<compile_context>
chip_gen: v7x
topology: tpu7x:2x2x1
jax: 0.10.0
libtpu: 0.0.40
codegen_flags: <defaults>
</compile_context>

<pallas_src>
import functools
import math

import jax
import jax.numpy as jnp
from jax.experimental import pallas as pl
from jax.experimental.pallas import tpu as pltpu


CPAD = 128          # channel padding -> lane width, carried layer to layer
HID = 128           # classifier hidden width (module spec)
NCLS_PAD = 128      # padded logits lane width (lane-dense final store)
OUT_ROWS = 8        # sublane-padded logits rows per image (row 0 is real)

CFG = [16, "M", 32, "M", 64, "M"]   # small cifar-style feature config
IN_CHANNELS = 3
NUM_CLASSES = 10


def _round_up(x, m):
    return (x + m - 1) // m * m


def _pitch(w):
    """Flat-layout row pitch for a width-w feature map: W+2 border, padded to 8."""
    return _round_up(w + 2, 8)


def _flat_rows(h, w):
    """#rows of the flat zero-bordered layout feeding a 3x3/pad=1 conv on (h, w)."""
    return (h + 2) * _pitch(w) + 8     # +8: room for the last (kh=2,kw=2) tap slice


# ---------------------------------------------------------------------------
# Fully fused VGG forward kernel (one grid step == one image)
# ---------------------------------------------------------------------------
def _vgg_kernel(x_ref, wc_ref, bc_ref, w1_ref, b1_ref, w2_ref, b2_ref, o_ref,
                *scratch, layers):
    # x_ref : (R1, CPAD) f32        flat zero-bordered input, row = ph*pitch + pw
    # wc_ref: (L, 9, CPAD, CPAD) bf16  conv taps, layout [cin, cout]
    # bc_ref: (L, 1, CPAD) f32
    # w1_ref: (n_pos*CPAD, HID) bf16   fc1 with torch flatten folded in
    # b1_ref: (1, HID) f32
    # w2_ref: (HID, NCLS_PAD) bf16
    # b2_ref: (1, NCLS_PAD) f32
    # o_ref : (OUT_ROWS, NCLS_PAD) f32 (row 0 holds the logits)
    # scratch: L conv accumulators (H_l*pitch_l, CPAD) f32, then L-1 staging
    #          buffers (R_{l+1}, CPAD) f32 holding the next layer's flat input.
    L = len(layers)
    accs = scratch[:L]
    acts = scratch[L:]

    # Staging buffers are uninitialized, per-core scratch; only their zero-border
    # rows matter and they are tiny VMEM blocks, so clear them every step (this
    # stays correct on megacore, where program_id==0 never runs on core 1).
    for a in acts:
        a[...] = jnp.zeros_like(a)

    src = x_ref
    for l, (H, W, pool) in enumerate(layers):
        pitch = _pitch(W)
        M = H * pitch                   # rows computed (cols w >= W are unused)
        acc = accs[l]

        # ---- conv3x3: in-kernel im2col -- 9 shifted contiguous slices, one MXU
        # matmul each, combined by a value-level pairwise tree sum (no per-tap
        # accumulator read-modify-write); bias + ReLU fused into the one store.
        parts = []
        for t in range(9):
            kh, kw = divmod(t, 3)
            tap = src[pl.ds(kh * pitch + kw, M), :].astype(jnp.bfloat16)
            parts.append(jnp.dot(tap, wc_ref[l, t],
                                 preferred_element_type=jnp.float32))
        while len(parts) > 1:
            nxt_parts = [parts[i] + parts[i + 1]
                         for i in range(0, len(parts) - 1, 2)]
            if len(parts) % 2:
                nxt_parts.append(parts[-1])
            parts = nxt_parts
        # padded channels carry zero weight & bias -> stay exactly 0 after ReLU
        acc[...] = jnp.maximum(parts[0] + bc_ref[l], 0.0)

        Ho, Wo = (H // 2, W // 2) if pool else (H, W)

        if l + 1 < L:
            # ---- epilogue: fused 2x2 maxpool, written straight into the next
            # layer's zero-bordered flat layout (data rows only; border stays 0).
            # TODO(synk): the pool=False intermediate path is not exercised by CFG.
            po = _pitch(layers[l + 1][1])
            dst = acts[l]
            for ho in range(Ho):
                if pool:
                    r0 = (2 * ho) * pitch
                    r1 = r0 + pitch
                    a = acc[pl.ds(r0, Wo, stride=2), :]
                    b = acc[pl.ds(r0 + 1, Wo, stride=2), :]
                    c = acc[pl.ds(r1, Wo, stride=2), :]
                    d = acc[pl.ds(r1 + 1, Wo, stride=2), :]
                    row = jnp.maximum(jnp.maximum(a, b), jnp.maximum(c, d))
                else:
                    row = acc[pl.ds(ho * pitch, Wo), :]
                dst[pl.ds((ho + 1) * po + 1, Wo), :] = row.astype(dst.dtype)
            src = dst
        else:
            # ---- classifier fused into the last conv epilogue ---------------
            # torch x.view(N,-1) flattening is folded into w1's packing, so the
            # pooled features are consumed position-major along the lane axis.
            feats = []
            for ho in range(Ho):
                for wo in range(Wo):
                    if pool:
                        r0 = (2 * ho) * pitch + 2 * wo
                        r1 = r0 + pitch
                        v = jnp.maximum(
                            jnp.maximum(acc[pl.ds(r0, 1), :],
                                        acc[pl.ds(r0 + 1, 1), :]),
                            jnp.maximum(acc[pl.ds(r1, 1), :],
                                        acc[pl.ds(r1 + 1, 1), :]))
                    else:
                        v = acc[pl.ds(ho * pitch + wo, 1), :]
                    feats.append(v)                           # (1, CPAD) f32
            feat = jnp.concatenate(feats, axis=1)             # (1, n_pos*CPAD)
            # Broadcast to 8 rows -> tile-aligned MXU M dimension; row 0 is kept.
            feat = jnp.broadcast_to(feat, (OUT_ROWS, feat.shape[1]))
            h = jnp.dot(feat.astype(jnp.bfloat16), w1_ref[...],
                        preferred_element_type=jnp.float32)
            h = jnp.maximum(h + b1_ref[...], 0.0)
            logits = jnp.dot(h.astype(jnp.bfloat16), w2_ref[...],
                             preferred_element_type=jnp.float32) + b2_ref[...]
            o_ref[...] = logits.astype(o_ref.dtype)


# ---------------------------------------------------------------------------
# Wrapper: geometry parsing, specs, scratch, pallas_call
# ---------------------------------------------------------------------------
def _parse_layers(cfg, H, W):
    layers = []
    items = list(cfg)
    idx = 0
    h, w = H, W
    while idx < len(items):
        v = items[idx]
        # TODO(synk): standalone / leading 'M' entries (no preceding conv) unsupported.
        assert v != "M", "cfg with un-fusable standalone max-pool not supported"
        pool = idx + 1 < len(items) and items[idx + 1] == "M"
        layers.append((h, w, pool))
        if pool:
            assert h % 2 == 0 and w % 2 == 0
            h, w = h // 2, w // 2
            idx += 2
        else:
            idx += 1
    return layers, h, w


def _prep_input(x_nchw):
    """One-time NCHW -> flat zero-bordered, lane-padded layout for the first conv."""
    N, C, H, W = x_nchw.shape
    assert C <= CPAD
    p = _pitch(W)
    x = jnp.transpose(x_nchw, (0, 2, 3, 1))                           # NHWC
    x = jnp.pad(x, ((0, 0), (1, 1), (1, p - W - 1), (0, CPAD - C)))   # border+pitch+lanes
    x = x.reshape(N, (H + 2) * p, CPAD)
    R = _flat_rows(H, W)
    return jnp.pad(x, ((0, 0), (0, R - (H + 2) * p), (0, 0)))


def vgg_forward(kparams, x_nchw, cfg, num_classes=NUM_CLASSES):
    N, _, H, W = x_nchw.shape
    layers, ho, wo = _parse_layers(cfg, H, W)
    n_pos = ho * wo
    conv_w, conv_b, w1p, b1p, w2p, b2p = kparams
    assert w1p.shape == (n_pos * CPAD, HID), (w1p.shape, n_pos)

    x_flat = _prep_input(x_nchw)
    R1 = x_flat.shape[1]

    scratch = [pltpu.VMEM((hh * _pitch(ww), CPAD), jnp.float32)
               for (hh, ww, _) in layers]
    scratch += [pltpu.VMEM((_flat_rows(hh, ww), CPAD), jnp.float32)
                for (hh, ww, _) in layers[1:]]

    flops = N * (sum(2 * 9 * hh * _pitch(ww) * CPAD * CPAD for (hh, ww, _) in layers)
                 + 2 * OUT_ROWS * (n_pos * CPAD * HID + HID * NCLS_PAD))
    bytes_accessed = (x_flat.size * 4 + conv_w.size * 2 + conv_b.size * 4
                      + w1p.size * 2 + b1p.size * 4 + w2p.size * 2 + b2p.size * 4
                      + N * OUT_ROWS * NCLS_PAD * 4)

    kernel = functools.partial(_vgg_kernel, layers=tuple(layers))
    out = pl.pallas_call(
        kernel,
        out_shape=jax.ShapeDtypeStruct((N, OUT_ROWS, NCLS_PAD), jnp.float32),
        grid_spec=pltpu.PrefetchScalarGridSpec(
            num_scalar_prefetch=0,
            grid=(N,),                          # one image per step; both v7x TCs busy
            in_specs=[
                pl.BlockSpec((None, R1, CPAD), lambda b: (b, 0, 0)),
                pl.BlockSpec(conv_w.shape, lambda b: (0, 0, 0, 0)),   # resident
                pl.BlockSpec(conv_b.shape, lambda b: (0, 0, 0)),      # resident
                pl.BlockSpec(w1p.shape, lambda b: (0, 0)),            # resident
                pl.BlockSpec(b1p.shape, lambda b: (0, 0)),
                pl.BlockSpec(w2p.shape, lambda b: (0, 0)),
                pl.BlockSpec(b2p.shape, lambda b: (0, 0)),
            ],
            out_specs=pl.BlockSpec((None, OUT_ROWS, NCLS_PAD), lambda b: (b, 0, 0)),
            scratch_shapes=scratch,
        ),
        compiler_params=pltpu.CompilerParams(dimension_semantics=("parallel",)),
        cost_estimate=pl.CostEstimate(
            flops=flops, transcendentals=0, bytes_accessed=bytes_accessed),
    )(x_flat, conv_w, conv_b, w1p, b1p, w2p, b2p)
    return out[:, 0, :num_classes]


# ---------------------------------------------------------------------------
# Parameter init (PyTorch-equivalent) and kernel-ready packing
# ---------------------------------------------------------------------------
def init_params(key, cfg, in_channels, num_classes, feature_size):
    """Torch-layout params with the same init distribution as the nn.Module."""
    params = {"convs": []}
    c = in_channels
    for v in cfg:
        if v == "M":
            continue
        key, kw = jax.random.split(key)
        n = 3 * 3 * v  # kernel_size[0]*kernel_size[1]*out_channels
        w = jax.random.normal(kw, (v, c, 3, 3), jnp.float32) * math.sqrt(2.0 / n)
        b = jnp.zeros((v,), jnp.float32)
        params["convs"].append((w, b))
        c = v
    key, k1, k2 = jax.random.split(key, 3)
    w1 = jax.random.normal(k1, (128, feature_size), jnp.float32) * math.sqrt(2.0 / feature_size)
    b1 = jnp.zeros((128,), jnp.float32)
    w2 = jax.random.normal(k2, (num_classes, 128), jnp.float32) * math.sqrt(2.0 / 128)
    b2 = jnp.zeros((num_classes,), jnp.float32)
    params["classifier"] = (w1, b1, w2, b2)
    return params


def prepare_params(params):
    """Pad / permute / bf16-cast weights once at setup (kernel-ready, resident)."""
    ws, bs = [], []
    c = None
    for (w, b) in params["convs"]:
        cout, cin = w.shape[0], w.shape[1]
        wt = jnp.transpose(w, (2, 3, 1, 0)).reshape(9, cin, cout)     # (tap, cin, cout)
        ws.append(jnp.pad(wt, ((0, 0), (0, CPAD - cin), (0, CPAD - cout))))
        bs.append(jnp.pad(b, (0, CPAD - cout)).reshape(1, CPAD))
        c = cout
    conv_w = jnp.stack(ws).astype(jnp.bfloat16)                       # (L, 9, CPAD, CPAD)
    conv_b = jnp.stack(bs).astype(jnp.float32)                        # (L, 1, CPAD)

    w1, b1, w2, b2 = params["classifier"]
    hid, num_classes = w1.shape[0], w2.shape[0]
    assert hid == HID and num_classes <= NCLS_PAD
    n_pos = w1.shape[1] // c
    # torch x.view(N,-1) flattens NCHW as (c, h, w); fold that permutation and the
    # channel padding into fc1 so the kernel consumes [pos-major, lane=channel].
    w1p = jnp.transpose(w1.reshape(hid, c, n_pos), (2, 1, 0))         # (pos, cin, hid)
    w1p = jnp.pad(w1p, ((0, 0), (0, CPAD - c), (0, 0)))
    w1p = w1p.reshape(n_pos * CPAD, hid).astype(jnp.bfloat16)         # (pos*CPAD, hid)
    b1p = b1.reshape(1, hid).astype(jnp.float32)
    w2p = jnp.pad(w2.T, ((0, 0), (0, NCLS_PAD - num_classes))).astype(jnp.bfloat16)
    b2p = jnp.pad(b2, (0, NCLS_PAD - num_classes)).reshape(1, NCLS_PAD).astype(jnp.float32)
    return (conv_w, conv_b, w1p, b1p, w2p, b2p)


# ---------------------------------------------------------------------------
# Pure-JAX f32 reference for correctness checking
# ---------------------------------------------------------------------------
def vgg_reference(params, x_nchw, cfg):
    x = jnp.transpose(x_nchw, (0, 2, 3, 1))
    ci = 0
    for v in cfg:
        if v == "M":
            x = jax.lax.reduce_window(
                x, -jnp.inf, jax.lax.max, (1, 2, 2, 1), (1, 2, 2, 1), "VALID")
        else:
            w, b = params["convs"][ci]
            ci += 1
            w_hwio = jnp.transpose(w, (2, 3, 1, 0))
            x = jax.lax.conv_general_dilated(
                x, w_hwio, (1, 1), "SAME",
                dimension_numbers=("NHWC", "HWIO", "NHWC")) + b
            x = jnp.maximum(x, 0.0)
    x = jnp.transpose(x, (0, 3, 1, 2)).reshape(x.shape[0], -1)
    w1, b1, w2, b2 = params["classifier"]
    x = jnp.maximum(x @ w1.T + b1, 0.0)
    return x @ w2.T + b2


if __name__ == "__main__":
    key = jax.random.PRNGKey(0)
    key, kx = jax.random.split(key)

    batch, spatial = 2, 16
    x = jax.random.normal(kx, (batch, IN_CHANNELS, spatial, spatial), jnp.float32)

    # spatial 16 -> 8 -> 4 -> 2 after three 'M'; final channels = 64
    feature_size = 64 * 2 * 2
    params = init_params(key, CFG, IN_CHANNELS, NUM_CLASSES, feature_size)
    kparams = prepare_params(params)

    fwd = jax.jit(lambda kp, xi: vgg_forward(kp, xi, CFG))
    out = jax.block_until_ready(fwd(kparams, x))
    assert out.shape == (batch, NUM_CLASSES), out.shape

    ref = jax.block_until_ready(vgg_reference(params, x, CFG))
    # bf16 MXU inputs (f32 accumulation) vs f32 reference -> slightly relaxed tol.
    assert jnp.allclose(out, ref, rtol=2e-2, atol=2e-2), (
        "Pallas VGG output mismatch vs JAX reference, max abs diff = "
        + str(float(jnp.max(jnp.abs(out - ref)))))

    print("KERNEL_OK")
</pallas_src>

<mosaic_0001>
module attributes {stable_mosaic.version = 11 : i64} {
  func.func @_vgg_kernel(%arg0: i32, %arg1: memref<1x440x128xf32, #tpu.memory_space<vmem>>, %arg2: memref<3x9x128x128xbf16, #tpu.memory_space<vmem>>, %arg3: memref<3x1x128xf32, #tpu.memory_space<vmem>>, %arg4: memref<512x128xbf16, #tpu.memory_space<vmem>>, %arg5: memref<1x128xf32, #tpu.memory_space<vmem>>, %arg6: memref<128x128xbf16, #tpu.memory_space<vmem>>, %arg7: memref<1x128xf32, #tpu.memory_space<vmem>>, %arg8: memref<1x8x128xf32, #tpu.memory_space<vmem>>, %arg9: memref<384x128xf32, #tpu.memory_space<vmem>>, %arg10: memref<128x128xf32, #tpu.memory_space<vmem>>, %arg11: memref<32x128xf32, #tpu.memory_space<vmem>>, %arg12: memref<168x128xf32, #tpu.memory_space<vmem>>, %arg13: memref<56x128xf32, #tpu.memory_space<vmem>>) attributes {dimension_semantics = [#tpu.dimension_semantics<parallel>], iteration_bounds = array<i64: 2>, scalar_prefetch = 0 : i64, scratch_operands = 5 : i64, tpu.core_type = #tpu.core_type<tc>, window_params = [{transform_indices = @transform_0, window_bounds = array<i64: 1, 440, 128>}, {pipeline_mode = #tpu.pipeline_mode<synchronous>, transform_indices = @transform_1, window_bounds = array<i64: 3, 9, 128, 128>}, {pipeline_mode = #tpu.pipeline_mode<synchronous>, transform_indices = @transform_2, window_bounds = array<i64: 3, 1, 128>}, {pipeline_mode = #tpu.pipeline_mode<synchronous>, transform_indices = @transform_3, window_bounds = array<i64: 512, 128>}, {pipeline_mode = #tpu.pipeline_mode<synchronous>, transform_indices = @transform_4, window_bounds = array<i64: 1, 128>}, {pipeline_mode = #tpu.pipeline_mode<synchronous>, transform_indices = @transform_5, window_bounds = array<i64: 128, 128>}, {pipeline_mode = #tpu.pipeline_mode<synchronous>, transform_indices = @transform_6, window_bounds = array<i64: 1, 128>}, {transform_indices = @transform_7, window_bounds = array<i64: 1, 8, 128>}]} {
    %cst = arith.constant 0.000000e+00 : f32
    %0 = vector.broadcast %cst : f32 to vector<168x128xf32>
    %c0 = arith.constant 0 : index
    %c0_0 = arith.constant 0 : index
    %1 = vector.load %arg12[%c0, %c0_0] : memref<168x128xf32, #tpu.memory_space<vmem>>, vector<168x128xf32>
    tpu.vector_store %arg12[%c0, %c0_0], %0 {strides = array<i32>} : memref<168x128xf32, #tpu.memory_space<vmem>>, vector<168x128xf32>,
    %cst_1 = arith.constant 0.000000e+00 : f32
    %2 = vector.broadcast %cst_1 : f32 to vector<56x128xf32>
    %c0_2 = arith.constant 0 : index
    %c0_3 = arith.constant 0 : index
    %3 = vector.load %arg13[%c0_2, %c0_3] : memref<56x128xf32, #tpu.memory_space<vmem>>, vector<56x128xf32>
    tpu.vector_store %arg13[%c0_2, %c0_3], %2 {strides = array<i32>} : memref<56x128xf32, #tpu.memory_space<vmem>>, vector<56x128xf32>,
    %c0_4 = arith.constant 0 : index
    %c0_5 = arith.constant 0 : index
    %c0_6 = arith.constant 0 : index
    %4 = vector.load %arg1[%c0_4, %c0_5, %c0_6] : memref<1x440x128xf32, #tpu.memory_space<vmem>>, vector<1x384x128xf32>
    %5 = vector.shape_cast %4 : vector<1x384x128xf32> to vector<384x128xf32>
    %6 = arith.truncf %5 : vector<384x128xf32> to vector<384x128xbf16>
    %c0_7 = arith.constant 0 : index
    %c0_8 = arith.constant 0 : index
    %c0_9 = arith.constant 0 : index
    %c0_10 = arith.constant 0 : index
    %7 = vector.load %arg2[%c0_7, %c0_8, %c0_9, %c0_10] : memref<3x9x128x128xbf16, #tpu.memory_space<vmem>>, vector<1x1x128x128xbf16>
    %8 = vector.shape_cast %7 : vector<1x1x128x128xbf16> to vector<128x128xbf16>
    %cst_11 = arith.constant dense<0.000000e+00> : vector<384x128xf32>
    %9 = tpu.matmul %6, %8, %cst_11 {dimension_numbers = #tpu.dot_dimension_numbers<[1], [0], [0], [1], [0, 0, 1, 1], [], []>} : vector<384x128xbf16>, vector<128x128xbf16>, vector<384x128xf32> -> vector<384x128xf32>
    %c0_12 = arith.constant 0 : index
    %c1 = arith.constant 1 : index
    %c0_13 = arith.constant 0 : index
    %10 = vector.load %arg1[%c0_12, %c1, %c0_13] : memref<1x440x128xf32, #tpu.memory_space<vmem>>, vector<1x384x128xf32>
    %11 = vector.shape_cast %10 : vector<1x384x128xf32> to vector<384x128xf32>
    %12 = arith.truncf %11 : vector<384x128xf32> to vector<384x128xbf16>
    %c0_14 = arith.constant 0 : index
    %c1_15 = arith.constant 1 : index
    %c0_16 = arith.constant 0 : index
    %c0_17 = arith.constant 0 : index
    %13 = vector.load %arg2[%c0_14, %c1_15, %c0_16, %c0_17] : memref<3x9x128x128xbf16, #tpu.memory_space<vmem>>, vector<1x1x128x128xbf16>
    %14 = vector.shape_cast %13 : vector<1x1x128x128xbf16> to vector<128x128xbf16>
    %cst_18 = arith.constant dense<0.000000e+00> : vector<384x128xf32>
    %15 = tpu.matmul %12, %14, %cst_18 {dimension_numbers = #tpu.dot_dimension_numbers<[1], [0], [0], [1], [0, 0, 1, 1], [], []>} : vector<384x128xbf16>, vector<128x128xbf16>, vector<384x128xf32> -> vector<384x128xf32>
    %c0_19 = arith.constant 0 : index
    %c2 = arith.constant 2 : index
    %c0_20 = arith.constant 0 : index
    %16 = vector.load %arg1[%c0_19, %c2, %c0_20] : memref<1x440x128xf32, #tpu.memory_space<vmem>>, vector<1x384x128xf32>
    %17 = vector.shape_cast %16 : vector<1x384x128xf32> to vector<384x128xf32>
    %18 = arith.truncf %17 : vector<384x128xf32> to vector<384x128xbf16>
    %c0_21 = arith.constant 0 : index
    %c2_22 = arith.constant 2 : index
    %c0_23 = arith.constant 0 : index
    %c0_24 = arith.constant 0 : index
    %19 = vector.load %arg2[%c0_21, %c2_22, %c0_23, %c0_24] : memref<3x9x128x128xbf16, #tpu.memory_space<vmem>>, vector<1x1x128x128xbf16>
    %20 = vector.shape_cast %19 : vector<1x1x128x128xbf16> to vector<128x128xbf16>
    %cst_25 = arith.constant dense<0.000000e+00> : vector<384x128xf32>
    %21 = tpu.matmul %18, %20, %cst_25 {dimension_numbers = #tpu.dot_dimension_numbers<[1], [0], [0], [1], [0, 0, 1, 1], [], []>} : vector<384x128xbf16>, vector<128x128xbf16>, vector<384x128xf32> -> vector<384x128xf32>
    %c0_26 = arith.constant 0 : index
    %c24 = arith.constant 24 : index
    %c0_27 = arith.constant 0 : index
    %22 = vector.load %arg1[%c0_26, %c24, %c0_27] : memref<1x440x128xf32, #tpu.memory_space<vmem>>, vector<1x384x128xf32>
    %23 = vector.shape_cast %22 : vector<1x384x128xf32> to vector<384x128xf32>
    %24 = arith.truncf %23 : vector<384x128xf32> to vector<384x128xbf16>
    %c0_28 = arith.constant 0 : index
    %c3 = arith.constant 3 : index
    %c0_29 = arith.constant 0 : index
    %c0_30 = arith.constant 0 : index
    %25 = vector.load %arg2[%c0_28, %c3, %c0_29, %c0_30] : memref<3x9x128x128xbf16, #tpu.memory_space<vmem>>, vector<1x1x128x128xbf16>
    %26 = vector.shape_cast %25 : vector<1x1x128x128xbf16> to vector<128x128xbf16>
    %cst_31 = arith.constant dense<0.000000e+00> : vector<384x128xf32>
    %27 = tpu.matmul %24, %26, %cst_31 {dimension_numbers = #tpu.dot_dimension_numbers<[1], [0], [0], [1], [0, 0, 1, 1], [], []>} : vector<384x128xbf16>, vector<128x128xbf16>, vector<384x128xf32> -> vector<384x128xf32>
    %c0_32 = arith.constant 0 : index
    %c25 = arith.constant 25 : index
    %c0_33 = arith.constant 0 : index
    %28 = vector.load %arg1[%c0_32, %c25, %c0_33] : memref<1x440x128xf32, #tpu.memory_space<vmem>>, vector<1x384x128xf32>
    %29 = vector.shape_cast %28 : vector<1x384x128xf32> to vector<384x128xf32>
    %30 = arith.truncf %29 : vector<384x128xf32> to vector<384x128xbf16>
    %c0_34 = arith.constant 0 : index
    %c4 = arith.constant 4 : index
    %c0_35 = arith.constant 0 : index
    %c0_36 = arith.constant 0 : index
    %31 = vector.load %arg2[%c0_34, %c4, %c0_35, %c0_36] : memref<3x9x128x128xbf16, #tpu.memory_space<vmem>>, vector<1x1x128x128xbf16>
    %32 = vector.shape_cast %31 : vector<1x1x128x128xbf16> to vector<128x128xbf16>
    %cst_37 = arith.constant dense<0.000000e+00> : vector<384x128xf32>
    %33 = tpu.matmul %30, %32, %cst_37 {dimension_numbers = #tpu.dot_dimension_numbers<[1], [0], [0], [1], [0, 0, 1, 1], [], []>} : vector<384x128xbf16>, vector<128x128xbf16>, vector<384x128xf32> -> vector<384x128xf32>
    %c0_38 = arith.constant 0 : index
    %c26 = arith.constant 26 : index
    %c0_39 = arith.constant 0 : index
    %34 = vector.load %arg1[%c0_38, %c26, %c0_39] : memref<1x440x128xf32, #tpu.memory_space<vmem>>, vector<1x384x128xf32>
    %35 = vector.shape_cast %34 : vector<1x384x128xf32> to vector<384x128xf32>
    %36 = arith.truncf %35 : vector<384x128xf32> to vector<384x128xbf16>
    %c0_40 = arith.constant 0 : index
    %c5 = arith.constant 5 : index
    %c0_41 = arith.constant 0 : index
    %c0_42 = arith.constant 0 : index
    %37 = vector.load %arg2[%c0_40, %c5, %c0_41, %c0_42] : memref<3x9x128x128xbf16, #tpu.memory_space<vmem>>, vector<1x1x128x128xbf16>
    %38 = vector.shape_cast %37 : vector<1x1x128x128xbf16> to vector<128x128xbf16>
    %cst_43 = arith.constant dense<0.000000e+00> : vector<384x128xf32>
    %39 = tpu.matmul %36, %38, %cst_43 {dimension_numbers = #tpu.dot_dimension_numbers<[1], [0], [0], [1], [0, 0, 1, 1], [], []>} : vector<384x128xbf16>, vector<128x128xbf16>, vector<384x128xf32> -> vector<384x128xf32>
    %c0_44 = arith.constant 0 : index
    %c48 = arith.constant 48 : index
    %c0_45 = arith.constant 0 : index
    %40 = vector.load %arg1[%c0_44, %c48, %c0_45] : memref<1x440x128xf32, #tpu.memory_space<vmem>>, vector<1x384x128xf32>
    %41 = vector.shape_cast %40 : vector<1x384x128xf32> to vector<384x128xf32>
    %42 = arith.truncf %41 : vector<384x128xf32> to vector<384x128xbf16>
    %c0_46 = arith.constant 0 : index
    %c6 = arith.constant 6 : index
    %c0_47 = arith.constant 0 : index
    %c0_48 = arith.constant 0 : index
    %43 = vector.load %arg2[%c0_46, %c6, %c0_47, %c0_48] : memref<3x9x128x128xbf16, #tpu.memory_space<vmem>>, vector<1x1x128x128xbf16>
    %44 = vector.shape_cast %43 : vector<1x1x128x128xbf16> to vector<128x128xbf16>
    %cst_49 = arith.constant dense<0.000000e+00> : vector<384x128xf32>
    %45 = tpu.matmul %42, %44, %cst_49 {dimension_numbers = #tpu.dot_dimension_numbers<[1], [0], [0], [1], [0, 0, 1, 1], [], []>} : vector<384x128xbf16>, vector<128x128xbf16>, vector<384x128xf32> -> vector<384x128xf32>
    %c0_50 = arith.constant 0 : index
    %c49 = arith.constant 49 : index
    %c0_51 = arith.constant 0 : index
    %46 = vector.load %arg1[%c0_50, %c49, %c0_51] : memref<1x440x128xf32, #tpu.memory_space<vmem>>, vector<1x384x128xf32>
    %47 = vector.shape_cast %46 : vector<1x384x128xf32> to vector<384x128xf32>
    %48 = arith.truncf %47 : vector<384x128xf32> to vector<384x128xbf16>
    %c0_52 = arith.constant 0 : index
    %c7 = arith.constant 7 : index
    %c0_53 = arith.constant 0 : index
    %c0_54 = arith.constant 0 : index
    %49 = vector.load %arg2[%c0_52, %c7, %c0_53, %c0_54] : memref<3x9x128x128xbf16, #tpu.memory_space<vmem>>, vector<1x1x128x128xbf16>
    %50 = vector.shape_cast %49 : vector<1x1x128x128xbf16> to vector<128x128xbf16>
    %cst_55 = arith.constant dense<0.000000e+00> : vector<384x128xf32>
    %51 = tpu.matmul %48, %50, %cst_55 {dimension_numbers = #tpu.dot_dimension_numbers<[1], [0], [0], [1], [0, 0, 1, 1], [], []>} : vector<384x128xbf16>, vector<128x128xbf16>, vector<384x128xf32> -> vector<384x128xf32>
    %c0_56 = arith.constant 0 : index
    %c50 = arith.constant 50 : index
    %c0_57 = arith.constant 0 : index
    %52 = vector.load %arg1[%c0_56, %c50, %c0_57] : memref<1x440x128xf32, #tpu.memory_space<vmem>>, vector<1x384x128xf32>
    %53 = vector.shape_cast %52 : vector<1x384x128xf32> to vector<384x128xf32>
    %54 = arith.truncf %53 : vector<384x128xf32> to vector<384x128xbf16>
    %c0_58 = arith.constant 0 : index
    %c8 = arith.constant 8 : index
    %c0_59 = arith.constant 0 : index
    %c0_60 = arith.constant 0 : index
    %55 = vector.load %arg2[%c0_58, %c8, %c0_59, %c0_60] : memref<3x9x128x128xbf16, #tpu.memory_space<vmem>>, vector<1x1x128x128xbf16>
    %56 = vector.shape_cast %55 : vector<1x1x128x128xbf16> to vector<128x128xbf16>
    %cst_61 = arith.constant dense<0.000000e+00> : vector<384x128xf32>
    %57 = tpu.matmul %54, %56, %cst_61 {dimension_numbers = #tpu.dot_dimension_numbers<[1], [0], [0], [1], [0, 0, 1, 1], [], []>} : vector<384x128xbf16>, vector<128x128xbf16>, vector<384x128xf32> -> vector<384x128xf32>
    %58 = arith.addf %9, %15 : vector<384x128xf32>
    %59 = arith.addf %21, %27 : vector<384x128xf32>
    %60 = arith.addf %33, %39 : vector<384x128xf32>
    %61 = arith.addf %45, %51 : vector<384x128xf32>
    %62 = arith.addf %58, %59 : vector<384x128xf32>
    %63 = arith.addf %60, %61 : vector<384x128xf32>
    %64 = arith.addf %62, %63 : vector<384x128xf32>
    %65 = arith.addf %64, %57 : vector<384x128xf32>
    %c0_62 = arith.constant 0 : index
    %c0_63 = arith.constant 0 : index
    %c0_64 = arith.constant 0 : index
    %66 = vector.load %arg3[%c0_62, %c0_63, %c0_64] : memref<3x1x128xf32, #tpu.memory_space<vmem>>, vector<1x1x128xf32>
    %67 = vector.shape_cast %66 : vector<1x1x128xf32> to vector<1x128xf32>
    %68 = vector.broadcast %67 : vector<1x128xf32> to vector<384x128xf32>
    %69 = arith.addf %65, %68 : vector<384x128xf32>
    %cst_65 = arith.constant 0.000000e+00 : f32
    %70 = vector.broadcast %cst_65 : f32 to vector<384x128xf32>
    %71 = arith.maximumf %69, %70 : vector<384x128xf32>
    %c0_66 = arith.constant 0 : index
    %c0_67 = arith.constant 0 : index
    %72 = vector.load %arg9[%c0_66, %c0_67] : memref<384x128xf32, #tpu.memory_space<vmem>>, vector<384x128xf32>
    tpu.vector_store %arg9[%c0_66, %c0_67], %71 {strides = array<i32>} : memref<384x128xf32, #tpu.memory_space<vmem>>, vector<384x128xf32>,
    %c0_68 = arith.constant 0 : index
    %c0_69 = arith.constant 0 : index
    %73 = tpu.strided_load %arg9[%c0_68, %c0_69] {strides = array<i32: 2, 1>} : memref<384x128xf32, #tpu.memory_space<vmem>>, vector<8x128xf32>
    %c1_70 = arith.constant 1 : index
    %c0_71 = arith.constant 0 : index
    %74 = tpu.strided_load %arg9[%c1_70, %c0_71] {strides = array<i32: 2, 1>} : memref<384x128xf32, #tpu.memory_space<vmem>>, vector<8x128xf32>
    %c24_72 = arith.constant 24 : index
    %c0_73 = arith.constant 0 : index
    %75 = tpu.strided_load %arg9[%c24_72, %c0_73] {strides = array<i32: 2, 1>} : memref<384x128xf32, #tpu.memory_space<vmem>>, vector<8x128xf32>
    %c25_74 = arith.constant 25 : index
    %c0_75 = arith.constant 0 : index
    %76 = tpu.strided_load %arg9[%c25_74, %c0_75] {strides = array<i32: 2, 1>} : memref<384x128xf32, #tpu.memory_space<vmem>>, vector<8x128xf32>
    %77 = arith.maximumf %73, %74 : vector<8x128xf32>
    %78 = arith.maximumf %75, %76 : vector<8x128xf32>
    %79 = arith.maximumf %77, %78 : vector<8x128xf32>
    %c17 = arith.constant 17 : index
    %c0_76 = arith.constant 0 : index
    %80 = vector.load %arg12[%c17, %c0_76] : memref<168x128xf32, #tpu.memory_space<vmem>>, vector<8x128xf32>
    tpu.vector_store %arg12[%c17, %c0_76], %79 {strides = array<i32>} : memref<168x128xf32, #tpu.memory_space<vmem>>, vector<8x128xf32>,
    %c48_77 = arith.constant 48 : index
    %c0_78 = arith.constant 0 : index
    %81 = tpu.strided_load %arg9[%c48_77, %c0_78] {strides = array<i32: 2, 1>} : memref<384x128xf32, #tpu.memory_space<vmem>>, vector<8x128xf32>
    %c49_79 = arith.constant 49 : index
    %c0_80 = arith.constant 0 : index
    %82 = tpu.strided_load %arg9[%c49_79, %c0_80] {strides = array<i32: 2, 1>} : memref<384x128xf32, #tpu.memory_space<vmem>>, vector<8x128xf32>
    %c72 = arith.constant 72 : index
    %c0_81 = arith.constant 0 : index
    %83 = tpu.strided_load %arg9[%c72, %c0_81] {strides = array<i32: 2, 1>} : memref<384x128xf32, #tpu.memory_space<vmem>>, vector<8x128xf32>
    %c73 = arith.constant 73 : index
    %c0_82 = arith.constant 0 : index
    %84 = tpu.strided_load %arg9[%c73, %c0_82] {strides = array<i32: 2, 1>} : memref<384x128xf32, #tpu.memory_space<vmem>>, vector<8x128xf32>
    %85 = arith.maximumf %81, %82 : vector<8x128xf32>
    %86 = arith.maximumf %83, %84 : vector<8x128xf32>
    %87 = arith.maximumf %85, %86 : vector<8x128xf32>
    %c33 = arith.constant 33 : index
    %c0_83 = arith.constant 0 : index
    %88 = vector.load %arg12[%c33, %c0_83] : memref<168x128xf32, #tpu.memory_space<vmem>>, vector<8x128xf32>
    tpu.vector_store %arg12[%c33, %c0_83], %87 {strides = array<i32>} : memref<168x128xf32, #tpu.memory_space<vmem>>, vector<8x128xf32>,
    %c96 = arith.constant 96 : index
    %c0_84 = arith.constant 0 : index
    %89 = tpu.strided_load %arg9[%c96, %c0_84] {strides = array<i32: 2, 1>} : memref<384x128xf32, #tpu.memory_space<vmem>>, vector<8x128xf32>
    %c97 = arith.constant 97 : index
    %c0_85 = arith.constant 0 : index
    %90 = tpu.strided_load %arg9[%c97, %c0_85] {strides = array<i32: 2, 1>} : memref<384x128xf32, #tpu.memory_space<vmem>>, vector<8x128xf32>
    %c120 = arith.constant 120 : index
    %c0_86 = arith.constant 0 : index
    %91 = tpu.strided_load %arg9[%c120, %c0_86] {strides = array<i32: 2, 1>} : memref<384x128xf32, #tpu.memory_space<vmem>>, vector<8x128xf32>
    %c121 = arith.constant 121 : index
    %c0_87 = arith.constant 0 : index
    %92 = tpu.strided_load %arg9[%c121, %c0_87] {strides = array<i32: 2, 1>} : memref<384x128xf32, #tpu.memory_space<vmem>>, vector<8x128xf32>
    %93 = arith.maximumf %89, %90 : vector<8x128xf32>
    %94 = arith.maximumf %91, %92 : vector<8x128xf32>
    %95 = arith.maximumf %93, %94 : vector<8x128xf32>
    %c49_88 = arith.constant 49 : index
    %c0_89 = arith.constant 0 : index
    %96 = vector.load %arg12[%c49_88, %c0_89] : memref<168x128xf32, #tpu.memory_space<vmem>>, vector<8x128xf32>
    tpu.vector_store %arg12[%c49_88, %c0_89], %95 {strides = array<i32>} : memref<168x128xf32, #tpu.memory_space<vmem>>, vector<8x128xf32>,
    %c144 = arith.constant 144 : index
    %c0_90 = arith.constant 0 : index
    %97 = tpu.strided_load %arg9[%c144, %c0_90] {strides = array<i32: 2, 1>} : memref<384x128xf32, #tpu.memory_space<vmem>>, vector<8x128xf32>
    %c145 = arith.constant 145 : index
    %c0_91 = arith.constant 0 : index
    %98 = tpu.strided_load %arg9[%c145, %c0_91] {strides = array<i32: 2, 1>} : memref<384x128xf32, #tpu.memory_space<vmem>>, vector<8x128xf32>
    %c168 = arith.constant 168 : index
    %c0_92 = arith.constant 0 : index
    %99 = tpu.strided_load %arg9[%c168, %c0_92] {strides = array<i32: 2, 1>} : memref<384x128xf32, #tpu.memory_space<vmem>>, vector<8x128xf32>
    %c169 = arith.constant 169 : index
    %c0_93 = arith.constant 0 : index
    %100 = tpu.strided_load %arg9[%c169, %c0_93] {strides = array<i32: 2, 1>} : memref<384x128xf32, #tpu.memory_space<vmem>>, vector<8x128xf32>
    %101 = arith.maximumf %97, %98 : vector<8x128xf32>
    %102 = arith.maximumf %99, %100 : vector<8x128xf32>
    %103 = arith.maximumf %101, %102 : vector<8x128xf32>
    %c65 = arith.constant 65 : index
    %c0_94 = arith.constant 0 : index
    %104 = vector.load %arg12[%c65, %c0_94] : memref<168x128xf32, #tpu.memory_space<vmem>>, vector<8x128xf32>
    tpu.vector_store %arg12[%c65, %c0_94], %103 {strides = array<i32>} : memref<168x128xf32, #tpu.memory_space<vmem>>, vector<8x128xf32>,
    %c192 = arith.constant 192 : index
    %c0_95 = arith.constant 0 : index
    %105 = tpu.strided_load %arg9[%c192, %c0_95] {strides = array<i32: 2, 1>} : memref<384x128xf32, #tpu.memory_space<vmem>>, vector<8x128xf32>
    %c193 = arith.constant 193 : index
    %c0_96 = arith.constant 0 : index
    %106 = tpu.strided_load %arg9[%c193, %c0_96] {strides = array<i32: 2, 1>} : memref<384x128xf32, #tpu.memory_space<vmem>>, vector<8x128xf32>
    %c216 = arith.constant 216 : index
    %c0_97 = arith.constant 0 : index
    %107 = tpu.strided_load %arg9[%c216, %c0_97] {strides = array<i32: 2, 1>} : memref<384x128xf32, #tpu.memory_space<vmem>>, vector<8x128xf32>
    %c217 = arith.constant 217 : index
    %c0_98 = arith.constant 0 : index
    %108 = tpu.strided_load %arg9[%c217, %c0_98] {strides = array<i32: 2, 1>} : memref<384x128xf32, #tpu.memory_space<vmem>>, vector<8x128xf32>
    %109 = arith.maximumf %105, %106 : vector<8x128xf32>
    %110 = arith.maximumf %107, %108 : vector<8x128xf32>
    %111 = arith.maximumf %109, %110 : vector<8x128xf32>
    %c81 = arith.constant 81 : index
    %c0_99 = arith.constant 0 : index
    %112 = vector.load %arg12[%c81, %c0_99] : memref<168x128xf32, #tpu.memory_space<vmem>>, vector<8x128xf32>
    tpu.vector_store %arg12[%c81, %c0_99], %111 {strides = array<i32>} : memref<168x128xf32, #tpu.memory_space<vmem>>, vector<8x128xf32>,
    %c240 = arith.constant 240 : index
    %c0_100 = arith.constant 0 : index
    %113 = tpu.strided_load %arg9[%c240, %c0_100] {strides = array<i32: 2, 1>} : memref<384x128xf32, #tpu.memory_space<vmem>>, vector<8x128xf32>
    %c241 = arith.constant 241 : index
    %c0_101 = arith.constant 0 : index
    %114 = tpu.strided_load %arg9[%c241, %c0_101] {strides = array<i32: 2, 1>} : memref<384x128xf32, #tpu.memory_space<vmem>>, vector<8x128xf32>
    %c264 = arith.constant 264 : index
    %c0_102 = arith.constant 0 : index
    %115 = tpu.strided_load %arg9[%c264, %c0_102] {strides = array<i32: 2, 1>} : memref<384x128xf32, #tpu.memory_space<vmem>>, vector<8x128xf32>
    %c265 = arith.constant 265 : index
    %c0_103 = arith.constant 0 : index
    %116 = tpu.strided_load %arg9[%c265, %c0_103] {strides = array<i32: 2, 1>} : memref<384x128xf32, #tpu.memory_space<vmem>>, vector<8x128xf32>
    %117 = arith.maximumf %113, %114 : vector<8x128xf32>
    %118 = arith.maximumf %115, %116 : vector<8x128xf32>
    %119 = arith.maximumf %117, %118 : vector<8x128xf32>
    %c97_104 = arith.constant 97 : index
    %c0_105 = arith.constant 0 : index
    %120 = vector.load %arg12[%c97_104, %c0_105] : memref<168x128xf32, #tpu.memory_space<vmem>>, vector<8x128xf32>
    tpu.vector_store %arg12[%c97_104, %c0_105], %119 {strides = array<i32>} : memref<168x128xf32, #tpu.memory_space<vmem>>, vector<8x128xf32>,
    %c288 = arith.constant 288 : index
    %c0_106 = arith.constant 0 : index
    %121 = tpu.strided_load %arg9[%c288, %c0_106] {strides = array<i32: 2, 1>} : memref<384x128xf32, #tpu.memory_space<vmem>>, vector<8x128xf32>
    %c289 = arith.constant 289 : index
    %c0_107 = arith.constant 0 : index
    %122 = tpu.strided_load %arg9[%c289, %c0_107] {strides = array<i32: 2, 1>} : memref<384x128xf32, #tpu.memory_space<vmem>>, vector<8x128xf32>
    %c312 = arith.constant 312 : index
    %c0_108 = arith.constant 0 : index
    %123 = tpu.strided_load %arg9[%c312, %c0_108] {strides = array<i32: 2, 1>} : memref<384x128xf32, #tpu.memory_space<vmem>>, vector<8x128xf32>
    %c313 = arith.constant 313 : index
    %c0_109 = arith.constant 0 : index
    %124 = tpu.strided_load %arg9[%c313, %c0_109] {strides = array<i32: 2, 1>} : memref<384x128xf32, #tpu.memory_space<vmem>>, vector<8x128xf32>
    %125 = arith.maximumf %121, %122 : vector<8x128xf32>
    %126 = arith.maximumf %123, %124 : vector<8x128xf32>
    %127 = arith.maximumf %125, %126 : vector<8x128xf32>
    %c113 = arith.constant 113 : index
    %c0_110 = arith.constant 0 : index
    %128 = vector.load %arg12[%c113, %c0_110] : memref<168x128xf32, #tpu.memory_space<vmem>>, vector<8x128xf32>
    tpu.vector_store %arg12[%c113, %c0_110], %127 {strides = array<i32>} : memref<168x128xf32, #tpu.memory_space<vmem>>, vector<8x128xf32>,
    %c336 = arith.constant 336 : index
    %c0_111 = arith.constant 0 : index
    %129 = tpu.strided_load %arg9[%c336, %c0_111] {strides = array<i32: 2, 1>} : memref<384x128xf32, #tpu.memory_space<vmem>>, vector<8x128xf32>
    %c337 = arith.constant 337 : index
    %c0_112 = arith.constant 0 : index
    %130 = tpu.strided_load %arg9[%c337, %c0_112] {strides = array<i32: 2, 1>} : memref<384x128xf32, #tpu.memory_space<vmem>>, vector<8x128xf32>
    %c360 = arith.constant 360 : index
    %c0_113 = arith.constant 0 : index
    %131 = tpu.strided_load %arg9[%c360, %c0_113] {strides = array<i32: 2, 1>} : memref<384x128xf32, #tpu.memory_space<vmem>>, vector<8x128xf32>
    %c361 = arith.constant 361 : index
    %c0_114 = arith.constant 0 : index
    %132 = tpu.strided_load %arg9[%c361, %c0_114] {strides = array<i32: 2, 1>} : memref<384x128xf32, #tpu.memory_space<vmem>>, vector<8x128xf32>
    %133 = arith.maximumf %129, %130 : vector<8x128xf32>
    %134 = arith.maximumf %131, %132 : vector<8x128xf32>
    %135 = arith.maximumf %133, %134 : vector<8x128xf32>
    %c129 = arith.constant 129 : index
    %c0_115 = arith.constant 0 : index
    %136 = vector.load %arg12[%c129, %c0_115] : memref<168x128xf32, #tpu.memory_space<vmem>>, vector<8x128xf32>
    tpu.vector_store %arg12[%c129, %c0_115], %135 {strides = array<i32>} : memref<168x128xf32, #tpu.memory_space<vmem>>, vector<8x128xf32>,
    %c0_116 = arith.constant 0 : index
    %c0_117 = arith.constant 0 : index
    %137 = vector.load %arg12[%c0_116, %c0_117] : memref<168x128xf32, #tpu.memory_space<vmem>>, vector<128x128xf32>
    %138 = arith.truncf %137 : vector<128x128xf32> to vector<128x128xbf16>
    %c1_118 = arith.constant 1 : index
    %c0_119 = arith.constant 0 : index
    %c0_120 = arith.constant 0 : index
    %c0_121 = arith.constant 0 : index
    %139 = vector.load %arg2[%c1_118, %c0_119, %c0_120, %c0_121] : memref<3x9x128x128xbf16, #tpu.memory_space<vmem>>, vector<1x1x128x128xbf16>
    %140 = vector.shape_cast %139 : vector<1x1x128x128xbf16> to vector<128x128xbf16>
    %cst_122 = arith.constant dense<0.000000e+00> : vector<128x128xf32>
    %141 = tpu.matmul %138, %140, %cst_122 {dimension_numbers = #tpu.dot_dimension_numbers<[1], [0], [0], [1], [0, 0, 1, 1], [], []>} : vector<128x128xbf16>, vector<128x128xbf16>, vector<128x128xf32> -> vector<128x128xf32>
    %c1_123 = arith.constant 1 : index
    %c0_124 = arith.constant 0 : index
    %142 = vector.load %arg12[%c1_123, %c0_124] : memref<168x128xf32, #tpu.memory_space<vmem>>, vector<128x128xf32>
    %143 = arith.truncf %142 : vector<128x128xf32> to vector<128x128xbf16>
    %c1_125 = arith.constant 1 : index
    %c1_126 = arith.constant 1 : index
    %c0_127 = arith.constant 0 : index
    %c0_128 = arith.constant 0 : index
    %144 = vector.load %arg2[%c1_125, %c1_126, %c0_127, %c0_128] : memref<3x9x128x128xbf16, #tpu.memory_space<vmem>>, vector<1x1x128x128xbf16>
    %145 = vector.shape_cast %144 : vector<1x1x128x128xbf16> to vector<128x128xbf16>
    %cst_129 = arith.constant dense<0.000000e+00> : vector<128x128xf32>
    %146 = tpu.matmul %143, %145, %cst_129 {dimension_numbers = #tpu.dot_dimension_numbers<[1], [0], [0], [1], [0, 0, 1, 1], [], []>} : vector<128x128xbf16>, vector<128x128xbf16>, vector<128x128xf32> -> vector<128x128xf32>
    %c2_130 = arith.constant 2 : index
    %c0_131 = arith.constant 0 : index
    %147 = vector.load %arg12[%c2_130, %c0_131] : memref<168x128xf32, #tpu.memory_space<vmem>>, vector<128x128xf32>
    %148 = arith.truncf %147 : vector<128x128xf32> to vector<128x128xbf16>
    %c1_132 = arith.constant 1 : index
    %c2_133 = arith.constant 2 : index
    %c0_134 = arith.constant 0 : index
    %c0_135 = arith.constant 0 : index
    %149 = vector.load %arg2[%c1_132, %c2_133, %c0_134, %c0_135] : memref<3x9x128x128xbf16, #tpu.memory_space<vmem>>, vector<1x1x128x128xbf16>
    %150 = vector.shape_cast %149 : vector<1x1x128x128xbf16> to vector<128x128xbf16>
    %cst_136 = arith.constant dense<0.000000e+00> : vector<128x128xf32>
    %151 = tpu.matmul %148, %150, %cst_136 {dimension_numbers = #tpu.dot_dimension_numbers<[1], [0], [0], [1], [0, 0, 1, 1], [], []>} : vector<128x128xbf16>, vector<128x128xbf16>, vector<128x128xf32> -> vector<128x128xf32>
    %c16 = arith.constant 16 : index
    %c0_137 = arith.constant 0 : index
    %152 = vector.load %arg12[%c16, %c0_137] : memref<168x128xf32, #tpu.memory_space<vmem>>, vector<128x128xf32>
    %153 = arith.truncf %152 : vector<128x128xf32> to vector<128x128xbf16>
    %c1_138 = arith.constant 1 : index
    %c3_139 = arith.constant 3 : index
    %c0_140 = arith.constant 0 : index
    %c0_141 = arith.constant 0 : index
    %154 = vector.load %arg2[%c1_138, %c3_139, %c0_140, %c0_141] : memref<3x9x128x128xbf16, #tpu.memory_space<vmem>>, vector<1x1x128x128xbf16>
    %155 = vector.shape_cast %154 : vector<1x1x128x128xbf16> to vector<128x128xbf16>
    %cst_142 = arith.constant dense<0.000000e+00> : vector<128x128xf32>
    %156 = tpu.matmul %153, %155, %cst_142 {dimension_numbers = #tpu.dot_dimension_numbers<[1], [0], [0], [1], [0, 0, 1, 1], [], []>} : vector<128x128xbf16>, vector<128x128xbf16>, vector<128x128xf32> -> vector<128x128xf32>
    %c17_143 = arith.constant 17 : index
    %c0_144 = arith.constant 0 : index
    %157 = vector.load %arg12[%c17_143, %c0_144] : memref<168x128xf32, #tpu.memory_space<vmem>>, vector<128x128xf32>
    %158 = arith.truncf %157 : vector<128x128xf32> to vector<128x128xbf16>
    %c1_145 = arith.constant 1 : index
    %c4_146 = arith.constant 4 : index
    %c0_147 = arith.constant 0 : index
    %c0_148 = arith.constant 0 : index
    %159 = vector.load %arg2[%c1_145, %c4_146, %c0_147, %c0_148] : memref<3x9x128x128xbf16, #tpu.memory_space<vmem>>, vector<1x1x128x128xbf16>
    %160 = vector.shape_cast %159 : vector<1x1x128x128xbf16> to vector<128x128xbf16>
    %cst_149 = arith.constant dense<0.000000e+00> : vector<128x128xf32>
    %161 = tpu.matmul %158, %160, %cst_149 {dimension_numbers = #tpu.dot_dimension_numbers<[1], [0], [0], [1], [0, 0, 1, 1], [], []>} : vector<128x128xbf16>, vector<128x128xbf16>, vector<128x128xf32> -> vector<128x128xf32>
    %c18 = arith.constant 18 : index
    %c0_150 = arith.constant 0 : index
    %162 = vector.load %arg12[%c18, %c0_150] : memref<168x128xf32, #tpu.memory_space<vmem>>, vector<128x128xf32>
    %163 = arith.truncf %162 : vector<128x128xf32> to vector<128x128xbf16>
    %c1_151 = arith.constant 1 : index
    %c5_152 = arith.constant 5 : index
    %c0_153 = arith.constant 0 : index
    %c0_154 = arith.constant 0 : index
    %164 = vector.load %arg2[%c1_151, %c5_152, %c0_153, %c0_154] : memref<3x9x128x128xbf16, #tpu.memory_space<vmem>>, vector<1x1x128x128xbf16>
    %165 = vector.shape_cast %164 : vector<1x1x128x128xbf16> to vector<128x128xbf16>
    %cst_155 = arith.constant dense<0.000000e+00> : vector<128x128xf32>
    %166 = tpu.matmul %163, %165, %cst_155 {dimension_numbers = #tpu.dot_dimension_numbers<[1], [0], [0], [1], [0, 0, 1, 1], [], []>} : vector<128x128xbf16>, vector<128x128xbf16>, vector<128x128xf32> -> vector<128x128xf32>
    %c32 = arith.constant 32 : index
    %c0_156 = arith.constant 0 : index
    %167 = vector.load %arg12[%c32, %c0_156] : memref<168x128xf32, #tpu.memory_space<vmem>>, vector<128x128xf32>
    %168 = arith.truncf %167 : vector<128x128xf32> to vector<128x128xbf16>
    %c1_157 = arith.constant 1 : index
    %c6_158 = arith.constant 6 : index
    %c0_159 = arith.constant 0 : index
    %c0_160 = arith.constant 0 : index
    %169 = vector.load %arg2[%c1_157, %c6_158, %c0_159, %c0_160] : memref<3x9x128x128xbf16, #tpu.memory_space<vmem>>, vector<1x1x128x128xbf16>
    %170 = vector.shape_cast %169 : vector<1x1x128x128xbf16> to vector<128x128xbf16>
    %cst_161 = arith.constant dense<0.000000e+00> : vector<128x128xf32>
    %171 = tpu.matmul %168, %170, %cst_161 {dimension_numbers = #tpu.dot_dimension_numbers<[1], [0], [0], [1], [0, 0, 1, 1], [], []>} : vector<128x128xbf16>, vector<128x128xbf16>, vector<128x128xf32> -> vector<128x128xf32>
    %c33_162 = arith.constant 33 : index
    %c0_163 = arith.constant 0 : index
    %172 = vector.load %arg12[%c33_162, %c0_163] : memref<168x128xf32, #tpu.memory_space<vmem>>, vector<128x128xf32>
    %173 = arith.truncf %172 : vector<128x128xf32> to vector<128x128xbf16>
    %c1_164 = arith.constant 1 : index
    %c7_165 = arith.constant 7 : index
    %c0_166 = arith.constant 0 : index
    %c0_167 = arith.constant 0 : index
    %174 = vector.load %arg2[%c1_164, %c7_165, %c0_166, %c0_167] : memref<3x9x128x128xbf16, #tpu.memory_space<vmem>>, vector<1x1x128x128xbf16>
    %175 = vector.shape_cast %174 : vector<1x1x128x128xbf16> to vector<128x128xbf16>
    %cst_168 = arith.constant dense<0.000000e+00> : vector<128x128xf32>
    %176 = tpu.matmul %173, %175, %cst_168 {dimension_numbers = #tpu.dot_dimension_numbers<[1], [0], [0], [1], [0, 0, 1, 1], [], []>} : vector<128x128xbf16>, vector<128x128xbf16>, vector<128x128xf32> -> vector<128x128xf32>
    %c34 = arith.constant 34 : index
    %c0_169 = arith.constant 0 : index
    %177 = vector.load %arg12[%c34, %c0_169] : memref<168x128xf32, #tpu.memory_space<vmem>>, vector<128x128xf32>
    %178 = arith.truncf %177 : vector<128x128xf32> to vector<128x128xbf16>
    %c1_170 = arith.constant 1 : index
    %c8_171 = arith.constant 8 : index
    %c0_172 = arith.constant 0 : index
    %c0_173 = arith.constant 0 : index
    %179 = vector.load %arg2[%c1_170, %c8_171, %c0_172, %c0_173] : memref<3x9x128x128xbf16, #tpu.memory_space<vmem>>, vector<1x1x128x128xbf16>
    %180 = vector.shape_cast %179 : vector<1x1x128x128xbf16> to vector<128x128xbf16>
    %cst_174 = arith.constant dense<0.000000e+00> : vector<128x128xf32>
    %181 = tpu.matmul %178, %180, %cst_174 {dimension_numbers = #tpu.dot_dimension_numbers<[1], [0], [0], [1], [0, 0, 1, 1], [], []>} : vector<128x128xbf16>, vector<128x128xbf16>, vector<128x128xf32> -> vector<128x128xf32>
    %182 = arith.addf %141, %146 : vector<128x128xf32>
    %183 = arith.addf %151, %156 : vector<128x128xf32>
    %184 = arith.addf %161, %166 : vector<128x128xf32>
    %185 = arith.addf %171, %176 : vector<128x128xf32>
    %186 = arith.addf %182, %183 : vector<128x128xf32>
    %187 = arith.addf %184, %185 : vector<128x128xf32>
    %188 = arith.addf %186, %187 : vector<128x128xf32>
    %189 = arith.addf %188, %181 : vector<128x128xf32>
    %c1_175 = arith.constant 1 : index
    %c0_176 = arith.constant 0 : index
    %c0_177 = arith.constant 0 : index
    %190 = vector.load %arg3[%c1_175, %c0_176, %c0_177] : memref<3x1x128xf32, #tpu.memory_space<vmem>>, vector<1x1x128xf32>
    %191 = vector.shape_cast %190 : vector<1x1x128xf32> to vector<1x128xf32>
    %192 = vector.broadcast %191 : vector<1x128xf32> to vector<128x128xf32>
    %193 = arith.addf %189, %192 : vector<128x128xf32>
    %cst_178 = arith.constant 0.000000e+00 : f32
    %194 = vector.broadcast %cst_178 : f32 to vector<128x128xf32>
    %195 = arith.maximumf %193, %194 : vector<128x128xf32>
    %c0_179 = arith.constant 0 : index
    %c0_180 = arith.constant 0 : index
    %196 = vector.load %arg10[%c0_179, %c0_180] : memref<128x128xf32, #tpu.memory_space<vmem>>, vector<128x128xf32>
    tpu.vector_store %arg10[%c0_179, %c0_180], %195 {strides = array<i32>} : memref<128x128xf32, #tpu.memory_space<vmem>>, vector<128x128xf32>,
    %c0_181 = arith.constant 0 : index
    %c0_182 = arith.constant 0 : index
    %197 = tpu.strided_load %arg10[%c0_181, %c0_182] {strides = array<i32: 2, 1>} : memref<128x128xf32, #tpu.memory_space<vmem>>, vector<4x128xf32>
    %c1_183 = arith.constant 1 : index
    %c0_184 = arith.constant 0 : index
    %198 = tpu.strided_load %arg10[%c1_183, %c0_184] {strides = array<i32: 2, 1>} : memref<128x128xf32, #tpu.memory_space<vmem>>, vector<4x128xf32>
    %c16_185 = arith.constant 16 : index
    %c0_186 = arith.constant 0 : index
    %199 = tpu.strided_load %arg10[%c16_185, %c0_186] {strides = array<i32: 2, 1>} : memref<128x128xf32, #tpu.memory_space<vmem>>, vector<4x128xf32>
    %c17_187 = arith.constant 17 : index
    %c0_188 = arith.constant 0 : index
    %200 = tpu.strided_load %arg10[%c17_187, %c0_188] {strides = array<i32: 2, 1>} : memref<128x128xf32, #tpu.memory_space<vmem>>, vector<4x128xf32>
    %201 = arith.maximumf %197, %198 : vector<4x128xf32>
    %202 = arith.maximumf %199, %200 : vector<4x128xf32>
    %203 = arith.maximumf %201, %202 : vector<4x128xf32>
    %c9 = arith.constant 9 : index
    %c0_189 = arith.constant 0 : index
    %204 = vector.load %arg13[%c9, %c0_189] : memref<56x128xf32, #tpu.memory_space<vmem>>, vector<4x128xf32>
    tpu.vector_store %arg13[%c9, %c0_189], %203 {strides = array<i32>} : memref<56x128xf32, #tpu.memory_space<vmem>>, vector<4x128xf32>,
    %c32_190 = arith.constant 32 : index
    %c0_191 = arith.constant 0 : index
    %205 = tpu.strided_load %arg10[%c32_190, %c0_191] {strides = array<i32: 2, 1>} : memref<128x128xf32, #tpu.memory_space<vmem>>, vector<4x128xf32>
    %c33_192 = arith.constant 33 : index
    %c0_193 = arith.constant 0 : index
    %206 = tpu.strided_load %arg10[%c33_192, %c0_193] {strides = array<i32: 2, 1>} : memref<128x128xf32, #tpu.memory_space<vmem>>, vector<4x128xf32>
    %c48_194 = arith.constant 48 : index
    %c0_195 = arith.constant 0 : index
    %207 = tpu.strided_load %arg10[%c48_194, %c0_195] {strides = array<i32: 2, 1>} : memref<128x128xf32, #tpu.memory_space<vmem>>, vector<4x128xf32>
    %c49_196 = arith.constant 49 : index
    %c0_197 = arith.constant 0 : index
    %208 = tpu.strided_load %arg10[%c49_196, %c0_197] {strides = array<i32: 2, 1>} : memref<128x128xf32, #tpu.memory_space<vmem>>, vector<4x128xf32>
    %209 = arith.maximumf %205, %206 : vector<4x128xf32>
    %210 = arith.maximumf %207, %208 : vector<4x128xf32>
    %211 = arith.maximumf %209, %210 : vector<4x128xf32>
    %c17_198 = arith.constant 17 : index
    %c0_199 = arith.constant 0 : index
    %212 = vector.load %arg13[%c17_198, %c0_199] : memref<56x128xf32, #tpu.memory_space<vmem>>, vector<4x128xf32>
    tpu.vector_store %arg13[%c17_198, %c0_199], %211 {strides = array<i32>} : memref<56x128xf32, #tpu.memory_space<vmem>>, vector<4x128xf32>,
    %c64 = arith.constant 64 : index
    %c0_200 = arith.constant 0 : index
    %213 = tpu.strided_load %arg10[%c64, %c0_200] {strides = array<i32: 2, 1>} : memref<128x128xf32, #tpu.memory_space<vmem>>, vector<4x128xf32>
    %c65_201 = arith.constant 65 : index
    %c0_202 = arith.constant 0 : index
    %214 = tpu.strided_load %arg10[%c65_201, %c0_202] {strides = array<i32: 2, 1>} : memref<128x128xf32, #tpu.memory_space<vmem>>, vector<4x128xf32>
    %c80 = arith.constant 80 : index
    %c0_203 = arith.constant 0 : index
    %215 = tpu.strided_load %arg10[%c80, %c0_203] {strides = array<i32: 2, 1>} : memref<128x128xf32, #tpu.memory_space<vmem>>, vector<4x128xf32>
    %c81_204 = arith.constant 81 : index
    %c0_205 = arith.constant 0 : index
    %216 = tpu.strided_load %arg10[%c81_204, %c0_205] {strides = array<i32: 2, 1>} : memref<128x128xf32, #tpu.memory_space<vmem>>, vector<4x128xf32>
    %217 = arith.maximumf %213, %214 : vector<4x128xf32>
    %218 = arith.maximumf %215, %216 : vector<4x128xf32>
    %219 = arith.maximumf %217, %218 : vector<4x128xf32>
    %c25_206 = arith.constant 25 : index
    %c0_207 = arith.constant 0 : index
    %220 = vector.load %arg13[%c25_206, %c0_207] : memref<56x128xf32, #tpu.memory_space<vmem>>, vector<4x128xf32>
    tpu.vector_store %arg13[%c25_206, %c0_207], %219 {strides = array<i32>} : memref<56x128xf32, #tpu.memory_space<vmem>>, vector<4x128xf32>,
    %c96_208 = arith.constant 96 : index
    %c0_209 = arith.constant 0 : index
    %221 = tpu.strided_load %arg10[%c96_208, %c0_209] {strides = array<i32: 2, 1>} : memref<128x128xf32, #tpu.memory_space<vmem>>, vector<4x128xf32>
    %c97_210 = arith.constant 97 : index
    %c0_211 = arith.constant 0 : index
    %222 = tpu.strided_load %arg10[%c97_210, %c0_211] {strides = array<i32: 2, 1>} : memref<128x128xf32, #tpu.memory_space<vmem>>, vector<4x128xf32>
    %c112 = arith.constant 112 : index
    %c0_212 = arith.constant 0 : index
    %223 = tpu.strided_load %arg10[%c112, %c0_212] {strides = array<i32: 2, 1>} : memref<128x128xf32, #tpu.memory_space<vmem>>, vector<4x128xf32>
    %c113_213 = arith.constant 113 : index
    %c0_214 = arith.constant 0 : index
    %224 = tpu.strided_load %arg10[%c113_213, %c0_214] {strides = array<i32: 2, 1>} : memref<128x128xf32, #tpu.memory_space<vmem>>, vector<4x128xf32>
    %225 = arith.maximumf %221, %222 : vector<4x128xf32>
    %226 = arith.maximumf %223, %224 : vector<4x128xf32>
    %227 = arith.maximumf %225, %226 : vector<4x128xf32>
    %c33_215 = arith.constant 33 : index
    %c0_216 = arith.constant 0 : index
    %228 = vector.load %arg13[%c33_215, %c0_216] : memref<56x128xf32, #tpu.memory_space<vmem>>, vector<4x128xf32>
    tpu.vector_store %arg13[%c33_215, %c0_216], %227 {strides = array<i32>} : memref<56x128xf32, #tpu.memory_space<vmem>>, vector<4x128xf32>,
    %c0_217 = arith.constant 0 : index
    %c0_218 = arith.constant 0 : index
    %229 = vector.load %arg13[%c0_217, %c0_218] : memref<56x128xf32, #tpu.memory_space<vmem>>, vector<32x128xf32>
    %230 = arith.truncf %229 : vector<32x128xf32> to vector<32x128xbf16>
    %c2_219 = arith.constant 2 : index
    %c0_220 = arith.constant 0 : index
    %c0_221 = arith.constant 0 : index
    %c0_222 = arith.constant 0 : index
    %231 = vector.load %arg2[%c2_219, %c0_220, %c0_221, %c0_222] : memref<3x9x128x128xbf16, #tpu.memory_space<vmem>>, vector<1x1x128x128xbf16>
    %232 = vector.shape_cast %231 : vector<1x1x128x128xbf16> to vector<128x128xbf16>
    %cst_223 = arith.constant dense<0.000000e+00> : vector<32x128xf32>
    %233 = tpu.matmul %230, %232, %cst_223 {dimension_numbers = #tpu.dot_dimension_numbers<[1], [0], [0], [1], [0, 0, 1, 1], [], []>} : vector<32x128xbf16>, vector<128x128xbf16>, vector<32x128xf32> -> vector<32x128xf32>
    %c1_224 = arith.constant 1 : index
    %c0_225 = arith.constant 0 : index
    %234 = vector.load %arg13[%c1_224, %c0_225] : memref<56x128xf32, #tpu.memory_space<vmem>>, vector<32x128xf32>
    %235 = arith.truncf %234 : vector<32x128xf32> to vector<32x128xbf16>
    %c2_226 = arith.constant 2 : index
    %c1_227 = arith.constant 1 : index
    %c0_228 = arith.constant 0 : index
    %c0_229 = arith.constant 0 : index
    %236 = vector.load %arg2[%c2_226, %c1_227, %c0_228, %c0_229] : memref<3x9x128x128xbf16, #tpu.memory_space<vmem>>, vector<1x1x128x128xbf16>
    %237 = vector.shape_cast %236 : vector<1x1x128x128xbf16> to vector<128x128xbf16>
    %cst_230 = arith.constant dense<0.000000e+00> : vector<32x128xf32>
    %238 = tpu.matmul %235, %237, %cst_230 {dimension_numbers = #tpu.dot_dimension_numbers<[1], [0], [0], [1], [0, 0, 1, 1], [], []>} : vector<32x128xbf16>, vector<128x128xbf16>, vector<32x128xf32> -> vector<32x128xf32>
    %c2_231 = arith.constant 2 : index
    %c0_232 = arith.constant 0 : index
    %239 = vector.load %arg13[%c2_231, %c0_232] : memref<56x128xf32, #tpu.memory_space<vmem>>, vector<32x128xf32>
    %240 = arith.truncf %239 : vector<32x128xf32> to vector<32x128xbf16>
    %c2_233 = arith.constant 2 : index
    %c2_234 = arith.constant 2 : index
    %c0_235 = arith.constant 0 : index
    %c0_236 = arith.constant 0 : index
    %241 = vector.load %arg2[%c2_233, %c2_234, %c0_235, %c0_236] : memref<3x9x128x128xbf16, #tpu.memory_space<vmem>>, vector<1x1x128x128xbf16>
    %242 = vector.shape_cast %241 : vector<1x1x128x128xbf16> to vector<128x128xbf16>
    %cst_237 = arith.constant dense<0.000000e+00> : vector<32x128xf32>
    %243 = tpu.matmul %240, %242, %cst_237 {dimension_numbers = #tpu.dot_dimension_numbers<[1], [0], [0], [1], [0, 0, 1, 1], [], []>} : vector<32x128xbf16>, vector<128x128xbf16>, vector<32x128xf32> -> vector<32x128xf32>
    %c8_238 = arith.constant 8 : index
    %c0_239 = arith.constant 0 : index
    %244 = vector.load %arg13[%c8_238, %c0_239] : memref<56x128xf32, #tpu.memory_space<vmem>>, vector<32x128xf32>
    %245 = arith.truncf %244 : vector<32x128xf32> to vector<32x128xbf16>
    %c2_240 = arith.constant 2 : index
    %c3_241 = arith.constant 3 : index
    %c0_242 = arith.constant 0 : index
    %c0_243 = arith.constant 0 : index
    %246 = vector.load %arg2[%c2_240, %c3_241, %c0_242, %c0_243] : memref<3x9x128x128xbf16, #tpu.memory_space<vmem>>, vector<1x1x128x128xbf16>
    %247 = vector.shape_cast %246 : vector<1x1x128x128xbf16> to vector<128x128xbf16>
    %cst_244 = arith.constant dense<0.000000e+00> : vector<32x128xf32>
    %248 = tpu.matmul %245, %247, %cst_244 {dimension_numbers = #tpu.dot_dimension_numbers<[1], [0], [0], [1], [0, 0, 1, 1], [], []>} : vector<32x128xbf16>, vector<128x128xbf16>, vector<32x128xf32> -> vector<32x128xf32>
    %c9_245 = arith.constant 9 : index
    %c0_246 = arith.constant 0 : index
    %249 = vector.load %arg13[%c9_245, %c0_246] : memref<56x128xf32, #tpu.memory_space<vmem>>, vector<32x128xf32>
    %250 = arith.truncf %249 : vector<32x128xf32> to vector<32x128xbf16>
    %c2_247 = arith.constant 2 : index
    %c4_248 = arith.constant 4 : index
    %c0_249 = arith.constant 0 : index
    %c0_250 = arith.constant 0 : index
    %251 = vector.load %arg2[%c2_247, %c4_248, %c0_249, %c0_250] : memref<3x9x128x128xbf16, #tpu.memory_space<vmem>>, vector<1x1x128x128xbf16>
    %252 = vector.shape_cast %251 : vector<1x1x128x128xbf16> to vector<128x128xbf16>
    %cst_251 = arith.constant dense<0.000000e+00> : vector<32x128xf32>
    %253 = tpu.matmul %250, %252, %cst_251 {dimension_numbers = #tpu.dot_dimension_numbers<[1], [0], [0], [1], [0, 0, 1, 1], [], []>} : vector<32x128xbf16>, vector<128x128xbf16>, vector<32x128xf32> -> vector<32x128xf32>
    %c10 = arith.constant 10 : index
    %c0_252 = arith.constant 0 : index
    %254 = vector.load %arg13[%c10, %c0_252] : memref<56x128xf32, #tpu.memory_space<vmem>>, vector<32x128xf32>
    %255 = arith.truncf %254 : vector<32x128xf32> to vector<32x128xbf16>
    %c2_253 = arith.constant 2 : index
    %c5_254 = arith.constant 5 : index
    %c0_255 = arith.constant 0 : index
    %c0_256 = arith.constant 0 : index
    %256 = vector.load %arg2[%c2_253, %c5_254, %c0_255, %c0_256] : memref<3x9x128x128xbf16, #tpu.memory_space<vmem>>, vector<1x1x128x128xbf16>
    %257 = vector.shape_cast %256 : vector<1x1x128x128xbf16> to vector<128x128xbf16>
    %cst_257 = arith.constant dense<0.000000e+00> : vector<32x128xf32>
    %258 = tpu.matmul %255, %257, %cst_257 {dimension_numbers = #tpu.dot_dimension_numbers<[1], [0], [0], [1], [0, 0, 1, 1], [], []>} : vector<32x128xbf16>, vector<128x128xbf16>, vector<32x128xf32> -> vector<32x128xf32>
    %c16_258 = arith.constant 16 : index
    %c0_259 = arith.constant 0 : index
    %259 = vector.load %arg13[%c16_258, %c0_259] : memref<56x128xf32, #tpu.memory_space<vmem>>, vector<32x128xf32>
    %260 = arith.truncf %259 : vector<32x128xf32> to vector<32x128xbf16>
    %c2_260 = arith.constant 2 : index
    %c6_261 = arith.constant 6 : index
    %c0_262 = arith.constant 0 : index
    %c0_263 = arith.constant 0 : index
    %261 = vector.load %arg2[%c2_260, %c6_261, %c0_262, %c0_263] : memref<3x9x128x128xbf16, #tpu.memory_space<vmem>>, vector<1x1x128x128xbf16>
    %262 = vector.shape_cast %261 : vector<1x1x128x128xbf16> to vector<128x128xbf16>
    %cst_264 = arith.constant dense<0.000000e+00> : vector<32x128xf32>
    %263 = tpu.matmul %260, %262, %cst_264 {dimension_numbers = #tpu.dot_dimension_numbers<[1], [0], [0], [1], [0, 0, 1, 1], [], []>} : vector<32x128xbf16>, vector<128x128xbf16>, vector<32x128xf32> -> vector<32x128xf32>
    %c17_265 = arith.constant 17 : index
    %c0_266 = arith.constant 0 : index
    %264 = vector.load %arg13[%c17_265, %c0_266] : memref<56x128xf32, #tpu.memory_space<vmem>>, vector<32x128xf32>
    %265 = arith.truncf %264 : vector<32x128xf32> to vector<32x128xbf16>
    %c2_267 = arith.constant 2 : index
    %c7_268 = arith.constant 7 : index
    %c0_269 = arith.constant 0 : index
    %c0_270 = arith.constant 0 : index
    %266 = vector.load %arg2[%c2_267, %c7_268, %c0_269, %c0_270] : memref<3x9x128x128xbf16, #tpu.memory_space<vmem>>, vector<1x1x128x128xbf16>
    %267 = vector.shape_cast %266 : vector<1x1x128x128xbf16> to vector<128x128xbf16>
    %cst_271 = arith.constant dense<0.000000e+00> : vector<32x128xf32>
    %268 = tpu.matmul %265, %267, %cst_271 {dimension_numbers = #tpu.dot_dimension_numbers<[1], [0], [0], [1], [0, 0, 1, 1], [], []>} : vector<32x128xbf16>, vector<128x128xbf16>, vector<32x128xf32> -> vector<32x128xf32>
    %c18_272 = arith.constant 18 : index
    %c0_273 = arith.constant 0 : index
    %269 = vector.load %arg13[%c18_272, %c0_273] : memref<56x128xf32, #tpu.memory_space<vmem>>, vector<32x128xf32>
    %270 = arith.truncf %269 : vector<32x128xf32> to vector<32x128xbf16>
    %c2_274 = arith.constant 2 : index
    %c8_275 = arith.constant 8 : index
    %c0_276 = arith.constant 0 : index
    %c0_277 = arith.constant 0 : index
    %271 = vector.load %arg2[%c2_274, %c8_275, %c0_276, %c0_277] : memref<3x9x128x128xbf16, #tpu.memory_space<vmem>>, vector<1x1x128x128xbf16>
    %272 = vector.shape_cast %271 : vector<1x1x128x128xbf16> to vector<128x128xbf16>
    %cst_278 = arith.constant dense<0.000000e+00> : vector<32x128xf32>
    %273 = tpu.matmul %270, %272, %cst_278 {dimension_numbers = #tpu.dot_dimension_numbers<[1], [0], [0], [1], [0, 0, 1, 1], [], []>} : vector<32x128xbf16>, vector<128x128xbf16>, vector<32x128xf32> -> vector<32x128xf32>
    %274 = arith.addf %233, %238 : vector<32x128xf32>
    %275 = arith.addf %243, %248 : vector<32x128xf32>
    %276 = arith.addf %253, %258 : vector<32x128xf32>
    %277 = arith.addf %263, %268 : vector<32x128xf32>
    %278 = arith.addf %274, %275 : vector<32x128xf32>
    %279 = arith.addf %276, %277 : vector<32x128xf32>
    %280 = arith.addf %278, %279 : vector<32x128xf32>
    %281 = arith.addf %280, %273 : vector<32x128xf32>
    %c2_279 = arith.constant 2 : index
    %c0_280 = arith.constant 0 : index
    %c0_281 = arith.constant 0 : index
    %282 = vector.load %arg3[%c2_279, %c0_280, %c0_281] : memref<3x1x128xf32, #tpu.memory_space<vmem>>, vector<1x1x128xf32>
    %283 = vector.shape_cast %282 : vector<1x1x128xf32> to vector<1x128xf32>
    %284 = vector.broadcast %283 : vector<1x128xf32> to vector<32x128xf32>
    %285 = arith.addf %281, %284 : vector<32x128xf32>
    %cst_282 = arith.constant 0.000000e+00 : f32
    %286 = vector.broadcast %cst_282 : f32 to vector<32x128xf32>
    %287 = arith.maximumf %285, %286 : vector<32x128xf32>
    %c0_283 = arith.constant 0 : index
    %c0_284 = arith.constant 0 : index
    %288 = vector.load %arg11[%c0_283, %c0_284] : memref<32x128xf32, #tpu.memory_space<vmem>>, vector<32x128xf32>
    tpu.vector_store %arg11[%c0_283, %c0_284], %287 {strides = array<i32>} : memref<32x128xf32, #tpu.memory_space<vmem>>, vector<32x128xf32>,
    %c0_285 = arith.constant 0 : index
    %c0_286 = arith.constant 0 : index
    %289 = vector.load %arg11[%c0_285, %c0_286] : memref<32x128xf32, #tpu.memory_space<vmem>>, vector<1x128xf32>
    %c1_287 = arith.constant 1 : index
    %c0_288 = arith.constant 0 : index
    %290 = vector.load %arg11[%c1_287, %c0_288] : memref<32x128xf32, #tpu.memory_space<vmem>>, vector<1x128xf32>
    %291 = arith.maximumf %289, %290 : vector<1x128xf32>
    %c8_289 = arith.constant 8 : index
    %c0_290 = arith.constant 0 : index
    %292 = vector.load %arg11[%c8_289, %c0_290] : memref<32x128xf32, #tpu.memory_space<vmem>>, vector<1x128xf32>
    %c9_291 = arith.constant 9 : index
    %c0_292 = arith.constant 0 : index
    %293 = vector.load %arg11[%c9_291, %c0_292] : memref<32x128xf32, #tpu.memory_space<vmem>>, vector<1x128xf32>
    %294 = arith.maximumf %292, %293 : vector<1x128xf32>
    %295 = arith.maximumf %291, %294 : vector<1x128xf32>
    %c2_293 = arith.constant 2 : index
    %c0_294 = arith.constant 0 : index
    %296 = vector.load %arg11[%c2_293, %c0_294] : memref<32x128xf32, #tpu.memory_space<vmem>>, vector<1x128xf32>
    %c3_295 = arith.constant 3 : index
    %c0_296 = arith.constant 0 : index
    %297 = vector.load %arg11[%c3_295, %c0_296] : memref<32x128xf32, #tpu.memory_space<vmem>>, vector<1x128xf32>
    %298 = arith.maximumf %296, %297 : vector<1x128xf32>
    %c10_297 = arith.constant 10 : index
    %c0_298 = arith.constant 0 : index
    %299 = vector.load %arg11[%c10_297, %c0_298] : memref<32x128xf32, #tpu.memory_space<vmem>>, vector<1x128xf32>
    %c11 = arith.constant 11 : index
    %c0_299 = arith.constant 0 : index
    %300 = vector.load %arg11[%c11, %c0_299] : memref<32x128xf32, #tpu.memory_space<vmem>>, vector<1x128xf32>
    %301 = arith.maximumf %299, %300 : vector<1x128xf32>
    %302 = arith.maximumf %298, %301 : vector<1x128xf32>
    %c16_300 = arith.constant 16 : index
    %c0_301 = arith.constant 0 : index
    %303 = vector.load %arg11[%c16_300, %c0_301] : memref<32x128xf32, #tpu.memory_space<vmem>>, vector<1x128xf32>
    %c17_302 = arith.constant 17 : index
    %c0_303 = arith.constant 0 : index
    %304 = vector.load %arg11[%c17_302, %c0_303] : memref<32x128xf32, #tpu.memory_space<vmem>>, vector<1x128xf32>
    %305 = arith.maximumf %303, %304 : vector<1x128xf32>
    %c24_304 = arith.constant 24 : index
    %c0_305 = arith.constant 0 : index
    %306 = vector.load %arg11[%c24_304, %c0_305] : memref<32x128xf32, #tpu.memory_space<vmem>>, vector<1x128xf32>
    %c25_306 = arith.constant 25 : index
    %c0_307 = arith.constant 0 : index
    %307 = vector.load %arg11[%c25_306, %c0_307] : memref<32x128xf32, #tpu.memory_space<vmem>>, vector<1x128xf32>
    %308 = arith.maximumf %306, %307 : vector<1x128xf32>
    %309 = arith.maximumf %305, %308 : vector<1x128xf32>
    %c18_308 = arith.constant 18 : index
    %c0_309 = arith.constant 0 : index
    %310 = vector.load %arg11[%c18_308, %c0_309] : memref<32x128xf32, #tpu.memory_space<vmem>>, vector<1x128xf32>
    %c19 = arith.constant 19 : index
    %c0_310 = arith.constant 0 : index
    %311 = vector.load %arg11[%c19, %c0_310] : memref<32x128xf32, #tpu.memory_space<vmem>>, vector<1x128xf32>
    %312 = arith.maximumf %310, %311 : vector<1x128xf32>
    %c26_311 = arith.constant 26 : index
    %c0_312 = arith.constant 0 : index
    %313 = vector.load %arg11[%c26_311, %c0_312] : memref<32x128xf32, #tpu.memory_space<vmem>>, vector<1x128xf32>
    %c27 = arith.constant 27 : index
    %c0_313 = arith.constant 0 : index
    %314 = vector.load %arg11[%c27, %c0_313] : memref<32x128xf32, #tpu.memory_space<vmem>>, vector<1x128xf32>
    %315 = arith.maximumf %313, %314 : vector<1x128xf32>
    %316 = arith.maximumf %312, %315 : vector<1x128xf32>
    %317 = tpu.concatenate %295, %302, %309, %316 in 1 : vector<1x128xf32>, vector<1x128xf32>, vector<1x128xf32>, vector<1x128xf32> -> vector<1x512xf32>
    %318 = vector.shape_cast %317 : vector<1x512xf32> to vector<1x512xf32>
    %319 = vector.broadcast %318 : vector<1x512xf32> to vector<8x512xf32>
    %320 = arith.truncf %319 : vector<8x512xf32> to vector<8x512xbf16>
    %c0_314 = arith.constant 0 : index
    %c0_315 = arith.constant 0 : index
    %321 = vector.load %arg4[%c0_314, %c0_315] : memref<512x128xbf16, #tpu.memory_space<vmem>>, vector<512x128xbf16>
    %cst_316 = arith.constant dense<0.000000e+00> : vector<8x128xf32>
    %322 = tpu.matmul %320, %321, %cst_316 {dimension_numbers = #tpu.dot_dimension_numbers<[1], [0], [0], [1], [0, 0, 1, 1], [], []>} : vector<8x512xbf16>, vector<512x128xbf16>, vector<8x128xf32> -> vector<8x128xf32>
    %c0_317 = arith.constant 0 : index
    %c0_318 = arith.constant 0 : index
    %323 = vector.load %arg5[%c0_317, %c0_318] : memref<1x128xf32, #tpu.memory_space<vmem>>, vector<1x128xf32>
    %324 = vector.broadcast %323 : vector<1x128xf32> to vector<8x128xf32>
    %325 = arith.addf %322, %324 : vector<8x128xf32>
    %cst_319 = arith.constant 0.000000e+00 : f32
    %326 = vector.broadcast %cst_319 : f32 to vector<8x128xf32>
    %327 = arith.maximumf %325, %326 : vector<8x128xf32>
    %328 = arith.truncf %327 : vector<8x128xf32> to vector<8x128xbf16>
    %c0_320 = arith.constant 0 : index
    %c0_321 = arith.constant 0 : index
    %329 = vector.load %arg6[%c0_320, %c0_321] : memref<128x128xbf16, #tpu.memory_space<vmem>>, vector<128x128xbf16>
    %cst_322 = arith.constant dense<0.000000e+00> : vector<8x128xf32>
    %330 = tpu.matmul %328, %329, %cst_322 {dimension_numbers = #tpu.dot_dimension_numbers<[1], [0], [0], [1], [0, 0, 1, 1], [], []>} : vector<8x128xbf16>, vector<128x128xbf16>, vector<8x128xf32> -> vector<8x128xf32>
    %c0_323 = arith.constant 0 : index
    %c0_324 = arith.constant 0 : index
    %331 = vector.load %arg7[%c0_323, %c0_324] : memref<1x128xf32, #tpu.memory_space<vmem>>, vector<1x128xf32>
    %332 = vector.broadcast %331 : vector<1x128xf32> to vector<8x128xf32>
    %333 = arith.addf %330, %332 : vector<8x128xf32>
    %c0_325 = arith.constant 0 : index
    %c0_326 = arith.constant 0 : index
    %c0_327 = arith.constant 0 : index
    %334 = vector.load %arg8[%c0_325, %c0_326, %c0_327] : memref<1x8x128xf32, #tpu.memory_space<vmem>>, vector<1x8x128xf32>
    %335 = vector.shape_cast %334 : vector<1x8x128xf32> to vector<8x128xf32>
    %336 = vector.shape_cast %333 : vector<8x128xf32> to vector<1x8x128xf32>
    tpu.vector_store %arg8[%c0_325, %c0_326, %c0_327], %336 {strides = array<i32>} : memref<1x8x128xf32, #tpu.memory_space<vmem>>, vector<1x8x128xf32>,
    return
  }
  func.func @transform_0(%arg0: i32) -> (i32, i32, i32) {
    %c0_i32 = arith.constant 0 : i32
    %c0_i32_0 = arith.constant 0 : i32
    %c0_i32_1 = arith.constant 0 : i32
    return %arg0, %c0_i32, %c0_i32_0 : i32, i32, i32
  }
  func.func @transform_1(%arg0: i32) -> (i32, i32, i32, i32) {
    %c0_i32 = arith.constant 0 : i32
    %c0_i32_0 = arith.constant 0 : i32
    %c0_i32_1 = arith.constant 0 : i32
    %c0_i32_2 = arith.constant 0 : i32
    %c0_i32_3 = arith.constant 0 : i32
    return %c0_i32, %c0_i32_0, %c0_i32_1, %c0_i32_2 : i32, i32, i32, i32
  }
  func.func @transform_2(%arg0: i32) -> (i32, i32, i32) {
    %c0_i32 = arith.constant 0 : i32
    %c0_i32_0 = arith.constant 0 : i32
    %c0_i32_1 = arith.constant 0 : i32
    %c0_i32_2 = arith.constant 0 : i32
    return %c0_i32, %c0_i32_0, %c0_i32_1 : i32, i32, i32
  }
  func.func @transform_3(%arg0: i32) -> (i32, i32) {
    %c0_i32 = arith.constant 0 : i32
    %c0_i32_0 = arith.constant 0 : i32
    %c0_i32_1 = arith.constant 0 : i32
    return %c0_i32, %c0_i32_0 : i32, i32
  }
  func.func @transform_4(%arg0: i32) -> (i32, i32) {
    %c0_i32 = arith.constant 0 : i32
    %c0_i32_0 = arith.constant 0 : i32
    %c0_i32_1 = arith.constant 0 : i32
    return %c0_i32, %c0_i32_0 : i32, i32
  }
  func.func @transform_5(%arg0: i32) -> (i32, i32) {
    %c0_i32 = arith.constant 0 : i32
    %c0_i32_0 = arith.constant 0 : i32
    %c0_i32_1 = arith.constant 0 : i32
    return %c0_i32, %c0_i32_0 : i32, i32
  }
  func.func @transform_6(%arg0: i32) -> (i32, i32) {
    %c0_i32 = arith.constant 0 : i32
    %c0_i32_0 = arith.constant 0 : i32
    %c0_i32_1 = arith.constant 0 : i32
    return %c0_i32, %c0_i32_0 : i32, i32
  }
  func.func @transform_7(%arg0: i32) -> (i32, i32, i32) {
    %c0_i32 = arith.constant 0 : i32
    %c0_i32_0 = arith.constant 0 : i32
    %c0_i32_1 = arith.constant 0 : i32
    return %arg0, %c0_i32, %c0_i32_0 : i32, i32, i32
  }
}

</mosaic_0001>

<llo_original>
// kernel: _lambda_.1
$region0: #{_lambda_.1}
  #allocation0 [shape = 'u32[]', space=smem, size = 0x4, offset = 0x4, fixed_abs, tag = 'smem constant byte address 0x4 - core index']
  #allocation1 [shape = 'u32[144,128]{1,0:T(1,128)}', space=vmem, size = 0x12000, scoped, tag = 'internal scratch']
  #allocation2 [shape = 'f32[384,128]{1,0:T(8,128)}', space=vmem, size = 0x30000, scoped, tag = 'scratch operand']
  #allocation3 [shape = 'f32[128,128]{1,0:T(8,128)}', space=vmem, size = 0x10000, scoped, tag = 'scratch operand']
  #allocation4 [shape = 'f32[32,128]{1,0:T(8,128)}', space=vmem, size = 0x4000, scoped, tag = 'scratch operand']
  #allocation5 [shape = 'f32[168,128]{1,0:T(8,128)}', space=vmem, size = 0x15000, scoped, tag = 'scratch operand']
  #allocation6 [shape = 'f32[56,128]{1,0:T(8,128)}', space=vmem, size = 0x7000, scoped, tag = 'scratch operand']
  %s0 = inlined_call_operand.vmem [shape: f32[2,440,128], index: 0, kind: input, shape index: {}]
  %s1 = inlined_call_operand.vmem [shape: bf16[3,9,128,128], index: 1, kind: input, shape index: {}]
  %s2 = inlined_call_operand.vmem [shape: f32[3,1,128], index: 2, kind: input, shape index: {}]
  %s3 = inlined_call_operand.vmem [shape: bf16[512,128], index: 3, kind: input, shape index: {}]
  %s4 = inlined_call_operand.vmem [shape: f32[1,128], index: 4, kind: input, shape index: {}]
  %s5 = inlined_call_operand.vmem [shape: bf16[128,128], index: 5, kind: input, shape index: {}]
  %s6 = inlined_call_operand.vmem [shape: f32[1,128], index: 6, kind: input, shape index: {}]
  %s7 = inlined_call_operand.vmem [shape: f32[2,8,128], index: 7, kind: output, shape index: {}]
  %s8 = sld [smem:[#allocation0]]
  $region61: #{_lambda_.1} parent=0
    _
  %s10 = ssub.s32 1, %s8
  %s11 = scalar_select 0, %s10, %s8
  loop: start=0, step=1, limit=4
  $region2: #{_lambda_.1} parent=0 // loop_pre_header
    _
  $region3: #{_lambda_.1} parent=0 // loop_header
    %s13 = sphi 0, %s17
    %p14 = scmp.ge.s32.totalorder %s13, 4
    %s23 = sphi 0, %s25
    %s26 = sphi 0, %s23
    %s27 = sphi 0, %s26
    %s43 = sphi 0, %s27
    %s47 = sphi 0, %s47
    %s49 = sphi 0, %s47
    %s50 = sphi 0, %s49
    %s64 = sphi 0, %s50
    %s68 = sphi 0, %s68
    %s70 = sphi 0, %s68
    %s71 = sphi 0, %s70
    %s85 = sphi 0, %s71
    %s89 = sphi 0, %s89
    %s91 = sphi 0, %s89
    %s92 = sphi 0, %s91
    %s106 = sphi 0, %s92
    %s110 = sphi 0, %s110
    %s112 = sphi 0, %s110
    %s113 = sphi 0, %s112
    %s127 = sphi 0, %s113
    %s131 = sphi 0, %s131
    %s133 = sphi 0, %s131
    %s134 = sphi 0, %s133
    %s148 = sphi 0, %s134
    %s152 = sphi 0, %s152
    %s154 = sphi 0, %s152
    %s155 = sphi 0, %s154
    %s169 = sphi 0, %s155
    %s175 = sphi 0, %s177
    %s178 = sphi 0, %s175
    %s179 = sphi 0, %s178
    %s195 = sphi 0, %s179
  $region4: #{_lambda_.1} parent=0 // loop_header_branch
    %16 = sbr.rel (%p14) target = $region8
  $region5: #{_lambda_.1} parent=0 // loop_body
    %s18 = ssub.s32 %s13, 1
    %s19 = ssub.s32 %s13, 2
    %s20 = sadd.s32 %s13, 1
    %s21 = ssub.s32 %s13, %s20
    %p22 = scmp.eq.s32.totalorder %s21, 0
    %s24 = sadd.s32 %s23, 1
    %s25 = scalar_select %p22, %s23, %s24
    %p28 = pneg %p22
    %p29 = scmp.eq.s32.totalorder %s13, 1
    %p30 = por %p28, %p29
    %p31 = scmp.ne.s32.totalorder %s23, %s26
    %p32 = scmp.eq.s32.totalorder %s13, 0
    %p33 = por %p31, %p32
    %p34 = scmp.ne.s32.totalorder %s23, %s26
    %p35 = scmp.eq.s32.totalorder %s18, 1
    %p36 = por %p34, %p35
    %p37 = scmp.ne.s32.totalorder %s26, %s27
    %p38 = scmp.eq.s32.totalorder %s18, 0
    %p39 = por %p37, %p38
    %p40 = scmp.ne.s32.totalorder %s26, %s27
    %p41 = scmp.eq.s32.totalorder %s19, 1
    %p42 = por %p40, %p41
    %p44 = scmp.ne.s32.totalorder %s27, %s43
    %p45 = scmp.eq.s32.totalorder %s19, 0
    %p46 = por %p44, %p45
    %s48 = sadd.s32 %s47, 1
    %p51 = scmp.eq.s32.totalorder %s13, 1
    %p52 = scmp.ne.s32.totalorder %s47, %s49
    %p53 = scmp.eq.s32.totalorder %s13, 0
    %p54 = por %p52, %p53
    %p55 = scmp.ne.s32.totalorder %s47, %s49
    %p56 = scmp.eq.s32.totalorder %s18, 1
    %p57 = por %p55, %p56
    %p58 = scmp.ne.s32.totalorder %s49, %s50
    %p59 = scmp.eq.s32.totalorder %s18, 0
    %p60 = por %p58, %p59
    %p61 = scmp.ne.s32.totalorder %s49, %s50
    %p62 = scmp.eq.s32.totalorder %s19, 1
    %p63 = por %p61, %p62
    %p65 = scmp.ne.s32.totalorder %s50, %s64
    %p66 = scmp.eq.s32.totalorder %s19, 0
    %p67 = por %p65, %p66
    %s69 = sadd.s32 %s68, 1
    %p72 = scmp.eq.s32.totalorder %s13, 1
    %p73 = scmp.ne.s32.totalorder %s68, %s70
    %p74 = scmp.eq.s32.totalorder %s13, 0
    %p75 = por %p73, %p74
    %p76 = scmp.ne.s32.totalorder %s68, %s70
    %p77 = scmp.eq.s32.totalorder %s18, 1
    %p78 = por %p76, %p77
    %p79 = scmp.ne.s32.totalorder %s70, %s71
    %p80 = scmp.eq.s32.totalorder %s18, 0
    %p81 = por %p79, %p80
    %p82 = scmp.ne.s32.totalorder %s70, %s71
    %p83 = scmp.eq.s32.totalorder %s19, 1
    %p84 = por %p82, %p83
    %p86 = scmp.ne.s32.totalorder %s71, %s85
    %p87 = scmp.eq.s32.totalorder %s19, 0
    %p88 = por %p86, %p87
    %s90 = sadd.s32 %s89, 1
    %p93 = scmp.eq.s32.totalorder %s13, 1
    %p94 = scmp.ne.s32.totalorder %s89, %s91
    %p95 = scmp.eq.s32.totalorder %s13, 0
    %p96 = por %p94, %p95
    %p97 = scmp.ne.s32.totalorder %s89, %s91
    %p98 = scmp.eq.s32.totalorder %s18, 1
    %p99 = por %p97, %p98
    %p100 = scmp.ne.s32.totalorder %s91, %s92
    %p101 = scmp.eq.s32.totalorder %s18, 0
    %p102 = por %p100, %p101
    %p103 = scmp.ne.s32.totalorder %s91, %s92
    %p104 = scmp.eq.s32.totalorder %s19, 1
    %p105 = por %p103, %p104
    %p107 = scmp.ne.s32.totalorder %s92, %s106
    %p108 = scmp.eq.s32.totalorder %s19, 0
    %p109 = por %p107, %p108
    %s111 = sadd.s32 %s110, 1
    %p114 = scmp.eq.s32.totalorder %s13, 1
    %p115 = scmp.ne.s32.totalorder %s110, %s112
    %p116 = scmp.eq.s32.totalorder %s13, 0
    %p117 = por %p115, %p116
    %p118 = scmp.ne.s32.totalorder %s110, %s112
    %p119 = scmp.eq.s32.totalorder %s18, 1
    %p120 = por %p118, %p119
    %p121 = scmp.ne.s32.totalorder %s112, %s113
    %p122 = scmp.eq.s32.totalorder %s18, 0
    %p123 = por %p121, %p122
    %p124 = scmp.ne.s32.totalorder %s112, %s113
    %p125 = scmp.eq.s32.totalorder %s19, 1
    %p126 = por %p124, %p125
    %p128 = scmp.ne.s32.totalorder %s113, %s127
    %p129 = scmp.eq.s32.totalorder %s19, 0
    %p130 = por %p128, %p129
    %s132 = sadd.s32 %s131, 1
    %p135 = scmp.eq.s32.totalorder %s13, 1
    %p136 = scmp.ne.s32.totalorder %s131, %s133
    %p137 = scmp.eq.s32.totalorder %s13, 0
    %p138 = por %p136, %p137
    %p139 = scmp.ne.s32.totalorder %s131, %s133
    %p140 = scmp.eq.s32.totalorder %s18, 1
    %p141 = por %p139, %p140
    %p142 = scmp.ne.s32.totalorder %s133, %s134
    %p143 = scmp.eq.s32.totalorder %s18, 0
    %p144 = por %p142, %p143
    %p145 = scmp.ne.s32.totalorder %s133, %s134
    %p146 = scmp.eq.s32.totalorder %s19, 1
    %p147 = por %p145, %p146
    %p149 = scmp.ne.s32.totalorder %s134, %s148
    %p150 = scmp.eq.s32.totalorder %s19, 0
    %p151 = por %p149, %p150
    %s153 = sadd.s32 %s152, 1
    %p156 = scmp.eq.s32.totalorder %s13, 1
    %p157 = scmp.ne.s32.totalorder %s152, %s154
    %p158 = scmp.eq.s32.totalorder %s13, 0
    %p159 = por %p157, %p158
    %p160 = scmp.ne.s32.totalorder %s152, %s154
    %p161 = scmp.eq.s32.totalorder %s18, 1
    %p162 = por %p160, %p161
    %p163 = scmp.ne.s32.totalorder %s154, %s155
    %p164 = scmp.eq.s32.totalorder %s18, 0
    %p165 = por %p163, %p164
    %p166 = scmp.ne.s32.totalorder %s154, %s155
    %p167 = scmp.eq.s32.totalorder %s19, 1
    %p168 = por %p166, %p167
    %p170 = scmp.ne.s32.totalorder %s155, %s169
    %p171 = scmp.eq.s32.totalorder %s19, 0
    %p172 = por %p170, %p171
    %s173 = ssub.s32 %s13, %s20
    %p174 = scmp.eq.s32.totalorder %s173, 0
    %s176 = sadd.s32 %s175, 1
    %s177 = scalar_select %p174, %s175, %s176
    %p180 = pneg %p174
    %p181 = scmp.eq.s32.totalorder %s13, 1
    %p182 = por %p180, %p181
    %p183 = scmp.ne.s32.totalorder %s175, %s178
    %p184 = scmp.eq.s32.totalorder %s13, 0
    %p185 = por %p183, %p184
    %p186 = scmp.ne.s32.totalorder %s175, %s178
    %p187 = scmp.eq.s32.totalorder %s18, 1
    %p188 = por %p186, %p187
    %p189 = scmp.ne.s32.totalorder %s178, %s179
    %p190 = scmp.eq.s32.totalorder %s18, 0
    %p191 = por %p189, %p190
    %p192 = scmp.ne.s32.totalorder %s178, %s179
    %p193 = scmp.eq.s32.totalorder %s19, 1
    %p194 = por %p192, %p193
    %p196 = scmp.ne.s32.totalorder %s179, %s195
    %p197 = scmp.eq.s32.totalorder %s19, 0
    %p198 = por %p196, %p197
    %p199 = scmp.le.s32.totalorder 1, %s13
    %p200 = scmp.lt.s32.totalorder %s13, 3
    %p201 = pnand %p199, %p200
    %p202 = pneg %p201
    // Predicated region
    $region9: #{_lambda_.1} parent=5 // pred_check
      _
    $region10: #{_lambda_.1} parent=5 // pred_check_branch
      %204 = sbr.rel (%p201) target = $region12
    $region11: #{_lambda_.1} parent=5 // pred_region
      %s205 = ssub.s32 %s13, 1
      // Predicated region
      $region13: #{_lambda_.1} parent=11 // pred_check
        %p206 = pneg %p60
      $region14: #{_lambda_.1} parent=11 // pred_check_branch
        %208 = sbr.rel (%p206) target = $region16
      $region15: #{_lambda_.1} parent=11 // pred_region
        _
      $region16: #{_lambda_.1} parent=11 // pred_fallthru
        _
      // Predicated region
      $region17: #{_lambda_.1} parent=11 // pred_check
        %p209 = pneg %p81
      $region18: #{_lambda_.1} parent=11 // pred_check_branch
        %211 = sbr.rel (%p209) target = $region20
      $region19: #{_lambda_.1} parent=11 // pred_region
        _
      $region20: #{_lambda_.1} parent=11 // pred_fallthru
        _
      // Predicated region
      $region21: #{_lambda_.1} parent=11 // pred_check
        %p212 = pneg %p102
      $region22: #{_lambda_.1} parent=11 // pred_check_branch
        %214 = sbr.rel (%p212) target = $region24
      $region23: #{_lambda_.1} parent=11 // pred_region
        _
      $region24: #{_lambda_.1} parent=11 // pred_fallthru
        _
      // Predicated region
      $region25: #{_lambda_.1} parent=11 // pred_check
        %p215 = pneg %p123
      $region26: #{_lambda_.1} parent=11 // pred_check_branch
        %217 = sbr.rel (%p215) target = $region28
      $region27: #{_lambda_.1} parent=11 // pred_region
        _
      $region28: #{_lambda_.1} parent=11 // pred_fallthru
        _
      // Predicated region
      $region29: #{_lambda_.1} parent=11 // pred_check
        %p218 = pneg %p144
      $region30: #{_lambda_.1} parent=11 // pred_check_branch
        %220 = sbr.rel (%p218) target = $region32
      $region31: #{_lambda_.1} parent=11 // pred_region
        _
      $region32: #{_lambda_.1} parent=11 // pred_fallthru
        _
      // Predicated region
      $region33: #{_lambda_.1} parent=11 // pred_check
        %p221 = pneg %p165
      $region34: #{_lambda_.1} parent=11 // pred_check_branch
        %223 = sbr.rel (%p221) target = $region36
      $region35: #{_lambda_.1} parent=11 // pred_region
        _
      $region36: #{_lambda_.1} parent=11 // pred_fallthru
        _
    $region12: #{_lambda_.1} parent=5 // pred_fallthru
      _
    %p224 = scmp.lt.s32.totalorder %s13, 2
    // Predicated region
    $region37: #{_lambda_.1} parent=5 // pred_check
      %p225 = pneg %p224
    $region38: #{_lambda_.1} parent=5 // pred_check_branch
      %227 = sbr.rel (%p225) target = $region40
    $region39: #{_lambda_.1} parent=5 // pred_region
      // Predicated region
      $region41: #{_lambda_.1} parent=39 // pred_check
        %p228 = pneg %p33
      $region42: #{_lambda_.1} parent=39 // pred_check_branch
        %230 = sbr.rel (%p228) target = $region44
      $region43: #{_lambda_.1} parent=39 // pred_region
        %p231 = scmp.lt.s32.totalorder %s13, 1
        %s232 = scalar_select %p231, %s13, 1
        %s233 = smul.addr %s232, 55
        %s234 = smul.addr %s233, 8
        %s235 = scalar_lea.vmem %s0, %s234
      $region44: #{_lambda_.1} parent=39 // pred_fallthru
        _
    $region40: #{_lambda_.1} parent=5 // pred_fallthru
      _
    %p236 = scmp.le.s32.totalorder 1, %s13
    %p237 = scmp.lt.s32.totalorder %s13, 3
    %p238 = pnand %p236, %p237
    %p239 = pneg %p238
    // Predicated region
    $region45: #{_lambda_.1} parent=5 // pred_check
      _
    $region46: #{_lambda_.1} parent=5 // pred_check_branch
      %241 = sbr.rel (%p238) target = $region48
    $region47: #{_lambda_.1} parent=5 // pred_region
      %s242 = ssub.s32 %s13, 1
      %p243 = scmp.lt.s32.totalorder %s18, 1
      %s244 = scalar_select %p243, %s18, 1
      %s245 = smul.addr %s244, 55
      %s246 = smul.addr %s245, 8
      %s247 = scalar_lea.vmem %s0, %s246
      %p248 = pneg %p39
      %p249 = pneg %p36
      %p250 = pneg %p60
      %p251 = pneg %p57
      %p252 = pneg %p81
      %p253 = pneg %p78
      %p254 = pneg %p102
      %p255 = pneg %p99
      %p256 = pneg %p123
      %p257 = pneg %p120
      %p258 = pneg %p144
      %p259 = pneg %p141
      %p260 = pneg %p165
      %p261 = pneg %p162
      %p262 = pneg %p191
      %p263 = pneg %p188
      %p264 = scmp.lt.s32.totalorder %s18, 1
      %s265 = scalar_select %p264, %s18, 1
      %s266 = smul.addr %s265, 8
      %s267 = scalar_lea.vmem %s7, %s266
      %p268 = scmp.lt.s32.totalorder %s18, 1
      %s269 = scalar_select %p268, %s18, 1
      %s270 = smul.addr %s269, 55
      %s271 = smul.addr %s270, 8
      %s272 = scalar_lea.vmem %s0, %s271
      %p273 = scmp.lt.s32.totalorder %s18, 1
      %s274 = scalar_select %p273, %s18, 1
      %s275 = smul.addr %s274, 8
      %s276 = scalar_lea.vmem %s7, %s275
      %278 = vst [vmem:[#allocation5] sm:$0xff] 0.0
      %279 = vst [vmem:[#allocation5 + $0x8] sm:$0xff] 0.0
      %280 = vst [vmem:[#allocation5 + $0x10] sm:$0xff] 0.0
      %281 = vst [vmem:[#allocation5 + $0x18] sm:$0xff] 0.0
      %282 = vst [vmem:[#allocation5 + $0x20] sm:$0xff] 0.0
      %283 = vst [vmem:[#allocation5 + $0x28] sm:$0xff] 0.0
      %284 = vst [vmem:[#allocation5 + $0x30] sm:$0xff] 0.0
      %285 = vst [vmem:[#allocation5 + $0x38] sm:$0xff] 0.0
      %286 = vst [vmem:[#allocation5 + $0x40] sm:$0xff] 0.0
      %287 = vst [vmem:[#allocation5 + $0x48] sm:$0xff] 0.0
      %288 = vst [vmem:[#allocation5 + $0x50] sm:$0xff] 0.0
      %289 = vst [vmem:[#allocation5 + $0x58] sm:$0xff] 0.0
      %290 = vst [vmem:[#allocation5 + $0x60] sm:$0xff] 0.0
      %291 = vst [vmem:[#allocation5 + $0x68] sm:$0xff] 0.0
      %292 = vst [vmem:[#allocation5 + $0x70] sm:$0xff] 0.0
      %293 = vst [vmem:[#allocation5 + $0x78] sm:$0xff] 0.0
      %294 = vst [vmem:[#allocation5 + $0x80] sm:$0xff] 0.0
      %295 = vst [vmem:[#allocation5 + $0x88] sm:$0xff] 0.0
      %296 = vst [vmem:[#allocation5 + $0x90] sm:$0xff] 0.0
      %297 = vst [vmem:[#allocation5 + $0x98] sm:$0xff] 0.0
      %298 = vst [vmem:[#allocation5 + $0xa0] sm:$0xff] 0.0
      %299 = vst [vmem:[#allocation6] sm:$0xff] 0.0
      %300 = vst [vmem:[#allocation6 + $0x8] sm:$0xff] 0.0
      %301 = vst [vmem:[#allocation6 + $0x10] sm:$0xff] 0.0
      %302 = vst [vmem:[#allocation6 + $0x18] sm:$0xff] 0.0
      %303 = vst [vmem:[#allocation6 + $0x20] sm:$0xff] 0.0
      %304 = vst [vmem:[#allocation6 + $0x28] sm:$0xff] 0.0
      %305 = vst [vmem:[#allocation6 + $0x30] sm:$0xff] 0.0
      %v306 = vld [vmem:[%s272] sm:$0xff]
      %v307 = vld [vmem:[%s272 + $0x8] sm:$0xff]
      %v308 = vld [vmem:[%s272 + $0x10] sm:$0xff]
      %v309 = vld [vmem:[%s272 + $0x18] sm:$0xff]
      %v310 = vld [vmem:[%s272 + $0x20] sm:$0xff]
      %v311 = vld [vmem:[%s272 + $0x28] sm:$0xff]
      %v312 = vld [vmem:[%s272 + $0x30] sm:$0xff]
      %v313 = vld [vmem:[%s272 + $0x38] sm:$0xff]
      %v314 = vld [vmem:[%s272 + $0x40] sm:$0xff]
      %v315 = vld [vmem:[%s272 + $0x48] sm:$0xff]
      %v316 = vld [vmem:[%s272 + $0x50] sm:$0xff]
      %v317 = vld [vmem:[%s272 + $0x58] sm:$0xff]
      %v318 = vld [vmem:[%s272 + $0x60] sm:$0xff]
      %v319 = vld [vmem:[%s272 + $0x68] sm:$0xff]
      %v320 = vld [vmem:[%s272 + $0x70] sm:$0xff]
      %v321 = vld [vmem:[%s272 + $0x78] sm:$0xff]
      %v322 = vld [vmem:[%s272 + $0x80] sm:$0xff]
      %v323 = vld [vmem:[%s272 + $0x88] sm:$0xff]
      %v324 = vld [vmem:[%s272 + $0x90] sm:$0xff]
      %v325 = vld [vmem:[%s272 + $0x98] sm:$0xff]
      %v326 = vld [vmem:[%s272 + $0xa0] sm:$0xff]
      %v327 = vld [vmem:[%s272 + $0xa8] sm:$0xff]
      %v328 = vld [vmem:[%s272 + $0xb0] sm:$0xff]
      %v329 = vld [vmem:[%s272 + $0xb8] sm:$0xff]
      %v330 = vld [vmem:[%s272 + $0xc0] sm:$0xff]
      %v331 = vld [vmem:[%s272 + $0xc8] sm:$0xff]
      %v332 = vld [vmem:[%s272 + $0xd0] sm:$0xff]
      %v333 = vld [vmem:[%s272 + $0xd8] sm:$0xff]
      %v334 = vld [vmem:[%s272 + $0xe0] sm:$0xff]
      %v335 = vld [vmem:[%s272 + $0xe8] sm:$0xff]
      %v336 = vld [vmem:[%s272 + $0xf0] sm:$0xff]
      %v337 = vld [vmem:[%s272 + $0xf8] sm:$0xff]
      %v338 = vld [vmem:[%s272 + $0x100] sm:$0xff]
      %v339 = vld [vmem:[%s272 + $0x108] sm:$0xff]
      %v340 = vld [vmem:[%s272 + $0x110] sm:$0xff]
      %v341 = vld [vmem:[%s272 + $0x118] sm:$0xff]
      %v342 = vld [vmem:[%s272 + $0x120] sm:$0xff]
      %v343 = vld [vmem:[%s272 + $0x128] sm:$0xff]
      %v344 = vld [vmem:[%s272 + $0x130] sm:$0xff]
      %v345 = vld [vmem:[%s272 + $0x138] sm:$0xff]
      %v346 = vld [vmem:[%s272 + $0x140] sm:$0xff]
      %v347 = vld [vmem:[%s272 + $0x148] sm:$0xff]
      %v348 = vld [vmem:[%s272 + $0x150] sm:$0xff]
      %v349 = vld [vmem:[%s272 + $0x158] sm:$0xff]
      %v350 = vld [vmem:[%s272 + $0x160] sm:$0xff]
      %v351 = vld [vmem:[%s272 + $0x168] sm:$0xff]
      %v352 = vld [vmem:[%s272 + $0x170] sm:$0xff]
      %v353 = vld [vmem:[%s272 + $0x178] sm:$0xff]
      %v354 = vpack.c.bf16 %v307, %v306
      %v355 = vpack.c.bf16 %v309, %v308
      %v356 = vpack.c.bf16 %v311, %v310
      %v357 = vpack.c.bf16 %v313, %v312
      %v358 = vpack.c.bf16 %v315, %v314
      %v359 = vpack.c.bf16 %v317, %v316
      %v360 = vpack.c.bf16 %v319, %v318
      %v361 = vpack.c.bf16 %v321, %v320
      %v362 = vpack.c.bf16 %v323, %v322
      %v363 = vpack.c.bf16 %v325, %v324
      %v364 = vpack.c.bf16 %v327, %v326
      %v365 = vpack.c.bf16 %v329, %v328
      %v366 = vpack.c.bf16 %v331, %v330
      %v367 = vpack.c.bf16 %v333, %v332
      %v368 = vpack.c.bf16 %v335, %v334
      %v369 = vpack.c.bf16 %v337, %v336
      %v370 = vpack.c.bf16 %v339, %v338
      %v371 = vpack.c.bf16 %v341, %v340
      %v372 = vpack.c.bf16 %v343, %v342
      %v373 = vpack.c.bf16 %v345, %v344
      %v374 = vpack.c.bf16 %v347, %v346
      %v375 = vpack.c.bf16 %v349, %v348
      %v376 = vpack.c.bf16 %v351, %v350
      %v377 = vpack.c.bf16 %v353, %v352
      %v378 = vld [vmem:[%s1] sm:$0xf]
      %v379 = vld [vmem:[%s1 + $0x4] sm:$0xf]
      %v380 = vld [vmem:[%s1 + $0x8] sm:$0xf]
      %v381 = vld [vmem:[%s1 + $0xc] sm:$0xf]
      %v382 = vld [vmem:[%s1 + $0x10] sm:$0xf]
      %v383 = vld [vmem:[%s1 + $0x14] sm:$0xf]
      %v384 = vld [vmem:[%s1 + $0x18] sm:$0xf]
      %v385 = vld [vmem:[%s1 + $0x1c] sm:$0xf]
      %v386 = vld [vmem:[%s1 + $0x20] sm:$0xf]
      %v387 = vld [vmem:[%s1 + $0x24] sm:$0xf]
      %v388 = vld [vmem:[%s1 + $0x28] sm:$0xf]
      %v389 = vld [vmem:[%s1 + $0x2c] sm:$0xf]
      %v390 = vld [vmem:[%s1 + $0x30] sm:$0xf]
      %v391 = vld [vmem:[%s1 + $0x34] sm:$0xf]
      %v392 = vld [vmem:[%s1 + $0x38] sm:$0xf]
      %v393 = vld [vmem:[%s1 + $0x3c] sm:$0xf]
      %v394 = vld [vmem:[%s272 + $0x1] sm:$0xff]
      %v395 = vld [vmem:[%s272 + $0x9] sm:$0xff]
      %v396 = vld [vmem:[%s272 + $0x11] sm:$0xff]
      %v397 = vld [vmem:[%s272 + $0x19] sm:$0xff]
      %v398 = vld [vmem:[%s272 + $0x21] sm:$0xff]
      %v399 = vld [vmem:[%s272 + $0x29] sm:$0xff]
      %v400 = vld [vmem:[%s272 + $0x31] sm:$0xff]
      %v401 = vld [vmem:[%s272 + $0x39] sm:$0xff]
      %v402 = vld [vmem:[%s272 + $0x41] sm:$0xff]
      %v403 = vld [vmem:[%s272 + $0x49] sm:$0xff]
      %v404 = vld [vmem:[%s272 + $0x51] sm:$0xff]
      %v405 = vld [vmem:[%s272 + $0x59] sm:$0xff]
      %v406 = vld [vmem:[%s272 + $0x61] sm:$0xff]
      %v407 = vld [vmem:[%s272 + $0x69] sm:$0xff]
      %v408 = vld [vmem:[%s272 + $0x71] sm:$0xff]
      %v409 = vld [vmem:[%s272 + $0x79] sm:$0xff]
      %v410 = vld [vmem:[%s272 + $0x81] sm:$0xff]
      %v411 = vld [vmem:[%s272 + $0x89] sm:$0xff]
      %v412 = vld [vmem:[%s272 + $0x91] sm:$0xff]
      %v413 = vld [vmem:[%s272 + $0x99] sm:$0xff]
      %v414 = vld [vmem:[%s272 + $0xa1] sm:$0xff]
      %v415 = vld [vmem:[%s272 + $0xa9] sm:$0xff]
      %v416 = vld [vmem:[%s272 + $0xb1] sm:$0xff]
      %v417 = vld [vmem:[%s272 + $0xb9] sm:$0xff]
      %v418 = vld [vmem:[%s272 + $0xc1] sm:$0xff]
      %v419 = vld [vmem:[%s272 + $0xc9] sm:$0xff]
      %v420 = vld [vmem:[%s272 + $0xd1] sm:$0xff]
      %v421 = vld [vmem:[%s272 + $0xd9] sm:$0xff]
      %v422 = vld [vmem:[%s272 + $0xe1] sm:$0xff]
      %v423 = vld [vmem:[%s272 + $0xe9] sm:$0xff]
      %v424 = vld [vmem:[%s272 + $0xf1] sm:$0xff]
      %v425 = vld [vmem:[%s272 + $0xf9] sm:$0xff]
      %v426 = vld [vmem:[%s272 + $0x101] sm:$0xff]
      %v427 = vld [vmem:[%s272 + $0x109] sm:$0xff]
      %v428 = vld [vmem:[%s272 + $0x111] sm:$0xff]
      %v429 = vld [vmem:[%s272 + $0x119] sm:$0xff]
      %v430 = vld [vmem:[%s272 + $0x121] sm:$0xff]
      %v431 = vld [vmem:[%s272 + $0x129] sm:$0xff]
      %v432 = vld [vmem:[%s272 + $0x131] sm:$0xff]
      %v433 = vld [vmem:[%s272 + $0x139] sm:$0xff]
      %v434 = vld [vmem:[%s272 + $0x141] sm:$0xff]
      %v435 = vld [vmem:[%s272 + $0x149] sm:$0xff]
      %v436 = vld [vmem:[%s272 + $0x151] sm:$0xff]
      %v437 = vld [vmem:[%s272 + $0x159] sm:$0xff]
      %v438 = vld [vmem:[%s272 + $0x161] sm:$0xff]
      %v439 = vld [vmem:[%s272 + $0x169] sm:$0xff]
      %v440 = vld [vmem:[%s272 + $0x171] sm:$0xff]
      %v441 = vld [vmem:[%s272 + $0x179] sm:$0xff]
      %v442 = vpack.c.bf16 %v395, %v394
      %v443 = vpack.c.bf16 %v397, %v396
      %v444 = vpack.c.bf16 %v399, %v398
      %v445 = vpack.c.bf16 %v401, %v400
      %v446 = vpack.c.bf16 %v403, %v402
      %v447 = vpack.c.bf16 %v405, %v404
      %v448 = vpack.c.bf16 %v407, %v406
      %v449 = vpack.c.bf16 %v409, %v408
      %v450 = vpack.c.bf16 %v411, %v410
      %v451 = vpack.c.bf16 %v413, %v412
      %v452 = vpack.c.bf16 %v415, %v414
      %v453 = vpack.c.bf16 %v417, %v416
      %v454 = vpack.c.bf16 %v419, %v418
      %v455 = vpack.c.bf16 %v421, %v420
      %v456 = vpack.c.bf16 %v423, %v422
      %v457 = vpack.c.bf16 %v425, %v424
      %v458 = vpack.c.bf16 %v427, %v426
      %v459 = vpack.c.bf16 %v429, %v428
      %v460 = vpack.c.bf16 %v431, %v430
      %v461 = vpack.c.bf16 %v433, %v432
      %v462 = vpack.c.bf16 %v435, %v434
      %v463 = vpack.c.bf16 %v437, %v436
      %v464 = vpack.c.bf16 %v439, %v438
      %v465 = vpack.c.bf16 %v441, %v440
      %s466 = scalar_lea.vmem %s1, 64
      %v467 = vld [vmem:[%s466] sm:$0xf]
      %v468 = vld [vmem:[%s466 + $0x4] sm:$0xf]
      %v469 = vld [vmem:[%s466 + $0x8] sm:$0xf]
      %v470 = vld [vmem:[%s466 + $0xc] sm:$0xf]
      %v471 = vld [vmem:[%s466 + $0x10] sm:$0xf]
      %v472 = vld [vmem:[%s466 + $0x14] sm:$0xf]
      %v473 = vld [vmem:[%s466 + $0x18] sm:$0xf]
      %v474 = vld [vmem:[%s466 + $0x1c] sm:$0xf]
      %v475 = vld [vmem:[%s466 + $0x20] sm:$0xf]
      %v476 = vld [vmem:[%s466 + $0x24] sm:$0xf]
      %v477 = vld [vmem:[%s466 + $0x28] sm:$0xf]
      %v478 = vld [vmem:[%s466 + $0x2c] sm:$0xf]
      %v479 = vld [vmem:[%s466 + $0x30] sm:$0xf]
      %v480 = vld [vmem:[%s466 + $0x34] sm:$0xf]
      %v481 = vld [vmem:[%s466 + $0x38] sm:$0xf]
      %v482 = vld [vmem:[%s466 + $0x3c] sm:$0xf]
      %v499 = vunpack.c.l.b16 %v467
      %v500 = vunpack.c.l.b16 %v468
      %v501 = vunpack.c.l.b16 %v469
      %v502 = vunpack.c.l.b16 %v470
      %v503 = vunpack.c.l.b16 %v471
      %v504 = vunpack.c.l.b16 %v472
      %v505 = vunpack.c.l.b16 %v473
      %v506 = vunpack.c.l.b16 %v474
      %v507 = vunpack.c.l.b16 %v475
      %v508 = vunpack.c.l.b16 %v476
      %v509 = vunpack.c.l.b16 %v477
      %v510 = vunpack.c.l.b16 %v478
      %v511 = vunpack.c.l.b16 %v479
      %v512 = vunpack.c.l.b16 %v480
      %v513 = vunpack.c.l.b16 %v481
      %v514 = vunpack.c.l.b16 %v482
      %v515 = vpack.c.b16 %v500, %v499
      %v516 = vpack.c.b16 %v502, %v501
      %v517 = vpack.c.b16 %v504, %v503
      %v518 = vpack.c.b16 %v506, %v505
      %v519 = vpack.c.b16 %v508, %v507
      %v520 = vpack.c.b16 %v510, %v509
      %v521 = vpack.c.b16 %v512, %v511
      %v522 = vpack.c.b16 %v514, %v513
      %531 = vmatprep.subr.bf16.mxu0 0
      %532 = vmatpush1.bf16.msra.mxu0 %v515
      %533 = vmatprep.subr.bf16.mxu0 0
      %534 = vmatpush1.bf16.msra.mxu0 %v516
      %535 = vmatprep.subr.bf16.mxu0 0
      %536 = vmatpush1.bf16.msra.mxu0 %v517
      %537 = vmatprep.subr.bf16.mxu0 0
      %538 = vmatpush1.bf16.msra.mxu0 %v518
      %539 = vmatprep.subr.bf16.mxu0 0
      %540 = vmatpush1.bf16.msra.mxu0 %v519
      %541 = vmatprep.subr.bf16.mxu0 0
      %542 = vmatpush1.bf16.msra.mxu0 %v520
      %543 = vmatprep.subr.bf16.mxu0 0
      %544 = vmatpush1.bf16.msra.mxu0 %v521
      %545 = vmatprep.subr.bf16.mxu0 0
      %546 = vmatpush1.bf16.msra.mxu0 %v522
      %547 = vmatprep.subr.bf16.mxu0 0
      %548 = vmatpush1.bf16.msra.mxu0 0
      %549 = vmatprep.subr.bf16.mxu0 0
      %550 = vmatpush1.bf16.msra.mxu0 0
      %551 = vmatprep.subr.bf16.mxu0 0
      %552 = vmatpush1.bf16.msra.mxu0 0
      %553 = vmatprep.subr.bf16.mxu0 0
      %554 = vmatpush1.bf16.msra.mxu0 0
      %555 = vmatprep.subr.bf16.mxu0 0
      %556 = vmatpush1.bf16.msra.mxu0 0
      %557 = vmatprep.subr.bf16.mxu0 0
      %558 = vmatpush1.bf16.msra.mxu0 0
      %559 = vmatprep.subr.bf16.mxu0 0
      %560 = vmatpush1.bf16.msra.mxu0 0
      %561 = vmatprep.subr.bf16.mxu0 0
      %562 = vmatpush1.bf16.msra.mxu0 0
      %563 = vmatprep.mubr.bf16.mxu0 0
      %564 = vmatmul.mubr.bf16.gmra.mrb[0].mxu0 %v442
      %v565 = vpop.f32.mrb[0].mxu0
      %v566 = vadd.f32 0.0, %v565
      %v567 = vpop.f32.mrb[0].mxu0
      %v568 = vpop.f32.mrb[0].mxu0
      %v569 = vadd.f32 0.0, %v568
      %v570 = vpop.f32.mrb[0].mxu0
      %571 = vmatprep.mubr.bf16.mxu0 0
      %572 = vmatmul.mubr.bf16.gmra.mrb[0].mxu0 %v443
      %v573 = vpop.f32.mrb[0].mxu0
      %v574 = vadd.f32 0.0, %v573
      %v575 = vpop.f32.mrb[0].mxu0
      %v576 = vpop.f32.mrb[0].mxu0
      %v577 = vadd.f32 0.0, %v576
      %v578 = vpop.f32.mrb[0].mxu0
      %579 = vmatprep.mubr.bf16.mxu0 0
      %580 = vmatmul.mubr.bf16.gmra.mrb[0].mxu0 %v444
      %v581 = vpop.f32.mrb[0].mxu0
      %v582 = vadd.f32 0.0, %v581
      %v583 = vpop.f32.mrb[0].mxu0
      %v584 = vpop.f32.mrb[0].mxu0
      %v585 = vadd.f32 0.0, %v584
      %v586 = vpop.f32.mrb[0].mxu0
      %587 = vmatprep.mubr.bf16.mxu0 0
      %588 = vmatmul.mubr.bf16.gmra.mrb[0].mxu0 %v445
      %v589 = vpop.f32.mrb[0].mxu0
      %v590 = vadd.f32 0.0, %v589
      %v591 = vpop.f32.mrb[0].mxu0
      %v592 = vpop.f32.mrb[0].mxu0
      %v593 = vadd.f32 0.0, %v592
      %v594 = vpop.f32.mrb[0].mxu0
      %595 = vmatprep.mubr.bf16.mxu0 0
      %596 = vmatmul.mubr.bf16.gmra.mrb[0].mxu0 %v446
      %v597 = vpop.f32.mrb[0].mxu0
      %v598 = vadd.f32 0.0, %v597
      %v599 = vpop.f32.mrb[0].mxu0
      %v600 = vpop.f32.mrb[0].mxu0
      %v601 = vadd.f32 0.0, %v600
      %v602 = vpop.f32.mrb[0].mxu0
      %603 = vmatprep.mubr.bf16.mxu0 0
      %604 = vmatmul.mubr.bf16.gmra.mrb[0].mxu0 %v447
      %v605 = vpop.f32.mrb[0].mxu0
      %v606 = vadd.f32 0.0, %v605
      %v607 = vpop.f32.mrb[0].mxu0
      %v608 = vpop.f32.mrb[0].mxu0
      %v609 = vadd.f32 0.0, %v608
      %v610 = vpop.f32.mrb[0].mxu0
      %611 = vmatprep.mubr.bf16.mxu0 0
      %612 = vmatmul.mubr.bf16.gmra.mrb[0].mxu0 %v448
      %v613 = vpop.f32.mrb[0].mxu0
      %v614 = vadd.f32 0.0, %v613
      %v615 = vpop.f32.mrb[0].mxu0
      %v616 = vpop.f32.mrb[0].mxu0
      %v617 = vadd.f32 0.0, %v616
      %v618 = vpop.f32.mrb[0].mxu0
      %619 = vmatprep.mubr.bf16.mxu0 0
      %620 = vmatmul.mubr.bf16.gmra.mrb[0].mxu0 %v449
      %v621 = vpop.f32.mrb[0].mxu0
      %v622 = vadd.f32 0.0, %v621
      %v623 = vpop.f32.mrb[0].mxu0
      %v624 = vpop.f32.mrb[0].mxu0
      %v625 = vadd.f32 0.0, %v624
      %v626 = vpop.f32.mrb[0].mxu0
      %627 = vmatprep.mubr.bf16.mxu0 0
      %628 = vmatmul.mubr.bf16.gmra.mrb[0].mxu0 %v450
      %v629 = vpop.f32.mrb[0].mxu0
      %v630 = vadd.f32 0.0, %v629
      %v631 = vpop.f32.mrb[0].mxu0
      %v632 = vpop.f32.mrb[0].mxu0
      %v633 = vadd.f32 0.0, %v632
      %v634 = vpop.f32.mrb[0].mxu0
      %635 = vmatprep.mubr.bf16.mxu0 0
      %636 = vmatmul.mubr.bf16.gmra.mrb[0].mxu0 %v451
      %v637 = vpop.f32.mrb[0].mxu0
      %v638 = vadd.f32 0.0, %v637
      %v639 = vpop.f32.mrb[0].mxu0
      %v640 = vpop.f32.mrb[0].mxu0
      %v641 = vadd.f32 0.0, %v640
      %v642 = vpop.f32.mrb[0].mxu0
      %643 = vmatprep.mubr.bf16.mxu0 0
      %644 = vmatmul.mubr.bf16.gmra.mrb[0].mxu0 %v452
      %v645 = vpop.f32.mrb[0].mxu0
      %v646 = vadd.f32 0.0, %v645
      %v647 = vpop.f32.mrb[0].mxu0
      %v648 = vpop.f32.mrb[0].mxu0
      %v649 = vadd.f32 0.0, %v648
      %v650 = vpop.f32.mrb[0].mxu0
      %651 = vmatprep.mubr.bf16.mxu0 0
      %652 = vmatmul.mubr.bf16.gmra.mrb[0].mxu0 %v453
      %v653 = vpop.f32.mrb[0].mxu0
      %v654 = vadd.f32 0.0, %v653
      %v655 = vpop.f32.mrb[0].mxu0
      %v656 = vpop.f32.mrb[0].mxu0
      %v657 = vadd.f32 0.0, %v656
      %v658 = vpop.f32.mrb[0].mxu0
      %659 = vmatprep.mubr.bf16.mxu0 0
      %660 = vmatmul.mubr.bf16.gmra.mrb[0].mxu0 %v454
      %v661 = vpop.f32.mrb[0].mxu0
      %v662 = vadd.f32 0.0, %v661
      %v663 = vpop.f32.mrb[0].mxu0
      %v664 = vpop.f32.mrb[0].mxu0
      %v665 = vadd.f32 0.0, %v664
      %v666 = vpop.f32.mrb[0].mxu0
      %667 = vmatprep.mubr.bf16.mxu0 0
      %668 = vmatmul.mubr.bf16.gmra.mrb[0].mxu0 %v455
      %v669 = vpop.f32.mrb[0].mxu0
      %v670 = vadd.f32 0.0, %v669
      %v671 = vpop.f32.mrb[0].mxu0
      %v672 = vpop.f32.mrb[0].mxu0
      %v673 = vadd.f32 0.0, %v672
      %v674 = vpop.f32.mrb[0].mxu0
      %675 = vmatprep.mubr.bf16.mxu0 0
      %676 = vmatmul.mubr.bf16.gmra.mrb[0].mxu0 %v456
      %v677 = vpop.f32.mrb[0].mxu0
      %v678 = vadd.f32 0.0, %v677
      %v679 = vpop.f32.mrb[0].mxu0
      %v680 = vpop.f32.mrb[0].mxu0
      %v681 = vadd.f32 0.0, %v680
      %v682 = vpop.f32.mrb[0].mxu0
      %683 = vmatprep.mubr.bf16.mxu0 0
      %684 = vmatmul.mubr.bf16.gmra.mrb[0].mxu0 %v457
      %v685 = vpop.f32.mrb[0].mxu0
      %v686 = vadd.f32 0.0, %v685
      %v687 = vpop.f32.mrb[0].mxu0
      %v688 = vpop.f32.mrb[0].mxu0
      %v689 = vadd.f32 0.0, %v688
      %v690 = vpop.f32.mrb[0].mxu0
      %691 = vmatprep.mubr.bf16.mxu0 0
      %692 = vmatmul.mubr.bf16.gmra.mrb[0].mxu0 %v458
      %v693 = vpop.f32.mrb[0].mxu0
      %v694 = vadd.f32 0.0, %v693
      %v695 = vpop.f32.mrb[0].mxu0
      %v696 = vpop.f32.mrb[0].mxu0
      %v697 = vadd.f32 0.0, %v696
      %v698 = vpop.f32.mrb[0].mxu0
      %699 = vmatprep.mubr.bf16.mxu0 0
      %700 = vmatmul.mubr.bf16.gmra.mrb[0].mxu0 %v459
      %v701 = vpop.f32.mrb[0].mxu0
      %v702 = vadd.f32 0.0, %v701
      %v703 = vpop.f32.mrb[0].mxu0
      %v704 = vpop.f32.mrb[0].mxu0
      %v705 = vadd.f32 0.0, %v704
      %v706 = vpop.f32.mrb[0].mxu0
      %707 = vmatprep.mubr.bf16.mxu0 0
      %708 = vmatmul.mubr.bf16.gmra.mrb[0].mxu0 %v460
      %v709 = vpop.f32.mrb[0].mxu0
      %v710 = vadd.f32 0.0, %v709
      %v711 = vpop.f32.mrb[0].mxu0
      %v712 = vpop.f32.mrb[0].mxu0
      %v713 = vadd.f32 0.0, %v712
      %v714 = vpop.f32.mrb[0].mxu0
      %715 = vmatprep.mubr.bf16.mxu0 0
      %716 = vmatmul.mubr.bf16.gmra.mrb[0].mxu0 %v461
      %v717 = vpop.f32.mrb[0].mxu0
      %v718 = vadd.f32 0.0, %v717
      %v719 = vpop.f32.mrb[0].mxu0
      %v720 = vpop.f32.mrb[0].mxu0
      %v721 = vadd.f32 0.0, %v720
      %v722 = vpop.f32.mrb[0].mxu0
      %723 = vmatprep.mubr.bf16.mxu0 0
      %724 = vmatmul.mubr.bf16.gmra.mrb[0].mxu0 %v462
      %v725 = vpop.f32.mrb[0].mxu0
      %v726 = vadd.f32 0.0, %v725
      %v727 = vpop.f32.mrb[0].mxu0
      %v728 = vpop.f32.mrb[0].mxu0
      %v729 = vadd.f32 0.0, %v728
      %v730 = vpop.f32.mrb[0].mxu0
      %731 = vmatprep.mubr.bf16.mxu0 0
      %732 = vmatmul.mubr.bf16.gmra.mrb[0].mxu0 %v463
      %v733 = vpop.f32.mrb[0].mxu0
      %v734 = vadd.f32 0.0, %v733
      %v735 = vpop.f32.mrb[0].mxu0
      %v736 = vpop.f32.mrb[0].mxu0
      %v737 = vadd.f32 0.0, %v736
      %v738 = vpop.f32.mrb[0].mxu0
      %739 = vmatprep.mubr.bf16.mxu0 0
      %740 = vmatmul.mubr.bf16.gmra.mrb[0].mxu0 %v464
      %v741 = vpop.f32.mrb[0].mxu0
      %v742 = vadd.f32 0.0, %v741
      %v743 = vpop.f32.mrb[0].mxu0
      %v744 = vpop.f32.mrb[0].mxu0
      %v745 = vadd.f32 0.0, %v744
      %v746 = vpop.f32.mrb[0].mxu0
      %747 = vmatprep.mubr.bf16.mxu0 0
      %748 = vmatmul.mubr.bf16.gmra.mrb[0].mxu0 %v465
      %v749 = vpop.f32.mrb[0].mxu0
      %v750 = vadd.f32 0.0, %v749
      %v751 = vpop.f32.mrb[0].mxu0
      %v752 = vpop.f32.mrb[0].mxu0
      %v753 = vadd.f32 0.0, %v752
      %v754 = vpop.f32.mrb[0].mxu0
      %755 = vdwg.mxu0
      %v756 = vld [vmem:[%s272 + $0x2] sm:$0xff]
      %v757 = vld [vmem:[%s272 + $0xa] sm:$0xff]
      %v758 = vld [vmem:[%s272 + $0x12] sm:$0xff]
      %v759 = vld [vmem:[%s272 + $0x1a] sm:$0xff]
      %v760 = vld [vmem:[%s272 + $0x22] sm:$0xff]
      %v761 = vld [vmem:[%s272 + $0x2a] sm:$0xff]
      %v762 = vld [vmem:[%s272 + $0x32] sm:$0xff]
      %v763 = vld [vmem:[%s272 + $0x3a] sm:$0xff]
      %v764 = vld [vmem:[%s272 + $0x42] sm:$0xff]
      %v765 = vld [vmem:[%s272 + $0x4a] sm:$0xff]
      %v766 = vld [vmem:[%s272 + $0x52] sm:$0xff]
      %v767 = vld [vmem:[%s272 + $0x5a] sm:$0xff]
      %v768 = vld [vmem:[%s272 + $0x62] sm:$0xff]
      %v769 = vld [vmem:[%s272 + $0x6a] sm:$0xff]
      %v770 = vld [vmem:[%s272 + $0x72] sm:$0xff]
      %v771 = vld [vmem:[%s272 + $0x7a] sm:$0xff]
      %v772 = vld [vmem:[%s272 + $0x82] sm:$0xff]
      %v773 = vld [vmem:[%s272 + $0x8a] sm:$0xff]
      %v774 = vld [vmem:[%s272 + $0x92] sm:$0xff]
      %v775 = vld [vmem:[%s272 + $0x9a] sm:$0xff]
      %v776 = vld [vmem:[%s272 + $0xa2] sm:$0xff]
      %v777 = vld [vmem:[%s272 + $0xaa] sm:$0xff]
      %v778 = vld [vmem:[%s272 + $0xb2] sm:$0xff]
      %v779 = vld [vmem:[%s272 + $0xba] sm:$0xff]
      %v780 = vld [vmem:[%s272 + $0xc2] sm:$0xff]
      %v781 = vld [vmem:[%s272 + $0xca] sm:$0xff]
      %v782 = vld [vmem:[%s272 + $0xd2] sm:$0xff]
      %v783 = vld [vmem:[%s272 + $0xda] sm:$0xff]
      %v784 = vld [vmem:[%s272 + $0xe2] sm:$0xff]
      %v785 = vld [vmem:[%s272 + $0xea] sm:$0xff]
      %v786 = vld [vmem:[%s272 + $0xf2] sm:$0xff]
      %v787 = vld [vmem:[%s272 + $0xfa] sm:$0xff]
      %v788 = vld [vmem:[%s272 + $0x102] sm:$0xff]
      %v789 = vld [vmem:[%s272 + $0x10a] sm:$0xff]
      %v790 = vld [vmem:[%s272 + $0x112] sm:$0xff]
      %v791 = vld [vmem:[%s272 + $0x11a] sm:$0xff]
      %v792 = vld [vmem:[%s272 + $0x122] sm:$0xff]
      %v793 = vld [vmem:[%s272 + $0x12a] sm:$0xff]
      %v794 = vld [vmem:[%s272 + $0x132] sm:$0xff]
      %v795 = vld [vmem:[%s272 + $0x13a] sm:$0xff]
      %v796 = vld [vmem:[%s272 + $0x142] sm:$0xff]
      %v797 = vld [vmem:[%s272 + $0x14a] sm:$0xff]
      %v798 = vld [vmem:[%s272 + $0x152] sm:$0xff]
      %v799 = vld [vmem:[%s272 + $0x15a] sm:$0xff]
      %v800 = vld [vmem:[%s272 + $0x162] sm:$0xff]
      %v801 = vld [vmem:[%s272 + $0x16a] sm:$0xff]
      %v802 = vld [vmem:[%s272 + $0x172] sm:$0xff]
      %v803 = vld [vmem:[%s272 + $0x17a] sm:$0xff]
      %v804 = vpack.c.bf16 %v757, %v756
      %v805 = vpack.c.bf16 %v759, %v758
      %v806 = vpack.c.bf16 %v761, %v760
      %v807 = vpack.c.bf16 %v763, %v762
      %v808 = vpack.c.bf16 %v765, %v764
      %v809 = vpack.c.bf16 %v767, %v766
      %v810 = vpack.c.bf16 %v769, %v768
      %v811 = vpack.c.bf16 %v771, %v770
      %v812 = vpack.c.bf16 %v773, %v772
      %v813 = vpack.c.bf16 %v775, %v774
      %v814 = vpack.c.bf16 %v777, %v776
      %v815 = vpack.c.bf16 %v779, %v778
      %v816 = vpack.c.bf16 %v781, %v780
      %v817 = vpack.c.bf16 %v783, %v782
      %v818 = vpack.c.bf16 %v785, %v784
      %v819 = vpack.c.bf16 %v787, %v786
      %v820 = vpack.c.bf16 %v789, %v788
      %v821 = vpack.c.bf16 %v791, %v790
      %v822 = vpack.c.bf16 %v793, %v792
      %v823 = vpack.c.bf16 %v795, %v794
      %v824 = vpack.c.bf16 %v797, %v796
      %v825 = vpack.c.bf16 %v799, %v798
      %v826 = vpack.c.bf16 %v801, %v800
      %v827 = vpack.c.bf16 %v803, %v802
      %s828 = scalar_lea.vmem %s1, 128
      %v829 = vld [vmem:[%s828] sm:$0xf]
      %v830 = vld [vmem:[%s828 + $0x4] sm:$0xf]
      %v831 = vld [vmem:[%s828 + $0x8] sm:$0xf]
      %v832 = vld [vmem:[%s828 + $0xc] sm:$0xf]
      %v833 = vld [vmem:[%s828 + $0x10] sm:$0xf]
      %v834 = vld [vmem:[%s828 + $0x14] sm:$0xf]
      %v835 = vld [vmem:[%s828 + $0x18] sm:$0xf]
      %v836 = vld [vmem:[%s828 + $0x1c] sm:$0xf]
      %v837 = vld [vmem:[%s828 + $0x20] sm:$0xf]
      %v838 = vld [vmem:[%s828 + $0x24] sm:$0xf]
      %v839 = vld [vmem:[%s828 + $0x28] sm:$0xf]
      %v840 = vld [vmem:[%s828 + $0x2c] sm:$0xf]
      %v841 = vld [vmem:[%s828 + $0x30] sm:$0xf]
      %v842 = vld [vmem:[%s828 + $0x34] sm:$0xf]
      %v843 = vld [vmem:[%s828 + $0x38] sm:$0xf]
      %v844 = vld [vmem:[%s828 + $0x3c] sm:$0xf]
      %v845 = vld [vmem:[%s272 + $0x18] sm:$0xff]
      %v846 = vld [vmem:[%s272 + $0x20] sm:$0xff]
      %v847 = vld [vmem:[%s272 + $0x28] sm:$0xff]
      %v848 = vld [vmem:[%s272 + $0x30] sm:$0xff]
      %v849 = vld [vmem:[%s272 + $0x38] sm:$0xff]
      %v850 = vld [vmem:[%s272 + $0x40] sm:$0xff]
      %v851 = vld [vmem:[%s272 + $0x48] sm:$0xff]
      %v852 = vld [vmem:[%s272 + $0x50] sm:$0xff]
      %v853 = vld [vmem:[%s272 + $0x58] sm:$0xff]
      %v854 = vld [vmem:[%s272 + $0x60] sm:$0xff]
      %v855 = vld [vmem:[%s272 + $0x68] sm:$0xff]
      %v856 = vld [vmem:[%s272 + $0x70] sm:$0xff]
      %v857 = vld [vmem:[%s272 + $0x78] sm:$0xff]
      %v858 = vld [vmem:[%s272 + $0x80] sm:$0xff]
      %v859 = vld [vmem:[%s272 + $0x88] sm:$0xff]
      %v860 = vld [vmem:[%s272 + $0x90] sm:$0xff]
      %v861 = vld [vmem:[%s272 + $0x98] sm:$0xff]
      %v862 = vld [vmem:[%s272 + $0xa0] sm:$0xff]
      %v863 = vld [vmem:[%s272 + $0xa8] sm:$0xff]
      %v864 = vld [vmem:[%s272 + $0xb0] sm:$0xff]
      %v865 = vld [vmem:[%s272 + $0xb8] sm:$0xff]
      %v866 = vld [vmem:[%s272 + $0xc0] sm:$0xff]
      %v867 = vld [vmem:[%s272 + $0xc8] sm:$0xff]
      %v868 = vld [vmem:[%s272 + $0xd0] sm:$0xff]
      %v869 = vld [vmem:[%s272 + $0xd8] sm:$0xff]
      %v870 = vld [vmem:[%s272 + $0xe0] sm:$0xff]
      %v871 = vld [vmem:[%s272 + $0xe8] sm:$0xff]
      %v872 = vld [vmem:[%s272 + $0xf0] sm:$0xff]
      %v873 = vld [vmem:[%s272 + $0xf8] sm:$0xff]
      %v874 = vld [vmem:[%s272 + $0x100] sm:$0xff]
      %v875 = vld [vmem:[%s272 + $0x108] sm:$0xff]
      %v876 = vld [vmem:[%s272 + $0x110] sm:$0xff]
      %v877 = vld [vmem:[%s272 + $0x118] sm:$0xff]
      %v878 = vld [vmem:[%s272 + $0x120] sm:$0xff]
      %v879 = vld [vmem:[%s272 + $0x128] sm:$0xff]
      %v880 = vld [vmem:[%s272 + $0x130] sm:$0xff]
      %v881 = vld [vmem:[%s272 + $0x138] sm:$0xff]
      %v882 = vld [vmem:[%s272 + $0x140] sm:$0xff]
      %v883 = vld [vmem:[%s272 + $0x148] sm:$0xff]
      %v884 = vld [vmem:[%s272 + $0x150] sm:$0xff]
      %v885 = vld [vmem:[%s272 + $0x158] sm:$0xff]
      %v886 = vld [vmem:[%s272 + $0x160] sm:$0xff]
      %v887 = vld [vmem:[%s272 + $0x168] sm:$0xff]
      %v888 = vld [vmem:[%s272 + $0x170] sm:$0xff]
      %v889 = vld [vmem:[%s272 + $0x178] sm:$0xff]
      %v890 = vld [vmem:[%s272 + $0x180] sm:$0xff]
      %v891 = vld [vmem:[%s272 + $0x188] sm:$0xff]
      %v892 = vld [vmem:[%s272 + $0x190] sm:$0xff]
      %v893 = vpack.c.bf16 %v846, %v845
      %v894 = vpack.c.bf16 %v848, %v847
      %v895 = vpack.c.bf16 %v850, %v849
      %v896 = vpack.c.bf16 %v852, %v851
      %v897 = vpack.c.bf16 %v854, %v853
      %v898 = vpack.c.bf16 %v856, %v855
      %v899 = vpack.c.bf16 %v858, %v857
      %v900 = vpack.c.bf16 %v860, %v859
      %v901 = vpack.c.bf16 %v862, %v861
      %v902 = vpack.c.bf16 %v864, %v863
      %v903 = vpack.c.bf16 %v866, %v865
      %v904 = vpack.c.bf16 %v868, %v867
      %v905 = vpack.c.bf16 %v870, %v869
      %v906 = vpack.c.bf16 %v872, %v871
      %v907 = vpack.c.bf16 %v874, %v873
      %v908 = vpack.c.bf16 %v876, %v875
      %v909 = vpack.c.bf16 %v878, %v877
      %v910 = vpack.c.bf16 %v880, %v879
      %v911 = vpack.c.bf16 %v882, %v881
      %v912 = vpack.c.bf16 %v884, %v883
      %v913 = vpack.c.bf16 %v886, %v885
      %v914 = vpack.c.bf16 %v888, %v887
      %v915 = vpack.c.bf16 %v890, %v889
      %v916 = vpack.c.bf16 %v892, %v891
      %s917 = scalar_lea.vmem %s1, 192
      %v918 = vld [vmem:[%s917] sm:$0xf]
      %v919 = vld [vmem:[%s917 + $0x4] sm:$0xf]
      %v920 = vld [vmem:[%s917 + $0x8] sm:$0xf]
      %v921 = vld [vmem:[%s917 + $0xc] sm:$0xf]
      %v922 = vld [vmem:[%s917 + $0x10] sm:$0xf]
      %v923 = vld [vmem:[%s917 + $0x14] sm:$0xf]
      %v924 = vld [vmem:[%s917 + $0x18] sm:$0xf]
      %v925 = vld [vmem:[%s917 + $0x1c] sm:$0xf]
      %v926 = vld [vmem:[%s917 + $0x20] sm:$0xf]
      %v927 = vld [vmem:[%s917 + $0x24] sm:$0xf]
      %v928 = vld [vmem:[%s917 + $0x28] sm:$0xf]
      %v929 = vld [vmem:[%s917 + $0x2c] sm:$0xf]
      %v930 = vld [vmem:[%s917 + $0x30] sm:$0xf]
      %v931 = vld [vmem:[%s917 + $0x34] sm:$0xf]
      %v932 = vld [vmem:[%s917 + $0x38] sm:$0xf]
      %v933 = vld [vmem:[%s917 + $0x3c] sm:$0xf]
      %v950 = vunpack.c.l.b16 %v918
      %v951 = vunpack.c.l.b16 %v919
      %v952 = vunpack.c.l.b16 %v920
      %v953 = vunpack.c.l.b16 %v921
      %v954 = vunpack.c.l.b16 %v922
      %v955 = vunpack.c.l.b16 %v923
      %v956 = vunpack.c.l.b16 %v924
      %v957 = vunpack.c.l.b16 %v925
      %v958 = vunpack.c.l.b16 %v926
      %v959 = vunpack.c.l.b16 %v927
      %v960 = vunpack.c.l.b16 %v928
      %v961 = vunpack.c.l.b16 %v929
      %v962 = vunpack.c.l.b16 %v930
      %v963 = vunpack.c.l.b16 %v931
      %v964 = vunpack.c.l.b16 %v932
      %v965 = vunpack.c.l.b16 %v933
      %v966 = vpack.c.b16 %v951, %v950
      %v967 = vpack.c.b16 %v953, %v952
      %v968 = vpack.c.b16 %v955, %v954
      %v969 = vpack.c.b16 %v957, %v956
      %v970 = vpack.c.b16 %v959, %v958
      %v971 = vpack.c.b16 %v961, %v960
      %v972 = vpack.c.b16 %v963, %v962
      %v973 = vpack.c.b16 %v965, %v964
      %982 = vmatprep.subr.bf16.mxu0 0
      %983 = vmatpush1.bf16.msra.mxu0 %v966
      %984 = vmatprep.subr.bf16.mxu0 0
      %985 = vmatpush1.bf16.msra.mxu0 %v967
      %986 = vmatprep.subr.bf16.mxu0 0
      %987 = vmatpush1.bf16.msra.mxu0 %v968
      %988 = vmatprep.subr.bf16.mxu0 0
      %989 = vmatpush1.bf16.msra.mxu0 %v969
      %990 = vmatprep.subr.bf16.mxu0 0
      %991 = vmatpush1.bf16.msra.mxu0 %v970
      %992 = vmatprep.subr.bf16.mxu0 0
      %993 = vmatpush1.bf16.msra.mxu0 %v971
      %994 = vmatprep.subr.bf16.mxu0 0
      %995 = vmatpush1.bf16.msra.mxu0 %v972
      %996 = vmatprep.subr.bf16.mxu0 0
      %997 = vmatpush1.bf16.msra.mxu0 %v973
      %998 = vmatprep.subr.bf16.mxu0 0
      %999 = vmatpush1.bf16.msra.mxu0 0
      %1000 = vmatprep.subr.bf16.mxu0 0
      %1001 = vmatpush1.bf16.msra.mxu0 0
      %1002 = vmatprep.subr.bf16.mxu0 0
      %1003 = vmatpush1.bf16.msra.mxu0 0
      %1004 = vmatprep.subr.bf16.mxu0 0
      %1005 = vmatpush1.bf16.msra.mxu0 0
      %1006 = vmatprep.subr.bf16.mxu0 0
      %1007 = vmatpush1.bf16.msra.mxu0 0
      %1008 = vmatprep.subr.bf16.mxu0 0
      %1009 = vmatpush1.bf16.msra.mxu0 0
      %1010 = vmatprep.subr.bf16.mxu0 0
      %1011 = vmatpush1.bf16.msra.mxu0 0
      %1012 = vmatprep.subr.bf16.mxu0 0
      %1013 = vmatpush1.bf16.msra.mxu0 0
      %1014 = vmatprep.mubr.bf16.mxu0 0
      %1015 = vmatmul.mubr.bf16.gmra.mrb[0].mxu0 %v893
      %v1016 = vpop.f32.mrb[0].mxu0
      %v1017 = vadd.f32 0.0, %v1016
      %v1018 = vpop.f32.mrb[0].mxu0
      %v1019 = vpop.f32.mrb[0].mxu0
      %v1020 = vadd.f32 0.0, %v1019
      %v1021 = vpop.f32.mrb[0].mxu0
      %1022 = vmatprep.mubr.bf16.mxu0 0
      %1023 = vmatmul.mubr.bf16.gmra.mrb[0].mxu0 %v894
      %v1024 = vpop.f32.mrb[0].mxu0
      %v1025 = vadd.f32 0.0, %v1024
      %v1026 = vpop.f32.mrb[0].mxu0
      %v1027 = vpop.f32.mrb[0].mxu0
      %v1028 = vadd.f32 0.0, %v1027
      %v1029 = vpop.f32.mrb[0].mxu0
      %1030 = vmatprep.mubr.bf16.mxu0 0
      %1031 = vmatmul.mubr.bf16.gmra.mrb[0].mxu0 %v895
      %v1032 = vpop.f32.mrb[0].mxu0
      %v1033 = vadd.f32 0.0, %v1032
      %v1034 = vpop.f32.mrb[0].mxu0
      %v1035 = vpop.f32.mrb[0].mxu0
      %v1036 = vadd.f32 0.0, %v1035
      %v1037 = vpop.f32.mrb[0].mxu0
      %1038 = vmatprep.mubr.bf16.mxu0 0
      %1039 = vmatmul.mubr.bf16.gmra.mrb[0].mxu0 %v896
      %v1040 = vpop.f32.mrb[0].mxu0
      %v1041 = vadd.f32 0.0, %v1040
      %v1042 = vpop.f32.mrb[0].mxu0
      %v1043 = vpop.f32.mrb[0].mxu0
      %v1044 = vadd.f32 0.0, %v1043
      %v1045 = vpop.f32.mrb[0].mxu0
      %1046 = vmatprep.mubr.bf16.mxu0 0
      %1047 = vmatmul.mubr.bf16.gmra.mrb[0].mxu0 %v897
      %v1048 = vpop.f32.mrb[0].mxu0
      %v1049 = vadd.f32 0.0, %v1048
      %v1050 = vpop.f32.mrb[0].mxu0
      %v1051 = vpop.f32.mrb[0].mxu0
      %v1052 = vadd.f32 0.0, %v1051
      %v1053 = vpop.f32.mrb[0].mxu0
      %1054 = vmatprep.mubr.bf16.mxu0 0
      %1055 = vmatmul.mubr.bf16.gmra.mrb[0].mxu0 %v898
      %v1056 = vpop.f32.mrb[0].mxu0
      %v1057 = vadd.f32 0.0, %v1056
      %v1058 = vpop.f32.mrb[0].mxu0
      %v1059 = vpop.f32.mrb[0].mxu0
      %v1060 = vadd.f32 0.0, %v1059
      %v1061 = vpop.f32.mrb[0].mxu0
      %1062 = vmatprep.mubr.bf16.mxu0 0
      %1063 = vmatmul.mubr.bf16.gmra.mrb[0].mxu0 %v899
      %v1064 = vpop.f32.mrb[0].mxu0
      %v1065 = vadd.f32 0.0, %v1064
      %v1066 = vpop.f32.mrb[0].mxu0
      %v1067 = vpop.f32.mrb[0].mxu0
      %v1068 = vadd.f32 0.0, %v1067
      %v1069 = vpop.f32.mrb[0].mxu0
      %1070 = vmatprep.mubr.bf16.mxu0 0
      %1071 = vmatmul.mubr.bf16.gmra.mrb[0].mxu0 %v900
      %v1072 = vpop.f32.mrb[0].mxu0
      %v1073 = vadd.f32 0.0, %v1072
      %v1074 = vpop.f32.mrb[0].mxu0
      %v1075 = vpop.f32.mrb[0].mxu0
      %v1076 = vadd.f32 0.0, %v1075
      %v1077 = vpop.f32.mrb[0].mxu0
      %1078 = vmatprep.mubr.bf16.mxu0 0
      %1079 = vmatmul.mubr.bf16.gmra.mrb[0].mxu0 %v901
      %v1080 = vpop.f32.mrb[0].mxu0
      %v1081 = vadd.f32 0.0, %v1080
      %v1082 = vpop.f32.mrb[0].mxu0
      %v1083 = vpop.f32.mrb[0].mxu0
      %v1084 = vadd.f32 0.0, %v1083
      %v1085 = vpop.f32.mrb[0].mxu0
      %1086 = vmatprep.mubr.bf16.mxu0 0
      %1087 = vmatmul.mubr.bf16.gmra.mrb[0].mxu0 %v902
      %v1088 = vpop.f32.mrb[0].mxu0
      %v1089 = vadd.f32 0.0, %v1088
      %v1090 = vpop.f32.mrb[0].mxu0
      %v1091 = vpop.f32.mrb[0].mxu0
      %v1092 = vadd.f32 0.0, %v1091
      %v1093 = vpop.f32.mrb[0].mxu0
      %1094 = vmatprep.mubr.bf16.mxu0 0
      %1095 = vmatmul.mubr.bf16.gmra.mrb[0].mxu0 %v903
      %v1096 = vpop.f32.mrb[0].mxu0
      %v1097 = vadd.f32 0.0, %v1096
      %v1098 = vpop.f32.mrb[0].mxu0
      %v1099 = vpop.f32.mrb[0].mxu0
      %v1100 = vadd.f32 0.0, %v1099
      %v1101 = vpop.f32.mrb[0].mxu0
      %1102 = vmatprep.mubr.bf16.mxu0 0
      %1103 = vmatmul.mubr.bf16.gmra.mrb[0].mxu0 %v904
      %v1104 = vpop.f32.mrb[0].mxu0
      %v1105 = vadd.f32 0.0, %v1104
      %v1106 = vpop.f32.mrb[0].mxu0
      %v1107 = vpop.f32.mrb[0].mxu0
      %v1108 = vadd.f32 0.0, %v1107
      %v1109 = vpop.f32.mrb[0].mxu0
      %1110 = vmatprep.mubr.bf16.mxu0 0
      %1111 = vmatmul.mubr.bf16.gmra.mrb[0].mxu0 %v905
      %v1112 = vpop.f32.mrb[0].mxu0
      %v1113 = vadd.f32 0.0, %v1112
      %v1114 = vpop.f32.mrb[0].mxu0
      %v1115 = vpop.f32.mrb[0].mxu0
      %v1116 = vadd.f32 0.0, %v1115
      %v1117 = vpop.f32.mrb[0].mxu0
      %1118 = vmatprep.mubr.bf16.mxu0 0
      %1119 = vmatmul.mubr.bf16.gmra.mrb[0].mxu0 %v906
      %v1120 = vpop.f32.mrb[0].mxu0
      %v1121 = vadd.f32 0.0, %v1120
      %v1122 = vpop.f32.mrb[0].mxu0
      %v1123 = vpop.f32.mrb[0].mxu0
      %v1124 = vadd.f32 0.0, %v1123
      %v1125 = vpop.f32.mrb[0].mxu0
      %1126 = vmatprep.mubr.bf16.mxu0 0
      %1127 = vmatmul.mubr.bf16.gmra.mrb[0].mxu0 %v907
      %v1128 = vpop.f32.mrb[0].mxu0
      %v1129 = vadd.f32 0.0, %v1128
      %v1130 = vpop.f32.mrb[0].mxu0
      %v1131 = vpop.f32.mrb[0].mxu0
      %v1132 = vadd.f32 0.0, %v1131
      %v1133 = vpop.f32.mrb[0].mxu0
      %1134 = vmatprep.mubr.bf16.mxu0 0
      %1135 = vmatmul.mubr.bf16.gmra.mrb[0].mxu0 %v908
      %v1136 = vpop.f32.mrb[0].mxu0
      %v1137 = vadd.f32 0.0, %v1136
      %v1138 = vpop.f32.mrb[0].mxu0
      %v1139 = vpop.f32.mrb[0].mxu0
      %v1140 = vadd.f32 0.0, %v1139
      %v1141 = vpop.f32.mrb[0].mxu0
      %1142 = vmatprep.mubr.bf16.mxu0 0
      %1143 = vmatmul.mubr.bf16.gmra.mrb[0].mxu0 %v909
      %v1144 = vpop.f32.mrb[0].mxu0
      %v1145 = vadd.f32 0.0, %v1144
      %v1146 = vpop.f32.mrb[0].mxu0
      %v1147 = vpop.f32.mrb[0].mxu0
      %v1148 = vadd.f32 0.0, %v1147
      %v1149 = vpop.f32.mrb[0].mxu0
      %1150 = vmatprep.mubr.bf16.mxu0 0
      %1151 = vmatmul.mubr.bf16.gmra.mrb[0].mxu0 %v910
      %v1152 = vpop.f32.mrb[0].mxu0
      %v1153 = vadd.f32 0.0, %v1152
      %v1154 = vpop.f32.mrb[0].mxu0
      %v1155 = vpop.f32.mrb[0].mxu0
      %v1156 = vadd.f32 0.0, %v1155
      %v1157 = vpop.f32.mrb[0].mxu0
      %1158 = vmatprep.mubr.bf16.mxu0 0
      %1159 = vmatmul.mubr.bf16.gmra.mrb[0].mxu0 %v911
      %v1160 = vpop.f32.mrb[0].mxu0
      %v1161 = vadd.f32 0.0, %v1160
      %v1162 = vpop.f32.mrb[0].mxu0
      %v1163 = vpop.f32.mrb[0].mxu0
      %v1164 = vadd.f32 0.0, %v1163
      %v1165 = vpop.f32.mrb[0].mxu0
      %1166 = vmatprep.mubr.bf16.mxu0 0
      %1167 = vmatmul.mubr.bf16.gmra.mrb[0].mxu0 %v912
      %v1168 = vpop.f32.mrb[0].mxu0
      %v1169 = vadd.f32 0.0, %v1168
      %v1170 = vpop.f32.mrb[0].mxu0
      %v1171 = vpop.f32.mrb[0].mxu0
      %v1172 = vadd.f32 0.0, %v1171
      %v1173 = vpop.f32.mrb[0].mxu0
      %1174 = vmatprep.mubr.bf16.mxu0 0
      %1175 = vmatmul.mubr.bf16.gmra.mrb[0].mxu0 %v913
      %v1176 = vpop.f32.mrb[0].mxu0
      %v1177 = vadd.f32 0.0, %v1176
      %v1178 = vpop.f32.mrb[0].mxu0
      %v1179 = vpop.f32.mrb[0].mxu0
      %v1180 = vadd.f32 0.0, %v1179
      %v1181 = vpop.f32.mrb[0].mxu0
      %1182 = vmatprep.mubr.bf16.mxu0 0
      %1183 = vmatmul.mubr.bf16.gmra.mrb[0].mxu0 %v914
      %v1184 = vpop.f32.mrb[0].mxu0
      %v1185 = vadd.f32 0.0, %v1184
      %v1186 = vpop.f32.mrb[0].mxu0
      %v1187 = vpop.f32.mrb[0].mxu0
      %v1188 = vadd.f32 0.0, %v1187
      %v1189 = vpop.f32.mrb[0].mxu0
      %1190 = vmatprep.mubr.bf16.mxu0 0
      %1191 = vmatmul.mubr.bf16.gmra.mrb[0].mxu0 %v915
      %v1192 = vpop.f32.mrb[0].mxu0
      %v1193 = vadd.f32 0.0, %v1192
      %v1194 = vpop.f32.mrb[0].mxu0
      %v1195 = vpop.f32.mrb[0].mxu0
      %v1196 = vadd.f32 0.0, %v1195
      %v1197 = vpop.f32.mrb[0].mxu0
      %1198 = vmatprep.mubr.bf16.mxu0 0
      %1199 = vmatmul.mubr.bf16.gmra.mrb[0].mxu0 %v916
      %v1200 = vpop.f32.mrb[0].mxu0
      %v1201 = vadd.f32 0.0, %v1200
      %v1202 = vpop.f32.mrb[0].mxu0
      %v1203 = vpop.f32.mrb[0].mxu0
      %v1204 = vadd.f32 0.0, %v1203
      %v1205 = vpop.f32.mrb[0].mxu0
      %1206 = vdwg.mxu0
      %v1207 = vld [vmem:[%s272 + $0x19] sm:$0xff]
      %v1208 = vld [vmem:[%s272 + $0x21] sm:$0xff]
      %v1209 = vld [vmem:[%s272 + $0x29] sm:$0xff]
      %v1210 = vld [vmem:[%s272 + $0x31] sm:$0xff]
      %v1211 = vld [vmem:[%s272 + $0x39] sm:$0xff]
      %v1212 = vld [vmem:[%s272 + $0x41] sm:$0xff]
      %v1213 = vld [vmem:[%s272 + $0x49] sm:$0xff]
      %v1214 = vld [vmem:[%s272 + $0x51] sm:$0xff]
      %v1215 = vld [vmem:[%s272 + $0x59] sm:$0xff]
      %v1216 = vld [vmem:[%s272 + $0x61] sm:$0xff]
      %v1217 = vld [vmem:[%s272 + $0x69] sm:$0xff]
      %v1218 = vld [vmem:[%s272 + $0x71] sm:$0xff]
      %v1219 = vld [vmem:[%s272 + $0x79] sm:$0xff]
      %v1220 = vld [vmem:[%s272 + $0x81] sm:$0xff]
      %v1221 = vld [vmem:[%s272 + $0x89] sm:$0xff]
      %v1222 = vld [vmem:[%s272 + $0x91] sm:$0xff]
      %v1223 = vld [vmem:[%s272 + $0x99] sm:$0xff]
      %v1224 = vld [vmem:[%s272 + $0xa1] sm:$0xff]
      %v1225 = vld [vmem:[%s272 + $0xa9] sm:$0xff]
      %v1226 = vld [vmem:[%s272 + $0xb1] sm:$0xff]
      %v1227 = vld [vmem:[%s272 + $0xb9] sm:$0xff]
      %v1228 = vld [vmem:[%s272 + $0xc1] sm:$0xff]
      %v1229 = vld [vmem:[%s272 + $0xc9] sm:$0xff]
      %v1230 = vld [vmem:[%s272 + $0xd1] sm:$0xff]
      %v1231 = vld [vmem:[%s272 + $0xd9] sm:$0xff]
      %v1232 = vld [vmem:[%s272 + $0xe1] sm:$0xff]
      %v1233 = vld [vmem:[%s272 + $0xe9] sm:$0xff]
      %v1234 = vld [vmem:[%s272 + $0xf1] sm:$0xff]
      %v1235 = vld [vmem:[%s272 + $0xf9] sm:$0xff]
      %v1236 = vld [vmem:[%s272 + $0x101] sm:$0xff]
      %v1237 = vld [vmem:[%s272 + $0x109] sm:$0xff]
      %v1238 = vld [vmem:[%s272 + $0x111] sm:$0xff]
      %v1239 = vld [vmem:[%s272 + $0x119] sm:$0xff]
      %v1240 = vld [vmem:[%s272 + $0x121] sm:$0xff]
      %v1241 = vld [vmem:[%s272 + $0x129] sm:$0xff]
      %v1242 = vld [vmem:[%s272 + $0x131] sm:$0xff]
      %v1243 = vld [vmem:[%s272 + $0x139] sm:$0xff]
      %v1244 = vld [vmem:[%s272 + $0x141] sm:$0xff]
      %v1245 = vld [vmem:[%s272 + $0x149] sm:$0xff]
      %v1246 = vld [vmem:[%s272 + $0x151] sm:$0xff]
      %v1247 = vld [vmem:[%s272 + $0x159] sm:$0xff]
      %v1248 = vld [vmem:[%s272 + $0x161] sm:$0xff]
      %v1249 = vld [vmem:[%s272 + $0x169] sm:$0xff]
      %v1250 = vld [vmem:[%s272 + $0x171] sm:$0xff]
      %v1251 = vld [vmem:[%s272 + $0x179] sm:$0xff]
      %v1252 = vld [vmem:[%s272 + $0x181] sm:$0xff]
      %v1253 = vld [vmem:[%s272 + $0x189] sm:$0xff]
      %v1254 = vld [vmem:[%s272 + $0x191] sm:$0xff]
      %v1255 = vpack.c.bf16 %v1208, %v1207
      %v1256 = vpack.c.bf16 %v1210, %v1209
      %v1257 = vpack.c.bf16 %v1212, %v1211
      %v1258 = vpack.c.bf16 %v1214, %v1213
      %v1259 = vpack.c.bf16 %v1216, %v1215
      %v1260 = vpack.c.bf16 %v1218, %v1217
      %v1261 = vpack.c.bf16 %v1220, %v1219
      %v1262 = vpack.c.bf16 %v1222, %v1221
      %v1263 = vpack.c.bf16 %v1224, %v1223
      %v1264 = vpack.c.bf16 %v1226, %v1225
      %v1265 = vpack.c.bf16 %v1228, %v1227
      %v1266 = vpack.c.bf16 %v1230, %v1229
      %v1267 = vpack.c.bf16 %v1232, %v1231
      %v1268 = vpack.c.bf16 %v1234, %v1233
      %v1269 = vpack.c.bf16 %v1236, %v1235
      %v1270 = vpack.c.bf16 %v1238, %v1237
      %v1271 = vpack.c.bf16 %v1240, %v1239
      %v1272 = vpack.c.bf16 %v1242, %v1241
      %v1273 = vpack.c.bf16 %v1244, %v1243
      %v1274 = vpack.c.bf16 %v1246, %v1245
      %v1275 = vpack.c.bf16 %v1248, %v1247
      %v1276 = vpack.c.bf16 %v1250, %v1249
      %v1277 = vpack.c.bf16 %v1252, %v1251
      %v1278 = vpack.c.bf16 %v1254, %v1253
      %s1279 = scalar_lea.vmem %s1, 256
      %v1280 = vld [vmem:[%s1279] sm:$0xf]
      %v1281 = vld [vmem:[%s1279 + $0x4] sm:$0xf]
      %v1282 = vld [vmem:[%s1279 + $0x8] sm:$0xf]
      %v1283 = vld [vmem:[%s1279 + $0xc] sm:$0xf]
      %v1284 = vld [vmem:[%s1279 + $0x10] sm:$0xf]
      %v1285 = vld [vmem:[%s1279 + $0x14] sm:$0xf]
      %v1286 = vld [vmem:[%s1279 + $0x18] sm:$0xf]
      %v1287 = vld [vmem:[%s1279 + $0x1c] sm:$0xf]
      %v1288 = vld [vmem:[%s1279 + $0x20] sm:$0xf]
      %v1289 = vld [vmem:[%s1279 + $0x24] sm:$0xf]
      %v1290 = vld [vmem:[%s1279 + $0x28] sm:$0xf]
      %v1291 = vld [vmem:[%s1279 + $0x2c] sm:$0xf]
      %v1292 = vld [vmem:[%s1279 + $0x30] sm:$0xf]
      %v1293 = vld [vmem:[%s1279 + $0x34] sm:$0xf]
      %v1294 = vld [vmem:[%s1279 + $0x38] sm:$0xf]
      %v1295 = vld [vmem:[%s1279 + $0x3c] sm:$0xf]
      %v1296 = vld [vmem:[%s272 + $0x1a] sm:$0xff]
      %v1297 = vld [vmem:[%s272 + $0x22] sm:$0xff]
      %v1298 = vld [vmem:[%s272 + $0x2a] sm:$0xff]
      %v1299 = vld [vmem:[%s272 + $0x32] sm:$0xff]
      %v1300 = vld [vmem:[%s272 + $0x3a] sm:$0xff]
      %v1301 = vld [vmem:[%s272 + $0x42] sm:$0xff]
      %v1302 = vld [vmem:[%s272 + $0x4a] sm:$0xff]
      %v1303 = vld [vmem:[%s272 + $0x52] sm:$0xff]
      %v1304 = vld [vmem:[%s272 + $0x5a] sm:$0xff]
      %v1305 = vld [vmem:[%s272 + $0x62] sm:$0xff]
      %v1306 = vld [vmem:[%s272 + $0x6a] sm:$0xff]
      %v1307 = vld [vmem:[%s272 + $0x72] sm:$0xff]
      %v1308 = vld [vmem:[%s272 + $0x7a] sm:$0xff]
      %v1309 = vld [vmem:[%s272 + $0x82] sm:$0xff]
      %v1310 = vld [vmem:[%s272 + $0x8a] sm:$0xff]
      %v1311 = vld [vmem:[%s272 + $0x92] sm:$0xff]
      %v1312 = vld [vmem:[%s272 + $0x9a] sm:$0xff]
      %v1313 = vld [vmem:[%s272 + $0xa2] sm:$0xff]
      %v1314 = vld [vmem:[%s272 + $0xaa] sm:$0xff]
      %v1315 = vld [vmem:[%s272 + $0xb2] sm:$0xff]
      %v1316 = vld [vmem:[%s272 + $0xba] sm:$0xff]
      %v1317 = vld [vmem:[%s272 + $0xc2] sm:$0xff]
      %v1318 = vld [vmem:[%s272 + $0xca] sm:$0xff]
      %v1319 = vld [vmem:[%s272 + $0xd2] sm:$0xff]
      %v1320 = vld [vmem:[%s272 + $0xda] sm:$0xff]
      %v1321 = vld [vmem:[%s272 + $0xe2] sm:$0xff]
      %v1322 = vld [vmem:[%s272 + $0xea] sm:$0xff]
      %v1323 = vld [vmem:[%s272 + $0xf2] sm:$0xff]
      %v1324 = vld [vmem:[%s272 + $0xfa] sm:$0xff]
      %v1325 = vld [vmem:[%s272 + $0x102] sm:$0xff]
      %v1326 = vld [vmem:[%s272 + $0x10a] sm:$0xff]
      %v1327 = vld [vmem:[%s272 + $0x112] sm:$0xff]
      %v1328 = vld [vmem:[%s272 + $0x11a] sm:$0xff]
      %v1329 = vld [vmem:[%s272 + $0x122] sm:$0xff]
      %v1330 = vld [vmem:[%s272 + $0x12a] sm:$0xff]
      %v1331 = vld [vmem:[%s272 + $0x132] sm:$0xff]
      %v1332 = vld [vmem:[%s272 + $0x13a] sm:$0xff]
      %v1333 = vld [vmem:[%s272 + $0x142] sm:$0xff]
      %v1334 = vld [vmem:[%s272 + $0x14a] sm:$0xff]
      %v1335 = vld [vmem:[%s272 + $0x152] sm:$0xff]
      %v1336 = vld [vmem:[%s272 + $0x15a] sm:$0xff]
      %v1337 = vld [vmem:[%s272 + $0x162] sm:$0xff]
      %v1338 = vld [vmem:[%s272 + $0x16a] sm:$0xff]
      %v1339 = vld [vmem:[%s272 + $0x172] sm:$0xff]
      %v1340 = vld [vmem:[%s272 + $0x17a] sm:$0xff]
      %v1341 = vld [vmem:[%s272 + $0x182] sm:$0xff]
      %v1342 = vld [vmem:[%s272 + $0x18a] sm:$0xff]
      %v1343 = vld [vmem:[%s272 + $0x192] sm:$0xff]
      %v1344 = vpack.c.bf16 %v1297, %v1296
      %v1345 = vpack.c.bf16 %v1299, %v1298
      %v1346 = vpack.c.bf16 %v1301, %v1300
      %v1347 = vpack.c.bf16 %v1303, %v1302
      %v1348 = vpack.c.bf16 %v1305, %v1304
      %v1349 = vpack.c.bf16 %v1307, %v1306
      %v1350 = vpack.c.bf16 %v1309, %v1308
      %v1351 = vpack.c.bf16 %v1311, %v1310
      %v1352 = vpack.c.bf16 %v1313, %v1312
      %v1353 = vpack.c.bf16 %v1315, %v1314
      %v1354 = vpack.c.bf16 %v1317, %v1316
      %v1355 = vpack.c.bf16 %v1319, %v1318
      %v1356 = vpack.c.bf16 %v1321, %v1320
      %v1357 = vpack.c.bf16 %v1323, %v1322
      %v1358 = vpack.c.bf16 %v1325, %v1324
      %v1359 = vpack.c.bf16 %v1327, %v1326
      %v1360 = vpack.c.bf16 %v1329, %v1328
      %v1361 = vpack.c.bf16 %v1331, %v1330
      %v1362 = vpack.c.bf16 %v1333, %v1332
      %v1363 = vpack.c.bf16 %v1335, %v1334
      %v1364 = vpack.c.bf16 %v1337, %v1336
      %v1365 = vpack.c.bf16 %v1339, %v1338
      %v1366 = vpack.c.bf16 %v1341, %v1340
      %v1367 = vpack.c.bf16 %v1343, %v1342
      %s1368 = scalar_lea.vmem %s1, 320
      %v1369 = vld [vmem:[%s1368] sm:$0xf]
      %v1370 = vld [vmem:[%s1368 + $0x4] sm:$0xf]
      %v1371 = vld [vmem:[%s1368 + $0x8] sm:$0xf]
      %v1372 = vld [vmem:[%s1368 + $0xc] sm:$0xf]
      %v1373 = vld [vmem:[%s1368 + $0x10] sm:$0xf]
      %v1374 = vld [vmem:[%s1368 + $0x14] sm:$0xf]
      %v1375 = vld [vmem:[%s1368 + $0x18] sm:$0xf]
      %v1376 = vld [vmem:[%s1368 + $0x1c] sm:$0xf]
      %v1377 = vld [vmem:[%s1368 + $0x20] sm:$0xf]
      %v1378 = vld [vmem:[%s1368 + $0x24] sm:$0xf]
      %v1379 = vld [vmem:[%s1368 + $0x28] sm:$0xf]
      %v1380 = vld [vmem:[%s1368 + $0x2c] sm:$0xf]
      %v1381 = vld [vmem:[%s1368 + $0x30] sm:$0xf]
      %v1382 = vld [vmem:[%s1368 + $0x34] sm:$0xf]
      %v1383 = vld [vmem:[%s1368 + $0x38] sm:$0xf]
      %v1384 = vld [vmem:[%s1368 + $0x3c] sm:$0xf]
      %v1401 = vunpack.c.l.b16 %v1369
      %v1402 = vunpack.c.l.b16 %v1370
      %v1403 = vunpack.c.l.b16 %v1371
      %v1404 = vunpack.c.l.b16 %v1372
      %v1405 = vunpack.c.l.b16 %v1373
      %v1406 = vunpack.c.l.b16 %v1374
      %v1407 = vunpack.c.l.b16 %v1375
      %v1408 = vunpack.c.l.b16 %v1376
      %v1409 = vunpack.c.l.b16 %v1377
      %v1410 = vunpack.c.l.b16 %v1378
      %v1411 = vunpack.c.l.b16 %v1379
      %v1412 = vunpack.c.l.b16 %v1380
      %v1413 = vunpack.c.l.b16 %v1381
      %v1414 = vunpack.c.l.b16 %v1382
      %v1415 = vunpack.c.l.b16 %v1383
      %v1416 = vunpack.c.l.b16 %v1384
      %v1417 = vpack.c.b16 %v1402, %v1401
      %v1418 = vpack.c.b16 %v1404, %v1403
      %v1419 = vpack.c.b16 %v1406, %v1405
      %v1420 = vpack.c.b16 %v1408, %v1407
      %v1421 = vpack.c.b16 %v1410, %v1409
      %v1422 = vpack.c.b16 %v1412, %v1411
      %v1423 = vpack.c.b16 %v1414, %v1413
      %v1424 = vpack.c.b16 %v1416, %v1415
      %1433 = vmatprep.subr.bf16.mxu0 0
      %1434 = vmatpush1.bf16.msra.mxu0 %v1417
      %1435 = vmatprep.subr.bf16.mxu0 0
      %1436 = vmatpush1.bf16.msra.mxu0 %v1418
      %1437 = vmatprep.subr.bf16.mxu0 0
      %1438 = vmatpush1.bf16.msra.mxu0 %v1419
      %1439 = vmatprep.subr.bf16.mxu0 0
      %1440 = vmatpush1.bf16.msra.mxu0 %v1420
      %1441 = vmatprep.subr.bf16.mxu0 0
      %1442 = vmatpush1.bf16.msra.mxu0 %v1421
      %1443 = vmatprep.subr.bf16.mxu0 0
      %1444 = vmatpush1.bf16.msra.mxu0 %v1422
      %1445 = vmatprep.subr.bf16.mxu0 0
      %1446 = vmatpush1.bf16.msra.mxu0 %v1423
      %1447 = vmatprep.subr.bf16.mxu0 0
      %1448 = vmatpush1.bf16.msra.mxu0 %v1424
      %1449 = vmatprep.subr.bf16.mxu0 0
      %1450 = vmatpush1.bf16.msra.mxu0 0
      %1451 = vmatprep.subr.bf16.mxu0 0
      %1452 = vmatpush1.bf16.msra.mxu0 0
      %1453 = vmatprep.subr.bf16.mxu0 0
      %1454 = vmatpush1.bf16.msra.mxu0 0
      %1455 = vmatprep.subr.bf16.mxu0 0
      %1456 = vmatpush1.bf16.msra.mxu0 0
      %1457 = vmatprep.subr.bf16.mxu0 0
      %1458 = vmatpush1.bf16.msra.mxu0 0
      %1459 = vmatprep.subr.bf16.mxu0 0
      %1460 = vmatpush1.bf16.msra.mxu0 0
      %1461 = vmatprep.subr.bf16.mxu0 0
      %1462 = vmatpush1.bf16.msra.mxu0 0
      %1463 = vmatprep.subr.bf16.mxu0 0
      %1464 = vmatpush1.bf16.msra.mxu0 0
      %1465 = vmatprep.mubr.bf16.mxu0 0
      %1466 = vmatmul.mubr.bf16.gmra.mrb[0].mxu0 %v1344
      %v1467 = vpop.f32.mrb[0].mxu0
      %v1468 = vadd.f32 0.0, %v1467
      %v1469 = vpop.f32.mrb[0].mxu0
      %v1470 = vpop.f32.mrb[0].mxu0
      %v1471 = vadd.f32 0.0, %v1470
      %v1472 = vpop.f32.mrb[0].mxu0
      %1473 = vmatprep.mubr.bf16.mxu0 0
      %1474 = vmatmul.mubr.bf16.gmra.mrb[0].mxu0 %v1345
      %v1475 = vpop.f32.mrb[0].mxu0
      %v1476 = vadd.f32 0.0, %v1475
      %v1477 = vpop.f32.mrb[0].mxu0
      %v1478 = vpop.f32.mrb[0].mxu0
      %v1479 = vadd.f32 0.0, %v1478
      %v1480 = vpop.f32.mrb[0].mxu0
      %1481 = vmatprep.mubr.bf16.mxu0 0
      %1482 = vmatmul.mubr.bf16.gmra.mrb[0].mxu0 %v1346
      %v1483 = vpop.f32.mrb[0].mxu0
      %v1484 = vadd.f32 0.0, %v1483
      %v1485 = vpop.f32.mrb[0].mxu0
      %v1486 = vpop.f32.mrb[0].mxu0
      %v1487 = vadd.f32 0.0, %v1486
      %v1488 = vpop.f32.mrb[0].mxu0
      %1489 = vmatprep.mubr.bf16.mxu0 0
      %1490 = vmatmul.mubr.bf16.gmra.mrb[0].mxu0 %v1347
      %v1491 = vpop.f32.mrb[0].mxu0
      %v1492 = vadd.f32 0.0, %v1491
      %v1493 = vpop.f32.mrb[0].mxu0
      %v1494 = vpop.f32.mrb[0].mxu0
      %v1495 = vadd.f32 0.0, %v1494
      %v1496 = vpop.f32.mrb[0].mxu0
      %1497 = vmatprep.mubr.bf16.mxu0 0
      %1498 = vmatmul.mubr.bf16.gmra.mrb[0].mxu0 %v1348
      %v1499 = vpop.f32.mrb[0].mxu0
      %v1500 = vadd.f32 0.0, %v1499
      %v1501 = vpop.f32.mrb[0].mxu0
      %v1502 = vpop.f32.mrb[0].mxu0
      %v1503 = vadd.f32 0.0, %v1502
      %v1504 = vpop.f32.mrb[0].mxu0
      %1505 = vmatprep.mubr.bf16.mxu0 0
      %1506 = vmatmul.mubr.bf16.gmra.mrb[0].mxu0 %v1349
      %v1507 = vpop.f32.mrb[0].mxu0
      %v1508 = vadd.f32 0.0, %v1507
      %v1509 = vpop.f32.mrb[0].mxu0
      %v1510 = vpop.f32.mrb[0].mxu0
      %v1511 = vadd.f32 0.0, %v1510
      %v1512 = vpop.f32.mrb[0].mxu0
      %1513 = vmatprep.mubr.bf16.mxu0 0
      %1514 = vmatmul.mubr.bf16.gmra.mrb[0].mxu0 %v1350
      %v1515 = vpop.f32.mrb[0].mxu0
      %v1516 = vadd.f32 0.0, %v1515
      %v1517 = vpop.f32.mrb[0].mxu0
      %v1518 = vpop.f32.mrb[0].mxu0
      %v1519 = vadd.f32 0.0, %v1518
      %v1520 = vpop.f32.mrb[0].mxu0
      %1521 = vmatprep.mubr.bf16.mxu0 0
      %1522 = vmatmul.mubr.bf16.gmra.mrb[0].mxu0 %v1351
      %v1523 = vpop.f32.mrb[0].mxu0
      %v1524 = vadd.f32 0.0, %v1523
      %v1525 = vpop.f32.mrb[0].mxu0
      %v1526 = vpop.f32.mrb[0].mxu0
      %v1527 = vadd.f32 0.0, %v1526
      %v1528 = vpop.f32.mrb[0].mxu0
      %1529 = vmatprep.mubr.bf16.mxu0 0
      %1530 = vmatmul.mubr.bf16.gmra.mrb[0].mxu0 %v1352
      %v1531 = vpop.f32.mrb[0].mxu0
      %v1532 = vadd.f32 0.0, %v1531
      %v1533 = vpop.f32.mrb[0].mxu0
      %v1534 = vpop.f32.mrb[0].mxu0
      %v1535 = vadd.f32 0.0, %v1534
      %v1536 = vpop.f32.mrb[0].mxu0
      %1537 = vmatprep.mubr.bf16.mxu0 0
      %1538 = vmatmul.mubr.bf16.gmra.mrb[0].mxu0 %v1353
      %v1539 = vpop.f32.mrb[0].mxu0
      %v1540 = vadd.f32 0.0, %v1539
      %v1541 = vpop.f32.mrb[0].mxu0
      %v1542 = vpop.f32.mrb[0].mxu0
      %v1543 = vadd.f32 0.0, %v1542
      %v1544 = vpop.f32.mrb[0].mxu0
      %1545 = vmatprep.mubr.bf16.mxu0 0
      %1546 = vmatmul.mubr.bf16.gmra.mrb[0].mxu0 %v1354
      %v1547 = vpop.f32.mrb[0].mxu0
      %v1548 = vadd.f32 0.0, %v1547
      %v1549 = vpop.f32.mrb[0].mxu0
      %v1550 = vpop.f32.mrb[0].mxu0
      %v1551 = vadd.f32 0.0, %v1550
      %v1552 = vpop.f32.mrb[0].mxu0
      %1553 = vmatprep.mubr.bf16.mxu0 0
      %1554 = vmatmul.mubr.bf16.gmra.mrb[0].mxu0 %v1355
      %v1555 = vpop.f32.mrb[0].mxu0
      %v1556 = vadd.f32 0.0, %v1555
      %v1557 = vpop.f32.mrb[0].mxu0
      %v1558 = vpop.f32.mrb[0].mxu0
      %v1559 = vadd.f32 0.0, %v1558
      %v1560 = vpop.f32.mrb[0].mxu0
      %1561 = vmatprep.mubr.bf16.mxu0 0
      %1562 = vmatmul.mubr.bf16.gmra.mrb[0].mxu0 %v1356
      %v1563 = vpop.f32.mrb[0].mxu0
      %v1564 = vadd.f32 0.0, %v1563
      %v1565 = vpop.f32.mrb[0].mxu0
      %v1566 = vpop.f32.mrb[0].mxu0
      %v1567 = vadd.f32 0.0, %v1566
      %v1568 = vpop.f32.mrb[0].mxu0
      %1569 = vmatprep.mubr.bf16.mxu0 0
      %1570 = vmatmul.mubr.bf16.gmra.mrb[0].mxu0 %v1357
      %v1571 = vpop.f32.mrb[0].mxu0
      %v1572 = vadd.f32 0.0, %v1571
      %v1573 = vpop.f32.mrb[0].mxu0
      %v1574 = vpop.f32.mrb[0].mxu0
      %v1575 = vadd.f32 0.0, %v1574
      %v1576 = vpop.f32.mrb[0].mxu0
      %1577 = vmatprep.mubr.bf16.mxu0 0
      %1578 = vmatmul.mubr.bf16.gmra.mrb[0].mxu0 %v1358
      %v1579 = vpop.f32.mrb[0].mxu0
      %v1580 = vadd.f32 0.0, %v1579
      %v1581 = vpop.f32.mrb[0].mxu0
      %v1582 = vpop.f32.mrb[0].mxu0
      %v1583 = vadd.f32 0.0, %v1582
      %v1584 = vpop.f32.mrb[0].mxu0
      %1585 = vmatprep.mubr.bf16.mxu0 0
      %1586 = vmatmul.mubr.bf16.gmra.mrb[0].mxu0 %v1359
      %v1587 = vpop.f32.mrb[0].mxu0
      %v1588 = vadd.f32 0.0, %v1587
      %v1589 = vpop.f32.mrb[0].mxu0
      %v1590 = vpop.f32.mrb[0].mxu0
      %v1591 = vadd.f32 0.0, %v1590
      %v1592 = vpop.f32.mrb[0].mxu0
      %1593 = vmatprep.mubr.bf16.mxu0 0
      %1594 = vmatmul.mubr.bf16.gmra.mrb[0].mxu0 %v1360
      %v1595 = vpop.f32.mrb[0].mxu0
      %v1596 = vadd.f32 0.0, %v1595
      %v1597 = vpop.f32.mrb[0].mxu0
      %v1598 = vpop.f32.mrb[0].mxu0
      %v1599 = vadd.f32 0.0, %v1598
      %v1600 = vpop.f32.mrb[0].mxu0
      %1601 = vmatprep.mubr.bf16.mxu0 0
      %1602 = vmatmul.mubr.bf16.gmra.mrb[0].mxu0 %v1361
      %v1603 = vpop.f32.mrb[0].mxu0
      %v1604 = vadd.f32 0.0, %v1603
      %v1605 = vpop.f32.mrb[0].mxu0
      %v1606 = vpop.f32.mrb[0].mxu0
      %v1607 = vadd.f32 0.0, %v1606
      %v1608 = vpop.f32.mrb[0].mxu0
      %1609 = vmatprep.mubr.bf16.mxu0 0
      %1610 = vmatmul.mubr.bf16.gmra.mrb[0].mxu0 %v1362
      %v1611 = vpop.f32.mrb[0].mxu0
      %v1612 = vadd.f32 0.0, %v1611
      %v1613 = vpop.f32.mrb[0].mxu0
      %v1614 = vpop.f32.mrb[0].mxu0
      %v1615 = vadd.f32 0.0, %v1614
      %v1616 = vpop.f32.mrb[0].mxu0
      %1617 = vmatprep.mubr.bf16.mxu0 0
      %1618 = vmatmul.mubr.bf16.gmra.mrb[0].mxu0 %v1363
      %v1619 = vpop.f32.mrb[0].mxu0
      %v1620 = vadd.f32 0.0, %v1619
      %v1621 = vpop.f32.mrb[0].mxu0
      %v1622 = vpop.f32.mrb[0].mxu0
      %v1623 = vadd.f32 0.0, %v1622
      %v1624 = vpop.f32.mrb[0].mxu0
      %1625 = vmatprep.mubr.bf16.mxu0 0
      %1626 = vmatmul.mubr.bf16.gmra.mrb[0].mxu0 %v1364
      %v1627 = vpop.f32.mrb[0].mxu0
      %v1628 = vadd.f32 0.0, %v1627
      %v1629 = vpop.f32.mrb[0].mxu0
      %v1630 = vpop.f32.mrb[0].mxu0
      %v1631 = vadd.f32 0.0, %v1630
      %v1632 = vpop.f32.mrb[0].mxu0
      %1633 = vmatprep.mubr.bf16.mxu0 0
      %1634 = vmatmul.mubr.bf16.gmra.mrb[0].mxu0 %v1365
      %v1635 = vpop.f32.mrb[0].mxu0
      %v1636 = vadd.f32 0.0, %v1635
      %v1637 = vpop.f32.mrb[0].mxu0
      %v1638 = vpop.f32.mrb[0].mxu0
      %v1639 = vadd.f32 0.0, %v1638
      %v1640 = vpop.f32.mrb[0].mxu0
      %1641 = vmatprep.mubr.bf16.mxu0 0
      %1642 = vmatmul.mubr.bf16.gmra.mrb[0].mxu0 %v1366
      %v1643 = vpop.f32.mrb[0].mxu0
      %v1644 = vadd.f32 0.0, %v1643
      %v1645 = vpop.f32.mrb[0].mxu0
      %v1646 = vpop.f32.mrb[0].mxu0
      %v1647 = vadd.f32 0.0, %v1646
      %v1648 = vpop.f32.mrb[0].mxu0
      %1649 = vmatprep.mubr.bf16.mxu0 0
      %1650 = vmatmul.mubr.bf16.gmra.mrb[0].mxu0 %v1367
      %v1651 = vpop.f32.mrb[0].mxu0
      %v1652 = vadd.f32 0.0, %v1651
      %v1653 = vpop.f32.mrb[0].mxu0
      %v1654 = vpop.f32.mrb[0].mxu0
      %v1655 = vadd.f32 0.0, %v1654
      %v1656 = vpop.f32.mrb[0].mxu0
      %1657 = vdwg.mxu0
      %v1658 = vld [vmem:[%s272 + $0x30] sm:$0xff]
      %v1659 = vld [vmem:[%s272 + $0x38] sm:$0xff]
      %v1660 = vld [vmem:[%s272 + $0x40] sm:$0xff]
      %v1661 = vld [vmem:[%s272 + $0x48] sm:$0xff]
      %v1662 = vld [vmem:[%s272 + $0x50] sm:$0xff]
      %v1663 = vld [vmem:[%s272 + $0x58] sm:$0xff]
      %v1664 = vld [vmem:[%s272 + $0x60] sm:$0xff]
      %v1665 = vld [vmem:[%s272 + $0x68] sm:$0xff]
      %v1666 = vld [vmem:[%s272 + $0x70] sm:$0xff]
      %v1667 = vld [vmem:[%s272 + $0x78] sm:$0xff]
      %v1668 = vld [vmem:[%s272 + $0x80] sm:$0xff]
      %v1669 = vld [vmem:[%s272 + $0x88] sm:$0xff]
      %v1670 = vld [vmem:[%s272 + $0x90] sm:$0xff]
      %v1671 = vld [vmem:[%s272 + $0x98] sm:$0xff]
      %v1672 = vld [vmem:[%s272 + $0xa0] sm:$0xff]
      %v1673 = vld [vmem:[%s272 + $0xa8] sm:$0xff]
      %v1674 = vld [vmem:[%s272 + $0xb0] sm:$0xff]
      %v1675 = vld [vmem:[%s272 + $0xb8] sm:$0xff]
      %v1676 = vld [vmem:[%s272 + $0xc0] sm:$0xff]
      %v1677 = vld [vmem:[%s272 + $0xc8] sm:$0xff]
      %v1678 = vld [vmem:[%s272 + $0xd0] sm:$0xff]
      %v1679 = vld [vmem:[%s272 + $0xd8] sm:$0xff]
      %v1680 = vld [vmem:[%s272 + $0xe0] sm:$0xff]
      %v1681 = vld [vmem:[%s272 + $0xe8] sm:$0xff]
      %v1682 = vld [vmem:[%s272 + $0xf0] sm:$0xff]
      %v1683 = vld [vmem:[%s272 + $0xf8] sm:$0xff]
      %v1684 = vld [vmem:[%s272 + $0x100] sm:$0xff]
      %v1685 = vld [vmem:[%s272 + $0x108] sm:$0xff]
      %v1686 = vld [vmem:[%s272 + $0x110] sm:$0xff]
      %v1687 = vld [vmem:[%s272 + $0x118] sm:$0xff]
      %v1688 = vld [vmem:[%s272 + $0x120] sm:$0xff]
      %v1689 = vld [vmem:[%s272 + $0x128] sm:$0xff]
      %v1690 = vld [vmem:[%s272 + $0x130] sm:$0xff]
      %v1691 = vld [vmem:[%s272 + $0x138] sm:$0xff]
      %v1692 = vld [vmem:[%s272 + $0x140] sm:$0xff]
      %v1693 = vld [vmem:[%s272 + $0x148] sm:$0xff]
      %v1694 = vld [vmem:[%s272 + $0x150] sm:$0xff]
      %v1695 = vld [vmem:[%s272 + $0x158] sm:$0xff]
      %v1696 = vld [vmem:[%s272 + $0x160] sm:$0xff]
      %v1697 = vld [vmem:[%s272 + $0x168] sm:$0xff]
      %v1698 = vld [vmem:[%s272 + $0x170] sm:$0xff]
      %v1699 = vld [vmem:[%s272 + $0x178] sm:$0xff]
      %v1700 = vld [vmem:[%s272 + $0x180] sm:$0xff]
      %v1701 = vld [vmem:[%s272 + $0x188] sm:$0xff]
      %v1702 = vld [vmem:[%s272 + $0x190] sm:$0xff]
      %v1703 = vld [vmem:[%s272 + $0x198] sm:$0xff]
      %v1704 = vld [vmem:[%s272 + $0x1a0] sm:$0xff]
      %v1705 = vld [vmem:[%s272 + $0x1a8] sm:$0xff]
      %v1706 = vpack.c.bf16 %v1659, %v1658
      %v1707 = vpack.c.bf16 %v1661, %v1660
      %v1708 = vpack.c.bf16 %v1663, %v1662
      %v1709 = vpack.c.bf16 %v1665, %v1664
      %v1710 = vpack.c.bf16 %v1667, %v1666
      %v1711 = vpack.c.bf16 %v1669, %v1668
      %v1712 = vpack.c.bf16 %v1671, %v1670
      %v1713 = vpack.c.bf16 %v1673, %v1672
      %v1714 = vpack.c.bf16 %v1675, %v1674
      %v1715 = vpack.c.bf16 %v1677, %v1676
      %v1716 = vpack.c.bf16 %v1679, %v1678
      %v1717 = vpack.c.bf16 %v1681, %v1680
      %v1718 = vpack.c.bf16 %v1683, %v1682
      %v1719 = vpack.c.bf16 %v1685, %v1684
      %v1720 = vpack.c.bf16 %v1687, %v1686
      %v1721 = vpack.c.bf16 %v1689, %v1688
      %v1722 = vpack.c.bf16 %v1691, %v1690
      %v1723 = vpack.c.bf16 %v1693, %v1692
      %v1724 = vpack.c.bf16 %v1695, %v1694
      %v1725 = vpack.c.bf16 %v1697, %v1696
      %v1726 = vpack.c.bf16 %v1699, %v1698
      %v1727 = vpack.c.bf16 %v1701, %v1700
      %v1728 = vpack.c.bf16 %v1703, %v1702
      %v1729 = vpack.c.bf16 %v1705, %v1704
      %s1730 = scalar_lea.vmem %s1, 384
      %v1731 = vld [vmem:[%s1730] sm:$0xf]
      %v1732 = vld [vmem:[%s1730 + $0x4] sm:$0xf]
      %v1733 = vld [vmem:[%s1730 + $0x8] sm:$0xf]
      %v1734 = vld [vmem:[%s1730 + $0xc] sm:$0xf]
      %v1735 = vld [vmem:[%s1730 + $0x10] sm:$0xf]
      %v1736 = vld [vmem:[%s1730 + $0x14] sm:$0xf]
      %v1737 = vld [vmem:[%s1730 + $0x18] sm:$0xf]
      %v1738 = vld [vmem:[%s1730 + $0x1c] sm:$0xf]
      %v1739 = vld [vmem:[%s1730 + $0x20] sm:$0xf]
      %v1740 = vld [vmem:[%s1730 + $0x24] sm:$0xf]
      %v1741 = vld [vmem:[%s1730 + $0x28] sm:$0xf]
      %v1742 = vld [vmem:[%s1730 + $0x2c] sm:$0xf]
      %v1743 = vld [vmem:[%s1730 + $0x30] sm:$0xf]
      %v1744 = vld [vmem:[%s1730 + $0x34] sm:$0xf]
      %v1745 = vld [vmem:[%s1730 + $0x38] sm:$0xf]
      %v1746 = vld [vmem:[%s1730 + $0x3c] sm:$0xf]
      %v1747 = vld [vmem:[%s272 + $0x31] sm:$0xff]
      %v1748 = vld [vmem:[%s272 + $0x39] sm:$0xff]
      %v1749 = vld [vmem:[%s272 + $0x41] sm:$0xff]
      %v1750 = vld [vmem:[%s272 + $0x49] sm:$0xff]
      %v1751 = vld [vmem:[%s272 + $0x51] sm:$0xff]
      %v1752 = vld [vmem:[%s272 + $0x59] sm:$0xff]
      %v1753 = vld [vmem:[%s272 + $0x61] sm:$0xff]
      %v1754 = vld [vmem:[%s272 + $0x69] sm:$0xff]
      %v1755 = vld [vmem:[%s272 + $0x71] sm:$0xff]
      %v1756 = vld [vmem:[%s272 + $0x79] sm:$0xff]
      %v1757 = vld [vmem:[%s272 + $0x81] sm:$0xff]
      %v1758 = vld [vmem:[%s272 + $0x89] sm:$0xff]
      %v1759 = vld [vmem:[%s272 + $0x91] sm:$0xff]
      %v1760 = vld [vmem:[%s272 + $0x99] sm:$0xff]
      %v1761 = vld [vmem:[%s272 + $0xa1] sm:$0xff]
      %v1762 = vld [vmem:[%s272 + $0xa9] sm:$0xff]
      %v1763 = vld [vmem:[%s272 + $0xb1] sm:$0xff]
      %v1764 = vld [vmem:[%s272 + $0xb9] sm:$0xff]
      %v1765 = vld [vmem:[%s272 + $0xc1] sm:$0xff]
      %v1766 = vld [vmem:[%s272 + $0xc9] sm:$0xff]
      %v1767 = vld [vmem:[%s272 + $0xd1] sm:$0xff]
      %v1768 = vld [vmem:[%s272 + $0xd9] sm:$0xff]
      %v1769 = vld [vmem:[%s272 + $0xe1] sm:$0xff]
      %v1770 = vld [vmem:[%s272 + $0xe9] sm:$0xff]
      %v1771 = vld [vmem:[%s272 + $0xf1] sm:$0xff]
      %v1772 = vld [vmem:[%s272 + $0xf9] sm:$0xff]
      %v1773 = vld [vmem:[%s272 + $0x101] sm:$0xff]
      %v1774 = vld [vmem:[%s272 + $0x109] sm:$0xff]
      %v1775 = vld [vmem:[%s272 + $0x111] sm:$0xff]
      %v1776 = vld [vmem:[%s272 + $0x119] sm:$0xff]
      %v1777 = vld [vmem:[%s272 + $0x121] sm:$0xff]
      %v1778 = vld [vmem:[%s272 + $0x129] sm:$0xff]
      %v1779 = vld [vmem:[%s272 + $0x131] sm:$0xff]
      %v1780 = vld [vmem:[%s272 + $0x139] sm:$0xff]
      %v1781 = vld [vmem:[%s272 + $0x141] sm:$0xff]
      %v1782 = vld [vmem:[%s272 + $0x149] sm:$0xff]
      %v1783 = vld [vmem:[%s272 + $0x151] sm:$0xff]
      %v1784 = vld [vmem:[%s272 + $0x159] sm:$0xff]
      %v1785 = vld [vmem:[%s272 + $0x161] sm:$0xff]
      %v1786 = vld [vmem:[%s272 + $0x169] sm:$0xff]
      %v1787 = vld [vmem:[%s272 + $0x171] sm:$0xff]
      %v1788 = vld [vmem:[%s272 + $0x179] sm:$0xff]
      %v1789 = vld [vmem:[%s272 + $0x181] sm:$0xff]
      %v1790 = vld [vmem:[%s272 + $0x189] sm:$0xff]
      %v1791 = vld [vmem:[%s272 + $0x191] sm:$0xff]
      %v1792 = vld [vmem:[%s272 + $0x199] sm:$0xff]
      %v1793 = vld [vmem:[%s272 + $0x1a1] sm:$0xff]
      %v1794 = vld [vmem:[%s272 + $0x1a9] sm:$0xff]
      %v1795 = vpack.c.bf16 %v1748, %v1747
      %v1796 = vpack.c.bf16 %v1750, %v1749
      %v1797 = vpack.c.bf16 %v1752, %v1751
      %v1798 = vpack.c.bf16 %v1754, %v1753
      %v1799 = vpack.c.bf16 %v1756, %v1755
      %v1800 = vpack.c.bf16 %v1758, %v1757
      %v1801 = vpack.c.bf16 %v1760, %v1759
      %v1802 = vpack.c.bf16 %v1762, %v1761
      %v1803 = vpack.c.bf16 %v1764, %v1763
      %v1804 = vpack.c.bf16 %v1766, %v1765
      %v1805 = vpack.c.bf16 %v1768, %v1767
      %v1806 = vpack.c.bf16 %v1770, %v1769
      %v1807 = vpack.c.bf16 %v1772, %v1771
      %v1808 = vpack.c.bf16 %v1774, %v1773
      %v1809 = vpack.c.bf16 %v1776, %v1775
      %v1810 = vpack.c.bf16 %v1778, %v1777
      %v1811 = vpack.c.bf16 %v1780, %v1779
      %v1812 = vpack.c.bf16 %v1782, %v1781
      %v1813 = vpack.c.bf16 %v1784, %v1783
      %v1814 = vpack.c.bf16 %v1786, %v1785
      %v1815 = vpack.c.bf16 %v1788, %v1787
      %v1816 = vpack.c.bf16 %v1790, %v1789
      %v1817 = vpack.c.bf16 %v1792, %v1791
      %v1818 = vpack.c.bf16 %v1794, %v1793
      %s1819 = scalar_lea.vmem %s1, 448
      %v1820 = vld [vmem:[%s1819] sm:$0xf]
      %v1821 = vld [vmem:[%s1819 + $0x4] sm:$0xf]
      %v1822 = vld [vmem:[%s1819 + $0x8] sm:$0xf]
      %v1823 = vld [vmem:[%s1819 + $0xc] sm:$0xf]
      %v1824 = vld [vmem:[%s1819 + $0x10] sm:$0xf]
      %v1825 = vld [vmem:[%s1819 + $0x14] sm:$0xf]
      %v1826 = vld [vmem:[%s1819 + $0x18] sm:$0xf]
      %v1827 = vld [vmem:[%s1819 + $0x1c] sm:$0xf]
      %v1828 = vld [vmem:[%s1819 + $0x20] sm:$0xf]
      %v1829 = vld [vmem:[%s1819 + $0x24] sm:$0xf]
      %v1830 = vld [vmem:[%s1819 + $0x28] sm:$0xf]
      %v1831 = vld [vmem:[%s1819 + $0x2c] sm:$0xf]
      %v1832 = vld [vmem:[%s1819 + $0x30] sm:$0xf]
      %v1833 = vld [vmem:[%s1819 + $0x34] sm:$0xf]
      %v1834 = vld [vmem:[%s1819 + $0x38] sm:$0xf]
      %v1835 = vld [vmem:[%s1819 + $0x3c] sm:$0xf]
      %v1852 = vunpack.c.l.b16 %v1820
      %v1853 = vunpack.c.l.b16 %v1821
      %v1854 = vunpack.c.l.b16 %v1822
      %v1855 = vunpack.c.l.b16 %v1823
      %v1856 = vunpack.c.l.b16 %v1824
      %v1857 = vunpack.c.l.b16 %v1825
      %v1858 = vunpack.c.l.b16 %v1826
      %v1859 = vunpack.c.l.b16 %v1827
      %v1860 = vunpack.c.l.b16 %v1828
      %v1861 = vunpack.c.l.b16 %v1829
      %v1862 = vunpack.c.l.b16 %v1830
      %v1863 = vunpack.c.l.b16 %v1831
      %v1864 = vunpack.c.l.b16 %v1832
      %v1865 = vunpack.c.l.b16 %v1833
      %v1866 = vunpack.c.l.b16 %v1834
      %v1867 = vunpack.c.l.b16 %v1835
      %v1868 = vpack.c.b16 %v1853, %v1852
      %v1869 = vpack.c.b16 %v1855, %v1854
      %v1870 = vpack.c.b16 %v1857, %v1856
      %v1871 = vpack.c.b16 %v1859, %v1858
      %v1872 = vpack.c.b16 %v1861, %v1860
      %v1873 = vpack.c.b16 %v1863, %v1862
      %v1874 = vpack.c.b16 %v1865, %v1864
      %v1875 = vpack.c.b16 %v1867, %v1866
      %1884 = vmatprep.subr.bf16.mxu0 0
      %1885 = vmatpush1.bf16.msra.mxu0 %v1868
      %1886 = vmatprep.subr.bf16.mxu0 0
      %1887 = vmatpush1.bf16.msra.mxu0 %v1869
      %1888 = vmatprep.subr.bf16.mxu0 0
      %1889 = vmatpush1.bf16.msra.mxu0 %v1870
      %1890 = vmatprep.subr.bf16.mxu0 0
      %1891 = vmatpush1.bf16.msra.mxu0 %v1871
      %1892 = vmatprep.subr.bf16.mxu0 0
      %1893 = vmatpush1.bf16.msra.mxu0 %v1872
      %1894 = vmatprep.subr.bf16.mxu0 0
      %1895 = vmatpush1.bf16.msra.mxu0 %v1873
      %1896 = vmatprep.subr.bf16.mxu0 0
      %1897 = vmatpush1.bf16.msra.mxu0 %v1874
      %1898 = vmatprep.subr.bf16.mxu0 0
      %1899 = vmatpush1.bf16.msra.mxu0 %v1875
      %1900 = vmatprep.subr.bf16.mxu0 0
      %1901 = vmatpush1.bf16.msra.mxu0 0
      %1902 = vmatprep.subr.bf16.mxu0 0
      %1903 = vmatpush1.bf16.msra.mxu0 0
      %1904 = vmatprep.subr.bf16.mxu0 0
      %1905 = vmatpush1.bf16.msra.mxu0 0
      %1906 = vmatprep.subr.bf16.mxu0 0
      %1907 = vmatpush1.bf16.msra.mxu0 0
      %1908 = vmatprep.subr.bf16.mxu0 0
      %1909 = vmatpush1.bf16.msra.mxu0 0
      %1910 = vmatprep.subr.bf16.mxu0 0
      %1911 = vmatpush1.bf16.msra.mxu0 0
      %1912 = vmatprep.subr.bf16.mxu0 0
      %1913 = vmatpush1.bf16.msra.mxu0 0
      %1914 = vmatprep.subr.bf16.mxu0 0
      %1915 = vmatpush1.bf16.msra.mxu0 0
      %1916 = vmatprep.mubr.bf16.mxu0 0
      %1917 = vmatmul.mubr.bf16.gmra.mrb[0].mxu0 %v1795
      %v1918 = vpop.f32.mrb[0].mxu0
      %v1919 = vadd.f32 0.0, %v1918
      %v1920 = vpop.f32.mrb[0].mxu0
      %v1921 = vpop.f32.mrb[0].mxu0
      %v1922 = vadd.f32 0.0, %v1921
      %v1923 = vpop.f32.mrb[0].mxu0
      %1924 = vmatprep.mubr.bf16.mxu0 0
      %1925 = vmatmul.mubr.bf16.gmra.mrb[0].mxu0 %v1796
      %v1926 = vpop.f32.mrb[0].mxu0
      %v1927 = vadd.f32 0.0, %v1926
      %v1928 = vpop.f32.mrb[0].mxu0
      %v1929 = vpop.f32.mrb[0].mxu0
      %v1930 = vadd.f32 0.0, %v1929
      %v1931 = vpop.f32.mrb[0].mxu0
      %1932 = vmatprep.mubr.bf16.mxu0 0
      %1933 = vmatmul.mubr.bf16.gmra.mrb[0].mxu0 %v1797
      %v1934 = vpop.f32.mrb[0].mxu0
      %v1935 = vadd.f32 0.0, %v1934
      %v1936 = vpop.f32.mrb[0].mxu0
      %v1937 = vpop.f32.mrb[0].mxu0
      %v1938 = vadd.f32 0.0, %v1937
      %v1939 = vpop.f32.mrb[0].mxu0
      %1940 = vmatprep.mubr.bf16.mxu0 0
      %1941 = vmatmul.mubr.bf16.gmra.mrb[0].mxu0 %v1798
      %v1942 = vpop.f32.mrb[0].mxu0
      %v1943 = vadd.f32 0.0, %v1942
      %v1944 = vpop.f32.mrb[0].mxu0
      %v1945 = vpop.f32.mrb[0].mxu0
      %v1946 = vadd.f32 0.0, %v1945
      %v1947 = vpop.f32.mrb[0].mxu0
      %1948 = vmatprep.mubr.bf16.mxu0 0
      %1949 = vmatmul.mubr.bf16.gmra.mrb[0].mxu0 %v1799
      %v1950 = vpop.f32.mrb[0].mxu0
      %v1951 = vadd.f32 0.0, %v1950
      %v1952 = vpop.f32.mrb[0].mxu0
      %v1953 = vpop.f32.mrb[0].mxu0
      %v1954 = vadd.f32 0.0, %v1953
      %v1955 = vpop.f32.mrb[0].mxu0
      %1956 = vmatprep.mubr.bf16.mxu0 0
      %1957 = vmatmul.mubr.bf16.gmra.mrb[0].mxu0 %v1800
      %v1958 = vpop.f32.mrb[0].mxu0
      %v1959 = vadd.f32 0.0, %v1958
      %v1960 = vpop.f32.mrb[0].mxu0
      %v1961 = vpop.f32.mrb[0].mxu0
      %v1962 = vadd.f32 0.0, %v1961
      %v1963 = vpop.f32.mrb[0].mxu0
      %1964 = vmatprep.mubr.bf16.mxu0 0
      %1965 = vmatmul.mubr.bf16.gmra.mrb[0].mxu0 %v1801
      %v1966 = vpop.f32.mrb[0].mxu0
      %v1967 = vadd.f32 0.0, %v1966
      %v1968 = vpop.f32.mrb[0].mxu0
      %v1969 = vpop.f32.mrb[0].mxu0
      %v1970 = vadd.f32 0.0, %v1969
      %v1971 = vpop.f32.mrb[0].mxu0
      %1972 = vmatprep.mubr.bf16.mxu0 0
      %1973 = vmatmul.mubr.bf16.gmra.mrb[0].mxu0 %v1802
      %v1974 = vpop.f32.mrb[0].mxu0
      %v1975 = vadd.f32 0.0, %v1974
      %v1976 = vpop.f32.mrb[0].mxu0
      %v1977 = vpop.f32.mrb[0].mxu0
      %v1978 = vadd.f32 0.0, %v1977
      %v1979 = vpop.f32.mrb[0].mxu0
      %1980 = vmatprep.mubr.bf16.mxu0 0
      %1981 = vmatmul.mubr.bf16.gmra.mrb[0].mxu0 %v1803
      %v1982 = vpop.f32.mrb[0].mxu0
      %v1983 = vadd.f32 0.0, %v1982
      %v1984 = vpop.f32.mrb[0].mxu0
      %v1985 = vpop.f32.mrb[0].mxu0
      %v1986 = vadd.f32 0.0, %v1985
      %v1987 = vpop.f32.mrb[0].mxu0
      %1988 = vmatprep.mubr.bf16.mxu0 0
      %1989 = vmatmul.mubr.bf16.gmra.mrb[0].mxu0 %v1804
      %v1990 = vpop.f32.mrb[0].mxu0
      %v1991 = vadd.f32 0.0, %v1990
      %v1992 = vpop.f32.mrb[0].mxu0
      %v1993 = vpop.f32.mrb[0].mxu0
      %v1994 = vadd.f32 0.0, %v1993
      %v1995 = vpop.f32.mrb[0].mxu0
      %1996 = vmatprep.mubr.bf16.mxu0 0
      %1997 = vmatmul.mubr.bf16.gmra.mrb[0].mxu0 %v1805
      %v1998 = vpop.f32.mrb[0].mxu0
      %v1999 = vadd.f32 0.0, %v1998
      %v2000 = vpop.f32.mrb[0].mxu0
      %v2001 = vpop.f32.mrb[0].mxu0
      %v2002 = vadd.f32 0.0, %v2001
      %v2003 = vpop.f32.mrb[0].mxu0
      %2004 = vmatprep.mubr.bf16.mxu0 0
      %2005 = vmatmul.mubr.bf16.gmra.mrb[0].mxu0 %v1806
      %v2006 = vpop.f32.mrb[0].mxu0
      %v2007 = vadd.f32 0.0, %v2006
      %v2008 = vpop.f32.mrb[0].mxu0
      %v2009 = vpop.f32.mrb[0].mxu0
      %v2010 = vadd.f32 0.0, %v2009
      %v2011 = vpop.f32.mrb[0].mxu0
      %2012 = vmatprep.mubr.bf16.mxu0 0
      %2013 = vmatmul.mubr.bf16.gmra.mrb[0].mxu0 %v1807
      %v2014 = vpop.f32.mrb[0].mxu0
      %v2015 = vadd.f32 0.0, %v2014
      %v2016 = vpop.f32.mrb[0].mxu0
      %v2017 = vpop.f32.mrb[0].mxu0
      %v2018 = vadd.f32 0.0, %v2017
      %v2019 = vpop.f32.mrb[0].mxu0
      %2020 = vmatprep.mubr.bf16.mxu0 0
      %2021 = vmatmul.mubr.bf16.gmra.mrb[0].mxu0 %v1808
      %v2022 = vpop.f32.mrb[0].mxu0
      %v2023 = vadd.f32 0.0, %v2022
      %v2024 = vpop.f32.mrb[0].mxu0
      %v2025 = vpop.f32.mrb[0].mxu0
      %v2026 = vadd.f32 0.0, %v2025
      %v2027 = vpop.f32.mrb[0].mxu0
      %2028 = vmatprep.mubr.bf16.mxu0 0
      %2029 = vmatmul.mubr.bf16.gmra.mrb[0].mxu0 %v1809
      %v2030 = vpop.f32.mrb[0].mxu0
      %v2031 = vadd.f32 0.0, %v2030
      %v2032 = vpop.f32.mrb[0].mxu0
      %v2033 = vpop.f32.mrb[0].mxu0
      %v2034 = vadd.f32 0.0, %v2033
      %v2035 = vpop.f32.mrb[0].mxu0
      %2036 = vmatprep.mubr.bf16.mxu0 0
      %2037 = vmatmul.mubr.bf16.gmra.mrb[0].mxu0 %v1810
      %v2038 = vpop.f32.mrb[0].mxu0
      %v2039 = vadd.f32 0.0, %v2038
      %v2040 = vpop.f32.mrb[0].mxu0
      %v2041 = vpop.f32.mrb[0].mxu0
      %v2042 = vadd.f32 0.0, %v2041
      %v2043 = vpop.f32.mrb[0].mxu0
      %2044 = vmatprep.mubr.bf16.mxu0 0
      %2045 = vmatmul.mubr.bf16.gmra.mrb[0].mxu0 %v1811
      %v2046 = vpop.f32.mrb[0].mxu0
      %v2047 = vadd.f32 0.0, %v2046
      %v2048 = vpop.f32.mrb[0].mxu0
      %v2049 = vpop.f32.mrb[0].mxu0
      %v2050 = vadd.f32 0.0, %v2049
      %v2051 = vpop.f32.mrb[0].mxu0
      %2052 = vmatprep.mubr.bf16.mxu0 0
      %2053 = vmatmul.mubr.bf16.gmra.mrb[0].mxu0 %v1812
      %v2054 = vpop.f32.mrb[0].mxu0
      %v2055 = vadd.f32 0.0, %v2054
      %v2056 = vpop.f32.mrb[0].mxu0
      %v2057 = vpop.f32.mrb[0].mxu0
      %v2058 = vadd.f32 0.0, %v2057
      %v2059 = vpop.f32.mrb[0].mxu0
      %2060 = vmatprep.mubr.bf16.mxu0 0
      %2061 = vmatmul.mubr.bf16.gmra.mrb[0].mxu0 %v1813
      %v2062 = vpop.f32.mrb[0].mxu0
      %v2063 = vadd.f32 0.0, %v2062
      %v2064 = vpop.f32.mrb[0].mxu0
      %v2065 = vpop.f32.mrb[0].mxu0
      %v2066 = vadd.f32 0.0, %v2065
      %v2067 = vpop.f32.mrb[0].mxu0
      %2068 = vmatprep.mubr.bf16.mxu0 0
      %2069 = vmatmul.mubr.bf16.gmra.mrb[0].mxu0 %v1814
      %v2070 = vpop.f32.mrb[0].mxu0
      %v2071 = vadd.f32 0.0, %v2070
      %v2072 = vpop.f32.mrb[0].mxu0
      %v2073 = vpop.f32.mrb[0].mxu0
      %v2074 = vadd.f32 0.0, %v2073
      %v2075 = vpop.f32.mrb[0].mxu0
      %2076 = vmatprep.mubr.bf16.mxu0 0
      %2077 = vmatmul.mubr.bf16.gmra.mrb[0].mxu0 %v1815
      %v2078 = vpop.f32.mrb[0].mxu0
      %v2079 = vadd.f32 0.0, %v2078
      %v2080 = vpop.f32.mrb[0].mxu0
      %v2081 = vpop.f32.mrb[0].mxu0
      %v2082 = vadd.f32 0.0, %v2081
      %v2083 = vpop.f32.mrb[0].mxu0
      %2084 = vmatprep.mubr.bf16.mxu0 0
      %2085 = vmatmul.mubr.bf16.gmra.mrb[0].mxu0 %v1816
      %v2086 = vpop.f32.mrb[0].mxu0
      %v2087 = vadd.f32 0.0, %v2086
      %v2088 = vpop.f32.mrb[0].mxu0
      %v2089 = vpop.f32.mrb[0].mxu0
      %v2090 = vadd.f32 0.0, %v2089
      %v2091 = vpop.f32.mrb[0].mxu0
      %2092 = vmatprep.mubr.bf16.mxu0 0
      %2093 = vmatmul.mubr.bf16.gmra.mrb[0].mxu0 %v1817
      %v2094 = vpop.f32.mrb[0].mxu0
      %v2095 = vadd.f32 0.0, %v2094
      %v2096 = vpop.f32.mrb[0].mxu0
      %v2097 = vpop.f32.mrb[0].mxu0
      %v2098 = vadd.f32 0.0, %v2097
      %v2099 = vpop.f32.mrb[0].mxu0
      %2100 = vmatprep.mubr.bf16.mxu0 0
      %2101 = vmatmul.mubr.bf16.gmra.mrb[0].mxu0 %v1818
      %v2102 = vpop.f32.mrb[0].mxu0
      %v2103 = vadd.f32 0.0, %v2102
      %v2104 = vpop.f32.mrb[0].mxu0
      %v2105 = vpop.f32.mrb[0].mxu0
      %v2106 = vadd.f32 0.0, %v2105
      %v2107 = vpop.f32.mrb[0].mxu0
      %2108 = vdwg.mxu0
      %v2109 = vld [vmem:[%s272 + $0x32] sm:$0xff]
      %v2110 = vld [vmem:[%s272 + $0x3a] sm:$0xff]
      %v2111 = vld [vmem:[%s272 + $0x42] sm:$0xff]
      %v2112 = vld [vmem:[%s272 + $0x4a] sm:$0xff]
      %v2113 = vld [vmem:[%s272 + $0x52] sm:$0xff]
      %v2114 = vld [vmem:[%s272 + $0x5a] sm:$0xff]
      %v2115 = vld [vmem:[%s272 + $0x62] sm:$0xff]
      %v2116 = vld [vmem:[%s272 + $0x6a] sm:$0xff]
      %v2117 = vld [vmem:[%s272 + $0x72] sm:$0xff]
      %v2118 = vld [vmem:[%s272 + $0x7a] sm:$0xff]
      %v2119 = vld [vmem:[%s272 + $0x82] sm:$0xff]
      %v2120 = vld [vmem:[%s272 + $0x8a] sm:$0xff]
      %v2121 = vld [vmem:[%s272 + $0x92] sm:$0xff]
      %v2122 = vld [vmem:[%s272 + $0x9a] sm:$0xff]
      %v2123 = vld [vmem:[%s272 + $0xa2] sm:$0xff]
      %v2124 = vld [vmem:[%s272 + $0xaa] sm:$0xff]
      %v2125 = vld [vmem:[%s272 + $0xb2] sm:$0xff]
      %v2126 = vld [vmem:[%s272 + $0xba] sm:$0xff]
      %v2127 = vld [vmem:[%s272 + $0xc2] sm:$0xff]
      %v2128 = vld [vmem:[%s272 + $0xca] sm:$0xff]
      %v2129 = vld [vmem:[%s272 + $0xd2] sm:$0xff]
      %v2130 = vld [vmem:[%s272 + $0xda] sm:$0xff]
      %v2131 = vld [vmem:[%s272 + $0xe2] sm:$0xff]
      %v2132 = vld [vmem:[%s272 + $0xea] sm:$0xff]
      %v2133 = vld [vmem:[%s272 + $0xf2] sm:$0xff]
      %v2134 = vld [vmem:[%s272 + $0xfa] sm:$0xff]
      %v2135 = vld [vmem:[%s272 + $0x102] sm:$0xff]
      %v2136 = vld [vmem:[%s272 + $0x10a] sm:$0xff]
      %v2137 = vld [vmem:[%s272 + $0x112] sm:$0xff]
      %v2138 = vld [vmem:[%s272 + $0x11a] sm:$0xff]
      %v2139 = vld [vmem:[%s272 + $0x122] sm:$0xff]
      %v2140 = vld [vmem:[%s272 + $0x12a] sm:$0xff]
      %v2141 = vld [vmem:[%s272 + $0x132] sm:$0xff]
      %v2142 = vld [vmem:[%s272 + $0x13a] sm:$0xff]
      %v2143 = vld [vmem:[%s272 + $0x142] sm:$0xff]
      %v2144 = vld [vmem:[%s272 + $0x14a] sm:$0xff]
      %v2145 = vld [vmem:[%s272 + $0x152] sm:$0xff]
      %v2146 = vld [vmem:[%s272 + $0x15a] sm:$0xff]
      %v2147 = vld [vmem:[%s272 + $0x162] sm:$0xff]
      %v2148 = vld [vmem:[%s272 + $0x16a] sm:$0xff]
      %v2149 = vld [vmem:[%s272 + $0x172] sm:$0xff]
      %v2150 = vld [vmem:[%s272 + $0x17a] sm:$0xff]
      %v2151 = vld [vmem:[%s272 + $0x182] sm:$0xff]
      %v2152 = vld [vmem:[%s272 + $0x18a] sm:$0xff]
      %v2153 = vld [vmem:[%s272 + $0x192] sm:$0xff]
      %v2154 = vld [vmem:[%s272 + $0x19a] sm:$0xff]
      %v2155 = vld [vmem:[%s272 + $0x1a2] sm:$0xff]
      %v2156 = vld [vmem:[%s272 + $0x1aa] sm:$0xff]
      %v2157 = vpack.c.bf16 %v2110, %v2109
      %v2158 = vpack.c.bf16 %v2112, %v2111
      %v2159 = vpack.c.bf16 %v2114, %v2113
      %v2160 = vpack.c.bf16 %v2116, %v2115
      %v2161 = vpack.c.bf16 %v2118, %v2117
      %v2162 = vpack.c.bf16 %v2120, %v2119
      %v2163 = vpack.c.bf16 %v2122, %v2121
      %v2164 = vpack.c.bf16 %v2124, %v2123
      %v2165 = vpack.c.bf16 %v2126, %v2125
      %v2166 = vpack.c.bf16 %v2128, %v2127
      %v2167 = vpack.c.bf16 %v2130, %v2129
      %v2168 = vpack.c.bf16 %v2132, %v2131
      %v2169 = vpack.c.bf16 %v2134, %v2133
      %v2170 = vpack.c.bf16 %v2136, %v2135
      %v2171 = vpack.c.bf16 %v2138, %v2137
      %v2172 = vpack.c.bf16 %v2140, %v2139
      %v2173 = vpack.c.bf16 %v2142, %v2141
      %v2174 = vpack.c.bf16 %v2144, %v2143
      %v2175 = vpack.c.bf16 %v2146, %v2145
      %v2176 = vpack.c.bf16 %v2148, %v2147
      %v2177 = vpack.c.bf16 %v2150, %v2149
      %v2178 = vpack.c.bf16 %v2152, %v2151
      %v2179 = vpack.c.bf16 %v2154, %v2153
      %v2180 = vpack.c.bf16 %v2156, %v2155
      %s2181 = scalar_lea.vmem %s1, 512
      %v2182 = vld [vmem:[%s2181] sm:$0xf]
      %v2183 = vld [vmem:[%s2181 + $0x4] sm:$0xf]
      %v2184 = vld [vmem:[%s2181 + $0x8] sm:$0xf]
      %v2185 = vld [vmem:[%s2181 + $0xc] sm:$0xf]
      %v2186 = vld [vmem:[%s2181 + $0x10] sm:$0xf]
      %v2187 = vld [vmem:[%s2181 + $0x14] sm:$0xf]
      %v2188 = vld [vmem:[%s2181 + $0x18] sm:$0xf]
      %v2189 = vld [vmem:[%s2181 + $0x1c] sm:$0xf]
      %v2190 = vld [vmem:[%s2181 + $0x20] sm:$0xf]
      %v2191 = vld [vmem:[%s2181 + $0x24] sm:$0xf]
      %v2192 = vld [vmem:[%s2181 + $0x28] sm:$0xf]
      %v2193 = vld [vmem:[%s2181 + $0x2c] sm:$0xf]
      %v2194 = vld [vmem:[%s2181 + $0x30] sm:$0xf]
      %v2195 = vld [vmem:[%s2181 + $0x34] sm:$0xf]
      %v2196 = vld [vmem:[%s2181 + $0x38] sm:$0xf]
      %v2197 = vld [vmem:[%s2181 + $0x3c] sm:$0xf]
      %v2214 = vunpack.c.l.b16 %v2182
      %v2215 = vunpack.c.l.b16 %v2183
      %v2216 = vunpack.c.l.b16 %v2184
      %v2217 = vunpack.c.l.b16 %v2185
      %v2218 = vunpack.c.l.b16 %v2186
      %v2219 = vunpack.c.l.b16 %v2187
      %v2220 = vunpack.c.l.b16 %v2188
      %v2221 = vunpack.c.l.b16 %v2189
      %v2222 = vunpack.c.l.b16 %v2190
      %v2223 = vunpack.c.l.b16 %v2191
      %v2224 = vunpack.c.l.b16 %v2192
      %v2225 = vunpack.c.l.b16 %v2193
      %v2226 = vunpack.c.l.b16 %v2194
      %v2227 = vunpack.c.l.b16 %v2195
      %v2228 = vunpack.c.l.b16 %v2196
      %v2229 = vunpack.c.l.b16 %v2197
      %v2230 = vpack.c.b16 %v2215, %v2214
      %v2231 = vpack.c.b16 %v2217, %v2216
      %v2232 = vpack.c.b16 %v2219, %v2218
      %v2233 = vpack.c.b16 %v2221, %v2220
      %v2234 = vpack.c.b16 %v2223, %v2222
      %v2235 = vpack.c.b16 %v2225, %v2224
      %v2236 = vpack.c.b16 %v2227, %v2226
      %v2237 = vpack.c.b16 %v2229, %v2228
      %2246 = vmatprep.subr.bf16.mxu0 0
      %2247 = vmatpush1.bf16.msra.mxu0 %v2230
      %2248 = vmatprep.subr.bf16.mxu0 0
      %2249 = vmatpush1.bf16.msra.mxu0 %v2231
      %2250 = vmatprep.subr.bf16.mxu0 0
      %2251 = vmatpush1.bf16.msra.mxu0 %v2232
      %2252 = vmatprep.subr.bf16.mxu0 0
      %2253 = vmatpush1.bf16.msra.mxu0 %v2233
      %2254 = vmatprep.subr.bf16.mxu0 0
      %2255 = vmatpush1.bf16.msra.mxu0 %v2234
      %2256 = vmatprep.subr.bf16.mxu0 0
      %2257 = vmatpush1.bf16.msra.mxu0 %v2235
      %2258 = vmatprep.subr.bf16.mxu0 0
      %2259 = vmatpush1.bf16.msra.mxu0 %v2236
      %2260 = vmatprep.subr.bf16.mxu0 0
      %2261 = vmatpush1.bf16.msra.mxu0 %v2237
      %2262 = vmatprep.subr.bf16.mxu0 0
      %2263 = vmatpush1.bf16.msra.mxu0 0
      %2264 = vmatprep.subr.bf16.mxu0 0
      %2265 = vmatpush1.bf16.msra.mxu0 0
      %2266 = vmatprep.subr.bf16.mxu0 0
      %2267 = vmatpush1.bf16.msra.mxu0 0
      %2268 = vmatprep.subr.bf16.mxu0 0
      %2269 = vmatpush1.bf16.msra.mxu0 0
      %2270 = vmatprep.subr.bf16.mxu0 0
      %2271 = vmatpush1.bf16.msra.mxu0 0
      %2272 = vmatprep.subr.bf16.mxu0 0
      %2273 = vmatpush1.bf16.msra.mxu0 0
      %2274 = vmatprep.subr.bf16.mxu0 0
      %2275 = vmatpush1.bf16.msra.mxu0 0
      %2276 = vmatprep.subr.bf16.mxu0 0
      %2277 = vmatpush1.bf16.msra.mxu0 0
      %2278 = vmatprep.mubr.bf16.mxu0 0
      %2279 = vmatmul.mubr.bf16.gmra.mrb[0].mxu0 %v2157
      %v2280 = vpop.f32.mrb[0].mxu0
      %v2281 = vadd.f32 0.0, %v2280
      %v2282 = vpop.f32.mrb[0].mxu0
      %v2283 = vpop.f32.mrb[0].mxu0
      %v2284 = vadd.f32 0.0, %v2283
      %v2285 = vpop.f32.mrb[0].mxu0
      %2286 = vmatprep.mubr.bf16.mxu0 0
      %2287 = vmatmul.mubr.bf16.gmra.mrb[0].mxu0 %v2158
      %v2288 = vpop.f32.mrb[0].mxu0
      %v2289 = vadd.f32 0.0, %v2288
      %v2290 = vpop.f32.mrb[0].mxu0
      %v2291 = vpop.f32.mrb[0].mxu0
      %v2292 = vadd.f32 0.0, %v2291
      %v2293 = vpop.f32.mrb[0].mxu0
      %2294 = vmatprep.mubr.bf16.mxu0 0
      %2295 = vmatmul.mubr.bf16.gmra.mrb[0].mxu0 %v2159
      %v2296 = vpop.f32.mrb[0].mxu0
      %v2297 = vadd.f32 0.0, %v2296
      %v2298 = vpop.f32.mrb[0].mxu0
      %v2299 = vpop.f32.mrb[0].mxu0
      %v2300 = vadd.f32 0.0, %v2299
      %v2301 = vpop.f32.mrb[0].mxu0
      %2302 = vmatprep.mubr.bf16.mxu0 0
      %2303 = vmatmul.mubr.bf16.gmra.mrb[0].mxu0 %v2160
      %v2304 = vpop.f32.mrb[0].mxu0
      %v2305 = vadd.f32 0.0, %v2304
      %v2306 = vpop.f32.mrb[0].mxu0
      %v2307 = vpop.f32.mrb[0].mxu0
      %v2308 = vadd.f32 0.0, %v2307
      %v2309 = vpop.f32.mrb[0].mxu0
      %2310 = vmatprep.mubr.bf16.mxu0 0
      %2311 = vmatmul.mubr.bf16.gmra.mrb[0].mxu0 %v2161
      %v2312 = vpop.f32.mrb[0].mxu0
      %v2313 = vadd.f32 0.0, %v2312
      %v2314 = vpop.f32.mrb[0].mxu0
      %v2315 = vpop.f32.mrb[0].mxu0
      %v2316 = vadd.f32 0.0, %v2315
      %v2317 = vpop.f32.mrb[0].mxu0
      %2318 = vmatprep.mubr.bf16.mxu0 0
      %2319 = vmatmul.mubr.bf16.gmra.mrb[0].mxu0 %v2162
      %v2320 = vpop.f32.mrb[0].mxu0
      %v2321 = vadd.f32 0.0, %v2320
      %v2322 = vpop.f32.mrb[0].mxu0
      %v2323 = vpop.f32.mrb[0].mxu0
      %v2324 = vadd.f32 0.0, %v2323
      %v2325 = vpop.f32.mrb[0].mxu0
      %2326 = vmatprep.mubr.bf16.mxu0 0
      %2327 = vmatmul.mubr.bf16.gmra.mrb[0].mxu0 %v2163
      %v2328 = vpop.f32.mrb[0].mxu0
      %v2329 = vadd.f32 0.0, %v2328
      %v2330 = vpop.f32.mrb[0].mxu0
      %v2331 = vpop.f32.mrb[0].mxu0
      %v2332 = vadd.f32 0.0, %v2331
      %v2333 = vpop.f32.mrb[0].mxu0
      %2334 = vmatprep.mubr.bf16.mxu0 0
      %2335 = vmatmul.mubr.bf16.gmra.mrb[0].mxu0 %v2164
      %v2336 = vpop.f32.mrb[0].mxu0
      %v2337 = vadd.f32 0.0, %v2336
      %v2338 = vpop.f32.mrb[0].mxu0
      %v2339 = vpop.f32.mrb[0].mxu0
      %v2340 = vadd.f32 0.0, %v2339
      %v2341 = vpop.f32.mrb[0].mxu0
      %2342 = vmatprep.mubr.bf16.mxu0 0
      %2343 = vmatmul.mubr.bf16.gmra.mrb[0].mxu0 %v2165
      %v2344 = vpop.f32.mrb[0].mxu0
      %v2345 = vadd.f32 0.0, %v2344
      %v2346 = vpop.f32.mrb[0].mxu0
      %v2347 = vpop.f32.mrb[0].mxu0
      %v2348 = vadd.f32 0.0, %v2347
      %v2349 = vpop.f32.mrb[0].mxu0
      %2350 = vmatprep.mubr.bf16.mxu0 0
      %2351 = vmatmul.mubr.bf16.gmra.mrb[0].mxu0 %v2166
      %v2352 = vpop.f32.mrb[0].mxu0
      %v2353 = vadd.f32 0.0, %v2352
      %v2354 = vpop.f32.mrb[0].mxu0
      %v2355 = vpop.f32.mrb[0].mxu0
      %v2356 = vadd.f32 0.0, %v2355
      %v2357 = vpop.f32.mrb[0].mxu0
      %2358 = vmatprep.mubr.bf16.mxu0 0
      %2359 = vmatmul.mubr.bf16.gmra.mrb[0].mxu0 %v2167
      %v2360 = vpop.f32.mrb[0].mxu0
      %v2361 = vadd.f32 0.0, %v2360
      %v2362 = vpop.f32.mrb[0].mxu0
      %v2363 = vpop.f32.mrb[0].mxu0
      %v2364 = vadd.f32 0.0, %v2363
      %v2365 = vpop.f32.mrb[0].mxu0
      %2366 = vmatprep.mubr.bf16.mxu0 0
      %2367 = vmatmul.mubr.bf16.gmra.mrb[0].mxu0 %v2168
      %v2368 = vpop.f32.mrb[0].mxu0
      %v2369 = vadd.f32 0.0, %v2368
      %v2370 = vpop.f32.mrb[0].mxu0
      %v2371 = vpop.f32.mrb[0].mxu0
      %v2372 = vadd.f32 0.0, %v2371
      %v2373 = vpop.f32.mrb[0].mxu0
      %2374 = vmatprep.mubr.bf16.mxu0 0
      %2375 = vmatmul.mubr.bf16.gmra.mrb[0].mxu0 %v2169
      %v2376 = vpop.f32.mrb[0].mxu0
      %v2377 = vadd.f32 0.0, %v2376
      %v2378 = vpop.f32.mrb[0].mxu0
      %v2379 = vpop.f32.mrb[0].mxu0
      %v2380 = vadd.f32 0.0, %v2379
      %v2381 = vpop.f32.mrb[0].mxu0
      %2382 = vmatprep.mubr.bf16.mxu0 0
      %2383 = vmatmul.mubr.bf16.gmra.mrb[0].mxu0 %v2170
      %v2384 = vpop.f32.mrb[0].mxu0
      %v2385 = vadd.f32 0.0, %v2384
      %v2386 = vpop.f32.mrb[0].mxu0
      %v2387 = vpop.f32.mrb[0].mxu0
      %v2388 = vadd.f32 0.0, %v2387
      %v2389 = vpop.f32.mrb[0].mxu0
      %2390 = vmatprep.mubr.bf16.mxu0 0
      %2391 = vmatmul.mubr.bf16.gmra.mrb[0].mxu0 %v2171
      %v2392 = vpop.f32.mrb[0].mxu0
      %v2393 = vadd.f32 0.0, %v2392
      %v2394 = vpop.f32.mrb[0].mxu0
      %v2395 = vpop.f32.mrb[0].mxu0
      %v2396 = vadd.f32 0.0, %v2395
      %v2397 = vpop.f32.mrb[0].mxu0
      %2398 = vmatprep.mubr.bf16.mxu0 0
      %2399 = vmatmul.mubr.bf16.gmra.mrb[0].mxu0 %v2172
      %v2400 = vpop.f32.mrb[0].mxu0
      %v2401 = vadd.f32 0.0, %v2400
      %v2402 = vpop.f32.mrb[0].mxu0
      %v2403 = vpop.f32.mrb[0].mxu0
      %v2404 = vadd.f32 0.0, %v2403
      %v2405 = vpop.f32.mrb[0].mxu0
      %2406 = vmatprep.mubr.bf16.mxu0 0
      %2407 = vmatmul.mubr.bf16.gmra.mrb[0].mxu0 %v2173
      %v2408 = vpop.f32.mrb[0].mxu0
      %v2409 = vadd.f32 0.0, %v2408
      %v2410 = vpop.f32.mrb[0].mxu0
      %v2411 = vpop.f32.mrb[0].mxu0
      %v2412 = vadd.f32 0.0, %v2411
      %v2413 = vpop.f32.mrb[0].mxu0
      %2414 = vmatprep.mubr.bf16.mxu0 0
      %2415 = vmatmul.mubr.bf16.gmra.mrb[0].mxu0 %v2174
      %v2416 = vpop.f32.mrb[0].mxu0
      %v2417 = vadd.f32 0.0, %v2416
      %v2418 = vpop.f32.mrb[0].mxu0
      %v2419 = vpop.f32.mrb[0].mxu0
      %v2420 = vadd.f32 0.0, %v2419
      %v2421 = vpop.f32.mrb[0].mxu0
      %2422 = vmatprep.mubr.bf16.mxu0 0
      %2423 = vmatmul.mubr.bf16.gmra.mrb[0].mxu0 %v2175
      %v2424 = vpop.f32.mrb[0].mxu0
      %v2425 = vadd.f32 0.0, %v2424
      %v2426 = vpop.f32.mrb[0].mxu0
      %v2427 = vpop.f32.mrb[0].mxu0
      %v2428 = vadd.f32 0.0, %v2427
      %v2429 = vpop.f32.mrb[0].mxu0
      %2430 = vmatprep.mubr.bf16.mxu0 0
      %2431 = vmatmul.mubr.bf16.gmra.mrb[0].mxu0 %v2176
      %v2432 = vpop.f32.mrb[0].mxu0
      %v2433 = vadd.f32 0.0, %v2432
      %v2434 = vpop.f32.mrb[0].mxu0
      %v2435 = vpop.f32.mrb[0].mxu0
      %v2436 = vadd.f32 0.0, %v2435
      %v2437 = vpop.f32.mrb[0].mxu0
      %2438 = vmatprep.mubr.bf16.mxu0 0
      %2439 = vmatmul.mubr.bf16.gmra.mrb[0].mxu0 %v2177
      %v2440 = vpop.f32.mrb[0].mxu0
      %v2441 = vadd.f32 0.0, %v2440
      %v2442 = vpop.f32.mrb[0].mxu0
      %v2443 = vpop.f32.mrb[0].mxu0
      %v2444 = vadd.f32 0.0, %v2443
      %v2445 = vpop.f32.mrb[0].mxu0
      %2446 = vmatprep.mubr.bf16.mxu0 0
      %2447 = vmatmul.mubr.bf16.gmra.mrb[0].mxu0 %v2178
      %v2448 = vpop.f32.mrb[0].mxu0
      %v2449 = vadd.f32 0.0, %v2448
      %v2450 = vpop.f32.mrb[0].mxu0
      %v2451 = vpop.f32.mrb[0].mxu0
      %v2452 = vadd.f32 0.0, %v2451
      %v2453 = vpop.f32.mrb[0].mxu0
      %2454 = vmatprep.mubr.bf16.mxu0 0
      %2455 = vmatmul.mubr.bf16.gmra.mrb[0].mxu0 %v2179
      %v2456 = vpop.f32.mrb[0].mxu0
      %v2457 = vadd.f32 0.0, %v2456
      %v2458 = vpop.f32.mrb[0].mxu0
      %v2459 = vpop.f32.mrb[0].mxu0
      %v2460 = vadd.f32 0.0, %v2459
      %v2461 = vpop.f32.mrb[0].mxu0
      %2462 = vmatprep.mubr.bf16.mxu0 0
      %2463 = vmatmul.mubr.bf16.gmra.mrb[0].mxu0 %v2180
      %v2464 = vpop.f32.mrb[0].mxu0
      %v2465 = vadd.f32 0.0, %v2464
      %v2466 = vpop.f32.mrb[0].mxu0
      %v2467 = vpop.f32.mrb[0].mxu0
      %v2468 = vadd.f32 0.0, %v2467
      %v2469 = vpop.f32.mrb[0].mxu0
      %2470 = vdwg.mxu0
      %v2487 = vunpack.c.l.b16 %v378
      %v2488 = vunpack.c.l.b16 %v379
      %v2489 = vunpack.c.l.b16 %v380
      %v2490 = vunpack.c.l.b16 %v381
      %v2491 = vunpack.c.l.b16 %v382
      %v2492 = vunpack.c.l.b16 %v383
      %v2493 = vunpack.c.l.b16 %v384
      %v2494 = vunpack.c.l.b16 %v385
      %v2495 = vunpack.c.l.b16 %v386
      %v2496 = vunpack.c.l.b16 %v387
      %v2497 = vunpack.c.l.b16 %v388
      %v2498 = vunpack.c.l.b16 %v389
      %v2499 = vunpack.c.l.b16 %v390
      %v2500 = vunpack.c.l.b16 %v391
      %v2501 = vunpack.c.l.b16 %v392
      %v2502 = vunpack.c.l.b16 %v393
      %v2503 = vpack.c.b16 %v2488, %v2487
      %v2504 = vpack.c.b16 %v2490, %v2489
      %v2505 = vpack.c.b16 %v2492, %v2491
      %v2506 = vpack.c.b16 %v2494, %v2493
      %v2507 = vpack.c.b16 %v2496, %v2495
      %v2508 = vpack.c.b16 %v2498, %v2497
      %v2509 = vpack.c.b16 %v2500, %v2499
      %v2510 = vpack.c.b16 %v2502, %v2501
      %2519 = vmatprep.subr.bf16.mxu0 0
      %2520 = vmatpush1.bf16.msra.mxu0 %v2503
      %2521 = vmatprep.subr.bf16.mxu0 0
      %2522 = vmatpush1.bf16.msra.mxu0 %v2504
      %2523 = vmatprep.subr.bf16.mxu0 0
      %2524 = vmatpush1.bf16.msra.mxu0 %v2505
      %2525 = vmatprep.subr.bf16.mxu0 0
      %2526 = vmatpush1.bf16.msra.mxu0 %v2506
      %2527 = vmatprep.subr.bf16.mxu0 0
      %2528 = vmatpush1.bf16.msra.mxu0 %v2507
      %2529 = vmatprep.subr.bf16.mxu0 0
      %2530 = vmatpush1.bf16.msra.mxu0 %v2508
      %2531 = vmatprep.subr.bf16.mxu0 0
      %2532 = vmatpush1.bf16.msra.mxu0 %v2509
      %2533 = vmatprep.subr.bf16.mxu0 0
      %2534 = vmatpush1.bf16.msra.mxu0 %v2510
      %2535 = vmatprep.subr.bf16.mxu0 0
      %2536 = vmatpush1.bf16.msra.mxu0 0
      %2537 = vmatprep.subr.bf16.mxu0 0
      %2538 = vmatpush1.bf16.msra.mxu0 0
      %2539 = vmatprep.subr.bf16.mxu0 0
      %2540 = vmatpush1.bf16.msra.mxu0 0
      %2541 = vmatprep.subr.bf16.mxu0 0
      %2542 = vmatpush1.bf16.msra.mxu0 0
      %2543 = vmatprep.subr.bf16.mxu0 0
      %2544 = vmatpush1.bf16.msra.mxu0 0
      %2545 = vmatprep.subr.bf16.mxu0 0
      %2546 = vmatpush1.bf16.msra.mxu0 0
      %2547 = vmatprep.subr.bf16.mxu0 0
      %2548 = vmatpush1.bf16.msra.mxu0 0
      %2549 = vmatprep.subr.bf16.mxu0 0
      %2550 = vmatpush1.bf16.msra.mxu0 0
      %2551 = vmatprep.mubr.bf16.mxu0 0
      %2552 = vmatmul.mubr.bf16.gmra.mrb[0].mxu0 %v354
      %v2553 = vpop.f32.mrb[0].mxu0
      %v2554 = vadd.f32 %v566, %v2553
      %v2555 = vpop.f32.mrb[0].mxu0
      %v2556 = vpop.f32.mrb[0].mxu0
      %v2557 = vadd.f32 %v569, %v2556
      %v2558 = vpop.f32.mrb[0].mxu0
      %2559 = vmatprep.mubr.bf16.mxu0 0
      %2560 = vmatmul.mubr.bf16.gmra.mrb[0].mxu0 %v355
      %v2561 = vpop.f32.mrb[0].mxu0
      %v2562 = vadd.f32 %v574, %v2561
      %v2563 = vpop.f32.mrb[0].mxu0
      %v2564 = vpop.f32.mrb[0].mxu0
      %v2565 = vadd.f32 %v577, %v2564
      %v2566 = vpop.f32.mrb[0].mxu0
      %2567 = vmatprep.mubr.bf16.mxu0 0
      %2568 = vmatmul.mubr.bf16.gmra.mrb[0].mxu0 %v356
      %v2569 = vpop.f32.mrb[0].mxu0
      %v2570 = vadd.f32 %v582, %v2569
      %v2571 = vpop.f32.mrb[0].mxu0
      %v2572 = vpop.f32.mrb[0].mxu0
      %v2573 = vadd.f32 %v585, %v2572
      %v2574 = vpop.f32.mrb[0].mxu0
      %2575 = vmatprep.mubr.bf16.mxu0 0
      %2576 = vmatmul.mubr.bf16.gmra.mrb[0].mxu0 %v357
      %v2577 = vpop.f32.mrb[0].mxu0
      %v2578 = vadd.f32 %v590, %v2577
      %v2579 = vpop.f32.mrb[0].mxu0
      %v2580 = vpop.f32.mrb[0].mxu0
      %v2581 = vadd.f32 %v593, %v2580
      %v2582 = vpop.f32.mrb[0].mxu0
      %2583 = vmatprep.mubr.bf16.mxu0 0
      %2584 = vmatmul.mubr.bf16.gmra.mrb[0].mxu0 %v358
      %v2585 = vpop.f32.mrb[0].mxu0
      %v2586 = vadd.f32 %v598, %v2585
      %v2587 = vpop.f32.mrb[0].mxu0
      %v2588 = vpop.f32.mrb[0].mxu0
      %v2589 = vadd.f32 %v601, %v2588
      %v2590 = vpop.f32.mrb[0].mxu0
      %2591 = vmatprep.mubr.bf16.mxu0 0
      %2592 = vmatmul.mubr.bf16.gmra.mrb[0].mxu0 %v359
      %v2593 = vpop.f32.mrb[0].mxu0
      %v2594 = vadd.f32 %v606, %v2593
      %v2595 = vpop.f32.mrb[0].mxu0
      %v2596 = vpop.f32.mrb[0].mxu0
      %v2597 = vadd.f32 %v609, %v2596
      %v2598 = vpop.f32.mrb[0].mxu0
      %2599 = vmatprep.mubr.bf16.mxu0 0
      %2600 = vmatmul.mubr.bf16.gmra.mrb[0].mxu0 %v360
      %v2601 = vpop.f32.mrb[0].mxu0
      %v2602 = vadd.f32 %v614, %v2601
      %v2603 = vpop.f32.mrb[0].mxu0
      %v2604 = vpop.f32.mrb[0].mxu0
      %v2605 = vadd.f32 %v617, %v2604
      %v2606 = vpop.f32.mrb[0].mxu0
      %2607 = vmatprep.mubr.bf16.mxu0 0
      %2608 = vmatmul.mubr.bf16.gmra.mrb[0].mxu0 %v361
      %v2609 = vpop.f32.mrb[0].mxu0
      %v2610 = vadd.f32 %v622, %v2609
      %v2611 = vpop.f32.mrb[0].mxu0
      %v2612 = vpop.f32.mrb[0].mxu0
      %v2613 = vadd.f32 %v625, %v2612
      %v2614 = vpop.f32.mrb[0].mxu0
      %2615 = vmatprep.mubr.bf16.mxu0 0
      %2616 = vmatmul.mubr.bf16.gmra.mrb[0].mxu0 %v362
      %v2617 = vpop.f32.mrb[0].mxu0
      %v2618 = vadd.f32 %v630, %v2617
      %v2619 = vpop.f32.mrb[0].mxu0
      %v2620 = vpop.f32.mrb[0].mxu0
      %v2621 = vadd.f32 %v633, %v2620
      %v2622 = vpop.f32.mrb[0].mxu0
      %2623 = vmatprep.mubr.bf16.mxu0 0
      %2624 = vmatmul.mubr.bf16.gmra.mrb[0].mxu0 %v363
      %v2625 = vpop.f32.mrb[0].mxu0
      %v2626 = vadd.f32 %v638, %v2625
      %v2627 = vpop.f32.mrb[0].mxu0
      %v2628 = vpop.f32.mrb[0].mxu0
      %v2629 = vadd.f32 %v641, %v2628
      %v2630 = vpop.f32.mrb[0].mxu0
      %2631 = vmatprep.mubr.bf16.mxu0 0
      %2632 = vmatmul.mubr.bf16.gmra.mrb[0].mxu0 %v364
      %v2633 = vpop.f32.mrb[0].mxu0
      %v2634 = vadd.f32 %v646, %v2633
      %v2635 = vpop.f32.mrb[0].mxu0
      %v2636 = vpop.f32.mrb[0].mxu0
      %v2637 = vadd.f32 %v649, %v2636
      %v2638 = vpop.f32.mrb[0].mxu0
      %2639 = vmatprep.mubr.bf16.mxu0 0
      %2640 = vmatmul.mubr.bf16.gmra.mrb[0].mxu0 %v365
      %v2641 = vpop.f32.mrb[0].mxu0
      %v2642 = vadd.f32 %v654, %v2641
      %v2643 = vpop.f32.mrb[0].mxu0
      %v2644 = vpop.f32.mrb[0].mxu0
      %v2645 = vadd.f32 %v657, %v2644
      %v2646 = vpop.f32.mrb[0].mxu0
      %2647 = vmatprep.mubr.bf16.mxu0 0
      %2648 = vmatmul.mubr.bf16.gmra.mrb[0].mxu0 %v366
      %v2649 = vpop.f32.mrb[0].mxu0
      %v2650 = vadd.f32 %v662, %v2649
      %v2651 = vpop.f32.mrb[0].mxu0
      %v2652 = vpop.f32.mrb[0].mxu0
      %v2653 = vadd.f32 %v665, %v2652
      %v2654 = vpop.f32.mrb[0].mxu0
      %2655 = vmatprep.mubr.bf16.mxu0 0
      %2656 = vmatmul.mubr.bf16.gmra.mrb[0].mxu0 %v367
      %v2657 = vpop.f32.mrb[0].mxu0
      %v2658 = vadd.f32 %v670, %v2657
      %v2659 = vpop.f32.mrb[0].mxu0
      %v2660 = vpop.f32.mrb[0].mxu0
      %v2661 = vadd.f32 %v673, %v2660
      %v2662 = vpop.f32.mrb[0].mxu0
      %2663 = vmatprep.mubr.bf16.mxu0 0
      %2664 = vmatmul.mubr.bf16.gmra.mrb[0].mxu0 %v368
      %v2665 = vpop.f32.mrb[0].mxu0
      %v2666 = vadd.f32 %v678, %v2665
      %v2667 = vpop.f32.mrb[0].mxu0
      %v2668 = vpop.f32.mrb[0].mxu0
      %v2669 = vadd.f32 %v681, %v2668
      %v2670 = vpop.f32.mrb[0].mxu0
      %2671 = vmatprep.mubr.bf16.mxu0 0
      %2672 = vmatmul.mubr.bf16.gmra.mrb[0].mxu0 %v369
      %v2673 = vpop.f32.mrb[0].mxu0
      %v2674 = vadd.f32 %v686, %v2673
      %v2675 = vpop.f32.mrb[0].mxu0
      %v2676 = vpop.f32.mrb[0].mxu0
      %v2677 = vadd.f32 %v689, %v2676
      %v2678 = vpop.f32.mrb[0].mxu0
      %2679 = vmatprep.mubr.bf16.mxu0 0
      %2680 = vmatmul.mubr.bf16.gmra.mrb[0].mxu0 %v370
      %v2681 = vpop.f32.mrb[0].mxu0
      %v2682 = vadd.f32 %v694, %v2681
      %v2683 = vpop.f32.mrb[0].mxu0
      %v2684 = vpop.f32.mrb[0].mxu0
      %v2685 = vadd.f32 %v697, %v2684
      %v2686 = vpop.f32.mrb[0].mxu0
      %2687 = vmatprep.mubr.bf16.mxu0 0
      %2688 = vmatmul.mubr.bf16.gmra.mrb[0].mxu0 %v371
      %v2689 = vpop.f32.mrb[0].mxu0
      %v2690 = vadd.f32 %v702, %v2689
      %v2691 = vpop.f32.mrb[0].mxu0
      %v2692 = vpop.f32.mrb[0].mxu0
      %v2693 = vadd.f32 %v705, %v2692
      %v2694 = vpop.f32.mrb[0].mxu0
      %2695 = vmatprep.mubr.bf16.mxu0 0
      %2696 = vmatmul.mubr.bf16.gmra.mrb[0].mxu0 %v372
      %v2697 = vpop.f32.mrb[0].mxu0
      %v2698 = vadd.f32 %v710, %v2697
      %v2699 = vpop.f32.mrb[0].mxu0
      %v2700 = vpop.f32.mrb[0].mxu0
      %v2701 = vadd.f32 %v713, %v2700
      %v2702 = vpop.f32.mrb[0].mxu0
      %2703 = vmatprep.mubr.bf16.mxu0 0
      %2704 = vmatmul.mubr.bf16.gmra.mrb[0].mxu0 %v373
      %v2705 = vpop.f32.mrb[0].mxu0
      %v2706 = vadd.f32 %v718, %v2705
      %v2707 = vpop.f32.mrb[0].mxu0
      %v2708 = vpop.f32.mrb[0].mxu0
      %v2709 = vadd.f32 %v721, %v2708
      %v2710 = vpop.f32.mrb[0].mxu0
      %2711 = vmatprep.mubr.bf16.mxu0 0
      %2712 = vmatmul.mubr.bf16.gmra.mrb[0].mxu0 %v374
      %v2713 = vpop.f32.mrb[0].mxu0
      %v2714 = vadd.f32 %v726, %v2713
      %v2715 = vpop.f32.mrb[0].mxu0
      %v2716 = vpop.f32.mrb[0].mxu0
      %v2717 = vadd.f32 %v729, %v2716
      %v2718 = vpop.f32.mrb[0].mxu0
      %2719 = vmatprep.mubr.bf16.mxu0 0
      %2720 = vmatmul.mubr.bf16.gmra.mrb[0].mxu0 %v375
      %v2721 = vpop.f32.mrb[0].mxu0
      %v2722 = vadd.f32 %v734, %v2721
      %v2723 = vpop.f32.mrb[0].mxu0
      %v2724 = vpop.f32.mrb[0].mxu0
      %v2725 = vadd.f32 %v737, %v2724
      %v2726 = vpop.f32.mrb[0].mxu0
      %2727 = vmatprep.mubr.bf16.mxu0 0
      %2728 = vmatmul.mubr.bf16.gmra.mrb[0].mxu0 %v376
      %v2729 = vpop.f32.mrb[0].mxu0
      %v2730 = vadd.f32 %v742, %v2729
      %v2731 = vpop.f32.mrb[0].mxu0
      %v2732 = vpop.f32.mrb[0].mxu0
      %v2733 = vadd.f32 %v745, %v2732
      %v2734 = vpop.f32.mrb[0].mxu0
      %2735 = vmatprep.mubr.bf16.mxu0 0
      %2736 = vmatmul.mubr.bf16.gmra.mrb[0].mxu0 %v377
      %v2737 = vpop.f32.mrb[0].mxu0
      %v2738 = vadd.f32 %v750, %v2737
      %v2739 = vpop.f32.mrb[0].mxu0
      %v2740 = vpop.f32.mrb[0].mxu0
      %v2741 = vadd.f32 %v753, %v2740
      %v2742 = vpop.f32.mrb[0].mxu0
      %2743 = vdwg.mxu0
      %v2760 = vunpack.c.l.b16 %v829
      %v2761 = vunpack.c.l.b16 %v830
      %v2762 = vunpack.c.l.b16 %v831
      %v2763 = vunpack.c.l.b16 %v832
      %v2764 = vunpack.c.l.b16 %v833
      %v2765 = vunpack.c.l.b16 %v834
      %v2766 = vunpack.c.l.b16 %v835
      %v2767 = vunpack.c.l.b16 %v836
      %v2768 = vunpack.c.l.b16 %v837
      %v2769 = vunpack.c.l.b16 %v838
      %v2770 = vunpack.c.l.b16 %v839
      %v2771 = vunpack.c.l.b16 %v840
      %v2772 = vunpack.c.l.b16 %v841
      %v2773 = vunpack.c.l.b16 %v842
      %v2774 = vunpack.c.l.b16 %v843
      %v2775 = vunpack.c.l.b16 %v844
      %v2776 = vpack.c.b16 %v2761, %v2760
      %v2777 = vpack.c.b16 %v2763, %v2762
      %v2778 = vpack.c.b16 %v2765, %v2764
      %v2779 = vpack.c.b16 %v2767, %v2766
      %v2780 = vpack.c.b16 %v2769, %v2768
      %v2781 = vpack.c.b16 %v2771, %v2770
      %v2782 = vpack.c.b16 %v2773, %v2772
      %v2783 = vpack.c.b16 %v2775, %v2774
      %2792 = vmatprep.subr.bf16.mxu0 0
      %2793 = vmatpush1.bf16.msra.mxu0 %v2776
      %2794 = vmatprep.subr.bf16.mxu0 0
      %2795 = vmatpush1.bf16.msra.mxu0 %v2777
      %2796 = vmatprep.subr.bf16.mxu0 0
      %2797 = vmatpush1.bf16.msra.mxu0 %v2778
      %2798 = vmatprep.subr.bf16.mxu0 0
      %2799 = vmatpush1.bf16.msra.mxu0 %v2779
      %2800 = vmatprep.subr.bf16.mxu0 0
      %2801 = vmatpush1.bf16.msra.mxu0 %v2780
      %2802 = vmatprep.subr.bf16.mxu0 0
      %2803 = vmatpush1.bf16.msra.mxu0 %v2781
      %2804 = vmatprep.subr.bf16.mxu0 0
      %2805 = vmatpush1.bf16.msra.mxu0 %v2782
      %2806 = vmatprep.subr.bf16.mxu0 0
      %2807 = vmatpush1.bf16.msra.mxu0 %v2783
      %2808 = vmatprep.subr.bf16.mxu0 0
      %2809 = vmatpush1.bf16.msra.mxu0 0
      %2810 = vmatprep.subr.bf16.mxu0 0
      %2811 = vmatpush1.bf16.msra.mxu0 0
      %2812 = vmatprep.subr.bf16.mxu0 0
      %2813 = vmatpush1.bf16.msra.mxu0 0
      %2814 = vmatprep.subr.bf16.mxu0 0
      %2815 = vmatpush1.bf16.msra.mxu0 0
      %2816 = vmatprep.subr.bf16.mxu0 0
      %2817 = vmatpush1.bf16.msra.mxu0 0
      %2818 = vmatprep.subr.bf16.mxu0 0
      %2819 = vmatpush1.bf16.msra.mxu0 0
      %2820 = vmatprep.subr.bf16.mxu0 0
      %2821 = vmatpush1.bf16.msra.mxu0 0
      %2822 = vmatprep.subr.bf16.mxu0 0
      %2823 = vmatpush1.bf16.msra.mxu0 0
      %2824 = vmatprep.mubr.bf16.mxu0 0
      %2825 = vmatmul.mubr.bf16.gmra.mrb[0].mxu0 %v804
      %v2826 = vpop.f32.mrb[0].mxu0
      %v2827 = vadd.f32 %v1017, %v2826
      %v2828 = vpop.f32.mrb[0].mxu0
      %v2829 = vpop.f32.mrb[0].mxu0
      %v2830 = vadd.f32 %v1020, %v2829
      %v2831 = vpop.f32.mrb[0].mxu0
      %2832 = vmatprep.mubr.bf16.mxu0 0
      %2833 = vmatmul.mubr.bf16.gmra.mrb[0].mxu0 %v805
      %v2834 = vpop.f32.mrb[0].mxu0
      %v2835 = vadd.f32 %v1025, %v2834
      %v2836 = vpop.f32.mrb[0].mxu0
      %v2837 = vpop.f32.mrb[0].mxu0
      %v2838 = vadd.f32 %v1028, %v2837
      %v2839 = vpop.f32.mrb[0].mxu0
      %2840 = vmatprep.mubr.bf16.mxu0 0
      %2841 = vmatmul.mubr.bf16.gmra.mrb[0].mxu0 %v806
      %v2842 = vpop.f32.mrb[0].mxu0
      %v2843 = vadd.f32 %v1033, %v2842
      %v2844 = vpop.f32.mrb[0].mxu0
      %v2845 = vpop.f32.mrb[0].mxu0
      %v2846 = vadd.f32 %v1036, %v2845
      %v2847 = vpop.f32.mrb[0].mxu0
      %2848 = vmatprep.mubr.bf16.mxu0 0
      %2849 = vmatmul.mubr.bf16.gmra.mrb[0].mxu0 %v807
      %v2850 = vpop.f32.mrb[0].mxu0
      %v2851 = vadd.f32 %v1041, %v2850
      %v2852 = vpop.f32.mrb[0].mxu0
      %v2853 = vpop.f32.mrb[0].mxu0
      %v2854 = vadd.f32 %v1044, %v2853
      %v2855 = vpop.f32.mrb[0].mxu0
      %2856 = vmatprep.mubr.bf16.mxu0 0
      %2857 = vmatmul.mubr.bf16.gmra.mrb[0].mxu0 %v808
      %v2858 = vpop.f32.mrb[0].mxu0
      %v2859 = vadd.f32 %v1049, %v2858
      %v2860 = vpop.f32.mrb[0].mxu0
      %v2861 = vpop.f32.mrb[0].mxu0
      %v2862 = vadd.f32 %v1052, %v2861
      %v2863 = vpop.f32.mrb[0].mxu0
      %2864 = vmatprep.mubr.bf16.mxu0 0
      %2865 = vmatmul.mubr.bf16.gmra.mrb[0].mxu0 %v809
      %v2866 = vpop.f32.mrb[0].mxu0
      %v2867 = vadd.f32 %v1057, %v2866
      %v2868 = vpop.f32.mrb[0].mxu0
      %v2869 = vpop.f32.mrb[0].mxu0
      %v2870 = vadd.f32 %v1060, %v2869
      %v2871 = vpop.f32.mrb[0].mxu0
      %2872 = vmatprep.mubr.bf16.mxu0 0
      %2873 = vmatmul.mubr.bf16.gmra.mrb[0].mxu0 %v810
      %v2874 = vpop.f32.mrb[0].mxu0
      %v2875 = vadd.f32 %v1065, %v2874
      %v2876 = vpop.f32.mrb[0].mxu0
      %v2877 = vpop.f32.mrb[0].mxu0
      %v2878 = vadd.f32 %v1068, %v2877
      %v2879 = vpop.f32.mrb[0].mxu0
      %2880 = vmatprep.mubr.bf16.mxu0 0
      %2881 = vmatmul.mubr.bf16.gmra.mrb[0].mxu0 %v811
      %v2882 = vpop.f32.mrb[0].mxu0
      %v2883 = vadd.f32 %v1073, %v2882
      %v2884 = vpop.f32.mrb[0].mxu0
      %v2885 = vpop.f32.mrb[0].mxu0
      %v2886 = vadd.f32 %v1076, %v2885
      %v2887 = vpop.f32.mrb[0].mxu0
      %2888 = vmatprep.mubr.bf16.mxu0 0
      %2889 = vmatmul.mubr.bf16.gmra.mrb[0].mxu0 %v812
      %v2890 = vpop.f32.mrb[0].mxu0
      %v2891 = vadd.f32 %v1081, %v2890
      %v2892 = vpop.f32.mrb[0].mxu0
      %v2893 = vpop.f32.mrb[0].mxu0
      %v2894 = vadd.f32 %v1084, %v2893
      %v2895 = vpop.f32.mrb[0].mxu0
      %2896 = vmatprep.mubr.bf16.mxu0 0
      %2897 = vmatmul.mubr.bf16.gmra.mrb[0].mxu0 %v813
      %v2898 = vpop.f32.mrb[0].mxu0
      %v2899 = vadd.f32 %v1089, %v2898
      %v2900 = vpop.f32.mrb[0].mxu0
      %v2901 = vpop.f32.mrb[0].mxu0
      %v2902 = vadd.f32 %v1092, %v2901
      %v2903 = vpop.f32.mrb[0].mxu0
      %2904 = vmatprep.mubr.bf16.mxu0 0
      %2905 = vmatmul.mubr.bf16.gmra.mrb[0].mxu0 %v814
      %v2906 = vpop.f32.mrb[0].mxu0
      %v2907 = vadd.f32 %v1097, %v2906
      %v2908 = vpop.f32.mrb[0].mxu0
      %v2909 = vpop.f32.mrb[0].mxu0
      %v2910 = vadd.f32 %v1100, %v2909
      %v2911 = vpop.f32.mrb[0].mxu0
      %2912 = vmatprep.mubr.bf16.mxu0 0
      %2913 = vmatmul.mubr.bf16.gmra.mrb[0].mxu0 %v815
      %v2914 = vpop.f32.mrb[0].mxu0
      %v2915 = vadd.f32 %v1105, %v2914
      %v2916 = vpop.f32.mrb[0].mxu0
      %v2917 = vpop.f32.mrb[0].mxu0
      %v2918 = vadd.f32 %v1108, %v2917
      %v2919 = vpop.f32.mrb[0].mxu0
      %2920 = vmatprep.mubr.bf16.mxu0 0
      %2921 = vmatmul.mubr.bf16.gmra.mrb[0].mxu0 %v816
      %v2922 = vpop.f32.mrb[0].mxu0
      %v2923 = vadd.f32 %v1113, %v2922
      %v2924 = vpop.f32.mrb[0].mxu0
      %v2925 = vpop.f32.mrb[0].mxu0
      %v2926 = vadd.f32 %v1116, %v2925
      %v2927 = vpop.f32.mrb[0].mxu0
      %2928 = vmatprep.mubr.bf16.mxu0 0
      %2929 = vmatmul.mubr.bf16.gmra.mrb[0].mxu0 %v817
      %v2930 = vpop.f32.mrb[0].mxu0
      %v2931 = vadd.f32 %v1121, %v2930
      %v2932 = vpop.f32.mrb[0].mxu0
      %v2933 = vpop.f32.mrb[0].mxu0
      %v2934 = vadd.f32 %v1124, %v2933
      %v2935 = vpop.f32.mrb[0].mxu0
      %2936 = vmatprep.mubr.bf16.mxu0 0
      %2937 = vmatmul.mubr.bf16.gmra.mrb[0].mxu0 %v818
      %v2938 = vpop.f32.mrb[0].mxu0
      %v2939 = vadd.f32 %v1129, %v2938
      %v2940 = vpop.f32.mrb[0].mxu0
      %v2941 = vpop.f32.mrb[0].mxu0
      %v2942 = vadd.f32 %v1132, %v2941
      %v2943 = vpop.f32.mrb[0].mxu0
      %2944 = vmatprep.mubr.bf16.mxu0 0
      %2945 = vmatmul.mubr.bf16.gmra.mrb[0].mxu0 %v819
      %v2946 = vpop.f32.mrb[0].mxu0
      %v2947 = vadd.f32 %v1137, %v2946
      %v2948 = vpop.f32.mrb[0].mxu0
      %v2949 = vpop.f32.mrb[0].mxu0
      %v2950 = vadd.f32 %v1140, %v2949
      %v2951 = vpop.f32.mrb[0].mxu0
      %2952 = vmatprep.mubr.bf16.mxu0 0
      %2953 = vmatmul.mubr.bf16.gmra.mrb[0].mxu0 %v820
      %v2954 = vpop.f32.mrb[0].mxu0
      %v2955 = vadd.f32 %v1145, %v2954
      %v2956 = vpop.f32.mrb[0].mxu0
      %v2957 = vpop.f32.mrb[0].mxu0
      %v2958 = vadd.f32 %v1148, %v2957
      %v2959 = vpop.f32.mrb[0].mxu0
      %2960 = vmatprep.mubr.bf16.mxu0 0
      %2961 = vmatmul.mubr.bf16.gmra.mrb[0].mxu0 %v821
      %v2962 = vpop.f32.mrb[0].mxu0
      %v2963 = vadd.f32 %v1153, %v2962
      %v2964 = vpop.f32.mrb[0].mxu0
      %v2965 = vpop.f32.mrb[0].mxu0
      %v2966 = vadd.f32 %v1156, %v2965
      %v2967 = vpop.f32.mrb[0].mxu0
      %2968 = vmatprep.mubr.bf16.mxu0 0
      %2969 = vmatmul.mubr.bf16.gmra.mrb[0].mxu0 %v822
      %v2970 = vpop.f32.mrb[0].mxu0
      %v2971 = vadd.f32 %v1161, %v2970
      %v2972 = vpop.f32.mrb[0].mxu0
      %v2973 = vpop.f32.mrb[0].mxu0
      %v2974 = vadd.f32 %v1164, %v2973
      %v2975 = vpop.f32.mrb[0].mxu0
      %2976 = vmatprep.mubr.bf16.mxu0 0
      %2977 = vmatmul.mubr.bf16.gmra.mrb[0].mxu0 %v823
      %v2978 = vpop.f32.mrb[0].mxu0
      %v2979 = vadd.f32 %v1169, %v2978
      %v2980 = vpop.f32.mrb[0].mxu0
      %v2981 = vpop.f32.mrb[0].mxu0
      %v2982 = vadd.f32 %v1172, %v2981
      %v2983 = vpop.f32.mrb[0].mxu0
      %2984 = vmatprep.mubr.bf16.mxu0 0
      %2985 = vmatmul.mubr.bf16.gmra.mrb[0].mxu0 %v824
      %v2986 = vpop.f32.mrb[0].mxu0
      %v2987 = vadd.f32 %v1177, %v2986
      %v2988 = vpop.f32.mrb[0].mxu0
      %v2989 = vpop.f32.mrb[0].mxu0
      %v2990 = vadd.f32 %v1180, %v2989
      %v2991 = vpop.f32.mrb[0].mxu0
      %2992 = vmatprep.mubr.bf16.mxu0 0
      %2993 = vmatmul.mubr.bf16.gmra.mrb[0].mxu0 %v825
      %v2994 = vpop.f32.mrb[0].mxu0
      %v2995 = vadd.f32 %v1185, %v2994
      %v2996 = vpop.f32.mrb[0].mxu0
      %v2997 = vpop.f32.mrb[0].mxu0
      %v2998 = vadd.f32 %v1188, %v2997
      %v2999 = vpop.f32.mrb[0].mxu0
      %3000 = vmatprep.mubr.bf16.mxu0 0
      %3001 = vmatmul.mubr.bf16.gmra.mrb[0].mxu0 %v826
      %v3002 = vpop.f32.mrb[0].mxu0
      %v3003 = vadd.f32 %v1193, %v3002
      %v3004 = vpop.f32.mrb[0].mxu0
      %v3005 = vpop.f32.mrb[0].mxu0
      %v3006 = vadd.f32 %v1196, %v3005
      %v3007 = vpop.f32.mrb[0].mxu0
      %3008 = vmatprep.mubr.bf16.mxu0 0
      %3009 = vmatmul.mubr.bf16.gmra.mrb[0].mxu0 %v827
      %v3010 = vpop.f32.mrb[0].mxu0
      %v3011 = vadd.f32 %v1201, %v3010
      %v3012 = vpop.f32.mrb[0].mxu0
      %v3013 = vpop.f32.mrb[0].mxu0
      %v3014 = vadd.f32 %v1204, %v3013
      %v3015 = vpop.f32.mrb[0].mxu0
      %3016 = vdwg.mxu0
      %v3033 = vunpack.c.l.b16 %v1280
      %v3034 = vunpack.c.l.b16 %v1281
      %v3035 = vunpack.c.l.b16 %v1282
      %v3036 = vunpack.c.l.b16 %v1283
      %v3037 = vunpack.c.l.b16 %v1284
      %v3038 = vunpack.c.l.b16 %v1285
      %v3039 = vunpack.c.l.b16 %v1286
      %v3040 = vunpack.c.l.b16 %v1287
      %v3041 = vunpack.c.l.b16 %v1288
      %v3042 = vunpack.c.l.b16 %v1289
      %v3043 = vunpack.c.l.b16 %v1290
      %v3044 = vunpack.c.l.b16 %v1291
      %v3045 = vunpack.c.l.b16 %v1292
      %v3046 = vunpack.c.l.b16 %v1293
      %v3047 = vunpack.c.l.b16 %v1294
      %v3048 = vunpack.c.l.b16 %v1295
      %v3049 = vpack.c.b16 %v3034, %v3033
      %v3050 = vpack.c.b16 %v3036, %v3035
      %v3051 = vpack.c.b16 %v3038, %v3037
      %v3052 = vpack.c.b16 %v3040, %v3039
      %v3053 = vpack.c.b16 %v3042, %v3041
      %v3054 = vpack.c.b16 %v3044, %v3043
      %v3055 = vpack.c.b16 %v3046, %v3045
      %v3056 = vpack.c.b16 %v3048, %v3047
      %3065 = vmatprep.subr.bf16.mxu0 0
      %3066 = vmatpush1.bf16.msra.mxu0 %v3049
      %3067 = vmatprep.subr.bf16.mxu0 0
      %3068 = vmatpush1.bf16.msra.mxu0 %v3050
      %3069 = vmatprep.subr.bf16.mxu0 0
      %3070 = vmatpush1.bf16.msra.mxu0 %v3051
      %3071 = vmatprep.subr.bf16.mxu0 0
      %3072 = vmatpush1.bf16.msra.mxu0 %v3052
      %3073 = vmatprep.subr.bf16.mxu0 0
      %3074 = vmatpush1.bf16.msra.mxu0 %v3053
      %3075 = vmatprep.subr.bf16.mxu0 0
      %3076 = vmatpush1.bf16.msra.mxu0 %v3054
      %3077 = vmatprep.subr.bf16.mxu0 0
      %3078 = vmatpush1.bf16.msra.mxu0 %v3055
      %3079 = vmatprep.subr.bf16.mxu0 0
      %3080 = vmatpush1.bf16.msra.mxu0 %v3056
      %3081 = vmatprep.subr.bf16.mxu0 0
      %3082 = vmatpush1.bf16.msra.mxu0 0
      %3083 = vmatprep.subr.bf16.mxu0 0
      %3084 = vmatpush1.bf16.msra.mxu0 0
      %3085 = vmatprep.subr.bf16.mxu0 0
      %3086 = vmatpush1.bf16.msra.mxu0 0
      %3087 = vmatprep.subr.bf16.mxu0 0
      %3088 = vmatpush1.bf16.msra.mxu0 0
      %3089 = vmatprep.subr.bf16.mxu0 0
      %3090 = vmatpush1.bf16.msra.mxu0 0
      %3091 = vmatprep.subr.bf16.mxu0 0
      %3092 = vmatpush1.bf16.msra.mxu0 0
      %3093 = vmatprep.subr.bf16.mxu0 0
      %3094 = vmatpush1.bf16.msra.mxu0 0
      %3095 = vmatprep.subr.bf16.mxu0 0
      %3096 = vmatpush1.bf16.msra.mxu0 0
      %3097 = vmatprep.mubr.bf16.mxu0 0
      %3098 = vmatmul.mubr.bf16.gmra.mrb[0].mxu0 %v1255
      %v3099 = vpop.f32.mrb[0].mxu0
      %v3100 = vadd.f32 %v1468, %v3099
      %v3101 = vpop.f32.mrb[0].mxu0
      %v3102 = vpop.f32.mrb[0].mxu0
      %v3103 = vadd.f32 %v1471, %v3102
      %v3104 = vpop.f32.mrb[0].mxu0
      %3105 = vmatprep.mubr.bf16.mxu0 0
      %3106 = vmatmul.mubr.bf16.gmra.mrb[0].mxu0 %v1256
      %v3107 = vpop.f32.mrb[0].mxu0
      %v3108 = vadd.f32 %v1476, %v3107
      %v3109 = vpop.f32.mrb[0].mxu0
      %v3110 = vpop.f32.mrb[0].mxu0
      %v3111 = vadd.f32 %v1479, %v3110
      %v3112 = vpop.f32.mrb[0].mxu0
      %3113 = vmatprep.mubr.bf16.mxu0 0
      %3114 = vmatmul.mubr.bf16.gmra.mrb[0].mxu0 %v1257
      %v3115 = vpop.f32.mrb[0].mxu0
      %v3116 = vadd.f32 %v1484, %v3115
      %v3117 = vpop.f32.mrb[0].mxu0
      %v3118 = vpop.f32.mrb[0].mxu0
      %v3119 = vadd.f32 %v1487, %v3118
      %v3120 = vpop.f32.mrb[0].mxu0
      %3121 = vmatprep.mubr.bf16.mxu0 0
      %3122 = vmatmul.mubr.bf16.gmra.mrb[0].mxu0 %v1258
      %v3123 = vpop.f32.mrb[0].mxu0
      %v3124 = vadd.f32 %v1492, %v3123
      %v3125 = vpop.f32.mrb[0].mxu0
      %v3126 = vpop.f32.mrb[0].mxu0
      %v3127 = vadd.f32 %v1495, %v3126
      %v3128 = vpop.f32.mrb[0].mxu0
      %3129 = vmatprep.mubr.bf16.mxu0 0
      %3130 = vmatmul.mubr.bf16.gmra.mrb[0].mxu0 %v1259
      %v3131 = vpop.f32.mrb[0].mxu0
      %v3132 = vadd.f32 %v1500, %v3131
      %v3133 = vpop.f32.mrb[0].mxu0
      %v3134 = vpop.f32.mrb[0].mxu0
      %v3135 = vadd.f32 %v1503, %v3134
      %v3136 = vpop.f32.mrb[0].mxu0
      %3137 = vmatprep.mubr.bf16.mxu0 0
      %3138 = vmatmul.mubr.bf16.gmra.mrb[0].mxu0 %v1260
      %v3139 = vpop.f32.mrb[0].mxu0
      %v3140 = vadd.f32 %v1508, %v3139
      %v3141 = vpop.f32.mrb[0].mxu0
      %v3142 = vpop.f32.mrb[0].mxu0
      %v3143 = vadd.f32 %v1511, %v3142
      %v3144 = vpop.f32.mrb[0].mxu0
      %3145 = vmatprep.mubr.bf16.mxu0 0
      %3146 = vmatmul.mubr.bf16.gmra.mrb[0].mxu0 %v1261
      %v3147 = vpop.f32.mrb[0].mxu0
      %v3148 = vadd.f32 %v1516, %v3147
      %v3149 = vpop.f32.mrb[0].mxu0
      %v3150 = vpop.f32.mrb[0].mxu0
      %v3151 = vadd.f32 %v1519, %v3150
      %v3152 = vpop.f32.mrb[0].mxu0
      %3153 = vmatprep.mubr.bf16.mxu0 0
      %3154 = vmatmul.mubr.bf16.gmra.mrb[0].mxu0 %v1262
      %v3155 = vpop.f32.mrb[0].mxu0
      %v3156 = vadd.f32 %v1524, %v3155
      %v3157 = vpop.f32.mrb[0].mxu0
      %v3158 = vpop.f32.mrb[0].mxu0
      %v3159 = vadd.f32 %v1527, %v3158
      %v3160 = vpop.f32.mrb[0].mxu0
      %3161 = vmatprep.mubr.bf16.mxu0 0
      %3162 = vmatmul.mubr.bf16.gmra.mrb[0].mxu0 %v1263
      %v3163 = vpop.f32.mrb[0].mxu0
      %v3164 = vadd.f32 %v1532, %v3163
      %v3165 = vpop.f32.mrb[0].mxu0
      %v3166 = vpop.f32.mrb[0].mxu0
      %v3167 = vadd.f32 %v1535, %v3166
      %v3168 = vpop.f32.mrb[0].mxu0
      %3169 = vmatprep.mubr.bf16.mxu0 0
      %3170 = vmatmul.mubr.bf16.gmra.mrb[0].mxu0 %v1264
      %v3171 = vpop.f32.mrb[0].mxu0
      %v3172 = vadd.f32 %v1540, %v3171
      %v3173 = vpop.f32.mrb[0].mxu0
      %v3174 = vpop.f32.mrb[0].mxu0
      %v3175 = vadd.f32 %v1543, %v3174
      %v3176 = vpop.f32.mrb[0].mxu0
      %3177 = vmatprep.mubr.bf16.mxu0 0
      %3178 = vmatmul.mubr.bf16.gmra.mrb[0].mxu0 %v1265
      %v3179 = vpop.f32.mrb[0].mxu0
      %v3180 = vadd.f32 %v1548, %v3179
      %v3181 = vpop.f32.mrb[0].mxu0
      %v3182 = vpop.f32.mrb[0].mxu0
      %v3183 = vadd.f32 %v1551, %v3182
      %v3184 = vpop.f32.mrb[0].mxu0
      %3185 = vmatprep.mubr.bf16.mxu0 0
      %3186 = vmatmul.mubr.bf16.gmra.mrb[0].mxu0 %v1266
      %v3187 = vpop.f32.mrb[0].mxu0
      %v3188 = vadd.f32 %v1556, %v3187
      %v3189 = vpop.f32.mrb[0].mxu0
      %v3190 = vpop.f32.mrb[0].mxu0
      %v3191 = vadd.f32 %v1559, %v3190
      %v3192 = vpop.f32.mrb[0].mxu0
      %3193 = vmatprep.mubr.bf16.mxu0 0
      %3194 = vmatmul.mubr.bf16.gmra.mrb[0].mxu0 %v1267
      %v3195 = vpop.f32.mrb[0].mxu0
      %v3196 = vadd.f32 %v1564, %v3195
      %v3197 = vpop.f32.mrb[0].mxu0
      %v3198 = vpop.f32.mrb[0].mxu0
      %v3199 = vadd.f32 %v1567, %v3198
      %v3200 = vpop.f32.mrb[0].mxu0
      %3201 = vmatprep.mubr.bf16.mxu0 0
      %3202 = vmatmul.mubr.bf16.gmra.mrb[0].mxu0 %v1268
      %v3203 = vpop.f32.mrb[0].mxu0
      %v3204 = vadd.f32 %v1572, %v3203
      %v3205 = vpop.f32.mrb[0].mxu0
      %v3206 = vpop.f32.mrb[0].mxu0
      %v3207 = vadd.f32 %v1575, %v3206
      %v3208 = vpop.f32.mrb[0].mxu0
      %3209 = vmatprep.mubr.bf16.mxu0 0
      %3210 = vmatmul.mubr.bf16.gmra.mrb[0].mxu0 %v1269
      %v3211 = vpop.f32.mrb[0].mxu0
      %v3212 = vadd.f32 %v1580, %v3211
      %v3213 = vpop.f32.mrb[0].mxu0
      %v3214 = vpop.f32.mrb[0].mxu0
      %v3215 = vadd.f32 %v1583, %v3214
      %v3216 = vpop.f32.mrb[0].mxu0
      %3217 = vmatprep.mubr.bf16.mxu0 0
      %3218 = vmatmul.mubr.bf16.gmra.mrb[0].mxu0 %v1270
      %v3219 = vpop.f32.mrb[0].mxu0
      %v3220 = vadd.f32 %v1588, %v3219
      %v3221 = vpop.f32.mrb[0].mxu0
      %v3222 = vpop.f32.mrb[0].mxu0
      %v3223 = vadd.f32 %v1591, %v3222
      %v3224 = vpop.f32.mrb[0].mxu0
      %3225 = vmatprep.mubr.bf16.mxu0 0
      %3226 = vmatmul.mubr.bf16.gmra.mrb[0].mxu0 %v1271
      %v3227 = vpop.f32.mrb[0].mxu0
      %v3228 = vadd.f32 %v1596, %v3227
      %v3229 = vpop.f32.mrb[0].mxu0
      %v3230 = vpop.f32.mrb[0].mxu0
      %v3231 = vadd.f32 %v1599, %v3230
      %v3232 = vpop.f32.mrb[0].mxu0
      %3233 = vmatprep.mubr.bf16.mxu0 0
      %3234 = vmatmul.mubr.bf16.gmra.mrb[0].mxu0 %v1272
      %v3235 = vpop.f32.mrb[0].mxu0
      %v3236 = vadd.f32 %v1604, %v3235
      %v3237 = vpop.f32.mrb[0].mxu0
      %v3238 = vpop.f32.mrb[0].mxu0
      %v3239 = vadd.f32 %v1607, %v3238
      %v3240 = vpop.f32.mrb[0].mxu0
      %3241 = vmatprep.mubr.bf16.mxu0 0
      %3242 = vmatmul.mubr.bf16.gmra.mrb[0].mxu0 %v1273
      %v3243 = vpop.f32.mrb[0].mxu0
      %v3244 = vadd.f32 %v1612, %v3243
      %v3245 = vpop.f32.mrb[0].mxu0
      %v3246 = vpop.f32.mrb[0].mxu0
      %v3247 = vadd.f32 %v1615, %v3246
      %v3248 = vpop.f32.mrb[0].mxu0
      %3249 = vmatprep.mubr.bf16.mxu0 0
      %3250 = vmatmul.mubr.bf16.gmra.mrb[0].mxu0 %v1274
      %v3251 = vpop.f32.mrb[0].mxu0
      %v3252 = vadd.f32 %v1620, %v3251
      %v3253 = vpop.f32.mrb[0].mxu0
      %v3254 = vpop.f32.mrb[0].mxu0
      %v3255 = vadd.f32 %v1623, %v3254
      %v3256 = vpop.f32.mrb[0].mxu0
      %3257 = vmatprep.mubr.bf16.mxu0 0
      %3258 = vmatmul.mubr.bf16.gmra.mrb[0].mxu0 %v1275
      %v3259 = vpop.f32.mrb[0].mxu0
      %v3260 = vadd.f32 %v1628, %v3259
      %v3261 = vpop.f32.mrb[0].mxu0
      %v3262 = vpop.f32.mrb[0].mxu0
      %v3263 = vadd.f32 %v1631, %v3262
      %v3264 = vpop.f32.mrb[0].mxu0
      %3265 = vmatprep.mubr.bf16.mxu0 0
      %3266 = vmatmul.mubr.bf16.gmra.mrb[0].mxu0 %v1276
      %v3267 = vpop.f32.mrb[0].mxu0
      %v3268 = vadd.f32 %v1636, %v3267
      %v3269 = vpop.f32.mrb[0].mxu0
      %v3270 = vpop.f32.mrb[0].mxu0
      %v3271 = vadd.f32 %v1639, %v3270
      %v3272 = vpop.f32.mrb[0].mxu0
      %3273 = vmatprep.mubr.bf16.mxu0 0
      %3274 = vmatmul.mubr.bf16.gmra.mrb[0].mxu0 %v1277
      %v3275 = vpop.f32.mrb[0].mxu0
      %v3276 = vadd.f32 %v1644, %v3275
      %v3277 = vpop.f32.mrb[0].mxu0
      %v3278 = vpop.f32.mrb[0].mxu0
      %v3279 = vadd.f32 %v1647, %v3278
      %v3280 = vpop.f32.mrb[0].mxu0
      %3281 = vmatprep.mubr.bf16.mxu0 0
      %3282 = vmatmul.mubr.bf16.gmra.mrb[0].mxu0 %v1278
      %v3283 = vpop.f32.mrb[0].mxu0
      %v3284 = vadd.f32 %v1652, %v3283
      %v3285 = vpop.f32.mrb[0].mxu0
      %v3286 = vpop.f32.mrb[0].mxu0
      %v3287 = vadd.f32 %v1655, %v3286
      %v3288 = vpop.f32.mrb[0].mxu0
      %3289 = vdwg.mxu0
      %v3306 = vunpack.c.l.b16 %v1731
      %v3307 = vunpack.c.l.b16 %v1732
      %v3308 = vunpack.c.l.b16 %v1733
      %v3309 = vunpack.c.l.b16 %v1734
      %v3310 = vunpack.c.l.b16 %v1735
      %v3311 = vunpack.c.l.b16 %v1736
      %v3312 = vunpack.c.l.b16 %v1737
      %v3313 = vunpack.c.l.b16 %v1738
      %v3314 = vunpack.c.l.b16 %v1739
      %v3315 = vunpack.c.l.b16 %v1740
      %v3316 = vunpack.c.l.b16 %v1741
      %v3317 = vunpack.c.l.b16 %v1742
      %v3318 = vunpack.c.l.b16 %v1743
      %v3319 = vunpack.c.l.b16 %v1744
      %v3320 = vunpack.c.l.b16 %v1745
      %v3321 = vunpack.c.l.b16 %v1746
      %v3322 = vpack.c.b16 %v3307, %v3306
      %v3323 = vpack.c.b16 %v3309, %v3308
      %v3324 = vpack.c.b16 %v3311, %v3310
      %v3325 = vpack.c.b16 %v3313, %v3312
      %v3326 = vpack.c.b16 %v3315, %v3314
      %v3327 = vpack.c.b16 %v3317, %v3316
      %v3328 = vpack.c.b16 %v3319, %v3318
      %v3329 = vpack.c.b16 %v3321, %v3320
      %3338 = vmatprep.subr.bf16.mxu0 0
      %3339 = vmatpush1.bf16.msra.mxu0 %v3322
      %3340 = vmatprep.subr.bf16.mxu0 0
      %3341 = vmatpush1.bf16.msra.mxu0 %v3323
      %3342 = vmatprep.subr.bf16.mxu0 0
      %3343 = vmatpush1.bf16.msra.mxu0 %v3324
      %3344 = vmatprep.subr.bf16.mxu0 0
      %3345 = vmatpush1.bf16.msra.mxu0 %v3325
      %3346 = vmatprep.subr.bf16.mxu0 0
      %3347 = vmatpush1.bf16.msra.mxu0 %v3326
      %3348 = vmatprep.subr.bf16.mxu0 0
      %3349 = vmatpush1.bf16.msra.mxu0 %v3327
      %3350 = vmatprep.subr.bf16.mxu0 0
      %3351 = vmatpush1.bf16.msra.mxu0 %v3328
      %3352 = vmatprep.subr.bf16.mxu0 0
      %3353 = vmatpush1.bf16.msra.mxu0 %v3329
      %3354 = vmatprep.subr.bf16.mxu0 0
      %3355 = vmatpush1.bf16.msra.mxu0 0
      %3356 = vmatprep.subr.bf16.mxu0 0
      %3357 = vmatpush1.bf16.msra.mxu0 0
      %3358 = vmatprep.subr.bf16.mxu0 0
      %3359 = vmatpush1.bf16.msra.mxu0 0
      %3360 = vmatprep.subr.bf16.mxu0 0
      %3361 = vmatpush1.bf16.msra.mxu0 0
      %3362 = vmatprep.subr.bf16.mxu0 0
      %3363 = vmatpush1.bf16.msra.mxu0 0
      %3364 = vmatprep.subr.bf16.mxu0 0
      %3365 = vmatpush1.bf16.msra.mxu0 0
      %3366 = vmatprep.subr.bf16.mxu0 0
      %3367 = vmatpush1.bf16.msra.mxu0 0
      %3368 = vmatprep.subr.bf16.mxu0 0
      %3369 = vmatpush1.bf16.msra.mxu0 0
      %3370 = vmatprep.mubr.bf16.mxu0 0
      %3371 = vmatmul.mubr.bf16.gmra.mrb[0].mxu0 %v1706
      %v3372 = vpop.f32.mrb[0].mxu0
      %v3373 = vadd.f32 %v1919, %v3372
      %v3374 = vpop.f32.mrb[0].mxu0
      %v3375 = vpop.f32.mrb[0].mxu0
      %v3376 = vadd.f32 %v1922, %v3375
      %v3377 = vpop.f32.mrb[0].mxu0
      %3378 = vmatprep.mubr.bf16.mxu0 0
      %3379 = vmatmul.mubr.bf16.gmra.mrb[0].mxu0 %v1707
      %v3380 = vpop.f32.mrb[0].mxu0
      %v3381 = vadd.f32 %v1927, %v3380
      %v3382 = vpop.f32.mrb[0].mxu0
      %v3383 = vpop.f32.mrb[0].mxu0
      %v3384 = vadd.f32 %v1930, %v3383
      %v3385 = vpop.f32.mrb[0].mxu0
      %3386 = vmatprep.mubr.bf16.mxu0 0
      %3387 = vmatmul.mubr.bf16.gmra.mrb[0].mxu0 %v1708
      %v3388 = vpop.f32.mrb[0].mxu0
      %v3389 = vadd.f32 %v1935, %v3388
      %v3390 = vpop.f32.mrb[0].mxu0
      %v3391 = vpop.f32.mrb[0].mxu0
      %v3392 = vadd.f32 %v1938, %v3391
      %v3393 = vpop.f32.mrb[0].mxu0
      %3394 = vmatprep.mubr.bf16.mxu0 0
      %3395 = vmatmul.mubr.bf16.gmra.mrb[0].mxu0 %v1709
      %v3396 = vpop.f32.mrb[0].mxu0
      %v3397 = vadd.f32 %v1943, %v3396
      %v3398 = vpop.f32.mrb[0].mxu0
      %v3399 = vpop.f32.mrb[0].mxu0
      %v3400 = vadd.f32 %v1946, %v3399
      %v3401 = vpop.f32.mrb[0].mxu0
      %3402 = vmatprep.mubr.bf16.mxu0 0
      %3403 = vmatmul.mubr.bf16.gmra.mrb[0].mxu0 %v1710
      %v3404 = vpop.f32.mrb[0].mxu0
      %v3405 = vadd.f32 %v1951, %v3404
      %v3406 = vpop.f32.mrb[0].mxu0
      %v3407 = vpop.f32.mrb[0].mxu0
      %v3408 = vadd.f32 %v1954, %v3407
      %v3409 = vpop.f32.mrb[0].mxu0
      %3410 = vmatprep.mubr.bf16.mxu0 0
      %3411 = vmatmul.mubr.bf16.gmra.mrb[0].mxu0 %v1711
      %v3412 = vpop.f32.mrb[0].mxu0
      %v3413 = vadd.f32 %v1959, %v3412
      %v3414 = vpop.f32.mrb[0].mxu0
      %v3415 = vpop.f32.mrb[0].mxu0
      %v3416 = vadd.f32 %v1962, %v3415
      %v3417 = vpop.f32.mrb[0].mxu0
      %3418 = vmatprep.mubr.bf16.mxu0 0
      %3419 = vmatmul.mubr.bf16.gmra.mrb[0].mxu0 %v1712
      %v3420 = vpop.f32.mrb[0].mxu0
      %v3421 = vadd.f32 %v1967, %v3420
      %v3422 = vpop.f32.mrb[0].mxu0
      %v3423 = vpop.f32.mrb[0].mxu0
      %v3424 = vadd.f32 %v1970, %v3423
      %v3425 = vpop.f32.mrb[0].mxu0
      %3426 = vmatprep.mubr.bf16.mxu0 0
      %3427 = vmatmul.mubr.bf16.gmra.mrb[0].mxu0 %v1713
      %v3428 = vpop.f32.mrb[0].mxu0
      %v3429 = vadd.f32 %v1975, %v3428
      %v3430 = vpop.f32.mrb[0].mxu0
      %v3431 = vpop.f32.mrb[0].mxu0
      %v3432 = vadd.f32 %v1978, %v3431
      %v3433 = vpop.f32.mrb[0].mxu0
      %3434 = vmatprep.mubr.bf16.mxu0 0
      %3435 = vmatmul.mubr.bf16.gmra.mrb[0].mxu0 %v1714
      %v3436 = vpop.f32.mrb[0].mxu0
      %v3437 = vadd.f32 %v1983, %v3436
      %v3438 = vpop.f32.mrb[0].mxu0
      %v3439 = vpop.f32.mrb[0].mxu0
      %v3440 = vadd.f32 %v1986, %v3439
      %v3441 = vpop.f32.mrb[0].mxu0
      %3442 = vmatprep.mubr.bf16.mxu0 0
      %3443 = vmatmul.mubr.bf16.gmra.mrb[0].mxu0 %v1715
      %v3444 = vpop.f32.mrb[0].mxu0
      %v3445 = vadd.f32 %v1991, %v3444
      %v3446 = vpop.f32.mrb[0].mxu0
      %v3447 = vpop.f32.mrb[0].mxu0
      %v3448 = vadd.f32 %v1994, %v3447
      %v3449 = vpop.f32.mrb[0].mxu0
      %3450 = vmatprep.mubr.bf16.mxu0 0
      %3451 = vmatmul.mubr.bf16.gmra.mrb[0].mxu0 %v1716
      %v3452 = vpop.f32.mrb[0].mxu0
      %v3453 = vadd.f32 %v1999, %v3452
      %v3454 = vpop.f32.mrb[0].mxu0
      %v3455 = vpop.f32.mrb[0].mxu0
      %v3456 = vadd.f32 %v2002, %v3455
      %v3457 = vpop.f32.mrb[0].mxu0
      %3458 = vmatprep.mubr.bf16.mxu0 0
      %3459 = vmatmul.mubr.bf16.gmra.mrb[0].mxu0 %v1717
      %v3460 = vpop.f32.mrb[0].mxu0
      %v3461 = vadd.f32 %v2007, %v3460
      %v3462 = vpop.f32.mrb[0].mxu0
      %v3463 = vpop.f32.mrb[0].mxu0
      %v3464 = vadd.f32 %v2010, %v3463
      %v3465 = vpop.f32.mrb[0].mxu0
      %3466 = vmatprep.mubr.bf16.mxu0 0
      %3467 = vmatmul.mubr.bf16.gmra.mrb[0].mxu0 %v1718
      %v3468 = vpop.f32.mrb[0].mxu0
      %v3469 = vadd.f32 %v2015, %v3468
      %v3470 = vpop.f32.mrb[0].mxu0
      %v3471 = vpop.f32.mrb[0].mxu0
      %v3472 = vadd.f32 %v2018, %v3471
      %v3473 = vpop.f32.mrb[0].mxu0
      %3474 = vmatprep.mubr.bf16.mxu0 0
      %3475 = vmatmul.mubr.bf16.gmra.mrb[0].mxu0 %v1719
      %v3476 = vpop.f32.mrb[0].mxu0
      %v3477 = vadd.f32 %v2023, %v3476
      %v3478 = vpop.f32.mrb[0].mxu0
      %v3479 = vpop.f32.mrb[0].mxu0
      %v3480 = vadd.f32 %v2026, %v3479
      %v3481 = vpop.f32.mrb[0].mxu0
      %3482 = vmatprep.mubr.bf16.mxu0 0
      %3483 = vmatmul.mubr.bf16.gmra.mrb[0].mxu0 %v1720
      %v3484 = vpop.f32.mrb[0].mxu0
      %v3485 = vadd.f32 %v2031, %v3484
      %v3486 = vpop.f32.mrb[0].mxu0
      %v3487 = vpop.f32.mrb[0].mxu0
      %v3488 = vadd.f32 %v2034, %v3487
      %v3489 = vpop.f32.mrb[0].mxu0
      %3490 = vmatprep.mubr.bf16.mxu0 0
      %3491 = vmatmul.mubr.bf16.gmra.mrb[0].mxu0 %v1721
      %v3492 = vpop.f32.mrb[0].mxu0
      %v3493 = vadd.f32 %v2039, %v3492
      %v3494 = vpop.f32.mrb[0].mxu0
      %v3495 = vpop.f32.mrb[0].mxu0
      %v3496 = vadd.f32 %v2042, %v3495
      %v3497 = vpop.f32.mrb[0].mxu0
      %3498 = vmatprep.mubr.bf16.mxu0 0
      %3499 = vmatmul.mubr.bf16.gmra.mrb[0].mxu0 %v1722
      %v3500 = vpop.f32.mrb[0].mxu0
      %v3501 = vadd.f32 %v2047, %v3500
      %v3502 = vpop.f32.mrb[0].mxu0
      %v3503 = vpop.f32.mrb[0].mxu0
      %v3504 = vadd.f32 %v2050, %v3503
      %v3505 = vpop.f32.mrb[0].mxu0
      %3506 = vmatprep.mubr.bf16.mxu0 0
      %3507 = vmatmul.mubr.bf16.gmra.mrb[0].mxu0 %v1723
      %v3508 = vpop.f32.mrb[0].mxu0
      %v3509 = vadd.f32 %v2055, %v3508
      %v3510 = vpop.f32.mrb[0].mxu0
      %v3511 = vpop.f32.mrb[0].mxu0
      %v3512 = vadd.f32 %v2058, %v3511
      %v3513 = vpop.f32.mrb[0].mxu0
      %3514 = vmatprep.mubr.bf16.mxu0 0
      %3515 = vmatmul.mubr.bf16.gmra.mrb[0].mxu0 %v1724
      %v3516 = vpop.f32.mrb[0].mxu0
      %v3517 = vadd.f32 %v2063, %v3516
      %v3518 = vpop.f32.mrb[0].mxu0
      %v3519 = vpop.f32.mrb[0].mxu0
      %v3520 = vadd.f32 %v2066, %v3519
      %v3521 = vpop.f32.mrb[0].mxu0
      %3522 = vmatprep.mubr.bf16.mxu0 0
      %3523 = vmatmul.mubr.bf16.gmra.mrb[0].mxu0 %v1725
      %v3524 = vpop.f32.mrb[0].mxu0
      %v3525 = vadd.f32 %v2071, %v3524
      %v3526 = vpop.f32.mrb[0].mxu0
      %v3527 = vpop.f32.mrb[0].mxu0
      %v3528 = vadd.f32 %v2074, %v3527
      %v3529 = vpop.f32.mrb[0].mxu0
      %3530 = vmatprep.mubr.bf16.mxu0 0
      %3531 = vmatmul.mubr.bf16.gmra.mrb[0].mxu0 %v1726
      %v3532 = vpop.f32.mrb[0].mxu0
      %v3533 = vadd.f32 %v2079, %v3532
      %v3534 = vpop.f32.mrb[0].mxu0
      %v3535 = vpop.f32.mrb[0].mxu0
      %v3536 = vadd.f32 %v2082, %v3535
      %v3537 = vpop.f32.mrb[0].mxu0
      %3538 = vmatprep.mubr.bf16.mxu0 0
      %3539 = vmatmul.mubr.bf16.gmra.mrb[0].mxu0 %v1727
      %v3540 = vpop.f32.mrb[0].mxu0
      %v3541 = vadd.f32 %v2087, %v3540
      %v3542 = vpop.f32.mrb[0].mxu0
      %v3543 = vpop.f32.mrb[0].mxu0
      %v3544 = vadd.f32 %v2090, %v3543
      %v3545 = vpop.f32.mrb[0].mxu0
      %3546 = vmatprep.mubr.bf16.mxu0 0
      %3547 = vmatmul.mubr.bf16.gmra.mrb[0].mxu0 %v1728
      %v3548 = vpop.f32.mrb[0].mxu0
      %v3549 = vadd.f32 %v2095, %v3548
      %v3550 = vpop.f32.mrb[0].mxu0
      %v3551 = vpop.f32.mrb[0].mxu0
      %v3552 = vadd.f32 %v2098, %v3551
      %v3553 = vpop.f32.mrb[0].mxu0
      %3554 = vmatprep.mubr.bf16.mxu0 0
      %3555 = vmatmul.mubr.bf16.gmra.mrb[0].mxu0 %v1729
      %v3556 = vpop.f32.mrb[0].mxu0
      %v3557 = vadd.f32 %v2103, %v3556
      %v3558 = vpop.f32.mrb[0].mxu0
      %v3559 = vpop.f32.mrb[0].mxu0
      %v3560 = vadd.f32 %v2106, %v3559
      %v3561 = vpop.f32.mrb[0].mxu0
      %3562 = vdwg.mxu0
      %v3563 = vadd.f32 %v2554, %v2827
      %v3564 = vadd.f32 %v2557, %v2830
      %v3565 = vadd.f32 %v2562, %v2835
      %v3566 = vadd.f32 %v2565, %v2838
      %v3567 = vadd.f32 %v2570, %v2843
      %v3568 = vadd.f32 %v2573, %v2846
      %v3569 = vadd.f32 %v2578, %v2851
      %v3570 = vadd.f32 %v2581, %v2854
      %v3571 = vadd.f32 %v2586, %v2859
      %v3572 = vadd.f32 %v2589, %v2862
      %v3573 = vadd.f32 %v2594, %v2867
      %v3574 = vadd.f32 %v2597, %v2870
      %v3575 = vadd.f32 %v2602, %v2875
      %v3576 = vadd.f32 %v2605, %v2878
      %v3577 = vadd.f32 %v2610, %v2883
      %v3578 = vadd.f32 %v2613, %v2886
      %v3579 = vadd.f32 %v2618, %v2891
      %v3580 = vadd.f32 %v2621, %v2894
      %v3581 = vadd.f32 %v2626, %v2899
      %v3582 = vadd.f32 %v2629, %v2902
      %v3583 = vadd.f32 %v2634, %v2907
      %v3584 = vadd.f32 %v2637, %v2910
      %v3585 = vadd.f32 %v2642, %v2915
      %v3586 = vadd.f32 %v2645, %v2918
      %v3587 = vadd.f32 %v2650, %v2923
      %v3588 = vadd.f32 %v2653, %v2926
      %v3589 = vadd.f32 %v2658, %v2931
      %v3590 = vadd.f32 %v2661, %v2934
      %v3591 = vadd.f32 %v2666, %v2939
      %v3592 = vadd.f32 %v2669, %v2942
      %v3593 = vadd.f32 %v2674, %v2947
      %v3594 = vadd.f32 %v2677, %v2950
      %v3595 = vadd.f32 %v2682, %v2955
      %v3596 = vadd.f32 %v2685, %v2958
      %v3597 = vadd.f32 %v2690, %v2963
      %v3598 = vadd.f32 %v2693, %v2966
      %v3599 = vadd.f32 %v2698, %v2971
      %v3600 = vadd.f32 %v2701, %v2974
      %v3601 = vadd.f32 %v2706, %v2979
      %v3602 = vadd.f32 %v2709, %v2982
      %v3603 = vadd.f32 %v2714, %v2987
      %v3604 = vadd.f32 %v2717, %v2990
      %v3605 = vadd.f32 %v2722, %v2995
      %v3606 = vadd.f32 %v2725, %v2998
      %v3607 = vadd.f32 %v2730, %v3003
      %v3608 = vadd.f32 %v2733, %v3006
      %v3609 = vadd.f32 %v2738, %v3011
      %v3610 = vadd.f32 %v2741, %v3014
      %v3611 = vadd.f32 %v3100, %v3373
      %v3612 = vadd.f32 %v3103, %v3376
      %v3613 = vadd.f32 %v3108, %v3381
      %v3614 = vadd.f32 %v3111, %v3384
      %v3615 = vadd.f32 %v3116, %v3389
      %v3616 = vadd.f32 %v3119, %v3392
      %v3617 = vadd.f32 %v3124, %v3397
      %v3618 = vadd.f32 %v3127, %v3400
      %v3619 = vadd.f32 %v3132, %v3405
      %v3620 = vadd.f32 %v3135, %v3408
      %v3621 = vadd.f32 %v3140, %v3413
      %v3622 = vadd.f32 %v3143, %v3416
      %v3623 = vadd.f32 %v3148, %v3421
      %v3624 = vadd.f32 %v3151, %v3424
      %v3625 = vadd.f32 %v3156, %v3429
      %v3626 = vadd.f32 %v3159, %v3432
      %v3627 = vadd.f32 %v3164, %v3437
      %v3628 = vadd.f32 %v3167, %v3440
      %v3629 = vadd.f32 %v3172, %v3445
      %v3630 = vadd.f32 %v3175, %v3448
      %v3631 = vadd.f32 %v3180, %v3453
      %v3632 = vadd.f32 %v3183, %v3456
      %v3633 = vadd.f32 %v3188, %v3461
      %v3634 = vadd.f32 %v3191, %v3464
      %v3635 = vadd.f32 %v3196, %v3469
      %v3636 = vadd.f32 %v3199, %v3472
      %v3637 = vadd.f32 %v3204, %v3477
      %v3638 = vadd.f32 %v3207, %v3480
      %v3639 = vadd.f32 %v3212, %v3485
      %v3640 = vadd.f32 %v3215, %v3488
      %v3641 = vadd.f32 %v3220, %v3493
      %v3642 = vadd.f32 %v3223, %v3496
      %v3643 = vadd.f32 %v3228, %v3501
      %v3644 = vadd.f32 %v3231, %v3504
      %v3645 = vadd.f32 %v3236, %v3509
      %v3646 = vadd.f32 %v3239, %v3512
      %v3647 = vadd.f32 %v3244, %v3517
      %v3648 = vadd.f32 %v3247, %v3520
      %v3649 = vadd.f32 %v3252, %v3525
      %v3650 = vadd.f32 %v3255, %v3528
      %v3651 = vadd.f32 %v3260, %v3533
      %v3652 = vadd.f32 %v3263, %v3536
      %v3653 = vadd.f32 %v3268, %v3541
      %v3654 = vadd.f32 %v3271, %v3544
      %v3655 = vadd.f32 %v3276, %v3549
      %v3656 = vadd.f32 %v3279, %v3552
      %v3657 = vadd.f32 %v3284, %v3557
      %v3658 = vadd.f32 %v3287, %v3560
      %v3659 = vadd.f32 %v3563, %v3611
      %v3660 = vadd.f32 %v3564, %v3612
      %v3661 = vadd.f32 %v3565, %v3613
      %v3662 = vadd.f32 %v3566, %v3614
      %v3663 = vadd.f32 %v3567, %v3615
      %v3664 = vadd.f32 %v3568, %v3616
      %v3665 = vadd.f32 %v3569, %v3617
      %v3666 = vadd.f32 %v3570, %v3618
      %v3667 = vadd.f32 %v3571, %v3619
      %v3668 = vadd.f32 %v3572, %v3620
      %v3669 = vadd.f32 %v3573, %v3621
      %v3670 = vadd.f32 %v3574, %v3622
      %v3671 = vadd.f32 %v3575, %v3623
      %v3672 = vadd.f32 %v3576, %v3624
      %v3673 = vadd.f32 %v3577, %v3625
      %v3674 = vadd.f32 %v3578, %v3626
      %v3675 = vadd.f32 %v3579, %v3627
      %v3676 = vadd.f32 %v3580, %v3628
      %v3677 = vadd.f32 %v3581, %v3629
      %v3678 = vadd.f32 %v3582, %v3630
      %v3679 = vadd.f32 %v3583, %v3631
      %v3680 = vadd.f32 %v3584, %v3632
      %v3681 = vadd.f32 %v3585, %v3633
      %v3682 = vadd.f32 %v3586, %v3634
      %v3683 = vadd.f32 %v3587, %v3635
      %v3684 = vadd.f32 %v3588, %v3636
      %v3685 = vadd.f32 %v3589, %v3637
      %v3686 = vadd.f32 %v3590, %v3638
      %v3687 = vadd.f32 %v3591, %v3639
      %v3688 = vadd.f32 %v3592, %v3640
      %v3689 = vadd.f32 %v3593, %v3641
      %v3690 = vadd.f32 %v3594, %v3642
      %v3691 = vadd.f32 %v3595, %v3643
      %v3692 = vadd.f32 %v3596, %v3644
      %v3693 = vadd.f32 %v3597, %v3645
      %v3694 = vadd.f32 %v3598, %v3646
      %v3695 = vadd.f32 %v3599, %v3647
      %v3696 = vadd.f32 %v3600, %v3648
      %v3697 = vadd.f32 %v3601, %v3649
      %v3698 = vadd.f32 %v3602, %v3650
      %v3699 = vadd.f32 %v3603, %v3651
      %v3700 = vadd.f32 %v3604, %v3652
      %v3701 = vadd.f32 %v3605, %v3653
      %v3702 = vadd.f32 %v3606, %v3654
      %v3703 = vadd.f32 %v3607, %v3655
      %v3704 = vadd.f32 %v3608, %v3656
      %v3705 = vadd.f32 %v3609, %v3657
      %v3706 = vadd.f32 %v3610, %v3658
      %v3707 = vadd.f32 %v3659, %v2281
      %v3708 = vadd.f32 %v3660, %v2284
      %v3709 = vadd.f32 %v3661, %v2289
      %v3710 = vadd.f32 %v3662, %v2292
      %v3711 = vadd.f32 %v3663, %v2297
      %v3712 = vadd.f32 %v3664, %v2300
      %v3713 = vadd.f32 %v3665, %v2305
      %v3714 = vadd.f32 %v3666, %v2308
      %v3715 = vadd.f32 %v3667, %v2313
      %v3716 = vadd.f32 %v3668, %v2316
      %v3717 = vadd.f32 %v3669, %v2321
      %v3718 = vadd.f32 %v3670, %v2324
      %v3719 = vadd.f32 %v3671, %v2329
      %v3720 = vadd.f32 %v3672, %v2332
      %v3721 = vadd.f32 %v3673, %v2337
      %v3722 = vadd.f32 %v3674, %v2340
      %v3723 = vadd.f32 %v3675, %v2345
      %v3724 = vadd.f32 %v3676, %v2348
      %v3725 = vadd.f32 %v3677, %v2353
      %v3726 = vadd.f32 %v3678, %v2356
      %v3727 = vadd.f32 %v3679, %v2361
      %v3728 = vadd.f32 %v3680, %v2364
      %v3729 = vadd.f32 %v3681, %v2369
      %v3730 = vadd.f32 %v3682, %v2372
      %v3731 = vadd.f32 %v3683, %v2377
      %v3732 = vadd.f32 %v3684, %v2380
      %v3733 = vadd.f32 %v3685, %v2385
      %v3734 = vadd.f32 %v3686, %v2388
      %v3735 = vadd.f32 %v3687, %v2393
      %v3736 = vadd.f32 %v3688, %v2396
      %v3737 = vadd.f32 %v3689, %v2401
      %v3738 = vadd.f32 %v3690, %v2404
      %v3739 = vadd.f32 %v3691, %v2409
      %v3740 = vadd.f32 %v3692, %v2412
      %v3741 = vadd.f32 %v3693, %v2417
      %v3742 = vadd.f32 %v3694, %v2420
      %v3743 = vadd.f32 %v3695, %v2425
      %v3744 = vadd.f32 %v3696, %v2428
      %v3745 = vadd.f32 %v3697, %v2433
      %v3746 = vadd.f32 %v3698, %v2436
      %v3747 = vadd.f32 %v3699, %v2441
      %v3748 = vadd.f32 %v3700, %v2444
      %v3749 = vadd.f32 %v3701, %v2449
      %v3750 = vadd.f32 %v3702, %v2452
      %v3751 = vadd.f32 %v3703, %v2457
      %v3752 = vadd.f32 %v3704, %v2460
      %v3753 = vadd.f32 %v3705, %v2465
      %v3754 = vadd.f32 %v3706, %v2468
      %v3755 = vld [vmem:[%s2] sm:$0x1]
      %v3757 = vlaneseq
      %v3758 = vshrl.u32 %v3757, 7
      %v3759 = vsub.s32 0, %v3758
      %v3760 = vrot.slane %v3755, %v3759
      %v3762 = vadd.f32 %v3707, %v3760
      %v3763 = vadd.f32 %v3708, %v3760
      %v3764 = vadd.f32 %v3709, %v3760
      %v3765 = vadd.f32 %v3710, %v3760
      %v3766 = vadd.f32 %v3711, %v3760
      %v3767 = vadd.f32 %v3712, %v3760
      %v3768 = vadd.f32 %v3713, %v3760
      %v3769 = vadd.f32 %v3714, %v3760
      %v3770 = vadd.f32 %v3715, %v3760
      %v3771 = vadd.f32 %v3716, %v3760
      %v3772 = vadd.f32 %v3717, %v3760
      %v3773 = vadd.f32 %v3718, %v3760
      %v3774 = vadd.f32 %v3719, %v3760
      %v3775 = vadd.f32 %v3720, %v3760
      %v3776 = vadd.f32 %v3721, %v3760
      %v3777 = vadd.f32 %v3722, %v3760
      %v3778 = vadd.f32 %v3723, %v3760
      %v3779 = vadd.f32 %v3724, %v3760
      %v3780 = vadd.f32 %v3725, %v3760
      %v3781 = vadd.f32 %v3726, %v3760
      %v3782 = vadd.f32 %v3727, %v3760
      %v3783 = vadd.f32 %v3728, %v3760
      %v3784 = vadd.f32 %v3729, %v3760
      %v3785 = vadd.f32 %v3730, %v3760
      %v3786 = vadd.f32 %v3731, %v3760
      %v3787 = vadd.f32 %v3732, %v3760
      %v3788 = vadd.f32 %v3733, %v3760
      %v3789 = vadd.f32 %v3734, %v3760
      %v3790 = vadd.f32 %v3735, %v3760
      %v3791 = vadd.f32 %v3736, %v3760
      %v3792 = vadd.f32 %v3737, %v3760
      %v3793 = vadd.f32 %v3738, %v3760
      %v3794 = vadd.f32 %v3739, %v3760
      %v3795 = vadd.f32 %v3740, %v3760
      %v3796 = vadd.f32 %v3741, %v3760
      %v3797 = vadd.f32 %v3742, %v3760
      %v3798 = vadd.f32 %v3743, %v3760
      %v3799 = vadd.f32 %v3744, %v3760
      %v3800 = vadd.f32 %v3745, %v3760
      %v3801 = vadd.f32 %v3746, %v3760
      %v3802 = vadd.f32 %v3747, %v3760
      %v3803 = vadd.f32 %v3748, %v3760
      %v3804 = vadd.f32 %v3749, %v3760
      %v3805 = vadd.f32 %v3750, %v3760
      %v3806 = vadd.f32 %v3751, %v3760
      %v3807 = vadd.f32 %v3752, %v3760
      %v3808 = vadd.f32 %v3753, %v3760
      %v3809 = vadd.f32 %v3754, %v3760
      %v3810 = vmax.f32 %v3762, 0.0
      %v3811 = vmax.f32 %v3763, 0.0
      %v3812 = vmax.f32 %v3764, 0.0
      %v3813 = vmax.f32 %v3765, 0.0
      %v3814 = vmax.f32 %v3766, 0.0
      %v3815 = vmax.f32 %v3767, 0.0
      %v3816 = vmax.f32 %v3768, 0.0
      %v3817 = vmax.f32 %v3769, 0.0
      %v3818 = vmax.f32 %v3770, 0.0
      %v3819 = vmax.f32 %v3771, 0.0
      %v3820 = vmax.f32 %v3772, 0.0
      %v3821 = vmax.f32 %v3773, 0.0
      %v3822 = vmax.f32 %v3774, 0.0
      %v3823 = vmax.f32 %v3775, 0.0
      %v3824 = vmax.f32 %v3776, 0.0
      %v3825 = vmax.f32 %v3777, 0.0
      %v3826 = vmax.f32 %v3778, 0.0
      %v3827 = vmax.f32 %v3779, 0.0
      %v3828 = vmax.f32 %v3780, 0.0
      %v3829 = vmax.f32 %v3781, 0.0
      %v3830 = vmax.f32 %v3782, 0.0
      %v3831 = vmax.f32 %v3783, 0.0
      %v3832 = vmax.f32 %v3784, 0.0
      %v3833 = vmax.f32 %v3785, 0.0
      %v3834 = vmax.f32 %v3786, 0.0
      %v3835 = vmax.f32 %v3787, 0.0
      %v3836 = vmax.f32 %v3788, 0.0
      %v3837 = vmax.f32 %v3789, 0.0
      %v3838 = vmax.f32 %v3790, 0.0
      %v3839 = vmax.f32 %v3791, 0.0
      %v3840 = vmax.f32 %v3792, 0.0
      %v3841 = vmax.f32 %v3793, 0.0
      %v3842 = vmax.f32 %v3794, 0.0
      %v3843 = vmax.f32 %v3795, 0.0
      %v3844 = vmax.f32 %v3796, 0.0
      %v3845 = vmax.f32 %v3797, 0.0
      %v3846 = vmax.f32 %v3798, 0.0
      %v3847 = vmax.f32 %v3799, 0.0
      %v3848 = vmax.f32 %v3800, 0.0
      %v3849 = vmax.f32 %v3801, 0.0
      %v3850 = vmax.f32 %v3802, 0.0
      %v3851 = vmax.f32 %v3803, 0.0
      %v3852 = vmax.f32 %v3804, 0.0
      %v3853 = vmax.f32 %v3805, 0.0
      %v3854 = vmax.f32 %v3806, 0.0
      %v3855 = vmax.f32 %v3807, 0.0
      %v3856 = vmax.f32 %v3808, 0.0
      %v3857 = vmax.f32 %v3809, 0.0
      %3858 = vst [vmem:[#allocation2] sm:$0xff] %v3810
      %3859 = vst [vmem:[#allocation2 + $0x8] sm:$0xff] %v3811
      %3860 = vst [vmem:[#allocation2 + $0x10] sm:$0xff] %v3812
      %3861 = vst [vmem:[#allocation2 + $0x18] sm:$0xff] %v3813
      %3862 = vst [vmem:[#allocation2 + $0x20] sm:$0xff] %v3814
      %3863 = vst [vmem:[#allocation2 + $0x28] sm:$0xff] %v3815
      %3864 = vst [vmem:[#allocation2 + $0x30] sm:$0xff] %v3816
      %3865 = vst [vmem:[#allocation2 + $0x38] sm:$0xff] %v3817
      %3866 = vst [vmem:[#allocation2 + $0x40] sm:$0xff] %v3818
      %3867 = vst [vmem:[#allocation2 + $0x48] sm:$0xff] %v3819
      %3868 = vst [vmem:[#allocation2 + $0x50] sm:$0xff] %v3820
      %3869 = vst [vmem:[#allocation2 + $0x58] sm:$0xff] %v3821
      %3870 = vst [vmem:[#allocation2 + $0x60] sm:$0xff] %v3822
      %3871 = vst [vmem:[#allocation2 + $0x68] sm:$0xff] %v3823
      %3872 = vst [vmem:[#allocation2 + $0x70] sm:$0xff] %v3824
      %3873 = vst [vmem:[#allocation2 + $0x78] sm:$0xff] %v3825
      %3874 = vst [vmem:[#allocation2 + $0x80] sm:$0xff] %v3826
      %3875 = vst [vmem:[#allocation2 + $0x88] sm:$0xff] %v3827
      %3876 = vst [vmem:[#allocation2 + $0x90] sm:$0xff] %v3828
      %3877 = vst [vmem:[#allocation2 + $0x98] sm:$0xff] %v3829
      %3878 = vst [vmem:[#allocation2 + $0xa0] sm:$0xff] %v3830
      %3879 = vst [vmem:[#allocation2 + $0xa8] sm:$0xff] %v3831
      %3880 = vst [vmem:[#allocation2 + $0xb0] sm:$0xff] %v3832
      %3881 = vst [vmem:[#allocation2 + $0xb8] sm:$0xff] %v3833
      %3882 = vst [vmem:[#allocation2 + $0xc0] sm:$0xff] %v3834
      %3883 = vst [vmem:[#allocation2 + $0xc8] sm:$0xff] %v3835
      %3884 = vst [vmem:[#allocation2 + $0xd0] sm:$0xff] %v3836
      %3885 = vst [vmem:[#allocation2 + $0xd8] sm:$0xff] %v3837
      %3886 = vst [vmem:[#allocation2 + $0xe0] sm:$0xff] %v3838
      %3887 = vst [vmem:[#allocation2 + $0xe8] sm:$0xff] %v3839
      %3888 = vst [vmem:[#allocation2 + $0xf0] sm:$0xff] %v3840
      %3889 = vst [vmem:[#allocation2 + $0xf8] sm:$0xff] %v3841
      %3890 = vst [vmem:[#allocation2 + $0x100] sm:$0xff] %v3842
      %3891 = vst [vmem:[#allocation2 + $0x108] sm:$0xff] %v3843
      %3892 = vst [vmem:[#allocation2 + $0x110] sm:$0xff] %v3844
      %3893 = vst [vmem:[#allocation2 + $0x118] sm:$0xff] %v3845
      %3894 = vst [vmem:[#allocation2 + $0x120] sm:$0xff] %v3846
      %3895 = vst [vmem:[#allocation2 + $0x128] sm:$0xff] %v3847
      %3896 = vst [vmem:[#allocation2 + $0x130] sm:$0xff] %v3848
      %3897 = vst [vmem:[#allocation2 + $0x138] sm:$0xff] %v3849
      %3898 = vst [vmem:[#allocation2 + $0x140] sm:$0xff] %v3850
      %3899 = vst [vmem:[#allocation2 + $0x148] sm:$0xff] %v3851
      %3900 = vst [vmem:[#allocation2 + $0x150] sm:$0xff] %v3852
      %3901 = vst [vmem:[#allocation2 + $0x158] sm:$0xff] %v3853
      %3902 = vst [vmem:[#allocation2 + $0x160] sm:$0xff] %v3854
      %3903 = vst [vmem:[#allocation2 + $0x168] sm:$0xff] %v3855
      %3904 = vst [vmem:[#allocation2 + $0x170] sm:$0xff] %v3856
      %3905 = vst [vmem:[#allocation2 + $0x178] sm:$0xff] %v3857
      %v3906 = vld [vmem:[#allocation2] ss:$2 sm:$0xff]
      %s3907 = scalar_lea.vmem [#allocation2], 1
      %v3908 = vld [vmem:[%s3907] ss:$2 sm:$0xff]
      %s3909 = scalar_lea.vmem [#allocation2], 24
      %v3910 = vld [vmem:[%s3909] ss:$2 sm:$0xff]
      %s3911 = scalar_lea.vmem [#allocation2], 25
      %v3912 = vld [vmem:[%s3911] ss:$2 sm:$0xff]
      %v3913 = vmax.f32 %v3906, %v3908
      %v3914 = vmax.f32 %v3910, %v3912
      %v3915 = vmax.f32 %v3913, %v3914
      %3916 = vst [vmem:[#allocation5 + $0x11] sm:$0xff] %v3915
      %s3917 = scalar_lea.vmem [#allocation2], 48
      %v3918 = vld [vmem:[%s3917] ss:$2 sm:$0xff]
      %s3919 = scalar_lea.vmem [#allocation2], 49
      %v3920 = vld [vmem:[%s3919] ss:$2 sm:$0xff]
      %s3921 = scalar_lea.vmem [#allocation2], 72
      %v3922 = vld [vmem:[%s3921] ss:$2 sm:$0xff]
      %s3923 = scalar_lea.vmem [#allocation2], 73
      %v3924 = vld [vmem:[%s3923] ss:$2 sm:$0xff]
      %v3925 = vmax.f32 %v3918, %v3920
      %v3926 = vmax.f32 %v3922, %v3924
      %v3927 = vmax.f32 %v3925, %v3926
      %3928 = vst [vmem:[#allocation5 + $0x21] sm:$0xff] %v3927
      %s3929 = scalar_lea.vmem [#allocation2], 96
      %v3930 = vld [vmem:[%s3929] ss:$2 sm:$0xff]
      %s3931 = scalar_lea.vmem [#allocation2], 97
      %v3932 = vld [vmem:[%s3931] ss:$2 sm:$0xff]
      %s3933 = scalar_lea.vmem [#allocation2], 120
      %v3934 = vld [vmem:[%s3933] ss:$2 sm:$0xff]
      %s3935 = scalar_lea.vmem [#allocation2], 121
      %v3936 = vld [vmem:[%s3935] ss:$2 sm:$0xff]
      %v3937 = vmax.f32 %v3930, %v3932
      %v3938 = vmax.f32 %v3934, %v3936
      %v3939 = vmax.f32 %v3937, %v3938
      %3940 = vst [vmem:[#allocation5 + $0x31] sm:$0xff] %v3939
      %s3941 = scalar_lea.vmem [#allocation2], 144
      %v3942 = vld [vmem:[%s3941] ss:$2 sm:$0xff]
      %s3943 = scalar_lea.vmem [#allocation2], 145
      %v3944 = vld [vmem:[%s3943] ss:$2 sm:$0xff]
      %s3945 = scalar_lea.vmem [#allocation2], 168
      %v3946 = vld [vmem:[%s3945] ss:$2 sm:$0xff]
      %s3947 = scalar_lea.vmem [#allocation2], 169
      %v3948 = vld [vmem:[%s3947] ss:$2 sm:$0xff]
      %v3949 = vmax.f32 %v3942, %v3944
      %v3950 = vmax.f32 %v3946, %v3948
      %v3951 = vmax.f32 %v3949, %v3950
      %3952 = vst [vmem:[#allocation5 + $0x41] sm:$0xff] %v3951
      %s3953 = scalar_lea.vmem [#allocation2], 192
      %v3954 = vld [vmem:[%s3953] ss:$2 sm:$0xff]
      %s3955 = scalar_lea.vmem [#allocation2], 193
      %v3956 = vld [vmem:[%s3955] ss:$2 sm:$0xff]
      %s3957 = scalar_lea.vmem [#allocation2], 216
      %v3958 = vld [vmem:[%s3957] ss:$2 sm:$0xff]
      %s3959 = scalar_lea.vmem [#allocation2], 217
      %v3960 = vld [vmem:[%s3959] ss:$2 sm:$0xff]
      %v3961 = vmax.f32 %v3954, %v3956
      %v3962 = vmax.f32 %v3958, %v3960
      %v3963 = vmax.f32 %v3961, %v3962
      %3964 = vst [vmem:[#allocation5 + $0x51] sm:$0xff] %v3963
      %s3965 = scalar_lea.vmem [#allocation2], 240
      %v3966 = vld [vmem:[%s3965] ss:$2 sm:$0xff]
      %s3967 = scalar_lea.vmem [#allocation2], 241
      %v3968 = vld [vmem:[%s3967] ss:$2 sm:$0xff]
      %s3969 = scalar_lea.vmem [#allocation2], 264
      %v3970 = vld [vmem:[%s3969] ss:$2 sm:$0xff]
      %s3971 = scalar_lea.vmem [#allocation2], 265
      %v3972 = vld [vmem:[%s3971] ss:$2 sm:$0xff]
      %v3973 = vmax.f32 %v3966, %v3968
      %v3974 = vmax.f32 %v3970, %v3972
      %v3975 = vmax.f32 %v3973, %v3974
      %3976 = vst [vmem:[#allocation5 + $0x61] sm:$0xff] %v3975
      %s3977 = scalar_lea.vmem [#allocation2], 288
      %v3978 = vld [vmem:[%s3977] ss:$2 sm:$0xff]
      %s3979 = scalar_lea.vmem [#allocation2], 289
      %v3980 = vld [vmem:[%s3979] ss:$2 sm:$0xff]
      %s3981 = scalar_lea.vmem [#allocation2], 312
      %v3982 = vld [vmem:[%s3981] ss:$2 sm:$0xff]
      %s3983 = scalar_lea.vmem [#allocation2], 313
      %v3984 = vld [vmem:[%s3983] ss:$2 sm:$0xff]
      %v3985 = vmax.f32 %v3978, %v3980
      %v3986 = vmax.f32 %v3982, %v3984
      %v3987 = vmax.f32 %v3985, %v3986
      %3988 = vst [vmem:[#allocation5 + $0x71] sm:$0xff] %v3987
      %s3989 = scalar_lea.vmem [#allocation2], 336
      %v3990 = vld [vmem:[%s3989] ss:$2 sm:$0xff]
      %s3991 = scalar_lea.vmem [#allocation2], 337
      %v3992 = vld [vmem:[%s3991] ss:$2 sm:$0xff]
      %s3993 = scalar_lea.vmem [#allocation2], 360
      %v3994 = vld [vmem:[%s3993] ss:$2 sm:$0xff]
      %s3995 = scalar_lea.vmem [#allocation2], 361
      %v3996 = vld [vmem:[%s3995] ss:$2 sm:$0xff]
      %v3997 = vmax.f32 %v3990, %v3992
      %v3998 = vmax.f32 %v3994, %v3996
      %v3999 = vmax.f32 %v3997, %v3998
      %4000 = vst [vmem:[#allocation5 + $0x81] sm:$0xff] %v3999
      %v4001 = vld [vmem:[#allocation5] sm:$0xff]
      %v4002 = vld [vmem:[#allocation5 + $0x8] sm:$0xff]
      %v4003 = vld [vmem:[#allocation5 + $0x10] sm:$0xff]
      %v4004 = vld [vmem:[#allocation5 + $0x18] sm:$0xff]
      %v4005 = vld [vmem:[#allocation5 + $0x20] sm:$0xff]
      %v4006 = vld [vmem:[#allocation5 + $0x28] sm:$0xff]
      %v4007 = vld [vmem:[#allocation5 + $0x30] sm:$0xff]
      %v4008 = vld [vmem:[#allocation5 + $0x38] sm:$0xff]
      %v4009 = vld [vmem:[#allocation5 + $0x40] sm:$0xff]
      %v4010 = vld [vmem:[#allocation5 + $0x48] sm:$0xff]
      %v4011 = vld [vmem:[#allocation5 + $0x50] sm:$0xff]
      %v4012 = vld [vmem:[#allocation5 + $0x58] sm:$0xff]
      %v4013 = vld [vmem:[#allocation5 + $0x60] sm:$0xff]
      %v4014 = vld [vmem:[#allocation5 + $0x68] sm:$0xff]
      %v4015 = vld [vmem:[#allocation5 + $0x70] sm:$0xff]
      %v4016 = vld [vmem:[#allocation5 + $0x78] sm:$0xff]
      %v4017 = vpack.c.bf16 %v4002, %v4001
      %v4018 = vpack.c.bf16 %v4004, %v4003
      %v4019 = vpack.c.bf16 %v4006, %v4005
      %v4020 = vpack.c.bf16 %v4008, %v4007
      %v4021 = vpack.c.bf16 %v4010, %v4009
      %v4022 = vpack.c.bf16 %v4012, %v4011
      %v4023 = vpack.c.bf16 %v4014, %v4013
      %v4024 = vpack.c.bf16 %v4016, %v4015
      %s4025 = scalar_lea.vmem %s1, 576
      %v4026 = vld [vmem:[%s4025] sm:$0xf]
      %v4027 = vld [vmem:[%s4025 + $0x4] sm:$0xf]
      %v4028 = vld [vmem:[%s4025 + $0x8] sm:$0xf]
      %v4029 = vld [vmem:[%s4025 + $0xc] sm:$0xf]
      %v4030 = vld [vmem:[%s4025 + $0x10] sm:$0xf]
      %v4031 = vld [vmem:[%s4025 + $0x14] sm:$0xf]
      %v4032 = vld [vmem:[%s4025 + $0x18] sm:$0xf]
      %v4033 = vld [vmem:[%s4025 + $0x1c] sm:$0xf]
      %v4034 = vld [vmem:[%s4025 + $0x20] sm:$0xf]
      %v4035 = vld [vmem:[%s4025 + $0x24] sm:$0xf]
      %v4036 = vld [vmem:[%s4025 + $0x28] sm:$0xf]
      %v4037 = vld [vmem:[%s4025 + $0x2c] sm:$0xf]
      %v4038 = vld [vmem:[%s4025 + $0x30] sm:$0xf]
      %v4039 = vld [vmem:[%s4025 + $0x34] sm:$0xf]
      %v4040 = vld [vmem:[%s4025 + $0x38] sm:$0xf]
      %v4041 = vld [vmem:[%s4025 + $0x3c] sm:$0xf]
      %v4042 = vld [vmem:[#allocation5 + $0x1] sm:$0xff]
      %v4043 = vld [vmem:[#allocation5 + $0x9] sm:$0xff]
      %v4044 = vld [vmem:[#allocation5 + $0x11] sm:$0xff]
      %v4045 = vld [vmem:[#allocation5 + $0x19] sm:$0xff]
      %v4046 = vld [vmem:[#allocation5 + $0x21] sm:$0xff]
      %v4047 = vld [vmem:[#allocation5 + $0x29] sm:$0xff]
      %v4048 = vld [vmem:[#allocation5 + $0x31] sm:$0xff]
      %v4049 = vld [vmem:[#allocation5 + $0x39] sm:$0xff]
      %v4050 = vld [vmem:[#allocation5 + $0x41] sm:$0xff]
      %v4051 = vld [vmem:[#allocation5 + $0x49] sm:$0xff]
      %v4052 = vld [vmem:[#allocation5 + $0x51] sm:$0xff]
      %v4053 = vld [vmem:[#allocation5 + $0x59] sm:$0xff]
      %v4054 = vld [vmem:[#allocation5 + $0x61] sm:$0xff]
      %v4055 = vld [vmem:[#allocation5 + $0x69] sm:$0xff]
      %v4056 = vld [vmem:[#allocation5 + $0x71] sm:$0xff]
      %v4057 = vld [vmem:[#allocation5 + $0x79] sm:$0xff]
      %v4058 = vpack.c.bf16 %v4043, %v4042
      %v4059 = vpack.c.bf16 %v4045, %v4044
      %v4060 = vpack.c.bf16 %v4047, %v4046
      %v4061 = vpack.c.bf16 %v4049, %v4048
      %v4062 = vpack.c.bf16 %v4051, %v4050
      %v4063 = vpack.c.bf16 %v4053, %v4052
      %v4064 = vpack.c.bf16 %v4055, %v4054
      %v4065 = vpack.c.bf16 %v4057, %v4056
      %s4066 = scalar_lea.vmem %s1, 640
      %v4067 = vld [vmem:[%s4066] sm:$0xf]
      %v4068 = vld [vmem:[%s4066 + $0x4] sm:$0xf]
      %v4069 = vld [vmem:[%s4066 + $0x8] sm:$0xf]
      %v4070 = vld [vmem:[%s4066 + $0xc] sm:$0xf]
      %v4071 = vld [vmem:[%s4066 + $0x10] sm:$0xf]
      %v4072 = vld [vmem:[%s4066 + $0x14] sm:$0xf]
      %v4073 = vld [vmem:[%s4066 + $0x18] sm:$0xf]
      %v4074 = vld [vmem:[%s4066 + $0x1c] sm:$0xf]
      %v4075 = vld [vmem:[%s4066 + $0x20] sm:$0xf]
      %v4076 = vld [vmem:[%s4066 + $0x24] sm:$0xf]
      %v4077 = vld [vmem:[%s4066 + $0x28] sm:$0xf]
      %v4078 = vld [vmem:[%s4066 + $0x2c] sm:$0xf]
      %v4079 = vld [vmem:[%s4066 + $0x30] sm:$0xf]
      %v4080 = vld [vmem:[%s4066 + $0x34] sm:$0xf]
      %v4081 = vld [vmem:[%s4066 + $0x38] sm:$0xf]
      %v4082 = vld [vmem:[%s4066 + $0x3c] sm:$0xf]
      %v4099 = vunpack.c.l.b16 %v4067
      %v4100 = vunpack.c.l.b16 %v4068
      %v4101 = vunpack.c.l.b16 %v4069
      %v4102 = vunpack.c.l.b16 %v4070
      %v4103 = vunpack.c.l.b16 %v4071
      %v4104 = vunpack.c.l.b16 %v4072
      %v4105 = vunpack.c.l.b16 %v4073
      %v4106 = vunpack.c.l.b16 %v4074
      %v4107 = vunpack.c.l.b16 %v4075
      %v4108 = vunpack.c.l.b16 %v4076
      %v4109 = vunpack.c.l.b16 %v4077
      %v4110 = vunpack.c.l.b16 %v4078
      %v4111 = vunpack.c.l.b16 %v4079
      %v4112 = vunpack.c.l.b16 %v4080
      %v4113 = vunpack.c.l.b16 %v4081
      %v4114 = vunpack.c.l.b16 %v4082
      %v4115 = vpack.c.b16 %v4100, %v4099
      %v4116 = vpack.c.b16 %v4102, %v4101
      %v4117 = vpack.c.b16 %v4104, %v4103
      %v4118 = vpack.c.b16 %v4106, %v4105
      %v4119 = vpack.c.b16 %v4108, %v4107
      %v4120 = vpack.c.b16 %v4110, %v4109
      %v4121 = vpack.c.b16 %v4112, %v4111
      %v4122 = vpack.c.b16 %v4114, %v4113
      %4131 = vmatprep.subr.bf16.mxu0 0
      %4132 = vmatpush1.bf16.msra.mxu0 %v4115
      %4133 = vmatprep.subr.bf16.mxu0 0
      %4134 = vmatpush1.bf16.msra.mxu0 %v4116
      %4135 = vmatprep.subr.bf16.mxu0 0
      %4136 = vmatpush1.bf16.msra.mxu0 %v4117
      %4137 = vmatprep.subr.bf16.mxu0 0
      %4138 = vmatpush1.bf16.msra.mxu0 %v4118
      %4139 = vmatprep.subr.bf16.mxu0 0
      %4140 = vmatpush1.bf16.msra.mxu0 %v4119
      %4141 = vmatprep.subr.bf16.mxu0 0
      %4142 = vmatpush1.bf16.msra.mxu0 %v4120
      %4143 = vmatprep.subr.bf16.mxu0 0
      %4144 = vmatpush1.bf16.msra.mxu0 %v4121
      %4145 = vmatprep.subr.bf16.mxu0 0
      %4146 = vmatpush1.bf16.msra.mxu0 %v4122
      %4147 = vmatprep.subr.bf16.mxu0 0
      %4148 = vmatpush1.bf16.msra.mxu0 0
      %4149 = vmatprep.subr.bf16.mxu0 0
      %4150 = vmatpush1.bf16.msra.mxu0 0
      %4151 = vmatprep.subr.bf16.mxu0 0
      %4152 = vmatpush1.bf16.msra.mxu0 0
      %4153 = vmatprep.subr.bf16.mxu0 0
      %4154 = vmatpush1.bf16.msra.mxu0 0
      %4155 = vmatprep.subr.bf16.mxu0 0
      %4156 = vmatpush1.bf16.msra.mxu0 0
      %4157 = vmatprep.subr.bf16.mxu0 0
      %4158 = vmatpush1.bf16.msra.mxu0 0
      %4159 = vmatprep.subr.bf16.mxu0 0
      %4160 = vmatpush1.bf16.msra.mxu0 0
      %4161 = vmatprep.subr.bf16.mxu0 0
      %4162 = vmatpush1.bf16.msra.mxu0 0
      %4163 = vmatprep.mubr.bf16.mxu0 0
      %4164 = vmatmul.mubr.bf16.gmra.mrb[0].mxu0 %v4058
      %v4165 = vpop.f32.mrb[0].mxu0
      %v4166 = vadd.f32 0.0, %v4165
      %v4167 = vpop.f32.mrb[0].mxu0
      %v4168 = vpop.f32.mrb[0].mxu0
      %v4169 = vadd.f32 0.0, %v4168
      %v4170 = vpop.f32.mrb[0].mxu0
      %4171 = vmatprep.mubr.bf16.mxu0 0
      %4172 = vmatmul.mubr.bf16.gmra.mrb[0].mxu0 %v4059
      %v4173 = vpop.f32.mrb[0].mxu0
      %v4174 = vadd.f32 0.0, %v4173
      %v4175 = vpop.f32.mrb[0].mxu0
      %v4176 = vpop.f32.mrb[0].mxu0
      %v4177 = vadd.f32 0.0, %v4176
      %v4178 = vpop.f32.mrb[0].mxu0
      %4179 = vmatprep.mubr.bf16.mxu0 0
      %4180 = vmatmul.mubr.bf16.gmra.mrb[0].mxu0 %v4060
      %v4181 = vpop.f32.mrb[0].mxu0
      %v4182 = vadd.f32 0.0, %v4181
      %v4183 = vpop.f32.mrb[0].mxu0
      %v4184 = vpop.f32.mrb[0].mxu0
      %v4185 = vadd.f32 0.0, %v4184
      %v4186 = vpop.f32.mrb[0].mxu0
      %4187 = vmatprep.mubr.bf16.mxu0 0
      %4188 = vmatmul.mubr.bf16.gmra.mrb[0].mxu0 %v4061
      %v4189 = vpop.f32.mrb[0].mxu0
      %v4190 = vadd.f32 0.0, %v4189
      %v4191 = vpop.f32.mrb[0].mxu0
      %v4192 = vpop.f32.mrb[0].mxu0
      %v4193 = vadd.f32 0.0, %v4192
      %v4194 = vpop.f32.mrb[0].mxu0
      %4195 = vmatprep.mubr.bf16.mxu0 0
      %4196 = vmatmul.mubr.bf16.gmra.mrb[0].mxu0 %v4062
      %v4197 = vpop.f32.mrb[0].mxu0
      %v4198 = vadd.f32 0.0, %v4197
      %v4199 = vpop.f32.mrb[0].mxu0
      %v4200 = vpop.f32.mrb[0].mxu0
      %v4201 = vadd.f32 0.0, %v4200
      %v4202 = vpop.f32.mrb[0].mxu0
      %4203 = vmatprep.mubr.bf16.mxu0 0
      %4204 = vmatmul.mubr.bf16.gmra.mrb[0].mxu0 %v4063
      %v4205 = vpop.f32.mrb[0].mxu0
      %v4206 = vadd.f32 0.0, %v4205
      %v4207 = vpop.f32.mrb[0].mxu0
      %v4208 = vpop.f32.mrb[0].mxu0
      %v4209 = vadd.f32 0.0, %v4208
      %v4210 = vpop.f32.mrb[0].mxu0
      %4211 = vmatprep.mubr.bf16.mxu0 0
      %4212 = vmatmul.mubr.bf16.gmra.mrb[0].mxu0 %v4064
      %v4213 = vpop.f32.mrb[0].mxu0
      %v4214 = vadd.f32 0.0, %v4213
      %v4215 = vpop.f32.mrb[0].mxu0
      %v4216 = vpop.f32.mrb[0].mxu0
      %v4217 = vadd.f32 0.0, %v4216
      %v4218 = vpop.f32.mrb[0].mxu0
      %4219 = vmatprep.mubr.bf16.mxu0 0
      %4220 = vmatmul.mubr.bf16.gmra.mrb[0].mxu0 %v4065
      %v4221 = vpop.f32.mrb[0].mxu0
      %v4222 = vadd.f32 0.0, %v4221
      %v4223 = vpop.f32.mrb[0].mxu0
      %v4224 = vpop.f32.mrb[0].mxu0
      %v4225 = vadd.f32 0.0, %v4224
      %v4226 = vpop.f32.mrb[0].mxu0
      %4227 = vdwg.mxu0
      %v4228 = vld [vmem:[#allocation5 + $0x2] sm:$0xff]
      %v4229 = vld [vmem:[#allocation5 + $0xa] sm:$0xff]
      %v4230 = vld [vmem:[#allocation5 + $0x12] sm:$0xff]
      %v4231 = vld [vmem:[#allocation5 + $0x1a] sm:$0xff]
      %v4232 = vld [vmem:[#allocation5 + $0x22] sm:$0xff]
      %v4233 = vld [vmem:[#allocation5 + $0x2a] sm:$0xff]
      %v4234 = vld [vmem:[#allocation5 + $0x32] sm:$0xff]
      %v4235 = vld [vmem:[#allocation5 + $0x3a] sm:$0xff]
      %v4236 = vld [vmem:[#allocation5 + $0x42] sm:$0xff]
      %v4237 = vld [vmem:[#allocation5 + $0x4a] sm:$0xff]
      %v4238 = vld [vmem:[#allocation5 + $0x52] sm:$0xff]
      %v4239 = vld [vmem:[#allocation5 + $0x5a] sm:$0xff]
      %v4240 = vld [vmem:[#allocation5 + $0x62] sm:$0xff]
      %v4241 = vld [vmem:[#allocation5 + $0x6a] sm:$0xff]
      %v4242 = vld [vmem:[#allocation5 + $0x72] sm:$0xff]
      %v4243 = vld [vmem:[#allocation5 + $0x7a] sm:$0xff]
      %v4244 = vpack.c.bf16 %v4229, %v4228
      %v4245 = vpack.c.bf16 %v4231, %v4230
      %v4246 = vpack.c.bf16 %v4233, %v4232
      %v4247 = vpack.c.bf16 %v4235, %v4234
      %v4248 = vpack.c.bf16 %v4237, %v4236
      %v4249 = vpack.c.bf16 %v4239, %v4238
      %v4250 = vpack.c.bf16 %v4241, %v4240
      %v4251 = vpack.c.bf16 %v4243, %v4242
      %s4252 = scalar_lea.vmem %s1, 704
      %v4253 = vld [vmem:[%s4252] sm:$0xf]
      %v4254 = vld [vmem:[%s4252 + $0x4] sm:$0xf]
      %v4255 = vld [vmem:[%s4252 + $0x8] sm:$0xf]
      %v4256 = vld [vmem:[%s4252 + $0xc] sm:$0xf]
      %v4257 = vld [vmem:[%s4252 + $0x10] sm:$0xf]
      %v4258 = vld [vmem:[%s4252 + $0x14] sm:$0xf]
      %v4259 = vld [vmem:[%s4252 + $0x18] sm:$0xf]
      %v4260 = vld [vmem:[%s4252 + $0x1c] sm:$0xf]
      %v4261 = vld [vmem:[%s4252 + $0x20] sm:$0xf]
      %v4262 = vld [vmem:[%s4252 + $0x24] sm:$0xf]
      %v4263 = vld [vmem:[%s4252 + $0x28] sm:$0xf]
      %v4264 = vld [vmem:[%s4252 + $0x2c] sm:$0xf]
      %v4265 = vld [vmem:[%s4252 + $0x30] sm:$0xf]
      %v4266 = vld [vmem:[%s4252 + $0x34] sm:$0xf]
      %v4267 = vld [vmem:[%s4252 + $0x38] sm:$0xf]
      %v4268 = vld [vmem:[%s4252 + $0x3c] sm:$0xf]
      %v4269 = vld [vmem:[#allocation5 + $0x10] sm:$0xff]
      %v4270 = vld [vmem:[#allocation5 + $0x18] sm:$0xff]
      %v4271 = vld [vmem:[#allocation5 + $0x20] sm:$0xff]
      %v4272 = vld [vmem:[#allocation5 + $0x28] sm:$0xff]
      %v4273 = vld [vmem:[#allocation5 + $0x30] sm:$0xff]
      %v4274 = vld [vmem:[#allocation5 + $0x38] sm:$0xff]
      %v4275 = vld [vmem:[#allocation5 + $0x40] sm:$0xff]
      %v4276 = vld [vmem:[#allocation5 + $0x48] sm:$0xff]
      %v4277 = vld [vmem:[#allocation5 + $0x50] sm:$0xff]
      %v4278 = vld [vmem:[#allocation5 + $0x58] sm:$0xff]
      %v4279 = vld [vmem:[#allocation5 + $0x60] sm:$0xff]
      %v4280 = vld [vmem:[#allocation5 + $0x68] sm:$0xff]
      %v4281 = vld [vmem:[#allocation5 + $0x70] sm:$0xff]
      %v4282 = vld [vmem:[#allocation5 + $0x78] sm:$0xff]
      %v4283 = vld [vmem:[#allocation5 + $0x80] sm:$0xff]
      %v4284 = vld [vmem:[#allocation5 + $0x88] sm:$0xff]
      %v4285 = vpack.c.bf16 %v4270, %v4269
      %v4286 = vpack.c.bf16 %v4272, %v4271
      %v4287 = vpack.c.bf16 %v4274, %v4273
      %v4288 = vpack.c.bf16 %v4276, %v4275
      %v4289 = vpack.c.bf16 %v4278, %v4277
      %v4290 = vpack.c.bf16 %v4280, %v4279
      %v4291 = vpack.c.bf16 %v4282, %v4281
      %v4292 = vpack.c.bf16 %v4284, %v4283
      %s4293 = scalar_lea.vmem %s1, 768
      %v4294 = vld [vmem:[%s4293] sm:$0xf]
      %v4295 = vld [vmem:[%s4293 + $0x4] sm:$0xf]
      %v4296 = vld [vmem:[%s4293 + $0x8] sm:$0xf]
      %v4297 = vld [vmem:[%s4293 + $0xc] sm:$0xf]
      %v4298 = vld [vmem:[%s4293 + $0x10] sm:$0xf]
      %v4299 = vld [vmem:[%s4293 + $0x14] sm:$0xf]
      %v4300 = vld [vmem:[%s4293 + $0x18] sm:$0xf]
      %v4301 = vld [vmem:[%s4293 + $0x1c] sm:$0xf]
      %v4302 = vld [vmem:[%s4293 + $0x20] sm:$0xf]
      %v4303 = vld [vmem:[%s4293 + $0x24] sm:$0xf]
      %v4304 = vld [vmem:[%s4293 + $0x28] sm:$0xf]
      %v4305 = vld [vmem:[%s4293 + $0x2c] sm:$0xf]
      %v4306 = vld [vmem:[%s4293 + $0x30] sm:$0xf]
      %v4307 = vld [vmem:[%s4293 + $0x34] sm:$0xf]
      %v4308 = vld [vmem:[%s4293 + $0x38] sm:$0xf]
      %v4309 = vld [vmem:[%s4293 + $0x3c] sm:$0xf]
      %v4326 = vunpack.c.l.b16 %v4294
      %v4327 = vunpack.c.l.b16 %v4295
      %v4328 = vunpack.c.l.b16 %v4296
      %v4329 = vunpack.c.l.b16 %v4297
      %v4330 = vunpack.c.l.b16 %v4298
      %v4331 = vunpack.c.l.b16 %v4299
      %v4332 = vunpack.c.l.b16 %v4300
      %v4333 = vunpack.c.l.b16 %v4301
      %v4334 = vunpack.c.l.b16 %v4302
      %v4335 = vunpack.c.l.b16 %v4303
      %v4336 = vunpack.c.l.b16 %v4304
      %v4337 = vunpack.c.l.b16 %v4305
      %v4338 = vunpack.c.l.b16 %v4306
      %v4339 = vunpack.c.l.b16 %v4307
      %v4340 = vunpack.c.l.b16 %v4308
      %v4341 = vunpack.c.l.b16 %v4309
      %v4342 = vpack.c.b16 %v4327, %v4326
      %v4343 = vpack.c.b16 %v4329, %v4328
      %v4344 = vpack.c.b16 %v4331, %v4330
      %v4345 = vpack.c.b16 %v4333, %v4332
      %v4346 = vpack.c.b16 %v4335, %v4334
      %v4347 = vpack.c.b16 %v4337, %v4336
      %v4348 = vpack.c.b16 %v4339, %v4338
      %v4349 = vpack.c.b16 %v4341, %v4340
      %4358 = vmatprep.subr.bf16.mxu0 0
      %4359 = vmatpush1.bf16.msra.mxu0 %v4342
      %4360 = vmatprep.subr.bf16.mxu0 0
      %4361 = vmatpush1.bf16.msra.mxu0 %v4343
      %4362 = vmatprep.subr.bf16.mxu0 0
      %4363 = vmatpush1.bf16.msra.mxu0 %v4344
      %4364 = vmatprep.subr.bf16.mxu0 0
      %4365 = vmatpush1.bf16.msra.mxu0 %v4345
      %4366 = vmatprep.subr.bf16.mxu0 0
      %4367 = vmatpush1.bf16.msra.mxu0 %v4346
      %4368 = vmatprep.subr.bf16.mxu0 0
      %4369 = vmatpush1.bf16.msra.mxu0 %v4347
      %4370 = vmatprep.subr.bf16.mxu0 0
      %4371 = vmatpush1.bf16.msra.mxu0 %v4348
      %4372 = vmatprep.subr.bf16.mxu0 0
      %4373 = vmatpush1.bf16.msra.mxu0 %v4349
      %4374 = vmatprep.subr.bf16.mxu0 0
      %4375 = vmatpush1.bf16.msra.mxu0 0
      %4376 = vmatprep.subr.bf16.mxu0 0
      %4377 = vmatpush1.bf16.msra.mxu0 0
      %4378 = vmatprep.subr.bf16.mxu0 0
      %4379 = vmatpush1.bf16.msra.mxu0 0
      %4380 = vmatprep.subr.bf16.mxu0 0
      %4381 = vmatpush1.bf16.msra.mxu0 0
      %4382 = vmatprep.subr.bf16.mxu0 0
      %4383 = vmatpush1.bf16.msra.mxu0 0
      %4384 = vmatprep.subr.bf16.mxu0 0
      %4385 = vmatpush1.bf16.msra.mxu0 0
      %4386 = vmatprep.subr.bf16.mxu0 0
      %4387 = vmatpush1.bf16.msra.mxu0 0
      %4388 = vmatprep.subr.bf16.mxu0 0
      %4389 = vmatpush1.bf16.msra.mxu0 0
      %4390 = vmatprep.mubr.bf16.mxu0 0
      %4391 = vmatmul.mubr.bf16.gmra.mrb[0].mxu0 %v4285
      %v4392 = vpop.f32.mrb[0].mxu0
      %v4393 = vadd.f32 0.0, %v4392
      %v4394 = vpop.f32.mrb[0].mxu0
      %v4395 = vpop.f32.mrb[0].mxu0
      %v4396 = vadd.f32 0.0, %v4395
      %v4397 = vpop.f32.mrb[0].mxu0
      %4398 = vmatprep.mubr.bf16.mxu0 0
      %4399 = vmatmul.mubr.bf16.gmra.mrb[0].mxu0 %v4286
      %v4400 = vpop.f32.mrb[0].mxu0
      %v4401 = vadd.f32 0.0, %v4400
      %v4402 = vpop.f32.mrb[0].mxu0
      %v4403 = vpop.f32.mrb[0].mxu0
      %v4404 = vadd.f32 0.0, %v4403
      %v4405 = vpop.f32.mrb[0].mxu0
      %4406 = vmatprep.mubr.bf16.mxu0 0
      %4407 = vmatmul.mubr.bf16.gmra.mrb[0].mxu0 %v4287
      %v4408 = vpop.f32.mrb[0].mxu0
      %v4409 = vadd.f32 0.0, %v4408
      %v4410 = vpop.f32.mrb[0].mxu0
      %v4411 = vpop.f32.mrb[0].mxu0
      %v4412 = vadd.f32 0.0, %v4411
      %v4413 = vpop.f32.mrb[0].mxu0
      %4414 = vmatprep.mubr.bf16.mxu0 0
      %4415 = vmatmul.mubr.bf16.gmra.mrb[0].mxu0 %v4288
      %v4416 = vpop.f32.mrb[0].mxu0
      %v4417 = vadd.f32 0.0, %v4416
      %v4418 = vpop.f32.mrb[0].mxu0
      %v4419 = vpop.f32.mrb[0].mxu0
      %v4420 = vadd.f32 0.0, %v4419
      %v4421 = vpop.f32.mrb[0].mxu0
      %4422 = vmatprep.mubr.bf16.mxu0 0
      %4423 = vmatmul.mubr.bf16.gmra.mrb[0].mxu0 %v4289
      %v4424 = vpop.f32.mrb[0].mxu0
      %v4425 = vadd.f32 0.0, %v4424
      %v4426 = vpop.f32.mrb[0].mxu0
      %v4427 = vpop.f32.mrb[0].mxu0
      %v4428 = vadd.f32 0.0, %v4427
      %v4429 = vpop.f32.mrb[0].mxu0
      %4430 = vmatprep.mubr.bf16.mxu0 0
      %4431 = vmatmul.mubr.bf16.gmra.mrb[0].mxu0 %v4290
      %v4432 = vpop.f32.mrb[0].mxu0
      %v4433 = vadd.f32 0.0, %v4432
      %v4434 = vpop.f32.mrb[0].mxu0
      %v4435 = vpop.f32.mrb[0].mxu0
      %v4436 = vadd.f32 0.0, %v4435
      %v4437 = vpop.f32.mrb[0].mxu0
      %4438 = vmatprep.mubr.bf16.mxu0 0
      %4439 = vmatmul.mubr.bf16.gmra.mrb[0].mxu0 %v4291
      %v4440 = vpop.f32.mrb[0].mxu0
      %v4441 = vadd.f32 0.0, %v4440
      %v4442 = vpop.f32.mrb[0].mxu0
      %v4443 = vpop.f32.mrb[0].mxu0
      %v4444 = vadd.f32 0.0, %v4443
      %v4445 = vpop.f32.mrb[0].mxu0
      %4446 = vmatprep.mubr.bf16.mxu0 0
      %4447 = vmatmul.mubr.bf16.gmra.mrb[0].mxu0 %v4292
      %v4448 = vpop.f32.mrb[0].mxu0
      %v4449 = vadd.f32 0.0, %v4448
      %v4450 = vpop.f32.mrb[0].mxu0
      %v4451 = vpop.f32.mrb[0].mxu0
      %v4452 = vadd.f32 0.0, %v4451
      %v4453 = vpop.f32.mrb[0].mxu0
      %4454 = vdwg.mxu0
      %v4455 = vld [vmem:[#allocation5 + $0x11] sm:$0xff]
      %v4456 = vld [vmem:[#allocation5 + $0x19] sm:$0xff]
      %v4457 = vld [vmem:[#allocation5 + $0x21] sm:$0xff]
      %v4458 = vld [vmem:[#allocation5 + $0x29] sm:$0xff]
      %v4459 = vld [vmem:[#allocation5 + $0x31] sm:$0xff]
      %v4460 = vld [vmem:[#allocation5 + $0x39] sm:$0xff]
      %v4461 = vld [vmem:[#allocation5 + $0x41] sm:$0xff]
      %v4462 = vld [vmem:[#allocation5 + $0x49] sm:$0xff]
      %v4463 = vld [vmem:[#allocation5 + $0x51] sm:$0xff]
      %v4464 = vld [vmem:[#allocation5 + $0x59] sm:$0xff]
      %v4465 = vld [vmem:[#allocation5 + $0x61] sm:$0xff]
      %v4466 = vld [vmem:[#allocation5 + $0x69] sm:$0xff]
      %v4467 = vld [vmem:[#allocation5 + $0x71] sm:$0xff]
      %v4468 = vld [vmem:[#allocation5 + $0x79] sm:$0xff]
      %v4469 = vld [vmem:[#allocation5 + $0x81] sm:$0xff]
      %v4470 = vld [vmem:[#allocation5 + $0x89] sm:$0xff]
      %v4471 = vpack.c.bf16 %v4456, %v4455
      %v4472 = vpack.c.bf16 %v4458, %v4457
      %v4473 = vpack.c.bf16 %v4460, %v4459
      %v4474 = vpack.c.bf16 %v4462, %v4461
      %v4475 = vpack.c.bf16 %v4464, %v4463
      %v4476 = vpack.c.bf16 %v4466, %v4465
      %v4477 = vpack.c.bf16 %v4468, %v4467
      %v4478 = vpack.c.bf16 %v4470, %v4469
      %s4479 = scalar_lea.vmem %s1, 832
      %v4480 = vld [vmem:[%s4479] sm:$0xf]
      %v4481 = vld [vmem:[%s4479 + $0x4] sm:$0xf]
      %v4482 = vld [vmem:[%s4479 + $0x8] sm:$0xf]
      %v4483 = vld [vmem:[%s4479 + $0xc] sm:$0xf]
      %v4484 = vld [vmem:[%s4479 + $0x10] sm:$0xf]
      %v4485 = vld [vmem:[%s4479 + $0x14] sm:$0xf]
      %v4486 = vld [vmem:[%s4479 + $0x18] sm:$0xf]
      %v4487 = vld [vmem:[%s4479 + $0x1c] sm:$0xf]
      %v4488 = vld [vmem:[%s4479 + $0x20] sm:$0xf]
      %v4489 = vld [vmem:[%s4479 + $0x24] sm:$0xf]
      %v4490 = vld [vmem:[%s4479 + $0x28] sm:$0xf]
      %v4491 = vld [vmem:[%s4479 + $0x2c] sm:$0xf]
      %v4492 = vld [vmem:[%s4479 + $0x30] sm:$0xf]
      %v4493 = vld [vmem:[%s4479 + $0x34] sm:$0xf]
      %v4494 = vld [vmem:[%s4479 + $0x38] sm:$0xf]
      %v4495 = vld [vmem:[%s4479 + $0x3c] sm:$0xf]
      %v4496 = vld [vmem:[#allocation5 + $0x12] sm:$0xff]
      %v4497 = vld [vmem:[#allocation5 + $0x1a] sm:$0xff]
      %v4498 = vld [vmem:[#allocation5 + $0x22] sm:$0xff]
      %v4499 = vld [vmem:[#allocation5 + $0x2a] sm:$0xff]
      %v4500 = vld [vmem:[#allocation5 + $0x32] sm:$0xff]
      %v4501 = vld [vmem:[#allocation5 + $0x3a] sm:$0xff]
      %v4502 = vld [vmem:[#allocation5 + $0x42] sm:$0xff]
      %v4503 = vld [vmem:[#allocation5 + $0x4a] sm:$0xff]
      %v4504 = vld [vmem:[#allocation5 + $0x52] sm:$0xff]
      %v4505 = vld [vmem:[#allocation5 + $0x5a] sm:$0xff]
      %v4506 = vld [vmem:[#allocation5 + $0x62] sm:$0xff]
      %v4507 = vld [vmem:[#allocation5 + $0x6a] sm:$0xff]
      %v4508 = vld [vmem:[#allocation5 + $0x72] sm:$0xff]
      %v4509 = vld [vmem:[#allocation5 + $0x7a] sm:$0xff]
      %v4510 = vld [vmem:[#allocation5 + $0x82] sm:$0xff]
      %v4511 = vld [vmem:[#allocation5 + $0x8a] sm:$0xff]
      %v4512 = vpack.c.bf16 %v4497, %v4496
      %v4513 = vpack.c.bf16 %v4499, %v4498
      %v4514 = vpack.c.bf16 %v4501, %v4500
      %v4515 = vpack.c.bf16 %v4503, %v4502
      %v4516 = vpack.c.bf16 %v4505, %v4504
      %v4517 = vpack.c.bf16 %v4507, %v4506
      %v4518 = vpack.c.bf16 %v4509, %v4508
      %v4519 = vpack.c.bf16 %v4511, %v4510
      %s4520 = scalar_lea.vmem %s1, 896
      %v4521 = vld [vmem:[%s4520] sm:$0xf]
      %v4522 = vld [vmem:[%s4520 + $0x4] sm:$0xf]
      %v4523 = vld [vmem:[%s4520 + $0x8] sm:$0xf]
      %v4524 = vld [vmem:[%s4520 + $0xc] sm:$0xf]
      %v4525 = vld [vmem:[%s4520 + $0x10] sm:$0xf]
      %v4526 = vld [vmem:[%s4520 + $0x14] sm:$0xf]
      %v4527 = vld [vmem:[%s4520 + $0x18] sm:$0xf]
      %v4528 = vld [vmem:[%s4520 + $0x1c] sm:$0xf]
      %v4529 = vld [vmem:[%s4520 + $0x20] sm:$0xf]
      %v4530 = vld [vmem:[%s4520 + $0x24] sm:$0xf]
      %v4531 = vld [vmem:[%s4520 + $0x28] sm:$0xf]
      %v4532 = vld [vmem:[%s4520 + $0x2c] sm:$0xf]
      %v4533 = vld [vmem:[%s4520 + $0x30] sm:$0xf]
      %v4534 = vld [vmem:[%s4520 + $0x34] sm:$0xf]
      %v4535 = vld [vmem:[%s4520 + $0x38] sm:$0xf]
      %v4536 = vld [vmem:[%s4520 + $0x3c] sm:$0xf]
      %v4553 = vunpack.c.l.b16 %v4521
      %v4554 = vunpack.c.l.b16 %v4522
      %v4555 = vunpack.c.l.b16 %v4523
      %v4556 = vunpack.c.l.b16 %v4524
      %v4557 = vunpack.c.l.b16 %v4525
      %v4558 = vunpack.c.l.b16 %v4526
      %v4559 = vunpack.c.l.b16 %v4527
      %v4560 = vunpack.c.l.b16 %v4528
      %v4561 = vunpack.c.l.b16 %v4529
      %v4562 = vunpack.c.l.b16 %v4530
      %v4563 = vunpack.c.l.b16 %v4531
      %v4564 = vunpack.c.l.b16 %v4532
      %v4565 = vunpack.c.l.b16 %v4533
      %v4566 = vunpack.c.l.b16 %v4534
      %v4567 = vunpack.c.l.b16 %v4535
      %v4568 = vunpack.c.l.b16 %v4536
      %v4569 = vpack.c.b16 %v4554, %v4553
      %v4570 = vpack.c.b16 %v4556, %v4555
      %v4571 = vpack.c.b16 %v4558, %v4557
      %v4572 = vpack.c.b16 %v4560, %v4559
      %v4573 = vpack.c.b16 %v4562, %v4561
      %v4574 = vpack.c.b16 %v4564, %v4563
      %v4575 = vpack.c.b16 %v4566, %v4565
      %v4576 = vpack.c.b16 %v4568, %v4567
      %4585 = vmatprep.subr.bf16.mxu0 0
      %4586 = vmatpush1.bf16.msra.mxu0 %v4569
      %4587 = vmatprep.subr.bf16.mxu0 0
      %4588 = vmatpush1.bf16.msra.mxu0 %v4570
      %4589 = vmatprep.subr.bf16.mxu0 0
      %4590 = vmatpush1.bf16.msra.mxu0 %v4571
      %4591 = vmatprep.subr.bf16.mxu0 0
      %4592 = vmatpush1.bf16.msra.mxu0 %v4572
      %4593 = vmatprep.subr.bf16.mxu0 0
      %4594 = vmatpush1.bf16.msra.mxu0 %v4573
      %4595 = vmatprep.subr.bf16.mxu0 0
      %4596 = vmatpush1.bf16.msra.mxu0 %v4574
      %4597 = vmatprep.subr.bf16.mxu0 0
      %4598 = vmatpush1.bf16.msra.mxu0 %v4575
      %4599 = vmatprep.subr.bf16.mxu0 0
      %4600 = vmatpush1.bf16.msra.mxu0 %v4576
      %4601 = vmatprep.subr.bf16.mxu0 0
      %4602 = vmatpush1.bf16.msra.mxu0 0
      %4603 = vmatprep.subr.bf16.mxu0 0
      %4604 = vmatpush1.bf16.msra.mxu0 0
      %4605 = vmatprep.subr.bf16.mxu0 0
      %4606 = vmatpush1.bf16.msra.mxu0 0
      %4607 = vmatprep.subr.bf16.mxu0 0
      %4608 = vmatpush1.bf16.msra.mxu0 0
      %4609 = vmatprep.subr.bf16.mxu0 0
      %4610 = vmatpush1.bf16.msra.mxu0 0
      %4611 = vmatprep.subr.bf16.mxu0 0
      %4612 = vmatpush1.bf16.msra.mxu0 0
      %4613 = vmatprep.subr.bf16.mxu0 0
      %4614 = vmatpush1.bf16.msra.mxu0 0
      %4615 = vmatprep.subr.bf16.mxu0 0
      %4616 = vmatpush1.bf16.msra.mxu0 0
      %4617 = vmatprep.mubr.bf16.mxu0 0
      %4618 = vmatmul.mubr.bf16.gmra.mrb[0].mxu0 %v4512
      %v4619 = vpop.f32.mrb[0].mxu0
      %v4620 = vadd.f32 0.0, %v4619
      %v4621 = vpop.f32.mrb[0].mxu0
      %v4622 = vpop.f32.mrb[0].mxu0
      %v4623 = vadd.f32 0.0, %v4622
      %v4624 = vpop.f32.mrb[0].mxu0
      %4625 = vmatprep.mubr.bf16.mxu0 0
      %4626 = vmatmul.mubr.bf16.gmra.mrb[0].mxu0 %v4513
      %v4627 = vpop.f32.mrb[0].mxu0
      %v4628 = vadd.f32 0.0, %v4627
      %v4629 = vpop.f32.mrb[0].mxu0
      %v4630 = vpop.f32.mrb[0].mxu0
      %v4631 = vadd.f32 0.0, %v4630
      %v4632 = vpop.f32.mrb[0].mxu0
      %4633 = vmatprep.mubr.bf16.mxu0 0
      %4634 = vmatmul.mubr.bf16.gmra.mrb[0].mxu0 %v4514
      %v4635 = vpop.f32.mrb[0].mxu0
      %v4636 = vadd.f32 0.0, %v4635
      %v4637 = vpop.f32.mrb[0].mxu0
      %v4638 = vpop.f32.mrb[0].mxu0
      %v4639 = vadd.f32 0.0, %v4638
      %v4640 = vpop.f32.mrb[0].mxu0
      %4641 = vmatprep.mubr.bf16.mxu0 0
      %4642 = vmatmul.mubr.bf16.gmra.mrb[0].mxu0 %v4515
      %v4643 = vpop.f32.mrb[0].mxu0
      %v4644 = vadd.f32 0.0, %v4643
      %v4645 = vpop.f32.mrb[0].mxu0
      %v4646 = vpop.f32.mrb[0].mxu0
      %v4647 = vadd.f32 0.0, %v4646
      %v4648 = vpop.f32.mrb[0].mxu0
      %4649 = vmatprep.mubr.bf16.mxu0 0
      %4650 = vmatmul.mubr.bf16.gmra.mrb[0].mxu0 %v4516
      %v4651 = vpop.f32.mrb[0].mxu0
      %v4652 = vadd.f32 0.0, %v4651
      %v4653 = vpop.f32.mrb[0].mxu0
      %v4654 = vpop.f32.mrb[0].mxu0
      %v4655 = vadd.f32 0.0, %v4654
      %v4656 = vpop.f32.mrb[0].mxu0
      %4657 = vmatprep.mubr.bf16.mxu0 0
      %4658 = vmatmul.mubr.bf16.gmra.mrb[0].mxu0 %v4517
      %v4659 = vpop.f32.mrb[0].mxu0
      %v4660 = vadd.f32 0.0, %v4659
      %v4661 = vpop.f32.mrb[0].mxu0
      %v4662 = vpop.f32.mrb[0].mxu0
      %v4663 = vadd.f32 0.0, %v4662
      %v4664 = vpop.f32.mrb[0].mxu0
      %4665 = vmatprep.mubr.bf16.mxu0 0
      %4666 = vmatmul.mubr.bf16.gmra.mrb[0].mxu0 %v4518
      %v4667 = vpop.f32.mrb[0].mxu0
      %v4668 = vadd.f32 0.0, %v4667
      %v4669 = vpop.f32.mrb[0].mxu0
      %v4670 = vpop.f32.mrb[0].mxu0
      %v4671 = vadd.f32 0.0, %v4670
      %v4672 = vpop.f32.mrb[0].mxu0
      %4673 = vmatprep.mubr.bf16.mxu0 0
      %4674 = vmatmul.mubr.bf16.gmra.mrb[0].mxu0 %v4519
      %v4675 = vpop.f32.mrb[0].mxu0
      %v4676 = vadd.f32 0.0, %v4675
      %v4677 = vpop.f32.mrb[0].mxu0
      %v4678 = vpop.f32.mrb[0].mxu0
      %v4679 = vadd.f32 0.0, %v4678
      %v4680 = vpop.f32.mrb[0].mxu0
      %4681 = vdwg.mxu0
      %v4682 = vld [vmem:[#allocation5 + $0x20] sm:$0xff]
      %v4683 = vld [vmem:[#allocation5 + $0x28] sm:$0xff]
      %v4684 = vld [vmem:[#allocation5 + $0x30] sm:$0xff]
      %v4685 = vld [vmem:[#allocation5 + $0x38] sm:$0xff]
      %v4686 = vld [vmem:[#allocation5 + $0x40] sm:$0xff]
      %v4687 = vld [vmem:[#allocation5 + $0x48] sm:$0xff]
      %v4688 = vld [vmem:[#allocation5 + $0x50] sm:$0xff]
      %v4689 = vld [vmem:[#allocation5 + $0x58] sm:$0xff]
      %v4690 = vld [vmem:[#allocation5 + $0x60] sm:$0xff]
      %v4691 = vld [vmem:[#allocation5 + $0x68] sm:$0xff]
      %v4692 = vld [vmem:[#allocation5 + $0x70] sm:$0xff]
      %v4693 = vld [vmem:[#allocation5 + $0x78] sm:$0xff]
      %v4694 = vld [vmem:[#allocation5 + $0x80] sm:$0xff]
      %v4695 = vld [vmem:[#allocation5 + $0x88] sm:$0xff]
      %v4696 = vld [vmem:[#allocation5 + $0x90] sm:$0xff]
      %v4697 = vld [vmem:[#allocation5 + $0x98] sm:$0xff]
      %v4698 = vpack.c.bf16 %v4683, %v4682
      %v4699 = vpack.c.bf16 %v4685, %v4684
      %v4700 = vpack.c.bf16 %v4687, %v4686
      %v4701 = vpack.c.bf16 %v4689, %v4688
      %v4702 = vpack.c.bf16 %v4691, %v4690
      %v4703 = vpack.c.bf16 %v4693, %v4692
      %v4704 = vpack.c.bf16 %v4695, %v4694
      %v4705 = vpack.c.bf16 %v4697, %v4696
      %s4706 = scalar_lea.vmem %s1, 960
      %v4707 = vld [vmem:[%s4706] sm:$0xf]
      %v4708 = vld [vmem:[%s4706 + $0x4] sm:$0xf]
      %v4709 = vld [vmem:[%s4706 + $0x8] sm:$0xf]
      %v4710 = vld [vmem:[%s4706 + $0xc] sm:$0xf]
      %v4711 = vld [vmem:[%s4706 + $0x10] sm:$0xf]
      %v4712 = vld [vmem:[%s4706 + $0x14] sm:$0xf]
      %v4713 = vld [vmem:[%s4706 + $0x18] sm:$0xf]
      %v4714 = vld [vmem:[%s4706 + $0x1c] sm:$0xf]
      %v4715 = vld [vmem:[%s4706 + $0x20] sm:$0xf]
      %v4716 = vld [vmem:[%s4706 + $0x24] sm:$0xf]
      %v4717 = vld [vmem:[%s4706 + $0x28] sm:$0xf]
      %v4718 = vld [vmem:[%s4706 + $0x2c] sm:$0xf]
      %v4719 = vld [vmem:[%s4706 + $0x30] sm:$0xf]
      %v4720 = vld [vmem:[%s4706 + $0x34] sm:$0xf]
      %v4721 = vld [vmem:[%s4706 + $0x38] sm:$0xf]
      %v4722 = vld [vmem:[%s4706 + $0x3c] sm:$0xf]
      %v4723 = vld [vmem:[#allocation5 + $0x21] sm:$0xff]
      %v4724 = vld [vmem:[#allocation5 + $0x29] sm:$0xff]
      %v4725 = vld [vmem:[#allocation5 + $0x31] sm:$0xff]
      %v4726 = vld [vmem:[#allocation5 + $0x39] sm:$0xff]
      %v4727 = vld [vmem:[#allocation5 + $0x41] sm:$0xff]
      %v4728 = vld [vmem:[#allocation5 + $0x49] sm:$0xff]
      %v4729 = vld [vmem:[#allocation5 + $0x51] sm:$0xff]
      %v4730 = vld [vmem:[#allocation5 + $0x59] sm:$0xff]
      %v4731 = vld [vmem:[#allocation5 + $0x61] sm:$0xff]
      %v4732 = vld [vmem:[#allocation5 + $0x69] sm:$0xff]
      %v4733 = vld [vmem:[#allocation5 + $0x71] sm:$0xff]
      %v4734 = vld [vmem:[#allocation5 + $0x79] sm:$0xff]
      %v4735 = vld [vmem:[#allocation5 + $0x81] sm:$0xff]
      %v4736 = vld [vmem:[#allocation5 + $0x89] sm:$0xff]
      %v4737 = vld [vmem:[#allocation5 + $0x91] sm:$0xff]
      %v4738 = vld [vmem:[#allocation5 + $0x99] sm:$0xff]
      %v4739 = vpack.c.bf16 %v4724, %v4723
      %v4740 = vpack.c.bf16 %v4726, %v4725
      %v4741 = vpack.c.bf16 %v4728, %v4727
      %v4742 = vpack.c.bf16 %v4730, %v4729
      %v4743 = vpack.c.bf16 %v4732, %v4731
      %v4744 = vpack.c.bf16 %v4734, %v4733
      %v4745 = vpack.c.bf16 %v4736, %v4735
      %v4746 = vpack.c.bf16 %v4738, %v4737
      %s4747 = scalar_lea.vmem %s1, 1024
      %v4748 = vld [vmem:[%s4747] sm:$0xf]
      %v4749 = vld [vmem:[%s4747 + $0x4] sm:$0xf]
      %v4750 = vld [vmem:[%s4747 + $0x8] sm:$0xf]
      %v4751 = vld [vmem:[%s4747 + $0xc] sm:$0xf]
      %v4752 = vld [vmem:[%s4747 + $0x10] sm:$0xf]
      %v4753 = vld [vmem:[%s4747 + $0x14] sm:$0xf]
      %v4754 = vld [vmem:[%s4747 + $0x18] sm:$0xf]
      %v4755 = vld [vmem:[%s4747 + $0x1c] sm:$0xf]
      %v4756 = vld [vmem:[%s4747 + $0x20] sm:$0xf]
      %v4757 = vld [vmem:[%s4747 + $0x24] sm:$0xf]
      %v4758 = vld [vmem:[%s4747 + $0x28] sm:$0xf]
      %v4759 = vld [vmem:[%s4747 + $0x2c] sm:$0xf]
      %v4760 = vld [vmem:[%s4747 + $0x30] sm:$0xf]
      %v4761 = vld [vmem:[%s4747 + $0x34] sm:$0xf]
      %v4762 = vld [vmem:[%s4747 + $0x38] sm:$0xf]
      %v4763 = vld [vmem:[%s4747 + $0x3c] sm:$0xf]
      %v4780 = vunpack.c.l.b16 %v4748
      %v4781 = vunpack.c.l.b16 %v4749
      %v4782 = vunpack.c.l.b16 %v4750
      %v4783 = vunpack.c.l.b16 %v4751
      %v4784 = vunpack.c.l.b16 %v4752
      %v4785 = vunpack.c.l.b16 %v4753
      %v4786 = vunpack.c.l.b16 %v4754
      %v4787 = vunpack.c.l.b16 %v4755
      %v4788 = vunpack.c.l.b16 %v4756
      %v4789 = vunpack.c.l.b16 %v4757
      %v4790 = vunpack.c.l.b16 %v4758
      %v4791 = vunpack.c.l.b16 %v4759
      %v4792 = vunpack.c.l.b16 %v4760
      %v4793 = vunpack.c.l.b16 %v4761
      %v4794 = vunpack.c.l.b16 %v4762
      %v4795 = vunpack.c.l.b16 %v4763
      %v4796 = vpack.c.b16 %v4781, %v4780
      %v4797 = vpack.c.b16 %v4783, %v4782
      %v4798 = vpack.c.b16 %v4785, %v4784
      %v4799 = vpack.c.b16 %v4787, %v4786
      %v4800 = vpack.c.b16 %v4789, %v4788
      %v4801 = vpack.c.b16 %v4791, %v4790
      %v4802 = vpack.c.b16 %v4793, %v4792
      %v4803 = vpack.c.b16 %v4795, %v4794
      %4812 = vmatprep.subr.bf16.mxu0 0
      %4813 = vmatpush1.bf16.msra.mxu0 %v4796
      %4814 = vmatprep.subr.bf16.mxu0 0
      %4815 = vmatpush1.bf16.msra.mxu0 %v4797
      %4816 = vmatprep.subr.bf16.mxu0 0
      %4817 = vmatpush1.bf16.msra.mxu0 %v4798
      %4818 = vmatprep.subr.bf16.mxu0 0
      %4819 = vmatpush1.bf16.msra.mxu0 %v4799
      %4820 = vmatprep.subr.bf16.mxu0 0
      %4821 = vmatpush1.bf16.msra.mxu0 %v4800
      %4822 = vmatprep.subr.bf16.mxu0 0
      %4823 = vmatpush1.bf16.msra.mxu0 %v4801
      %4824 = vmatprep.subr.bf16.mxu0 0
      %4825 = vmatpush1.bf16.msra.mxu0 %v4802
      %4826 = vmatprep.subr.bf16.mxu0 0
      %4827 = vmatpush1.bf16.msra.mxu0 %v4803
      %4828 = vmatprep.subr.bf16.mxu0 0
      %4829 = vmatpush1.bf16.msra.mxu0 0
      %4830 = vmatprep.subr.bf16.mxu0 0
      %4831 = vmatpush1.bf16.msra.mxu0 0
      %4832 = vmatprep.subr.bf16.mxu0 0
      %4833 = vmatpush1.bf16.msra.mxu0 0
      %4834 = vmatprep.subr.bf16.mxu0 0
      %4835 = vmatpush1.bf16.msra.mxu0 0
      %4836 = vmatprep.subr.bf16.mxu0 0
      %4837 = vmatpush1.bf16.msra.mxu0 0
      %4838 = vmatprep.subr.bf16.mxu0 0
      %4839 = vmatpush1.bf16.msra.mxu0 0
      %4840 = vmatprep.subr.bf16.mxu0 0
      %4841 = vmatpush1.bf16.msra.mxu0 0
      %4842 = vmatprep.subr.bf16.mxu0 0
      %4843 = vmatpush1.bf16.msra.mxu0 0
      %4844 = vmatprep.mubr.bf16.mxu0 0
      %4845 = vmatmul.mubr.bf16.gmra.mrb[0].mxu0 %v4739
      %v4846 = vpop.f32.mrb[0].mxu0
      %v4847 = vadd.f32 0.0, %v4846
      %v4848 = vpop.f32.mrb[0].mxu0
      %v4849 = vpop.f32.mrb[0].mxu0
      %v4850 = vadd.f32 0.0, %v4849
      %v4851 = vpop.f32.mrb[0].mxu0
      %4852 = vmatprep.mubr.bf16.mxu0 0
      %4853 = vmatmul.mubr.bf16.gmra.mrb[0].mxu0 %v4740
      %v4854 = vpop.f32.mrb[0].mxu0
      %v4855 = vadd.f32 0.0, %v4854
      %v4856 = vpop.f32.mrb[0].mxu0
      %v4857 = vpop.f32.mrb[0].mxu0
      %v4858 = vadd.f32 0.0, %v4857
      %v4859 = vpop.f32.mrb[0].mxu0
      %4860 = vmatprep.mubr.bf16.mxu0 0
      %4861 = vmatmul.mubr.bf16.gmra.mrb[0].mxu0 %v4741
      %v4862 = vpop.f32.mrb[0].mxu0
      %v4863 = vadd.f32 0.0, %v4862
      %v4864 = vpop.f32.mrb[0].mxu0
      %v4865 = vpop.f32.mrb[0].mxu0
      %v4866 = vadd.f32 0.0, %v4865
      %v4867 = vpop.f32.mrb[0].mxu0
      %4868 = vmatprep.mubr.bf16.mxu0 0
      %4869 = vmatmul.mubr.bf16.gmra.mrb[0].mxu0 %v4742
      %v4870 = vpop.f32.mrb[0].mxu0
      %v4871 = vadd.f32 0.0, %v4870
      %v4872 = vpop.f32.mrb[0].mxu0
      %v4873 = vpop.f32.mrb[0].mxu0
      %v4874 = vadd.f32 0.0, %v4873
      %v4875 = vpop.f32.mrb[0].mxu0
      %4876 = vmatprep.mubr.bf16.mxu0 0
      %4877 = vmatmul.mubr.bf16.gmra.mrb[0].mxu0 %v4743
      %v4878 = vpop.f32.mrb[0].mxu0
      %v4879 = vadd.f32 0.0, %v4878
      %v4880 = vpop.f32.mrb[0].mxu0
      %v4881 = vpop.f32.mrb[0].mxu0
      %v4882 = vadd.f32 0.0, %v4881
      %v4883 = vpop.f32.mrb[0].mxu0
      %4884 = vmatprep.mubr.bf16.mxu0 0
      %4885 = vmatmul.mubr.bf16.gmra.mrb[0].mxu0 %v4744
      %v4886 = vpop.f32.mrb[0].mxu0
      %v4887 = vadd.f32 0.0, %v4886
      %v4888 = vpop.f32.mrb[0].mxu0
      %v4889 = vpop.f32.mrb[0].mxu0
      %v4890 = vadd.f32 0.0, %v4889
      %v4891 = vpop.f32.mrb[0].mxu0
      %4892 = vmatprep.mubr.bf16.mxu0 0
      %4893 = vmatmul.mubr.bf16.gmra.mrb[0].mxu0 %v4745
      %v4894 = vpop.f32.mrb[0].mxu0
      %v4895 = vadd.f32 0.0, %v4894
      %v4896 = vpop.f32.mrb[0].mxu0
      %v4897 = vpop.f32.mrb[0].mxu0
      %v4898 = vadd.f32 0.0, %v4897
      %v4899 = vpop.f32.mrb[0].mxu0
      %4900 = vmatprep.mubr.bf16.mxu0 0
      %4901 = vmatmul.mubr.bf16.gmra.mrb[0].mxu0 %v4746
      %v4902 = vpop.f32.mrb[0].mxu0
      %v4903 = vadd.f32 0.0, %v4902
      %v4904 = vpop.f32.mrb[0].mxu0
      %v4905 = vpop.f32.mrb[0].mxu0
      %v4906 = vadd.f32 0.0, %v4905
      %v4907 = vpop.f32.mrb[0].mxu0
      %4908 = vdwg.mxu0
      %v4909 = vld [vmem:[#allocation5 + $0x22] sm:$0xff]
      %v4910 = vld [vmem:[#allocation5 + $0x2a] sm:$0xff]
      %v4911 = vld [vmem:[#allocation5 + $0x32] sm:$0xff]
      %v4912 = vld [vmem:[#allocation5 + $0x3a] sm:$0xff]
      %v4913 = vld [vmem:[#allocation5 + $0x42] sm:$0xff]
      %v4914 = vld [vmem:[#allocation5 + $0x4a] sm:$0xff]
      %v4915 = vld [vmem:[#allocation5 + $0x52] sm:$0xff]
      %v4916 = vld [vmem:[#allocation5 + $0x5a] sm:$0xff]
      %v4917 = vld [vmem:[#allocation5 + $0x62] sm:$0xff]
      %v4918 = vld [vmem:[#allocation5 + $0x6a] sm:$0xff]
      %v4919 = vld [vmem:[#allocation5 + $0x72] sm:$0xff]
      %v4920 = vld [vmem:[#allocation5 + $0x7a] sm:$0xff]
      %v4921 = vld [vmem:[#allocation5 + $0x82] sm:$0xff]
      %v4922 = vld [vmem:[#allocation5 + $0x8a] sm:$0xff]
      %v4923 = vld [vmem:[#allocation5 + $0x92] sm:$0xff]
      %v4924 = vld [vmem:[#allocation5 + $0x9a] sm:$0xff]
      %v4925 = vpack.c.bf16 %v4910, %v4909
      %v4926 = vpack.c.bf16 %v4912, %v4911
      %v4927 = vpack.c.bf16 %v4914, %v4913
      %v4928 = vpack.c.bf16 %v4916, %v4915
      %v4929 = vpack.c.bf16 %v4918, %v4917
      %v4930 = vpack.c.bf16 %v4920, %v4919
      %v4931 = vpack.c.bf16 %v4922, %v4921
      %v4932 = vpack.c.bf16 %v4924, %v4923
      %s4933 = scalar_lea.vmem %s1, 1088
      %v4934 = vld [vmem:[%s4933] sm:$0xf]
      %v4935 = vld [vmem:[%s4933 + $0x4] sm:$0xf]
      %v4936 = vld [vmem:[%s4933 + $0x8] sm:$0xf]
      %v4937 = vld [vmem:[%s4933 + $0xc] sm:$0xf]
      %v4938 = vld [vmem:[%s4933 + $0x10] sm:$0xf]
      %v4939 = vld [vmem:[%s4933 + $0x14] sm:$0xf]
      %v4940 = vld [vmem:[%s4933 + $0x18] sm:$0xf]
      %v4941 = vld [vmem:[%s4933 + $0x1c] sm:$0xf]
      %v4942 = vld [vmem:[%s4933 + $0x20] sm:$0xf]
      %v4943 = vld [vmem:[%s4933 + $0x24] sm:$0xf]
      %v4944 = vld [vmem:[%s4933 + $0x28] sm:$0xf]
      %v4945 = vld [vmem:[%s4933 + $0x2c] sm:$0xf]
      %v4946 = vld [vmem:[%s4933 + $0x30] sm:$0xf]
      %v4947 = vld [vmem:[%s4933 + $0x34] sm:$0xf]
      %v4948 = vld [vmem:[%s4933 + $0x38] sm:$0xf]
      %v4949 = vld [vmem:[%s4933 + $0x3c] sm:$0xf]
      %v4966 = vunpack.c.l.b16 %v4934
      %v4967 = vunpack.c.l.b16 %v4935
      %v4968 = vunpack.c.l.b16 %v4936
      %v4969 = vunpack.c.l.b16 %v4937
      %v4970 = vunpack.c.l.b16 %v4938
      %v4971 = vunpack.c.l.b16 %v4939
      %v4972 = vunpack.c.l.b16 %v4940
      %v4973 = vunpack.c.l.b16 %v4941
      %v4974 = vunpack.c.l.b16 %v4942
      %v4975 = vunpack.c.l.b16 %v4943
      %v4976 = vunpack.c.l.b16 %v4944
      %v4977 = vunpack.c.l.b16 %v4945
      %v4978 = vunpack.c.l.b16 %v4946
      %v4979 = vunpack.c.l.b16 %v4947
      %v4980 = vunpack.c.l.b16 %v4948
      %v4981 = vunpack.c.l.b16 %v4949
      %v4982 = vpack.c.b16 %v4967, %v4966
      %v4983 = vpack.c.b16 %v4969, %v4968
      %v4984 = vpack.c.b16 %v4971, %v4970
      %v4985 = vpack.c.b16 %v4973, %v4972
      %v4986 = vpack.c.b16 %v4975, %v4974
      %v4987 = vpack.c.b16 %v4977, %v4976
      %v4988 = vpack.c.b16 %v4979, %v4978
      %v4989 = vpack.c.b16 %v4981, %v4980
      %4998 = vmatprep.subr.bf16.mxu0 0
      %4999 = vmatpush1.bf16.msra.mxu0 %v4982
      %5000 = vmatprep.subr.bf16.mxu0 0
      %5001 = vmatpush1.bf16.msra.mxu0 %v4983
      %5002 = vmatprep.subr.bf16.mxu0 0
      %5003 = vmatpush1.bf16.msra.mxu0 %v4984
      %5004 = vmatprep.subr.bf16.mxu0 0
      %5005 = vmatpush1.bf16.msra.mxu0 %v4985
      %5006 = vmatprep.subr.bf16.mxu0 0
      %5007 = vmatpush1.bf16.msra.mxu0 %v4986
      %5008 = vmatprep.subr.bf16.mxu0 0
      %5009 = vmatpush1.bf16.msra.mxu0 %v4987
      %5010 = vmatprep.subr.bf16.mxu0 0
      %5011 = vmatpush1.bf16.msra.mxu0 %v4988
      %5012 = vmatprep.subr.bf16.mxu0 0
      %5013 = vmatpush1.bf16.msra.mxu0 %v4989
      %5014 = vmatprep.subr.bf16.mxu0 0
      %5015 = vmatpush1.bf16.msra.mxu0 0
      %5016 = vmatprep.subr.bf16.mxu0 0
      %5017 = vmatpush1.bf16.msra.mxu0 0
      %5018 = vmatprep.subr.bf16.mxu0 0
      %5019 = vmatpush1.bf16.msra.mxu0 0
      %5020 = vmatprep.subr.bf16.mxu0 0
      %5021 = vmatpush1.bf16.msra.mxu0 0
      %5022 = vmatprep.subr.bf16.mxu0 0
      %5023 = vmatpush1.bf16.msra.mxu0 0
      %5024 = vmatprep.subr.bf16.mxu0 0
      %5025 = vmatpush1.bf16.msra.mxu0 0
      %5026 = vmatprep.subr.bf16.mxu0 0
      %5027 = vmatpush1.bf16.msra.mxu0 0
      %5028 = vmatprep.subr.bf16.mxu0 0
      %5029 = vmatpush1.bf16.msra.mxu0 0
      %5030 = vmatprep.mubr.bf16.mxu0 0
      %5031 = vmatmul.mubr.bf16.gmra.mrb[0].mxu0 %v4925
      %v5032 = vpop.f32.mrb[0].mxu0
      %v5033 = vadd.f32 0.0, %v5032
      %v5034 = vpop.f32.mrb[0].mxu0
      %v5035 = vpop.f32.mrb[0].mxu0
      %v5036 = vadd.f32 0.0, %v5035
      %v5037 = vpop.f32.mrb[0].mxu0
      %5038 = vmatprep.mubr.bf16.mxu0 0
      %5039 = vmatmul.mubr.bf16.gmra.mrb[0].mxu0 %v4926
      %v5040 = vpop.f32.mrb[0].mxu0
      %v5041 = vadd.f32 0.0, %v5040
      %v5042 = vpop.f32.mrb[0].mxu0
      %v5043 = vpop.f32.mrb[0].mxu0
      %v5044 = vadd.f32 0.0, %v5043
      %v5045 = vpop.f32.mrb[0].mxu0
      %5046 = vmatprep.mubr.bf16.mxu0 0
      %5047 = vmatmul.mubr.bf16.gmra.mrb[0].mxu0 %v4927
      %v5048 = vpop.f32.mrb[0].mxu0
      %v5049 = vadd.f32 0.0, %v5048
      %v5050 = vpop.f32.mrb[0].mxu0
      %v5051 = vpop.f32.mrb[0].mxu0
      %v5052 = vadd.f32 0.0, %v5051
      %v5053 = vpop.f32.mrb[0].mxu0
      %5054 = vmatprep.mubr.bf16.mxu0 0
      %5055 = vmatmul.mubr.bf16.gmra.mrb[0].mxu0 %v4928
      %v5056 = vpop.f32.mrb[0].mxu0
      %v5057 = vadd.f32 0.0, %v5056
      %v5058 = vpop.f32.mrb[0].mxu0
      %v5059 = vpop.f32.mrb[0].mxu0
      %v5060 = vadd.f32 0.0, %v5059
      %v5061 = vpop.f32.mrb[0].mxu0
      %5062 = vmatprep.mubr.bf16.mxu0 0
      %5063 = vmatmul.mubr.bf16.gmra.mrb[0].mxu0 %v4929
      %v5064 = vpop.f32.mrb[0].mxu0
      %v5065 = vadd.f32 0.0, %v5064
      %v5066 = vpop.f32.mrb[0].mxu0
      %v5067 = vpop.f32.mrb[0].mxu0
      %v5068 = vadd.f32 0.0, %v5067
      %v5069 = vpop.f32.mrb[0].mxu0
      %5070 = vmatprep.mubr.bf16.mxu0 0
      %5071 = vmatmul.mubr.bf16.gmra.mrb[0].mxu0 %v4930
      %v5072 = vpop.f32.mrb[0].mxu0
      %v5073 = vadd.f32 0.0, %v5072
      %v5074 = vpop.f32.mrb[0].mxu0
      %v5075 = vpop.f32.mrb[0].mxu0
      %v5076 = vadd.f32 0.0, %v5075
      %v5077 = vpop.f32.mrb[0].mxu0
      %5078 = vmatprep.mubr.bf16.mxu0 0
      %5079 = vmatmul.mubr.bf16.gmra.mrb[0].mxu0 %v4931
      %v5080 = vpop.f32.mrb[0].mxu0
      %v5081 = vadd.f32 0.0, %v5080
      %v5082 = vpop.f32.mrb[0].mxu0
      %v5083 = vpop.f32.mrb[0].mxu0
      %v5084 = vadd.f32 0.0, %v5083
      %v5085 = vpop.f32.mrb[0].mxu0
      %5086 = vmatprep.mubr.bf16.mxu0 0
      %5087 = vmatmul.mubr.bf16.gmra.mrb[0].mxu0 %v4932
      %v5088 = vpop.f32.mrb[0].mxu0
      %v5089 = vadd.f32 0.0, %v5088
      %v5090 = vpop.f32.mrb[0].mxu0
      %v5091 = vpop.f32.mrb[0].mxu0
      %v5092 = vadd.f32 0.0, %v5091
      %v5093 = vpop.f32.mrb[0].mxu0
      %5094 = vdwg.mxu0
      %v5111 = vunpack.c.l.b16 %v4026
      %v5112 = vunpack.c.l.b16 %v4027
      %v5113 = vunpack.c.l.b16 %v4028
      %v5114 = vunpack.c.l.b16 %v4029
      %v5115 = vunpack.c.l.b16 %v4030
      %v5116 = vunpack.c.l.b16 %v4031
      %v5117 = vunpack.c.l.b16 %v4032
      %v5118 = vunpack.c.l.b16 %v4033
      %v5119 = vunpack.c.l.b16 %v4034
      %v5120 = vunpack.c.l.b16 %v4035
      %v5121 = vunpack.c.l.b16 %v4036
      %v5122 = vunpack.c.l.b16 %v4037
      %v5123 = vunpack.c.l.b16 %v4038
      %v5124 = vunpack.c.l.b16 %v4039
      %v5125 = vunpack.c.l.b16 %v4040
      %v5126 = vunpack.c.l.b16 %v4041
      %v5127 = vpack.c.b16 %v5112, %v5111
      %v5128 = vpack.c.b16 %v5114, %v5113
      %v5129 = vpack.c.b16 %v5116, %v5115
      %v5130 = vpack.c.b16 %v5118, %v5117
      %v5131 = vpack.c.b16 %v5120, %v5119
      %v5132 = vpack.c.b16 %v5122, %v5121
      %v5133 = vpack.c.b16 %v5124, %v5123
      %v5134 = vpack.c.b16 %v5126, %v5125
      %5143 = vmatprep.subr.bf16.mxu0 0
      %5144 = vmatpush1.bf16.msra.mxu0 %v5127
      %5145 = vmatprep.subr.bf16.mxu0 0
      %5146 = vmatpush1.bf16.msra.mxu0 %v5128
      %5147 = vmatprep.subr.bf16.mxu0 0
      %5148 = vmatpush1.bf16.msra.mxu0 %v5129
      %5149 = vmatprep.subr.bf16.mxu0 0
      %5150 = vmatpush1.bf16.msra.mxu0 %v5130
      %5151 = vmatprep.subr.bf16.mxu0 0
      %5152 = vmatpush1.bf16.msra.mxu0 %v5131
      %5153 = vmatprep.subr.bf16.mxu0 0
      %5154 = vmatpush1.bf16.msra.mxu0 %v5132
      %5155 = vmatprep.subr.bf16.mxu0 0
      %5156 = vmatpush1.bf16.msra.mxu0 %v5133
      %5157 = vmatprep.subr.bf16.mxu0 0
      %5158 = vmatpush1.bf16.msra.mxu0 %v5134
      %5159 = vmatprep.subr.bf16.mxu0 0
      %5160 = vmatpush1.bf16.msra.mxu0 0
      %5161 = vmatprep.subr.bf16.mxu0 0
      %5162 = vmatpush1.bf16.msra.mxu0 0
      %5163 = vmatprep.subr.bf16.mxu0 0
      %5164 = vmatpush1.bf16.msra.mxu0 0
      %5165 = vmatprep.subr.bf16.mxu0 0
      %5166 = vmatpush1.bf16.msra.mxu0 0
      %5167 = vmatprep.subr.bf16.mxu0 0
      %5168 = vmatpush1.bf16.msra.mxu0 0
      %5169 = vmatprep.subr.bf16.mxu0 0
      %5170 = vmatpush1.bf16.msra.mxu0 0
      %5171 = vmatprep.subr.bf16.mxu0 0
      %5172 = vmatpush1.bf16.msra.mxu0 0
      %5173 = vmatprep.subr.bf16.mxu0 0
      %5174 = vmatpush1.bf16.msra.mxu0 0
      %5175 = vmatprep.mubr.bf16.mxu0 0
      %5176 = vmatmul.mubr.bf16.gmra.mrb[0].mxu0 %v4017
      %v5177 = vpop.f32.mrb[0].mxu0
      %v5178 = vadd.f32 %v4166, %v5177
      %v5179 = vpop.f32.mrb[0].mxu0
      %v5180 = vpop.f32.mrb[0].mxu0
      %v5181 = vadd.f32 %v4169, %v5180
      %v5182 = vpop.f32.mrb[0].mxu0
      %5183 = vmatprep.mubr.bf16.mxu0 0
      %5184 = vmatmul.mubr.bf16.gmra.mrb[0].mxu0 %v4018
      %v5185 = vpop.f32.mrb[0].mxu0
      %v5186 = vadd.f32 %v4174, %v5185
      %v5187 = vpop.f32.mrb[0].mxu0
      %v5188 = vpop.f32.mrb[0].mxu0
      %v5189 = vadd.f32 %v4177, %v5188
      %v5190 = vpop.f32.mrb[0].mxu0
      %5191 = vmatprep.mubr.bf16.mxu0 0
      %5192 = vmatmul.mubr.bf16.gmra.mrb[0].mxu0 %v4019
      %v5193 = vpop.f32.mrb[0].mxu0
      %v5194 = vadd.f32 %v4182, %v5193
      %v5195 = vpop.f32.mrb[0].mxu0
      %v5196 = vpop.f32.mrb[0].mxu0
      %v5197 = vadd.f32 %v4185, %v5196
      %v5198 = vpop.f32.mrb[0].mxu0
      %5199 = vmatprep.mubr.bf16.mxu0 0
      %5200 = vmatmul.mubr.bf16.gmra.mrb[0].mxu0 %v4020
      %v5201 = vpop.f32.mrb[0].mxu0
      %v5202 = vadd.f32 %v4190, %v5201
      %v5203 = vpop.f32.mrb[0].mxu0
      %v5204 = vpop.f32.mrb[0].mxu0
      %v5205 = vadd.f32 %v4193, %v5204
      %v5206 = vpop.f32.mrb[0].mxu0
      %5207 = vmatprep.mubr.bf16.mxu0 0
      %5208 = vmatmul.mubr.bf16.gmra.mrb[0].mxu0 %v4021
      %v5209 = vpop.f32.mrb[0].mxu0
      %v5210 = vadd.f32 %v4198, %v5209
      %v5211 = vpop.f32.mrb[0].mxu0
      %v5212 = vpop.f32.mrb[0].mxu0
      %v5213 = vadd.f32 %v4201, %v5212
      %v5214 = vpop.f32.mrb[0].mxu0
      %5215 = vmatprep.mubr.bf16.mxu0 0
      %5216 = vmatmul.mubr.bf16.gmra.mrb[0].mxu0 %v4022
      %v5217 = vpop.f32.mrb[0].mxu0
      %v5218 = vadd.f32 %v4206, %v5217
      %v5219 = vpop.f32.mrb[0].mxu0
      %v5220 = vpop.f32.mrb[0].mxu0
      %v5221 = vadd.f32 %v4209, %v5220
      %v5222 = vpop.f32.mrb[0].mxu0
      %5223 = vmatprep.mubr.bf16.mxu0 0
      %5224 = vmatmul.mubr.bf16.gmra.mrb[0].mxu0 %v4023
      %v5225 = vpop.f32.mrb[0].mxu0
      %v5226 = vadd.f32 %v4214, %v5225
      %v5227 = vpop.f32.mrb[0].mxu0
      %v5228 = vpop.f32.mrb[0].mxu0
      %v5229 = vadd.f32 %v4217, %v5228
      %v5230 = vpop.f32.mrb[0].mxu0
      %5231 = vmatprep.mubr.bf16.mxu0 0
      %5232 = vmatmul.mubr.bf16.gmra.mrb[0].mxu0 %v4024
      %v5233 = vpop.f32.mrb[0].mxu0
      %v5234 = vadd.f32 %v4222, %v5233
      %v5235 = vpop.f32.mrb[0].mxu0
      %v5236 = vpop.f32.mrb[0].mxu0
      %v5237 = vadd.f32 %v4225, %v5236
      %v5238 = vpop.f32.mrb[0].mxu0
      %5239 = vdwg.mxu0
      %v5256 = vunpack.c.l.b16 %v4253
      %v5257 = vunpack.c.l.b16 %v4254
      %v5258 = vunpack.c.l.b16 %v4255
      %v5259 = vunpack.c.l.b16 %v4256
      %v5260 = vunpack.c.l.b16 %v4257
      %v5261 = vunpack.c.l.b16 %v4258
      %v5262 = vunpack.c.l.b16 %v4259
      %v5263 = vunpack.c.l.b16 %v4260
      %v5264 = vunpack.c.l.b16 %v4261
      %v5265 = vunpack.c.l.b16 %v4262
      %v5266 = vunpack.c.l.b16 %v4263
      %v5267 = vunpack.c.l.b16 %v4264
      %v5268 = vunpack.c.l.b16 %v4265
      %v5269 = vunpack.c.l.b16 %v4266
      %v5270 = vunpack.c.l.b16 %v4267
      %v5271 = vunpack.c.l.b16 %v4268
      %v5272 = vpack.c.b16 %v5257, %v5256
      %v5273 = vpack.c.b16 %v5259, %v5258
      %v5274 = vpack.c.b16 %v5261, %v5260
      %v5275 = vpack.c.b16 %v5263, %v5262
      %v5276 = vpack.c.b16 %v5265, %v5264
      %v5277 = vpack.c.b16 %v5267, %v5266
      %v5278 = vpack.c.b16 %v5269, %v5268
      %v5279 = vpack.c.b16 %v5271, %v5270
      %5288 = vmatprep.subr.bf16.mxu0 0
      %5289 = vmatpush1.bf16.msra.mxu0 %v5272
      %5290 = vmatprep.subr.bf16.mxu0 0
      %5291 = vmatpush1.bf16.msra.mxu0 %v5273
      %5292 = vmatprep.subr.bf16.mxu0 0
      %5293 = vmatpush1.bf16.msra.mxu0 %v5274
      %5294 = vmatprep.subr.bf16.mxu0 0
      %5295 = vmatpush1.bf16.msra.mxu0 %v5275
      %5296 = vmatprep.subr.bf16.mxu0 0
      %5297 = vmatpush1.bf16.msra.mxu0 %v5276
      %5298 = vmatprep.subr.bf16.mxu0 0
      %5299 = vmatpush1.bf16.msra.mxu0 %v5277
      %5300 = vmatprep.subr.bf16.mxu0 0
      %5301 = vmatpush1.bf16.msra.mxu0 %v5278
      %5302 = vmatprep.subr.bf16.mxu0 0
      %5303 = vmatpush1.bf16.msra.mxu0 %v5279
      %5304 = vmatprep.subr.bf16.mxu0 0
      %5305 = vmatpush1.bf16.msra.mxu0 0
      %5306 = vmatprep.subr.bf16.mxu0 0
      %5307 = vmatpush1.bf16.msra.mxu0 0
      %5308 = vmatprep.subr.bf16.mxu0 0
      %5309 = vmatpush1.bf16.msra.mxu0 0
      %5310 = vmatprep.subr.bf16.mxu0 0
      %5311 = vmatpush1.bf16.msra.mxu0 0
      %5312 = vmatprep.subr.bf16.mxu0 0
      %5313 = vmatpush1.bf16.msra.mxu0 0
      %5314 = vmatprep.subr.bf16.mxu0 0
      %5315 = vmatpush1.bf16.msra.mxu0 0
      %5316 = vmatprep.subr.bf16.mxu0 0
      %5317 = vmatpush1.bf16.msra.mxu0 0
      %5318 = vmatprep.subr.bf16.mxu0 0
      %5319 = vmatpush1.bf16.msra.mxu0 0
      %5320 = vmatprep.mubr.bf16.mxu0 0
      %5321 = vmatmul.mubr.bf16.gmra.mrb[0].mxu0 %v4244
      %v5322 = vpop.f32.mrb[0].mxu0
      %v5323 = vadd.f32 %v4393, %v5322
      %v5324 = vpop.f32.mrb[0].mxu0
      %v5325 = vpop.f32.mrb[0].mxu0
      %v5326 = vadd.f32 %v4396, %v5325
      %v5327 = vpop.f32.mrb[0].mxu0
      %5328 = vmatprep.mubr.bf16.mxu0 0
      %5329 = vmatmul.mubr.bf16.gmra.mrb[0].mxu0 %v4245
      %v5330 = vpop.f32.mrb[0].mxu0
      %v5331 = vadd.f32 %v4401, %v5330
      %v5332 = vpop.f32.mrb[0].mxu0
      %v5333 = vpop.f32.mrb[0].mxu0
      %v5334 = vadd.f32 %v4404, %v5333
      %v5335 = vpop.f32.mrb[0].mxu0
      %5336 = vmatprep.mubr.bf16.mxu0 0
      %5337 = vmatmul.mubr.bf16.gmra.mrb[0].mxu0 %v4246
      %v5338 = vpop.f32.mrb[0].mxu0
      %v5339 = vadd.f32 %v4409, %v5338
      %v5340 = vpop.f32.mrb[0].mxu0
      %v5341 = vpop.f32.mrb[0].mxu0
      %v5342 = vadd.f32 %v4412, %v5341
      %v5343 = vpop.f32.mrb[0].mxu0
      %5344 = vmatprep.mubr.bf16.mxu0 0
      %5345 = vmatmul.mubr.bf16.gmra.mrb[0].mxu0 %v4247
      %v5346 = vpop.f32.mrb[0].mxu0
      %v5347 = vadd.f32 %v4417, %v5346
      %v5348 = vpop.f32.mrb[0].mxu0
      %v5349 = vpop.f32.mrb[0].mxu0
      %v5350 = vadd.f32 %v4420, %v5349
      %v5351 = vpop.f32.mrb[0].mxu0
      %5352 = vmatprep.mubr.bf16.mxu0 0
      %5353 = vmatmul.mubr.bf16.gmra.mrb[0].mxu0 %v4248
      %v5354 = vpop.f32.mrb[0].mxu0
      %v5355 = vadd.f32 %v4425, %v5354
      %v5356 = vpop.f32.mrb[0].mxu0
      %v5357 = vpop.f32.mrb[0].mxu0
      %v5358 = vadd.f32 %v4428, %v5357
      %v5359 = vpop.f32.mrb[0].mxu0
      %5360 = vmatprep.mubr.bf16.mxu0 0
      %5361 = vmatmul.mubr.bf16.gmra.mrb[0].mxu0 %v4249
      %v5362 = vpop.f32.mrb[0].mxu0
      %v5363 = vadd.f32 %v4433, %v5362
      %v5364 = vpop.f32.mrb[0].mxu0
      %v5365 = vpop.f32.mrb[0].mxu0
      %v5366 = vadd.f32 %v4436, %v5365
      %v5367 = vpop.f32.mrb[0].mxu0
      %5368 = vmatprep.mubr.bf16.mxu0 0
      %5369 = vmatmul.mubr.bf16.gmra.mrb[0].mxu0 %v4250
      %v5370 = vpop.f32.mrb[0].mxu0
      %v5371 = vadd.f32 %v4441, %v5370
      %v5372 = vpop.f32.mrb[0].mxu0
      %v5373 = vpop.f32.mrb[0].mxu0
      %v5374 = vadd.f32 %v4444, %v5373
      %v5375 = vpop.f32.mrb[0].mxu0
      %5376 = vmatprep.mubr.bf16.mxu0 0
      %5377 = vmatmul.mubr.bf16.gmra.mrb[0].mxu0 %v4251
      %v5378 = vpop.f32.mrb[0].mxu0
      %v5379 = vadd.f32 %v4449, %v5378
      %v5380 = vpop.f32.mrb[0].mxu0
      %v5381 = vpop.f32.mrb[0].mxu0
      %v5382 = vadd.f32 %v4452, %v5381
      %v5383 = vpop.f32.mrb[0].mxu0
      %5384 = vdwg.mxu0
      %v5401 = vunpack.c.l.b16 %v4480
      %v5402 = vunpack.c.l.b16 %v4481
      %v5403 = vunpack.c.l.b16 %v4482
      %v5404 = vunpack.c.l.b16 %v4483
      %v5405 = vunpack.c.l.b16 %v4484
      %v5406 = vunpack.c.l.b16 %v4485
      %v5407 = vunpack.c.l.b16 %v4486
      %v5408 = vunpack.c.l.b16 %v4487
      %v5409 = vunpack.c.l.b16 %v4488
      %v5410 = vunpack.c.l.b16 %v4489
      %v5411 = vunpack.c.l.b16 %v4490
      %v5412 = vunpack.c.l.b16 %v4491
      %v5413 = vunpack.c.l.b16 %v4492
      %v5414 = vunpack.c.l.b16 %v4493
      %v5415 = vunpack.c.l.b16 %v4494
      %v5416 = vunpack.c.l.b16 %v4495
      %v5417 = vpack.c.b16 %v5402, %v5401
      %v5418 = vpack.c.b16 %v5404, %v5403
      %v5419 = vpack.c.b16 %v5406, %v5405
      %v5420 = vpack.c.b16 %v5408, %v5407
      %v5421 = vpack.c.b16 %v5410, %v5409
      %v5422 = vpack.c.b16 %v5412, %v5411
      %v5423 = vpack.c.b16 %v5414, %v5413
      %v5424 = vpack.c.b16 %v5416, %v5415
      %5433 = vmatprep.subr.bf16.mxu0 0
      %5434 = vmatpush1.bf16.msra.mxu0 %v5417
      %5435 = vmatprep.subr.bf16.mxu0 0
      %5436 = vmatpush1.bf16.msra.mxu0 %v5418
      %5437 = vmatprep.subr.bf16.mxu0 0
      %5438 = vmatpush1.bf16.msra.mxu0 %v5419
      %5439 = vmatprep.subr.bf16.mxu0 0
      %5440 = vmatpush1.bf16.msra.mxu0 %v5420
      %5441 = vmatprep.subr.bf16.mxu0 0
      %5442 = vmatpush1.bf16.msra.mxu0 %v5421
      %5443 = vmatprep.subr.bf16.mxu0 0
      %5444 = vmatpush1.bf16.msra.mxu0 %v5422
      %5445 = vmatprep.subr.bf16.mxu0 0
      %5446 = vmatpush1.bf16.msra.mxu0 %v5423
      %5447 = vmatprep.subr.bf16.mxu0 0
      %5448 = vmatpush1.bf16.msra.mxu0 %v5424
      %5449 = vmatprep.subr.bf16.mxu0 0
      %5450 = vmatpush1.bf16.msra.mxu0 0
      %5451 = vmatprep.subr.bf16.mxu0 0
      %5452 = vmatpush1.bf16.msra.mxu0 0
      %5453 = vmatprep.subr.bf16.mxu0 0
      %5454 = vmatpush1.bf16.msra.mxu0 0
      %5455 = vmatprep.subr.bf16.mxu0 0
      %5456 = vmatpush1.bf16.msra.mxu0 0
      %5457 = vmatprep.subr.bf16.mxu0 0
      %5458 = vmatpush1.bf16.msra.mxu0 0
      %5459 = vmatprep.subr.bf16.mxu0 0
      %5460 = vmatpush1.bf16.msra.mxu0 0
      %5461 = vmatprep.subr.bf16.mxu0 0
      %5462 = vmatpush1.bf16.msra.mxu0 0
      %5463 = vmatprep.subr.bf16.mxu0 0
      %5464 = vmatpush1.bf16.msra.mxu0 0
      %5465 = vmatprep.mubr.bf16.mxu0 0
      %5466 = vmatmul.mubr.bf16.gmra.mrb[0].mxu0 %v4471
      %v5467 = vpop.f32.mrb[0].mxu0
      %v5468 = vadd.f32 %v4620, %v5467
      %v5469 = vpop.f32.mrb[0].mxu0
      %v5470 = vpop.f32.mrb[0].mxu0
      %v5471 = vadd.f32 %v4623, %v5470
      %v5472 = vpop.f32.mrb[0].mxu0
      %5473 = vmatprep.mubr.bf16.mxu0 0
      %5474 = vmatmul.mubr.bf16.gmra.mrb[0].mxu0 %v4472
      %v5475 = vpop.f32.mrb[0].mxu0
      %v5476 = vadd.f32 %v4628, %v5475
      %v5477 = vpop.f32.mrb[0].mxu0
      %v5478 = vpop.f32.mrb[0].mxu0
      %v5479 = vadd.f32 %v4631, %v5478
      %v5480 = vpop.f32.mrb[0].mxu0
      %5481 = vmatprep.mubr.bf16.mxu0 0
      %5482 = vmatmul.mubr.bf16.gmra.mrb[0].mxu0 %v4473
      %v5483 = vpop.f32.mrb[0].mxu0
      %v5484 = vadd.f32 %v4636, %v5483
      %v5485 = vpop.f32.mrb[0].mxu0
      %v5486 = vpop.f32.mrb[0].mxu0
      %v5487 = vadd.f32 %v4639, %v5486
      %v5488 = vpop.f32.mrb[0].mxu0
      %5489 = vmatprep.mubr.bf16.mxu0 0
      %5490 = vmatmul.mubr.bf16.gmra.mrb[0].mxu0 %v4474
      %v5491 = vpop.f32.mrb[0].mxu0
      %v5492 = vadd.f32 %v4644, %v5491
      %v5493 = vpop.f32.mrb[0].mxu0
      %v5494 = vpop.f32.mrb[0].mxu0
      %v5495 = vadd.f32 %v4647, %v5494
      %v5496 = vpop.f32.mrb[0].mxu0
      %5497 = vmatprep.mubr.bf16.mxu0 0
      %5498 = vmatmul.mubr.bf16.gmra.mrb[0].mxu0 %v4475
      %v5499 = vpop.f32.mrb[0].mxu0
      %v5500 = vadd.f32 %v4652, %v5499
      %v5501 = vpop.f32.mrb[0].mxu0
      %v5502 = vpop.f32.mrb[0].mxu0
      %v5503 = vadd.f32 %v4655, %v5502
      %v5504 = vpop.f32.mrb[0].mxu0
      %5505 = vmatprep.mubr.bf16.mxu0 0
      %5506 = vmatmul.mubr.bf16.gmra.mrb[0].mxu0 %v4476
      %v5507 = vpop.f32.mrb[0].mxu0
      %v5508 = vadd.f32 %v4660, %v5507
      %v5509 = vpop.f32.mrb[0].mxu0
      %v5510 = vpop.f32.mrb[0].mxu0
      %v5511 = vadd.f32 %v4663, %v5510
      %v5512 = vpop.f32.mrb[0].mxu0
      %5513 = vmatprep.mubr.bf16.mxu0 0
      %5514 = vmatmul.mubr.bf16.gmra.mrb[0].mxu0 %v4477
      %v5515 = vpop.f32.mrb[0].mxu0
      %v5516 = vadd.f32 %v4668, %v5515
      %v5517 = vpop.f32.mrb[0].mxu0
      %v5518 = vpop.f32.mrb[0].mxu0
      %v5519 = vadd.f32 %v4671, %v5518
      %v5520 = vpop.f32.mrb[0].mxu0
      %5521 = vmatprep.mubr.bf16.mxu0 0
      %5522 = vmatmul.mubr.bf16.gmra.mrb[0].mxu0 %v4478
      %v5523 = vpop.f32.mrb[0].mxu0
      %v5524 = vadd.f32 %v4676, %v5523
      %v5525 = vpop.f32.mrb[0].mxu0
      %v5526 = vpop.f32.mrb[0].mxu0
      %v5527 = vadd.f32 %v4679, %v5526
      %v5528 = vpop.f32.mrb[0].mxu0
      %5529 = vdwg.mxu0
      %v5546 = vunpack.c.l.b16 %v4707
      %v5547 = vunpack.c.l.b16 %v4708
      %v5548 = vunpack.c.l.b16 %v4709
      %v5549 = vunpack.c.l.b16 %v4710
      %v5550 = vunpack.c.l.b16 %v4711
      %v5551 = vunpack.c.l.b16 %v4712
      %v5552 = vunpack.c.l.b16 %v4713
      %v5553 = vunpack.c.l.b16 %v4714
      %v5554 = vunpack.c.l.b16 %v4715
      %v5555 = vunpack.c.l.b16 %v4716
      %v5556 = vunpack.c.l.b16 %v4717
      %v5557 = vunpack.c.l.b16 %v4718
      %v5558 = vunpack.c.l.b16 %v4719
      %v5559 = vunpack.c.l.b16 %v4720
      %v5560 = vunpack.c.l.b16 %v4721
      %v5561 = vunpack.c.l.b16 %v4722
      %v5562 = vpack.c.b16 %v5547, %v5546
      %v5563 = vpack.c.b16 %v5549, %v5548
      %v5564 = vpack.c.b16 %v5551, %v5550
      %v5565 = vpack.c.b16 %v5553, %v5552
      %v5566 = vpack.c.b16 %v5555, %v5554
      %v5567 = vpack.c.b16 %v5557, %v5556
      %v5568 = vpack.c.b16 %v5559, %v5558
      %v5569 = vpack.c.b16 %v5561, %v5560
      %5578 = vmatprep.subr.bf16.mxu0 0
      %5579 = vmatpush1.bf16.msra.mxu0 %v5562
      %5580 = vmatprep.subr.bf16.mxu0 0
      %5581 = vmatpush1.bf16.msra.mxu0 %v5563
      %5582 = vmatprep.subr.bf16.mxu0 0
      %5583 = vmatpush1.bf16.msra.mxu0 %v5564
      %5584 = vmatprep.subr.bf16.mxu0 0
      %5585 = vmatpush1.bf16.msra.mxu0 %v5565
      %5586 = vmatprep.subr.bf16.mxu0 0
      %5587 = vmatpush1.bf16.msra.mxu0 %v5566
      %5588 = vmatprep.subr.bf16.mxu0 0
      %5589 = vmatpush1.bf16.msra.mxu0 %v5567
      %5590 = vmatprep.subr.bf16.mxu0 0
      %5591 = vmatpush1.bf16.msra.mxu0 %v5568
      %5592 = vmatprep.subr.bf16.mxu0 0
      %5593 = vmatpush1.bf16.msra.mxu0 %v5569
      %5594 = vmatprep.subr.bf16.mxu0 0
      %5595 = vmatpush1.bf16.msra.mxu0 0
      %5596 = vmatprep.subr.bf16.mxu0 0
      %5597 = vmatpush1.bf16.msra.mxu0 0
      %5598 = vmatprep.subr.bf16.mxu0 0
      %5599 = vmatpush1.bf16.msra.mxu0 0
      %5600 = vmatprep.subr.bf16.mxu0 0
      %5601 = vmatpush1.bf16.msra.mxu0 0
      %5602 = vmatprep.subr.bf16.mxu0 0
      %5603 = vmatpush1.bf16.msra.mxu0 0
      %5604 = vmatprep.subr.bf16.mxu0 0
      %5605 = vmatpush1.bf16.msra.mxu0 0
      %5606 = vmatprep.subr.bf16.mxu0 0
      %5607 = vmatpush1.bf16.msra.mxu0 0
      %5608 = vmatprep.subr.bf16.mxu0 0
      %5609 = vmatpush1.bf16.msra.mxu0 0
      %5610 = vmatprep.mubr.bf16.mxu0 0
      %5611 = vmatmul.mubr.bf16.gmra.mrb[0].mxu0 %v4698
      %v5612 = vpop.f32.mrb[0].mxu0
      %v5613 = vadd.f32 %v4847, %v5612
      %v5614 = vpop.f32.mrb[0].mxu0
      %v5615 = vpop.f32.mrb[0].mxu0
      %v5616 = vadd.f32 %v4850, %v5615
      %v5617 = vpop.f32.mrb[0].mxu0
      %5618 = vmatprep.mubr.bf16.mxu0 0
      %5619 = vmatmul.mubr.bf16.gmra.mrb[0].mxu0 %v4699
      %v5620 = vpop.f32.mrb[0].mxu0
      %v5621 = vadd.f32 %v4855, %v5620
      %v5622 = vpop.f32.mrb[0].mxu0
      %v5623 = vpop.f32.mrb[0].mxu0
      %v5624 = vadd.f32 %v4858, %v5623
      %v5625 = vpop.f32.mrb[0].mxu0
      %5626 = vmatprep.mubr.bf16.mxu0 0
      %5627 = vmatmul.mubr.bf16.gmra.mrb[0].mxu0 %v4700
      %v5628 = vpop.f32.mrb[0].mxu0
      %v5629 = vadd.f32 %v4863, %v5628
      %v5630 = vpop.f32.mrb[0].mxu0
      %v5631 = vpop.f32.mrb[0].mxu0
      %v5632 = vadd.f32 %v4866, %v5631
      %v5633 = vpop.f32.mrb[0].mxu0
      %5634 = vmatprep.mubr.bf16.mxu0 0
      %5635 = vmatmul.mubr.bf16.gmra.mrb[0].mxu0 %v4701
      %v5636 = vpop.f32.mrb[0].mxu0
      %v5637 = vadd.f32 %v4871, %v5636
      %v5638 = vpop.f32.mrb[0].mxu0
      %v5639 = vpop.f32.mrb[0].mxu0
      %v5640 = vadd.f32 %v4874, %v5639
      %v5641 = vpop.f32.mrb[0].mxu0
      %5642 = vmatprep.mubr.bf16.mxu0 0
      %5643 = vmatmul.mubr.bf16.gmra.mrb[0].mxu0 %v4702
      %v5644 = vpop.f32.mrb[0].mxu0
      %v5645 = vadd.f32 %v4879, %v5644
      %v5646 = vpop.f32.mrb[0].mxu0
      %v5647 = vpop.f32.mrb[0].mxu0
      %v5648 = vadd.f32 %v4882, %v5647
      %v5649 = vpop.f32.mrb[0].mxu0
      %5650 = vmatprep.mubr.bf16.mxu0 0
      %5651 = vmatmul.mubr.bf16.gmra.mrb[0].mxu0 %v4703
      %v5652 = vpop.f32.mrb[0].mxu0
      %v5653 = vadd.f32 %v4887, %v5652
      %v5654 = vpop.f32.mrb[0].mxu0
      %v5655 = vpop.f32.mrb[0].mxu0
      %v5656 = vadd.f32 %v4890, %v5655
      %v5657 = vpop.f32.mrb[0].mxu0
      %5658 = vmatprep.mubr.bf16.mxu0 0
      %5659 = vmatmul.mubr.bf16.gmra.mrb[0].mxu0 %v4704
      %v5660 = vpop.f32.mrb[0].mxu0
      %v5661 = vadd.f32 %v4895, %v5660
      %v5662 = vpop.f32.mrb[0].mxu0
      %v5663 = vpop.f32.mrb[0].mxu0
      %v5664 = vadd.f32 %v4898, %v5663
      %v5665 = vpop.f32.mrb[0].mxu0
      %5666 = vmatprep.mubr.bf16.mxu0 0
      %5667 = vmatmul.mubr.bf16.gmra.mrb[0].mxu0 %v4705
      %v5668 = vpop.f32.mrb[0].mxu0
      %v5669 = vadd.f32 %v4903, %v5668
      %v5670 = vpop.f32.mrb[0].mxu0
      %v5671 = vpop.f32.mrb[0].mxu0
      %v5672 = vadd.f32 %v4906, %v5671
      %v5673 = vpop.f32.mrb[0].mxu0
      %5674 = vdwg.mxu0
      %v5675 = vadd.f32 %v5178, %v5323
      %v5676 = vadd.f32 %v5181, %v5326
      %v5677 = vadd.f32 %v5186, %v5331
      %v5678 = vadd.f32 %v5189, %v5334
      %v5679 = vadd.f32 %v5194, %v5339
      %v5680 = vadd.f32 %v5197, %v5342
      %v5681 = vadd.f32 %v5202, %v5347
      %v5682 = vadd.f32 %v5205, %v5350
      %v5683 = vadd.f32 %v5210, %v5355
      %v5684 = vadd.f32 %v5213, %v5358
      %v5685 = vadd.f32 %v5218, %v5363
      %v5686 = vadd.f32 %v5221, %v5366
      %v5687 = vadd.f32 %v5226, %v5371
      %v5688 = vadd.f32 %v5229, %v5374
      %v5689 = vadd.f32 %v5234, %v5379
      %v5690 = vadd.f32 %v5237, %v5382
      %v5691 = vadd.f32 %v5468, %v5613
      %v5692 = vadd.f32 %v5471, %v5616
      %v5693 = vadd.f32 %v5476, %v5621
      %v5694 = vadd.f32 %v5479, %v5624
      %v5695 = vadd.f32 %v5484, %v5629
      %v5696 = vadd.f32 %v5487, %v5632
      %v5697 = vadd.f32 %v5492, %v5637
      %v5698 = vadd.f32 %v5495, %v5640
      %v5699 = vadd.f32 %v5500, %v5645
      %v5700 = vadd.f32 %v5503, %v5648
      %v5701 = vadd.f32 %v5508, %v5653
      %v5702 = vadd.f32 %v5511, %v5656
      %v5703 = vadd.f32 %v5516, %v5661
      %v5704 = vadd.f32 %v5519, %v5664
      %v5705 = vadd.f32 %v5524, %v5669
      %v5706 = vadd.f32 %v5527, %v5672
      %v5707 = vadd.f32 %v5675, %v5691
      %v5708 = vadd.f32 %v5676, %v5692
      %v5709 = vadd.f32 %v5677, %v5693
      %v5710 = vadd.f32 %v5678, %v5694
      %v5711 = vadd.f32 %v5679, %v5695
      %v5712 = vadd.f32 %v5680, %v5696
      %v5713 = vadd.f32 %v5681, %v5697
      %v5714 = vadd.f32 %v5682, %v5698
      %v5715 = vadd.f32 %v5683, %v5699
      %v5716 = vadd.f32 %v5684, %v5700
      %v5717 = vadd.f32 %v5685, %v5701
      %v5718 = vadd.f32 %v5686, %v5702
      %v5719 = vadd.f32 %v5687, %v5703
      %v5720 = vadd.f32 %v5688, %v5704
      %v5721 = vadd.f32 %v5689, %v5705
      %v5722 = vadd.f32 %v5690, %v5706
      %v5723 = vadd.f32 %v5707, %v5033
      %v5724 = vadd.f32 %v5708, %v5036
      %v5725 = vadd.f32 %v5709, %v5041
      %v5726 = vadd.f32 %v5710, %v5044
      %v5727 = vadd.f32 %v5711, %v5049
      %v5728 = vadd.f32 %v5712, %v5052
      %v5729 = vadd.f32 %v5713, %v5057
      %v5730 = vadd.f32 %v5714, %v5060
      %v5731 = vadd.f32 %v5715, %v5065
      %v5732 = vadd.f32 %v5716, %v5068
      %v5733 = vadd.f32 %v5717, %v5073
      %v5734 = vadd.f32 %v5718, %v5076
      %v5735 = vadd.f32 %v5719, %v5081
      %v5736 = vadd.f32 %v5720, %v5084
      %v5737 = vadd.f32 %v5721, %v5089
      %v5738 = vadd.f32 %v5722, %v5092
      %s5739 = scalar_lea.vmem %s2, 1
      %v5740 = vld [vmem:[%s5739] sm:$0x1]
      %v5742 = vlaneseq
      %v5743 = vshrl.u32 %v5742, 7
      %v5744 = vsub.s32 0, %v5743
      %v5745 = vrot.slane %v5740, %v5744
      %v5747 = vadd.f32 %v5723, %v5745
      %v5748 = vadd.f32 %v5724, %v5745
      %v5749 = vadd.f32 %v5725, %v5745
      %v5750 = vadd.f32 %v5726, %v5745
      %v5751 = vadd.f32 %v5727, %v5745
      %v5752 = vadd.f32 %v5728, %v5745
      %v5753 = vadd.f32 %v5729, %v5745
      %v5754 = vadd.f32 %v5730, %v5745
      %v5755 = vadd.f32 %v5731, %v5745
      %v5756 = vadd.f32 %v5732, %v5745
      %v5757 = vadd.f32 %v5733, %v5745
      %v5758 = vadd.f32 %v5734, %v5745
      %v5759 = vadd.f32 %v5735, %v5745
      %v5760 = vadd.f32 %v5736, %v5745
      %v5761 = vadd.f32 %v5737, %v5745
      %v5762 = vadd.f32 %v5738, %v5745
      %v5763 = vmax.f32 %v5747, 0.0
      %v5764 = vmax.f32 %v5748, 0.0
      %v5765 = vmax.f32 %v5749, 0.0
      %v5766 = vmax.f32 %v5750, 0.0
      %v5767 = vmax.f32 %v5751, 0.0
      %v5768 = vmax.f32 %v5752, 0.0
      %v5769 = vmax.f32 %v5753, 0.0
      %v5770 = vmax.f32 %v5754, 0.0
      %v5771 = vmax.f32 %v5755, 0.0
      %v5772 = vmax.f32 %v5756, 0.0
      %v5773 = vmax.f32 %v5757, 0.0
      %v5774 = vmax.f32 %v5758, 0.0
      %v5775 = vmax.f32 %v5759, 0.0
      %v5776 = vmax.f32 %v5760, 0.0
      %v5777 = vmax.f32 %v5761, 0.0
      %v5778 = vmax.f32 %v5762, 0.0
      %5779 = vst [vmem:[#allocation3] sm:$0xff] %v5763
      %5780 = vst [vmem:[#allocation3 + $0x8] sm:$0xff] %v5764
      %5781 = vst [vmem:[#allocation3 + $0x10] sm:$0xff] %v5765
      %5782 = vst [vmem:[#allocation3 + $0x18] sm:$0xff] %v5766
      %5783 = vst [vmem:[#allocation3 + $0x20] sm:$0xff] %v5767
      %5784 = vst [vmem:[#allocation3 + $0x28] sm:$0xff] %v5768
      %5785 = vst [vmem:[#allocation3 + $0x30] sm:$0xff] %v5769
      %5786 = vst [vmem:[#allocation3 + $0x38] sm:$0xff] %v5770
      %5787 = vst [vmem:[#allocation3 + $0x40] sm:$0xff] %v5771
      %5788 = vst [vmem:[#allocation3 + $0x48] sm:$0xff] %v5772
      %5789 = vst [vmem:[#allocation3 + $0x50] sm:$0xff] %v5773
      %5790 = vst [vmem:[#allocation3 + $0x58] sm:$0xff] %v5774
      %5791 = vst [vmem:[#allocation3 + $0x60] sm:$0xff] %v5775
      %5792 = vst [vmem:[#allocation3 + $0x68] sm:$0xff] %v5776
      %5793 = vst [vmem:[#allocation3 + $0x70] sm:$0xff] %v5777
      %5794 = vst [vmem:[#allocation3 + $0x78] sm:$0xff] %v5778
      %v5795 = vld [vmem:[#allocation3] ss:$2 sm:$0xf]
      %s5796 = scalar_lea.vmem [#allocation3], 1
      %v5797 = vld [vmem:[%s5796] ss:$2 sm:$0xf]
      %s5798 = scalar_lea.vmem [#allocation3], 16
      %v5799 = vld [vmem:[%s5798] ss:$2 sm:$0xf]
      %s5800 = scalar_lea.vmem [#allocation3], 17
      %v5801 = vld [vmem:[%s5800] ss:$2 sm:$0xf]
      %v5802 = vmax.f32 %v5795, %v5797
      %v5803 = vmax.f32 %v5799, %v5801
      %v5804 = vmax.f32 %v5802, %v5803
      %5805 = vst [vmem:[#allocation6 + $0x9] sm:$0xf] %v5804
      %s5806 = scalar_lea.vmem [#allocation3], 32
      %v5807 = vld [vmem:[%s5806] ss:$2 sm:$0xf]
      %s5808 = scalar_lea.vmem [#allocation3], 33
      %v5809 = vld [vmem:[%s5808] ss:$2 sm:$0xf]
      %s5810 = scalar_lea.vmem [#allocation3], 48
      %v5811 = vld [vmem:[%s5810] ss:$2 sm:$0xf]
      %s5812 = scalar_lea.vmem [#allocation3], 49
      %v5813 = vld [vmem:[%s5812] ss:$2 sm:$0xf]
      %v5814 = vmax.f32 %v5807, %v5809
      %v5815 = vmax.f32 %v5811, %v5813
      %v5816 = vmax.f32 %v5814, %v5815
      %5817 = vst [vmem:[#allocation6 + $0x11] sm:$0xf] %v5816
      %s5818 = scalar_lea.vmem [#allocation3], 64
      %v5819 = vld [vmem:[%s5818] ss:$2 sm:$0xf]
      %s5820 = scalar_lea.vmem [#allocation3], 65
      %v5821 = vld [vmem:[%s5820] ss:$2 sm:$0xf]
      %s5822 = scalar_lea.vmem [#allocation3], 80
      %v5823 = vld [vmem:[%s5822] ss:$2 sm:$0xf]
      %s5824 = scalar_lea.vmem [#allocation3], 81
      %v5825 = vld [vmem:[%s5824] ss:$2 sm:$0xf]
      %v5826 = vmax.f32 %v5819, %v5821
      %v5827 = vmax.f32 %v5823, %v5825
      %v5828 = vmax.f32 %v5826, %v5827
      %5829 = vst [vmem:[#allocation6 + $0x19] sm:$0xf] %v5828
      %s5830 = scalar_lea.vmem [#allocation3], 96
      %v5831 = vld [vmem:[%s5830] ss:$2 sm:$0xf]
      %s5832 = scalar_lea.vmem [#allocation3], 97
      %v5833 = vld [vmem:[%s5832] ss:$2 sm:$0xf]
      %s5834 = scalar_lea.vmem [#allocation3], 112
      %v5835 = vld [vmem:[%s5834] ss:$2 sm:$0xf]
      %s5836 = scalar_lea.vmem [#allocation3], 113
      %v5837 = vld [vmem:[%s5836] ss:$2 sm:$0xf]
      %v5838 = vmax.f32 %v5831, %v5833
      %v5839 = vmax.f32 %v5835, %v5837
      %v5840 = vmax.f32 %v5838, %v5839
      %5841 = vst [vmem:[#allocation6 + $0x21] sm:$0xf] %v5840
      %v5842 = vld [vmem:[#allocation6] sm:$0xff]
      %v5843 = vld [vmem:[#allocation6 + $0x8] sm:$0xff]
      %v5844 = vld [vmem:[#allocation6 + $0x10] sm:$0xff]
      %v5845 = vld [vmem:[#allocation6 + $0x18] sm:$0xff]
      %v5846 = vpack.c.bf16 %v5843, %v5842
      %v5847 = vpack.c.bf16 %v5845, %v5844
      %s5848 = scalar_lea.vmem %s1, 1152
      %v5849 = vld [vmem:[%s5848] sm:$0xf]
      %v5850 = vld [vmem:[%s5848 + $0x4] sm:$0xf]
      %v5851 = vld [vmem:[%s5848 + $0x8] sm:$0xf]
      %v5852 = vld [vmem:[%s5848 + $0xc] sm:$0xf]
      %v5853 = vld [vmem:[%s5848 + $0x10] sm:$0xf]
      %v5854 = vld [vmem:[%s5848 + $0x14] sm:$0xf]
      %v5855 = vld [vmem:[%s5848 + $0x18] sm:$0xf]
      %v5856 = vld [vmem:[%s5848 + $0x1c] sm:$0xf]
      %v5857 = vld [vmem:[%s5848 + $0x20] sm:$0xf]
      %v5858 = vld [vmem:[%s5848 + $0x24] sm:$0xf]
      %v5859 = vld [vmem:[%s5848 + $0x28] sm:$0xf]
      %v5860 = vld [vmem:[%s5848 + $0x2c] sm:$0xf]
      %v5861 = vld [vmem:[%s5848 + $0x30] sm:$0xf]
      %v5862 = vld [vmem:[%s5848 + $0x34] sm:$0xf]
      %v5863 = vld [vmem:[%s5848 + $0x38] sm:$0xf]
      %v5864 = vld [vmem:[%s5848 + $0x3c] sm:$0xf]
      %v5865 = vld [vmem:[#allocation6 + $0x1] sm:$0xff]
      %v5866 = vld [vmem:[#allocation6 + $0x9] sm:$0xff]
      %v5867 = vld [vmem:[#allocation6 + $0x11] sm:$0xff]
      %v5868 = vld [vmem:[#allocation6 + $0x19] sm:$0xff]
      %v5869 = vpack.c.bf16 %v5866, %v5865
      %v5870 = vpack.c.bf16 %v5868, %v5867
      %s5871 = scalar_lea.vmem %s1, 1216
      %v5872 = vld [vmem:[%s5871] sm:$0xf]
      %v5873 = vld [vmem:[%s5871 + $0x4] sm:$0xf]
      %v5874 = vld [vmem:[%s5871 + $0x8] sm:$0xf]
      %v5875 = vld [vmem:[%s5871 + $0xc] sm:$0xf]
      %v5876 = vld [vmem:[%s5871 + $0x10] sm:$0xf]
      %v5877 = vld [vmem:[%s5871 + $0x14] sm:$0xf]
      %v5878 = vld [vmem:[%s5871 + $0x18] sm:$0xf]
      %v5879 = vld [vmem:[%s5871 + $0x1c] sm:$0xf]
      %v5880 = vld [vmem:[%s5871 + $0x20] sm:$0xf]
      %v5881 = vld [vmem:[%s5871 + $0x24] sm:$0xf]
      %v5882 = vld [vmem:[%s5871 + $0x28] sm:$0xf]
      %v5883 = vld [vmem:[%s5871 + $0x2c] sm:$0xf]
      %v5884 = vld [vmem:[%s5871 + $0x30] sm:$0xf]
      %v5885 = vld [vmem:[%s5871 + $0x34] sm:$0xf]
      %v5886 = vld [vmem:[%s5871 + $0x38] sm:$0xf]
      %v5887 = vld [vmem:[%s5871 + $0x3c] sm:$0xf]
      %v5904 = vunpack.c.l.b16 %v5872
      %v5905 = vunpack.c.l.b16 %v5873
      %v5906 = vunpack.c.l.b16 %v5874
      %v5907 = vunpack.c.l.b16 %v5875
      %v5908 = vunpack.c.l.b16 %v5876
      %v5909 = vunpack.c.l.b16 %v5877
      %v5910 = vunpack.c.l.b16 %v5878
      %v5911 = vunpack.c.l.b16 %v5879
      %v5912 = vunpack.c.l.b16 %v5880
      %v5913 = vunpack.c.l.b16 %v5881
      %v5914 = vunpack.c.l.b16 %v5882
      %v5915 = vunpack.c.l.b16 %v5883
      %v5916 = vunpack.c.l.b16 %v5884
      %v5917 = vunpack.c.l.b16 %v5885
      %v5918 = vunpack.c.l.b16 %v5886
      %v5919 = vunpack.c.l.b16 %v5887
      %v5920 = vpack.c.b16 %v5905, %v5904
      %v5921 = vpack.c.b16 %v5907, %v5906
      %v5922 = vpack.c.b16 %v5909, %v5908
      %v5923 = vpack.c.b16 %v5911, %v5910
      %v5924 = vpack.c.b16 %v5913, %v5912
      %v5925 = vpack.c.b16 %v5915, %v5914
      %v5926 = vpack.c.b16 %v5917, %v5916
      %v5927 = vpack.c.b16 %v5919, %v5918
      %5936 = vmatprep.subr.bf16.mxu0 0
      %5937 = vmatpush1.bf16.msra.mxu0 %v5920
      %5938 = vmatprep.subr.bf16.mxu0 0
      %5939 = vmatpush1.bf16.msra.mxu0 %v5921
      %5940 = vmatprep.subr.bf16.mxu0 0
      %5941 = vmatpush1.bf16.msra.mxu0 %v5922
      %5942 = vmatprep.subr.bf16.mxu0 0
      %5943 = vmatpush1.bf16.msra.mxu0 %v5923
      %5944 = vmatprep.subr.bf16.mxu0 0
      %5945 = vmatpush1.bf16.msra.mxu0 %v5924
      %5946 = vmatprep.subr.bf16.mxu0 0
      %5947 = vmatpush1.bf16.msra.mxu0 %v5925
      %5948 = vmatprep.subr.bf16.mxu0 0
      %5949 = vmatpush1.bf16.msra.mxu0 %v5926
      %5950 = vmatprep.subr.bf16.mxu0 0
      %5951 = vmatpush1.bf16.msra.mxu0 %v5927
      %5952 = vmatprep.subr.bf16.mxu0 0
      %5953 = vmatpush1.bf16.msra.mxu0 0
      %5954 = vmatprep.subr.bf16.mxu0 0
      %5955 = vmatpush1.bf16.msra.mxu0 0
      %5956 = vmatprep.subr.bf16.mxu0 0
      %5957 = vmatpush1.bf16.msra.mxu0 0
      %5958 = vmatprep.subr.bf16.mxu0 0
      %5959 = vmatpush1.bf16.msra.mxu0 0
      %5960 = vmatprep.subr.bf16.mxu0 0
      %5961 = vmatpush1.bf16.msra.mxu0 0
      %5962 = vmatprep.subr.bf16.mxu0 0
      %5963 = vmatpush1.bf16.msra.mxu0 0
      %5964 = vmatprep.subr.bf16.mxu0 0
      %5965 = vmatpush1.bf16.msra.mxu0 0
      %5966 = vmatprep.subr.bf16.mxu0 0
      %5967 = vmatpush1.bf16.msra.mxu0 0
      %5968 = vmatprep.mubr.bf16.mxu0 0
      %5969 = vmatmul.mubr.bf16.gmra.mrb[0].mxu0 %v5869
      %v5970 = vpop.f32.mrb[0].mxu0
      %v5971 = vadd.f32 0.0, %v5970
      %v5972 = vpop.f32.mrb[0].mxu0
      %v5973 = vpop.f32.mrb[0].mxu0
      %v5974 = vadd.f32 0.0, %v5973
      %v5975 = vpop.f32.mrb[0].mxu0
      %5976 = vmatprep.mubr.bf16.mxu0 0
      %5977 = vmatmul.mubr.bf16.gmra.mrb[0].mxu0 %v5870
      %v5978 = vpop.f32.mrb[0].mxu0
      %v5979 = vadd.f32 0.0, %v5978
      %v5980 = vpop.f32.mrb[0].mxu0
      %v5981 = vpop.f32.mrb[0].mxu0
      %v5982 = vadd.f32 0.0, %v5981
      %v5983 = vpop.f32.mrb[0].mxu0
      %5984 = vdwg.mxu0
      %v5985 = vld [vmem:[#allocation6 + $0x2] sm:$0xff]
      %v5986 = vld [vmem:[#allocation6 + $0xa] sm:$0xff]
      %v5987 = vld [vmem:[#allocation6 + $0x12] sm:$0xff]
      %v5988 = vld [vmem:[#allocation6 + $0x1a] sm:$0xff]
      %v5989 = vpack.c.bf16 %v5986, %v5985
      %v5990 = vpack.c.bf16 %v5988, %v5987
      %s5991 = scalar_lea.vmem %s1, 1280
      %v5992 = vld [vmem:[%s5991] sm:$0xf]
      %v5993 = vld [vmem:[%s5991 + $0x4] sm:$0xf]
      %v5994 = vld [vmem:[%s5991 + $0x8] sm:$0xf]
      %v5995 = vld [vmem:[%s5991 + $0xc] sm:$0xf]
      %v5996 = vld [vmem:[%s5991 + $0x10] sm:$0xf]
      %v5997 = vld [vmem:[%s5991 + $0x14] sm:$0xf]
      %v5998 = vld [vmem:[%s5991 + $0x18] sm:$0xf]
      %v5999 = vld [vmem:[%s5991 + $0x1c] sm:$0xf]
      %v6000 = vld [vmem:[%s5991 + $0x20] sm:$0xf]
      %v6001 = vld [vmem:[%s5991 + $0x24] sm:$0xf]
      %v6002 = vld [vmem:[%s5991 + $0x28] sm:$0xf]
      %v6003 = vld [vmem:[%s5991 + $0x2c] sm:$0xf]
      %v6004 = vld [vmem:[%s5991 + $0x30] sm:$0xf]
      %v6005 = vld [vmem:[%s5991 + $0x34] sm:$0xf]
      %v6006 = vld [vmem:[%s5991 + $0x38] sm:$0xf]
      %v6007 = vld [vmem:[%s5991 + $0x3c] sm:$0xf]
      %v6008 = vld [vmem:[#allocation6 + $0x8] sm:$0xff]
      %v6009 = vld [vmem:[#allocation6 + $0x10] sm:$0xff]
      %v6010 = vld [vmem:[#allocation6 + $0x18] sm:$0xff]
      %v6011 = vld [vmem:[#allocation6 + $0x20] sm:$0xff]
      %v6012 = vpack.c.bf16 %v6009, %v6008
      %v6013 = vpack.c.bf16 %v6011, %v6010
      %s6014 = scalar_lea.vmem %s1, 1344
      %v6015 = vld [vmem:[%s6014] sm:$0xf]
      %v6016 = vld [vmem:[%s6014 + $0x4] sm:$0xf]
      %v6017 = vld [vmem:[%s6014 + $0x8] sm:$0xf]
      %v6018 = vld [vmem:[%s6014 + $0xc] sm:$0xf]
      %v6019 = vld [vmem:[%s6014 + $0x10] sm:$0xf]
      %v6020 = vld [vmem:[%s6014 + $0x14] sm:$0xf]
      %v6021 = vld [vmem:[%s6014 + $0x18] sm:$0xf]
      %v6022 = vld [vmem:[%s6014 + $0x1c] sm:$0xf]
      %v6023 = vld [vmem:[%s6014 + $0x20] sm:$0xf]
      %v6024 = vld [vmem:[%s6014 + $0x24] sm:$0xf]
      %v6025 = vld [vmem:[%s6014 + $0x28] sm:$0xf]
      %v6026 = vld [vmem:[%s6014 + $0x2c] sm:$0xf]
      %v6027 = vld [vmem:[%s6014 + $0x30] sm:$0xf]
      %v6028 = vld [vmem:[%s6014 + $0x34] sm:$0xf]
      %v6029 = vld [vmem:[%s6014 + $0x38] sm:$0xf]
      %v6030 = vld [vmem:[%s6014 + $0x3c] sm:$0xf]
      %v6047 = vunpack.c.l.b16 %v6015
      %v6048 = vunpack.c.l.b16 %v6016
      %v6049 = vunpack.c.l.b16 %v6017
      %v6050 = vunpack.c.l.b16 %v6018
      %v6051 = vunpack.c.l.b16 %v6019
      %v6052 = vunpack.c.l.b16 %v6020
      %v6053 = vunpack.c.l.b16 %v6021
      %v6054 = vunpack.c.l.b16 %v6022
      %v6055 = vunpack.c.l.b16 %v6023
      %v6056 = vunpack.c.l.b16 %v6024
      %v6057 = vunpack.c.l.b16 %v6025
      %v6058 = vunpack.c.l.b16 %v6026
      %v6059 = vunpack.c.l.b16 %v6027
      %v6060 = vunpack.c.l.b16 %v6028
      %v6061 = vunpack.c.l.b16 %v6029
      %v6062 = vunpack.c.l.b16 %v6030
      %v6063 = vpack.c.b16 %v6048, %v6047
      %v6064 = vpack.c.b16 %v6050, %v6049
      %v6065 = vpack.c.b16 %v6052, %v6051
      %v6066 = vpack.c.b16 %v6054, %v6053
      %v6067 = vpack.c.b16 %v6056, %v6055
      %v6068 = vpack.c.b16 %v6058, %v6057
      %v6069 = vpack.c.b16 %v6060, %v6059
      %v6070 = vpack.c.b16 %v6062, %v6061
      %6079 = vmatprep.subr.bf16.mxu0 0
      %6080 = vmatpush1.bf16.msra.mxu0 %v6063
      %6081 = vmatprep.subr.bf16.mxu0 0
      %6082 = vmatpush1.bf16.msra.mxu0 %v6064
      %6083 = vmatprep.subr.bf16.mxu0 0
      %6084 = vmatpush1.bf16.msra.mxu0 %v6065
      %6085 = vmatprep.subr.bf16.mxu0 0
      %6086 = vmatpush1.bf16.msra.mxu0 %v6066
      %6087 = vmatprep.subr.bf16.mxu0 0
      %6088 = vmatpush1.bf16.msra.mxu0 %v6067
      %6089 = vmatprep.subr.bf16.mxu0 0
      %6090 = vmatpush1.bf16.msra.mxu0 %v6068
      %6091 = vmatprep.subr.bf16.mxu0 0
      %6092 = vmatpush1.bf16.msra.mxu0 %v6069
      %6093 = vmatprep.subr.bf16.mxu0 0
      %6094 = vmatpush1.bf16.msra.mxu0 %v6070
      %6095 = vmatprep.subr.bf16.mxu0 0
      %6096 = vmatpush1.bf16.msra.mxu0 0
      %6097 = vmatprep.subr.bf16.mxu0 0
      %6098 = vmatpush1.bf16.msra.mxu0 0
      %6099 = vmatprep.subr.bf16.mxu0 0
      %6100 = vmatpush1.bf16.msra.mxu0 0
      %6101 = vmatprep.subr.bf16.mxu0 0
      %6102 = vmatpush1.bf16.msra.mxu0 0
      %6103 = vmatprep.subr.bf16.mxu0 0
      %6104 = vmatpush1.bf16.msra.mxu0 0
      %6105 = vmatprep.subr.bf16.mxu0 0
      %6106 = vmatpush1.bf16.msra.mxu0 0
      %6107 = vmatprep.subr.bf16.mxu0 0
      %6108 = vmatpush1.bf16.msra.mxu0 0
      %6109 = vmatprep.subr.bf16.mxu0 0
      %6110 = vmatpush1.bf16.msra.mxu0 0
      %6111 = vmatprep.mubr.bf16.mxu0 0
      %6112 = vmatmul.mubr.bf16.gmra.mrb[0].mxu0 %v6012
      %v6113 = vpop.f32.mrb[0].mxu0
      %v6114 = vadd.f32 0.0, %v6113
      %v6115 = vpop.f32.mrb[0].mxu0
      %v6116 = vpop.f32.mrb[0].mxu0
      %v6117 = vadd.f32 0.0, %v6116
      %v6118 = vpop.f32.mrb[0].mxu0
      %6119 = vmatprep.mubr.bf16.mxu0 0
      %6120 = vmatmul.mubr.bf16.gmra.mrb[0].mxu0 %v6013
      %v6121 = vpop.f32.mrb[0].mxu0
      %v6122 = vadd.f32 0.0, %v6121
      %v6123 = vpop.f32.mrb[0].mxu0
      %v6124 = vpop.f32.mrb[0].mxu0
      %v6125 = vadd.f32 0.0, %v6124
      %v6126 = vpop.f32.mrb[0].mxu0
      %6127 = vdwg.mxu0
      %v6128 = vld [vmem:[#allocation6 + $0x9] sm:$0xff]
      %v6129 = vld [vmem:[#allocation6 + $0x11] sm:$0xff]
      %v6130 = vld [vmem:[#allocation6 + $0x19] sm:$0xff]
      %v6131 = vld [vmem:[#allocation6 + $0x21] sm:$0xff]
      %v6132 = vpack.c.bf16 %v6129, %v6128
      %v6133 = vpack.c.bf16 %v6131, %v6130
      %s6134 = scalar_lea.vmem %s1, 1408
      %v6135 = vld [vmem:[%s6134] sm:$0xf]
      %v6136 = vld [vmem:[%s6134 + $0x4] sm:$0xf]
      %v6137 = vld [vmem:[%s6134 + $0x8] sm:$0xf]
      %v6138 = vld [vmem:[%s6134 + $0xc] sm:$0xf]
      %v6139 = vld [vmem:[%s6134 + $0x10] sm:$0xf]
      %v6140 = vld [vmem:[%s6134 + $0x14] sm:$0xf]
      %v6141 = vld [vmem:[%s6134 + $0x18] sm:$0xf]
      %v6142 = vld [vmem:[%s6134 + $0x1c] sm:$0xf]
      %v6143 = vld [vmem:[%s6134 + $0x20] sm:$0xf]
      %v6144 = vld [vmem:[%s6134 + $0x24] sm:$0xf]
      %v6145 = vld [vmem:[%s6134 + $0x28] sm:$0xf]
      %v6146 = vld [vmem:[%s6134 + $0x2c] sm:$0xf]
      %v6147 = vld [vmem:[%s6134 + $0x30] sm:$0xf]
      %v6148 = vld [vmem:[%s6134 + $0x34] sm:$0xf]
      %v6149 = vld [vmem:[%s6134 + $0x38] sm:$0xf]
      %v6150 = vld [vmem:[%s6134 + $0x3c] sm:$0xf]
      %v6151 = vld [vmem:[#allocation6 + $0xa] sm:$0xff]
      %v6152 = vld [vmem:[#allocation6 + $0x12] sm:$0xff]
      %v6153 = vld [vmem:[#allocation6 + $0x1a] sm:$0xff]
      %v6154 = vld [vmem:[#allocation6 + $0x22] sm:$0xff]
      %v6155 = vpack.c.bf16 %v6152, %v6151
      %v6156 = vpack.c.bf16 %v6154, %v6153
      %s6157 = scalar_lea.vmem %s1, 1472
      %v6158 = vld [vmem:[%s6157] sm:$0xf]
      %v6159 = vld [vmem:[%s6157 + $0x4] sm:$0xf]
      %v6160 = vld [vmem:[%s6157 + $0x8] sm:$0xf]
      %v6161 = vld [vmem:[%s6157 + $0xc] sm:$0xf]
      %v6162 = vld [vmem:[%s6157 + $0x10] sm:$0xf]
      %v6163 = vld [vmem:[%s6157 + $0x14] sm:$0xf]
      %v6164 = vld [vmem:[%s6157 + $0x18] sm:$0xf]
      %v6165 = vld [vmem:[%s6157 + $0x1c] sm:$0xf]
      %v6166 = vld [vmem:[%s6157 + $0x20] sm:$0xf]
      %v6167 = vld [vmem:[%s6157 + $0x24] sm:$0xf]
      %v6168 = vld [vmem:[%s6157 + $0x28] sm:$0xf]
      %v6169 = vld [vmem:[%s6157 + $0x2c] sm:$0xf]
      %v6170 = vld [vmem:[%s6157 + $0x30] sm:$0xf]
      %v6171 = vld [vmem:[%s6157 + $0x34] sm:$0xf]
      %v6172 = vld [vmem:[%s6157 + $0x38] sm:$0xf]
      %v6173 = vld [vmem:[%s6157 + $0x3c] sm:$0xf]
      %v6190 = vunpack.c.l.b16 %v6158
      %v6191 = vunpack.c.l.b16 %v6159
      %v6192 = vunpack.c.l.b16 %v6160
      %v6193 = vunpack.c.l.b16 %v6161
      %v6194 = vunpack.c.l.b16 %v6162
      %v6195 = vunpack.c.l.b16 %v6163
      %v6196 = vunpack.c.l.b16 %v6164
      %v6197 = vunpack.c.l.b16 %v6165
      %v6198 = vunpack.c.l.b16 %v6166
      %v6199 = vunpack.c.l.b16 %v6167
      %v6200 = vunpack.c.l.b16 %v6168
      %v6201 = vunpack.c.l.b16 %v6169
      %v6202 = vunpack.c.l.b16 %v6170
      %v6203 = vunpack.c.l.b16 %v6171
      %v6204 = vunpack.c.l.b16 %v6172
      %v6205 = vunpack.c.l.b16 %v6173
      %v6206 = vpack.c.b16 %v6191, %v6190
      %v6207 = vpack.c.b16 %v6193, %v6192
      %v6208 = vpack.c.b16 %v6195, %v6194
      %v6209 = vpack.c.b16 %v6197, %v6196
      %v6210 = vpack.c.b16 %v6199, %v6198
      %v6211 = vpack.c.b16 %v6201, %v6200
      %v6212 = vpack.c.b16 %v6203, %v6202
      %v6213 = vpack.c.b16 %v6205, %v6204
      %6222 = vmatprep.subr.bf16.mxu0 0
      %6223 = vmatpush1.bf16.msra.mxu0 %v6206
      %6224 = vmatprep.subr.bf16.mxu0 0
      %6225 = vmatpush1.bf16.msra.mxu0 %v6207
      %6226 = vmatprep.subr.bf16.mxu0 0
      %6227 = vmatpush1.bf16.msra.mxu0 %v6208
      %6228 = vmatprep.subr.bf16.mxu0 0
      %6229 = vmatpush1.bf16.msra.mxu0 %v6209
      %6230 = vmatprep.subr.bf16.mxu0 0
      %6231 = vmatpush1.bf16.msra.mxu0 %v6210
      %6232 = vmatprep.subr.bf16.mxu0 0
      %6233 = vmatpush1.bf16.msra.mxu0 %v6211
      %6234 = vmatprep.subr.bf16.mxu0 0
      %6235 = vmatpush1.bf16.msra.mxu0 %v6212
      %6236 = vmatprep.subr.bf16.mxu0 0
      %6237 = vmatpush1.bf16.msra.mxu0 %v6213
      %6238 = vmatprep.subr.bf16.mxu0 0
      %6239 = vmatpush1.bf16.msra.mxu0 0
      %6240 = vmatprep.subr.bf16.mxu0 0
      %6241 = vmatpush1.bf16.msra.mxu0 0
      %6242 = vmatprep.subr.bf16.mxu0 0
      %6243 = vmatpush1.bf16.msra.mxu0 0
      %6244 = vmatprep.subr.bf16.mxu0 0
      %6245 = vmatpush1.bf16.msra.mxu0 0
      %6246 = vmatprep.subr.bf16.mxu0 0
      %6247 = vmatpush1.bf16.msra.mxu0 0
      %6248 = vmatprep.subr.bf16.mxu0 0
      %6249 = vmatpush1.bf16.msra.mxu0 0
      %6250 = vmatprep.subr.bf16.mxu0 0
      %6251 = vmatpush1.bf16.msra.mxu0 0
      %6252 = vmatprep.subr.bf16.mxu0 0
      %6253 = vmatpush1.bf16.msra.mxu0 0
      %6254 = vmatprep.mubr.bf16.mxu0 0
      %6255 = vmatmul.mubr.bf16.gmra.mrb[0].mxu0 %v6155
      %v6256 = vpop.f32.mrb[0].mxu0
      %v6257 = vadd.f32 0.0, %v6256
      %v6258 = vpop.f32.mrb[0].mxu0
      %v6259 = vpop.f32.mrb[0].mxu0
      %v6260 = vadd.f32 0.0, %v6259
      %v6261 = vpop.f32.mrb[0].mxu0
      %6262 = vmatprep.mubr.bf16.mxu0 0
      %6263 = vmatmul.mubr.bf16.gmra.mrb[0].mxu0 %v6156
      %v6264 = vpop.f32.mrb[0].mxu0
      %v6265 = vadd.f32 0.0, %v6264
      %v6266 = vpop.f32.mrb[0].mxu0
      %v6267 = vpop.f32.mrb[0].mxu0
      %v6268 = vadd.f32 0.0, %v6267
      %v6269 = vpop.f32.mrb[0].mxu0
      %6270 = vdwg.mxu0
      %v6271 = vld [vmem:[#allocation6 + $0x10] sm:$0xff]
      %v6272 = vld [vmem:[#allocation6 + $0x18] sm:$0xff]
      %v6273 = vld [vmem:[#allocation6 + $0x20] sm:$0xff]
      %v6274 = vld [vmem:[#allocation6 + $0x28] sm:$0xff]
      %v6275 = vpack.c.bf16 %v6272, %v6271
      %v6276 = vpack.c.bf16 %v6274, %v6273
      %s6277 = scalar_lea.vmem %s1, 1536
      %v6278 = vld [vmem:[%s6277] sm:$0xf]
      %v6279 = vld [vmem:[%s6277 + $0x4] sm:$0xf]
      %v6280 = vld [vmem:[%s6277 + $0x8] sm:$0xf]
      %v6281 = vld [vmem:[%s6277 + $0xc] sm:$0xf]
      %v6282 = vld [vmem:[%s6277 + $0x10] sm:$0xf]
      %v6283 = vld [vmem:[%s6277 + $0x14] sm:$0xf]
      %v6284 = vld [vmem:[%s6277 + $0x18] sm:$0xf]
      %v6285 = vld [vmem:[%s6277 + $0x1c] sm:$0xf]
      %v6286 = vld [vmem:[%s6277 + $0x20] sm:$0xf]
      %v6287 = vld [vmem:[%s6277 + $0x24] sm:$0xf]
      %v6288 = vld [vmem:[%s6277 + $0x28] sm:$0xf]
      %v6289 = vld [vmem:[%s6277 + $0x2c] sm:$0xf]
      %v6290 = vld [vmem:[%s6277 + $0x30] sm:$0xf]
      %v6291 = vld [vmem:[%s6277 + $0x34] sm:$0xf]
      %v6292 = vld [vmem:[%s6277 + $0x38] sm:$0xf]
      %v6293 = vld [vmem:[%s6277 + $0x3c] sm:$0xf]
      %v6294 = vld [vmem:[#allocation6 + $0x11] sm:$0xff]
      %v6295 = vld [vmem:[#allocation6 + $0x19] sm:$0xff]
      %v6296 = vld [vmem:[#allocation6 + $0x21] sm:$0xff]
      %v6297 = vld [vmem:[#allocation6 + $0x29] sm:$0xff]
      %v6298 = vpack.c.bf16 %v6295, %v6294
      %v6299 = vpack.c.bf16 %v6297, %v6296
      %s6300 = scalar_lea.vmem %s1, 1600
      %v6301 = vld [vmem:[%s6300] sm:$0xf]
      %v6302 = vld [vmem:[%s6300 + $0x4] sm:$0xf]
      %v6303 = vld [vmem:[%s6300 + $0x8] sm:$0xf]
      %v6304 = vld [vmem:[%s6300 + $0xc] sm:$0xf]
      %v6305 = vld [vmem:[%s6300 + $0x10] sm:$0xf]
      %v6306 = vld [vmem:[%s6300 + $0x14] sm:$0xf]
      %v6307 = vld [vmem:[%s6300 + $0x18] sm:$0xf]
      %v6308 = vld [vmem:[%s6300 + $0x1c] sm:$0xf]
      %v6309 = vld [vmem:[%s6300 + $0x20] sm:$0xf]
      %v6310 = vld [vmem:[%s6300 + $0x24] sm:$0xf]
      %v6311 = vld [vmem:[%s6300 + $0x28] sm:$0xf]
      %v6312 = vld [vmem:[%s6300 + $0x2c] sm:$0xf]
      %v6313 = vld [vmem:[%s6300 + $0x30] sm:$0xf]
      %v6314 = vld [vmem:[%s6300 + $0x34] sm:$0xf]
      %v6315 = vld [vmem:[%s6300 + $0x38] sm:$0xf]
      %v6316 = vld [vmem:[%s6300 + $0x3c] sm:$0xf]
      %v6333 = vunpack.c.l.b16 %v6301
      %v6334 = vunpack.c.l.b16 %v6302
      %v6335 = vunpack.c.l.b16 %v6303
      %v6336 = vunpack.c.l.b16 %v6304
      %v6337 = vunpack.c.l.b16 %v6305
      %v6338 = vunpack.c.l.b16 %v6306
      %v6339 = vunpack.c.l.b16 %v6307
      %v6340 = vunpack.c.l.b16 %v6308
      %v6341 = vunpack.c.l.b16 %v6309
      %v6342 = vunpack.c.l.b16 %v6310
      %v6343 = vunpack.c.l.b16 %v6311
      %v6344 = vunpack.c.l.b16 %v6312
      %v6345 = vunpack.c.l.b16 %v6313
      %v6346 = vunpack.c.l.b16 %v6314
      %v6347 = vunpack.c.l.b16 %v6315
      %v6348 = vunpack.c.l.b16 %v6316
      %v6349 = vpack.c.b16 %v6334, %v6333
      %v6350 = vpack.c.b16 %v6336, %v6335
      %v6351 = vpack.c.b16 %v6338, %v6337
      %v6352 = vpack.c.b16 %v6340, %v6339
      %v6353 = vpack.c.b16 %v6342, %v6341
      %v6354 = vpack.c.b16 %v6344, %v6343
      %v6355 = vpack.c.b16 %v6346, %v6345
      %v6356 = vpack.c.b16 %v6348, %v6347
      %6365 = vmatprep.subr.bf16.mxu0 0
      %6366 = vmatpush1.bf16.msra.mxu0 %v6349
      %6367 = vmatprep.subr.bf16.mxu0 0
      %6368 = vmatpush1.bf16.msra.mxu0 %v6350
      %6369 = vmatprep.subr.bf16.mxu0 0
      %6370 = vmatpush1.bf16.msra.mxu0 %v6351
      %6371 = vmatprep.subr.bf16.mxu0 0
      %6372 = vmatpush1.bf16.msra.mxu0 %v6352
      %6373 = vmatprep.subr.bf16.mxu0 0
      %6374 = vmatpush1.bf16.msra.mxu0 %v6353
      %6375 = vmatprep.subr.bf16.mxu0 0
      %6376 = vmatpush1.bf16.msra.mxu0 %v6354
      %6377 = vmatprep.subr.bf16.mxu0 0
      %6378 = vmatpush1.bf16.msra.mxu0 %v6355
      %6379 = vmatprep.subr.bf16.mxu0 0
      %6380 = vmatpush1.bf16.msra.mxu0 %v6356
      %6381 = vmatprep.subr.bf16.mxu0 0
      %6382 = vmatpush1.bf16.msra.mxu0 0
      %6383 = vmatprep.subr.bf16.mxu0 0
      %6384 = vmatpush1.bf16.msra.mxu0 0
      %6385 = vmatprep.subr.bf16.mxu0 0
      %6386 = vmatpush1.bf16.msra.mxu0 0
      %6387 = vmatprep.subr.bf16.mxu0 0
      %6388 = vmatpush1.bf16.msra.mxu0 0
      %6389 = vmatprep.subr.bf16.mxu0 0
      %6390 = vmatpush1.bf16.msra.mxu0 0
      %6391 = vmatprep.subr.bf16.mxu0 0
      %6392 = vmatpush1.bf16.msra.mxu0 0
      %6393 = vmatprep.subr.bf16.mxu0 0
      %6394 = vmatpush1.bf16.msra.mxu0 0
      %6395 = vmatprep.subr.bf16.mxu0 0
      %6396 = vmatpush1.bf16.msra.mxu0 0
      %6397 = vmatprep.mubr.bf16.mxu0 0
      %6398 = vmatmul.mubr.bf16.gmra.mrb[0].mxu0 %v6298
      %v6399 = vpop.f32.mrb[0].mxu0
      %v6400 = vadd.f32 0.0, %v6399
      %v6401 = vpop.f32.mrb[0].mxu0
      %v6402 = vpop.f32.mrb[0].mxu0
      %v6403 = vadd.f32 0.0, %v6402
      %v6404 = vpop.f32.mrb[0].mxu0
      %6405 = vmatprep.mubr.bf16.mxu0 0
      %6406 = vmatmul.mubr.bf16.gmra.mrb[0].mxu0 %v6299
      %v6407 = vpop.f32.mrb[0].mxu0
      %v6408 = vadd.f32 0.0, %v6407
      %v6409 = vpop.f32.mrb[0].mxu0
      %v6410 = vpop.f32.mrb[0].mxu0
      %v6411 = vadd.f32 0.0, %v6410
      %v6412 = vpop.f32.mrb[0].mxu0
      %6413 = vdwg.mxu0
      %v6414 = vld [vmem:[#allocation6 + $0x12] sm:$0xff]
      %v6415 = vld [vmem:[#allocation6 + $0x1a] sm:$0xff]
      %v6416 = vld [vmem:[#allocation6 + $0x22] sm:$0xff]
      %v6417 = vld [vmem:[#allocation6 + $0x2a] sm:$0xff]
      %v6418 = vpack.c.bf16 %v6415, %v6414
      %v6419 = vpack.c.bf16 %v6417, %v6416
      %s6420 = scalar_lea.vmem %s1, 1664
      %v6421 = vld [vmem:[%s6420] sm:$0xf]
      %v6422 = vld [vmem:[%s6420 + $0x4] sm:$0xf]
      %v6423 = vld [vmem:[%s6420 + $0x8] sm:$0xf]
      %v6424 = vld [vmem:[%s6420 + $0xc] sm:$0xf]
      %v6425 = vld [vmem:[%s6420 + $0x10] sm:$0xf]
      %v6426 = vld [vmem:[%s6420 + $0x14] sm:$0xf]
      %v6427 = vld [vmem:[%s6420 + $0x18] sm:$0xf]
      %v6428 = vld [vmem:[%s6420 + $0x1c] sm:$0xf]
      %v6429 = vld [vmem:[%s6420 + $0x20] sm:$0xf]
      %v6430 = vld [vmem:[%s6420 + $0x24] sm:$0xf]
      %v6431 = vld [vmem:[%s6420 + $0x28] sm:$0xf]
      %v6432 = vld [vmem:[%s6420 + $0x2c] sm:$0xf]
      %v6433 = vld [vmem:[%s6420 + $0x30] sm:$0xf]
      %v6434 = vld [vmem:[%s6420 + $0x34] sm:$0xf]
      %v6435 = vld [vmem:[%s6420 + $0x38] sm:$0xf]
      %v6436 = vld [vmem:[%s6420 + $0x3c] sm:$0xf]
      %v6453 = vunpack.c.l.b16 %v6421
      %v6454 = vunpack.c.l.b16 %v6422
      %v6455 = vunpack.c.l.b16 %v6423
      %v6456 = vunpack.c.l.b16 %v6424
      %v6457 = vunpack.c.l.b16 %v6425
      %v6458 = vunpack.c.l.b16 %v6426
      %v6459 = vunpack.c.l.b16 %v6427
      %v6460 = vunpack.c.l.b16 %v6428
      %v6461 = vunpack.c.l.b16 %v6429
      %v6462 = vunpack.c.l.b16 %v6430
      %v6463 = vunpack.c.l.b16 %v6431
      %v6464 = vunpack.c.l.b16 %v6432
      %v6465 = vunpack.c.l.b16 %v6433
      %v6466 = vunpack.c.l.b16 %v6434
      %v6467 = vunpack.c.l.b16 %v6435
      %v6468 = vunpack.c.l.b16 %v6436
      %v6469 = vpack.c.b16 %v6454, %v6453
      %v6470 = vpack.c.b16 %v6456, %v6455
      %v6471 = vpack.c.b16 %v6458, %v6457
      %v6472 = vpack.c.b16 %v6460, %v6459
      %v6473 = vpack.c.b16 %v6462, %v6461
      %v6474 = vpack.c.b16 %v6464, %v6463
      %v6475 = vpack.c.b16 %v6466, %v6465
      %v6476 = vpack.c.b16 %v6468, %v6467
      %6485 = vmatprep.subr.bf16.mxu0 0
      %6486 = vmatpush1.bf16.msra.mxu0 %v6469
      %6487 = vmatprep.subr.bf16.mxu0 0
      %6488 = vmatpush1.bf16.msra.mxu0 %v6470
      %6489 = vmatprep.subr.bf16.mxu0 0
      %6490 = vmatpush1.bf16.msra.mxu0 %v6471
      %6491 = vmatprep.subr.bf16.mxu0 0
      %6492 = vmatpush1.bf16.msra.mxu0 %v6472
      %6493 = vmatprep.subr.bf16.mxu0 0
      %6494 = vmatpush1.bf16.msra.mxu0 %v6473
      %6495 = vmatprep.subr.bf16.mxu0 0
      %6496 = vmatpush1.bf16.msra.mxu0 %v6474
      %6497 = vmatprep.subr.bf16.mxu0 0
      %6498 = vmatpush1.bf16.msra.mxu0 %v6475
      %6499 = vmatprep.subr.bf16.mxu0 0
      %6500 = vmatpush1.bf16.msra.mxu0 %v6476
      %6501 = vmatprep.subr.bf16.mxu0 0
      %6502 = vmatpush1.bf16.msra.mxu0 0
      %6503 = vmatprep.subr.bf16.mxu0 0
      %6504 = vmatpush1.bf16.msra.mxu0 0
      %6505 = vmatprep.subr.bf16.mxu0 0
      %6506 = vmatpush1.bf16.msra.mxu0 0
      %6507 = vmatprep.subr.bf16.mxu0 0
      %6508 = vmatpush1.bf16.msra.mxu0 0
      %6509 = vmatprep.subr.bf16.mxu0 0
      %6510 = vmatpush1.bf16.msra.mxu0 0
      %6511 = vmatprep.subr.bf16.mxu0 0
      %6512 = vmatpush1.bf16.msra.mxu0 0
      %6513 = vmatprep.subr.bf16.mxu0 0
      %6514 = vmatpush1.bf16.msra.mxu0 0
      %6515 = vmatprep.subr.bf16.mxu0 0
      %6516 = vmatpush1.bf16.msra.mxu0 0
      %6517 = vmatprep.mubr.bf16.mxu0 0
      %6518 = vmatmul.mubr.bf16.gmra.mrb[0].mxu0 %v6418
      %v6519 = vpop.f32.mrb[0].mxu0
      %v6520 = vadd.f32 0.0, %v6519
      %v6521 = vpop.f32.mrb[0].mxu0
      %v6522 = vpop.f32.mrb[0].mxu0
      %v6523 = vadd.f32 0.0, %v6522
      %v6524 = vpop.f32.mrb[0].mxu0
      %6525 = vmatprep.mubr.bf16.mxu0 0
      %6526 = vmatmul.mubr.bf16.gmra.mrb[0].mxu0 %v6419
      %v6527 = vpop.f32.mrb[0].mxu0
      %v6528 = vadd.f32 0.0, %v6527
      %v6529 = vpop.f32.mrb[0].mxu0
      %v6530 = vpop.f32.mrb[0].mxu0
      %v6531 = vadd.f32 0.0, %v6530
      %v6532 = vpop.f32.mrb[0].mxu0
      %6533 = vdwg.mxu0
      %v6550 = vunpack.c.l.b16 %v5849
      %v6551 = vunpack.c.l.b16 %v5850
      %v6552 = vunpack.c.l.b16 %v5851
      %v6553 = vunpack.c.l.b16 %v5852
      %v6554 = vunpack.c.l.b16 %v5853
      %v6555 = vunpack.c.l.b16 %v5854
      %v6556 = vunpack.c.l.b16 %v5855
      %v6557 = vunpack.c.l.b16 %v5856
      %v6558 = vunpack.c.l.b16 %v5857
      %v6559 = vunpack.c.l.b16 %v5858
      %v6560 = vunpack.c.l.b16 %v5859
      %v6561 = vunpack.c.l.b16 %v5860
      %v6562 = vunpack.c.l.b16 %v5861
      %v6563 = vunpack.c.l.b16 %v5862
      %v6564 = vunpack.c.l.b16 %v5863
      %v6565 = vunpack.c.l.b16 %v5864
      %v6566 = vpack.c.b16 %v6551, %v6550
      %v6567 = vpack.c.b16 %v6553, %v6552
      %v6568 = vpack.c.b16 %v6555, %v6554
      %v6569 = vpack.c.b16 %v6557, %v6556
      %v6570 = vpack.c.b16 %v6559, %v6558
      %v6571 = vpack.c.b16 %v6561, %v6560
      %v6572 = vpack.c.b16 %v6563, %v6562
      %v6573 = vpack.c.b16 %v6565, %v6564
      %6582 = vmatprep.subr.bf16.mxu0 0
      %6583 = vmatpush1.bf16.msra.mxu0 %v6566
      %6584 = vmatprep.subr.bf16.mxu0 0
      %6585 = vmatpush1.bf16.msra.mxu0 %v6567
      %6586 = vmatprep.subr.bf16.mxu0 0
      %6587 = vmatpush1.bf16.msra.mxu0 %v6568
      %6588 = vmatprep.subr.bf16.mxu0 0
      %6589 = vmatpush1.bf16.msra.mxu0 %v6569
      %6590 = vmatprep.subr.bf16.mxu0 0
      %6591 = vmatpush1.bf16.msra.mxu0 %v6570
      %6592 = vmatprep.subr.bf16.mxu0 0
      %6593 = vmatpush1.bf16.msra.mxu0 %v6571
      %6594 = vmatprep.subr.bf16.mxu0 0
      %6595 = vmatpush1.bf16.msra.mxu0 %v6572
      %6596 = vmatprep.subr.bf16.mxu0 0
      %6597 = vmatpush1.bf16.msra.mxu0 %v6573
      %6598 = vmatprep.subr.bf16.mxu0 0
      %6599 = vmatpush1.bf16.msra.mxu0 0
      %6600 = vmatprep.subr.bf16.mxu0 0
      %6601 = vmatpush1.bf16.msra.mxu0 0
      %6602 = vmatprep.subr.bf16.mxu0 0
      %6603 = vmatpush1.bf16.msra.mxu0 0
      %6604 = vmatprep.subr.bf16.mxu0 0
      %6605 = vmatpush1.bf16.msra.mxu0 0
      %6606 = vmatprep.subr.bf16.mxu0 0
      %6607 = vmatpush1.bf16.msra.mxu0 0
      %6608 = vmatprep.subr.bf16.mxu0 0
      %6609 = vmatpush1.bf16.msra.mxu0 0
      %6610 = vmatprep.subr.bf16.mxu0 0
      %6611 = vmatpush1.bf16.msra.mxu0 0
      %6612 = vmatprep.subr.bf16.mxu0 0
      %6613 = vmatpush1.bf16.msra.mxu0 0
      %6614 = vmatprep.mubr.bf16.mxu0 0
      %6615 = vmatmul.mubr.bf16.gmra.mrb[0].mxu0 %v5846
      %v6616 = vpop.f32.mrb[0].mxu0
      %v6617 = vadd.f32 %v5971, %v6616
      %v6618 = vpop.f32.mrb[0].mxu0
      %v6619 = vpop.f32.mrb[0].mxu0
      %v6620 = vadd.f32 %v5974, %v6619
      %v6621 = vpop.f32.mrb[0].mxu0
      %6622 = vmatprep.mubr.bf16.mxu0 0
      %6623 = vmatmul.mubr.bf16.gmra.mrb[0].mxu0 %v5847
      %v6624 = vpop.f32.mrb[0].mxu0
      %v6625 = vadd.f32 %v5979, %v6624
      %v6626 = vpop.f32.mrb[0].mxu0
      %v6627 = vpop.f32.mrb[0].mxu0
      %v6628 = vadd.f32 %v5982, %v6627
      %v6629 = vpop.f32.mrb[0].mxu0
      %6630 = vdwg.mxu0
      %v6647 = vunpack.c.l.b16 %v5992
      %v6648 = vunpack.c.l.b16 %v5993
      %v6649 = vunpack.c.l.b16 %v5994
      %v6650 = vunpack.c.l.b16 %v5995
      %v6651 = vunpack.c.l.b16 %v5996
      %v6652 = vunpack.c.l.b16 %v5997
      %v6653 = vunpack.c.l.b16 %v5998
      %v6654 = vunpack.c.l.b16 %v5999
      %v6655 = vunpack.c.l.b16 %v6000
      %v6656 = vunpack.c.l.b16 %v6001
      %v6657 = vunpack.c.l.b16 %v6002
      %v6658 = vunpack.c.l.b16 %v6003
      %v6659 = vunpack.c.l.b16 %v6004
      %v6660 = vunpack.c.l.b16 %v6005
      %v6661 = vunpack.c.l.b16 %v6006
      %v6662 = vunpack.c.l.b16 %v6007
      %v6663 = vpack.c.b16 %v6648, %v6647
      %v6664 = vpack.c.b16 %v6650, %v6649
      %v6665 = vpack.c.b16 %v6652, %v6651
      %v6666 = vpack.c.b16 %v6654, %v6653
      %v6667 = vpack.c.b16 %v6656, %v6655
      %v6668 = vpack.c.b16 %v6658, %v6657
      %v6669 = vpack.c.b16 %v6660, %v6659
      %v6670 = vpack.c.b16 %v6662, %v6661
      %6679 = vmatprep.subr.bf16.mxu0 0
      %6680 = vmatpush1.bf16.msra.mxu0 %v6663
      %6681 = vmatprep.subr.bf16.mxu0 0
      %6682 = vmatpush1.bf16.msra.mxu0 %v6664
      %6683 = vmatprep.subr.bf16.mxu0 0
      %6684 = vmatpush1.bf16.msra.mxu0 %v6665
      %6685 = vmatprep.subr.bf16.mxu0 0
      %6686 = vmatpush1.bf16.msra.mxu0 %v6666
      %6687 = vmatprep.subr.bf16.mxu0 0
      %6688 = vmatpush1.bf16.msra.mxu0 %v6667
      %6689 = vmatprep.subr.bf16.mxu0 0
      %6690 = vmatpush1.bf16.msra.mxu0 %v6668
      %6691 = vmatprep.subr.bf16.mxu0 0
      %6692 = vmatpush1.bf16.msra.mxu0 %v6669
      %6693 = vmatprep.subr.bf16.mxu0 0
      %6694 = vmatpush1.bf16.msra.mxu0 %v6670
      %6695 = vmatprep.subr.bf16.mxu0 0
      %6696 = vmatpush1.bf16.msra.mxu0 0
      %6697 = vmatprep.subr.bf16.mxu0 0
      %6698 = vmatpush1.bf16.msra.mxu0 0
      %6699 = vmatprep.subr.bf16.mxu0 0
      %6700 = vmatpush1.bf16.msra.mxu0 0
      %6701 = vmatprep.subr.bf16.mxu0 0
      %6702 = vmatpush1.bf16.msra.mxu0 0
      %6703 = vmatprep.subr.bf16.mxu0 0
      %6704 = vmatpush1.bf16.msra.mxu0 0
      %6705 = vmatprep.subr.bf16.mxu0 0
      %6706 = vmatpush1.bf16.msra.mxu0 0
      %6707 = vmatprep.subr.bf16.mxu0 0
      %6708 = vmatpush1.bf16.msra.mxu0 0
      %6709 = vmatprep.subr.bf16.mxu0 0
      %6710 = vmatpush1.bf16.msra.mxu0 0
      %6711 = vmatprep.mubr.bf16.mxu0 0
      %6712 = vmatmul.mubr.bf16.gmra.mrb[0].mxu0 %v5989
      %v6713 = vpop.f32.mrb[0].mxu0
      %v6714 = vadd.f32 %v6114, %v6713
      %v6715 = vpop.f32.mrb[0].mxu0
      %v6716 = vpop.f32.mrb[0].mxu0
      %v6717 = vadd.f32 %v6117, %v6716
      %v6718 = vpop.f32.mrb[0].mxu0
      %6719 = vmatprep.mubr.bf16.mxu0 0
      %6720 = vmatmul.mubr.bf16.gmra.mrb[0].mxu0 %v5990
      %v6721 = vpop.f32.mrb[0].mxu0
      %v6722 = vadd.f32 %v6122, %v6721
      %v6723 = vpop.f32.mrb[0].mxu0
      %v6724 = vpop.f32.mrb[0].mxu0
      %v6725 = vadd.f32 %v6125, %v6724
      %v6726 = vpop.f32.mrb[0].mxu0
      %6727 = vdwg.mxu0
      %v6744 = vunpack.c.l.b16 %v6135
      %v6745 = vunpack.c.l.b16 %v6136
      %v6746 = vunpack.c.l.b16 %v6137
      %v6747 = vunpack.c.l.b16 %v6138
      %v6748 = vunpack.c.l.b16 %v6139
      %v6749 = vunpack.c.l.b16 %v6140
      %v6750 = vunpack.c.l.b16 %v6141
      %v6751 = vunpack.c.l.b16 %v6142
      %v6752 = vunpack.c.l.b16 %v6143
      %v6753 = vunpack.c.l.b16 %v6144
      %v6754 = vunpack.c.l.b16 %v6145
      %v6755 = vunpack.c.l.b16 %v6146
      %v6756 = vunpack.c.l.b16 %v6147
      %v6757 = vunpack.c.l.b16 %v6148
      %v6758 = vunpack.c.l.b16 %v6149
      %v6759 = vunpack.c.l.b16 %v6150
      %v6760 = vpack.c.b16 %v6745, %v6744
      %v6761 = vpack.c.b16 %v6747, %v6746
      %v6762 = vpack.c.b16 %v6749, %v6748
      %v6763 = vpack.c.b16 %v6751, %v6750
      %v6764 = vpack.c.b16 %v6753, %v6752
      %v6765 = vpack.c.b16 %v6755, %v6754
      %v6766 = vpack.c.b16 %v6757, %v6756
      %v6767 = vpack.c.b16 %v6759, %v6758
      %6776 = vmatprep.subr.bf16.mxu0 0
      %6777 = vmatpush1.bf16.msra.mxu0 %v6760
      %6778 = vmatprep.subr.bf16.mxu0 0
      %6779 = vmatpush1.bf16.msra.mxu0 %v6761
      %6780 = vmatprep.subr.bf16.mxu0 0
      %6781 = vmatpush1.bf16.msra.mxu0 %v6762
      %6782 = vmatprep.subr.bf16.mxu0 0
      %6783 = vmatpush1.bf16.msra.mxu0 %v6763
      %6784 = vmatprep.subr.bf16.mxu0 0
      %6785 = vmatpush1.bf16.msra.mxu0 %v6764
      %6786 = vmatprep.subr.bf16.mxu0 0
      %6787 = vmatpush1.bf16.msra.mxu0 %v6765
      %6788 = vmatprep.subr.bf16.mxu0 0
      %6789 = vmatpush1.bf16.msra.mxu0 %v6766
      %6790 = vmatprep.subr.bf16.mxu0 0
      %6791 = vmatpush1.bf16.msra.mxu0 %v6767
      %6792 = vmatprep.subr.bf16.mxu0 0
      %6793 = vmatpush1.bf16.msra.mxu0 0
      %6794 = vmatprep.subr.bf16.mxu0 0
      %6795 = vmatpush1.bf16.msra.mxu0 0
      %6796 = vmatprep.subr.bf16.mxu0 0
      %6797 = vmatpush1.bf16.msra.mxu0 0
      %6798 = vmatprep.subr.bf16.mxu0 0
      %6799 = vmatpush1.bf16.msra.mxu0 0
      %6800 = vmatprep.subr.bf16.mxu0 0
      %6801 = vmatpush1.bf16.msra.mxu0 0
      %6802 = vmatprep.subr.bf16.mxu0 0
      %6803 = vmatpush1.bf16.msra.mxu0 0
      %6804 = vmatprep.subr.bf16.mxu0 0
      %6805 = vmatpush1.bf16.msra.mxu0 0
      %6806 = vmatprep.subr.bf16.mxu0 0
      %6807 = vmatpush1.bf16.msra.mxu0 0
      %6808 = vmatprep.mubr.bf16.mxu0 0
      %6809 = vmatmul.mubr.bf16.gmra.mrb[0].mxu0 %v6132
      %v6810 = vpop.f32.mrb[0].mxu0
      %v6811 = vadd.f32 %v6257, %v6810
      %v6812 = vpop.f32.mrb[0].mxu0
      %v6813 = vpop.f32.mrb[0].mxu0
      %v6814 = vadd.f32 %v6260, %v6813
      %v6815 = vpop.f32.mrb[0].mxu0
      %6816 = vmatprep.mubr.bf16.mxu0 0
      %6817 = vmatmul.mubr.bf16.gmra.mrb[0].mxu0 %v6133
      %v6818 = vpop.f32.mrb[0].mxu0
      %v6819 = vadd.f32 %v6265, %v6818
      %v6820 = vpop.f32.mrb[0].mxu0
      %v6821 = vpop.f32.mrb[0].mxu0
      %v6822 = vadd.f32 %v6268, %v6821
      %v6823 = vpop.f32.mrb[0].mxu0
      %6824 = vdwg.mxu0
      %v6841 = vunpack.c.l.b16 %v6278
      %v6842 = vunpack.c.l.b16 %v6279
      %v6843 = vunpack.c.l.b16 %v6280
      %v6844 = vunpack.c.l.b16 %v6281
      %v6845 = vunpack.c.l.b16 %v6282
      %v6846 = vunpack.c.l.b16 %v6283
      %v6847 = vunpack.c.l.b16 %v6284
      %v6848 = vunpack.c.l.b16 %v6285
      %v6849 = vunpack.c.l.b16 %v6286
      %v6850 = vunpack.c.l.b16 %v6287
      %v6851 = vunpack.c.l.b16 %v6288
      %v6852 = vunpack.c.l.b16 %v6289
      %v6853 = vunpack.c.l.b16 %v6290
      %v6854 = vunpack.c.l.b16 %v6291
      %v6855 = vunpack.c.l.b16 %v6292
      %v6856 = vunpack.c.l.b16 %v6293
      %v6857 = vpack.c.b16 %v6842, %v6841
      %v6858 = vpack.c.b16 %v6844, %v6843
      %v6859 = vpack.c.b16 %v6846, %v6845
      %v6860 = vpack.c.b16 %v6848, %v6847
      %v6861 = vpack.c.b16 %v6850, %v6849
      %v6862 = vpack.c.b16 %v6852, %v6851
      %v6863 = vpack.c.b16 %v6854, %v6853
      %v6864 = vpack.c.b16 %v6856, %v6855
      %6873 = vmatprep.subr.bf16.mxu0 0
      %6874 = vmatpush1.bf16.msra.mxu0 %v6857
      %6875 = vmatprep.subr.bf16.mxu0 0
      %6876 = vmatpush1.bf16.msra.mxu0 %v6858
      %6877 = vmatprep.subr.bf16.mxu0 0
      %6878 = vmatpush1.bf16.msra.mxu0 %v6859
      %6879 = vmatprep.subr.bf16.mxu0 0
      %6880 = vmatpush1.bf16.msra.mxu0 %v6860
      %6881 = vmatprep.subr.bf16.mxu0 0
      %6882 = vmatpush1.bf16.msra.mxu0 %v6861
      %6883 = vmatprep.subr.bf16.mxu0 0
      %6884 = vmatpush1.bf16.msra.mxu0 %v6862
      %6885 = vmatprep.subr.bf16.mxu0 0
      %6886 = vmatpush1.bf16.msra.mxu0 %v6863
      %6887 = vmatprep.subr.bf16.mxu0 0
      %6888 = vmatpush1.bf16.msra.mxu0 %v6864
      %6889 = vmatprep.subr.bf16.mxu0 0
      %6890 = vmatpush1.bf16.msra.mxu0 0
      %6891 = vmatprep.subr.bf16.mxu0 0
      %6892 = vmatpush1.bf16.msra.mxu0 0
      %6893 = vmatprep.subr.bf16.mxu0 0
      %6894 = vmatpush1.bf16.msra.mxu0 0
      %6895 = vmatprep.subr.bf16.mxu0 0
      %6896 = vmatpush1.bf16.msra.mxu0 0
      %6897 = vmatprep.subr.bf16.mxu0 0
      %6898 = vmatpush1.bf16.msra.mxu0 0
      %6899 = vmatprep.subr.bf16.mxu0 0
      %6900 = vmatpush1.bf16.msra.mxu0 0
      %6901 = vmatprep.subr.bf16.mxu0 0
      %6902 = vmatpush1.bf16.msra.mxu0 0
      %6903 = vmatprep.subr.bf16.mxu0 0
      %6904 = vmatpush1.bf16.msra.mxu0 0
      %6905 = vmatprep.mubr.bf16.mxu0 0
      %6906 = vmatmul.mubr.bf16.gmra.mrb[0].mxu0 %v6275
      %v6907 = vpop.f32.mrb[0].mxu0
      %v6908 = vadd.f32 %v6400, %v6907
      %v6909 = vpop.f32.mrb[0].mxu0
      %v6910 = vpop.f32.mrb[0].mxu0
      %v6911 = vadd.f32 %v6403, %v6910
      %v6912 = vpop.f32.mrb[0].mxu0
      %6913 = vmatprep.mubr.bf16.mxu0 0
      %6914 = vmatmul.mubr.bf16.gmra.mrb[0].mxu0 %v6276
      %v6915 = vpop.f32.mrb[0].mxu0
      %v6916 = vadd.f32 %v6408, %v6915
      %v6917 = vpop.f32.mrb[0].mxu0
      %v6918 = vpop.f32.mrb[0].mxu0
      %v6919 = vadd.f32 %v6411, %v6918
      %v6920 = vpop.f32.mrb[0].mxu0
      %6921 = vdwg.mxu0
      %v6922 = vadd.f32 %v6617, %v6714
      %v6923 = vadd.f32 %v6620, %v6717
      %v6924 = vadd.f32 %v6625, %v6722
      %v6925 = vadd.f32 %v6628, %v6725
      %v6926 = vadd.f32 %v6811, %v6908
      %v6927 = vadd.f32 %v6814, %v6911
      %v6928 = vadd.f32 %v6819, %v6916
      %v6929 = vadd.f32 %v6822, %v6919
      %v6930 = vadd.f32 %v6922, %v6926
      %v6931 = vadd.f32 %v6923, %v6927
      %v6932 = vadd.f32 %v6924, %v6928
      %v6933 = vadd.f32 %v6925, %v6929
      %v6934 = vadd.f32 %v6930, %v6520
      %v6935 = vadd.f32 %v6931, %v6523
      %v6936 = vadd.f32 %v6932, %v6528
      %v6937 = vadd.f32 %v6933, %v6531
      %s6938 = scalar_lea.vmem %s2, 2
      %v6939 = vld [vmem:[%s6938] sm:$0x1]
      %v6941 = vlaneseq
      %v6942 = vshrl.u32 %v6941, 7
      %v6943 = vsub.s32 0, %v6942
      %v6944 = vrot.slane %v6939, %v6943
      %v6946 = vadd.f32 %v6934, %v6944
      %v6947 = vadd.f32 %v6935, %v6944
      %v6948 = vadd.f32 %v6936, %v6944
      %v6949 = vadd.f32 %v6937, %v6944
      %v6950 = vmax.f32 %v6946, 0.0
      %v6951 = vmax.f32 %v6947, 0.0
      %v6952 = vmax.f32 %v6948, 0.0
      %v6953 = vmax.f32 %v6949, 0.0
      %6954 = vst [vmem:[#allocation4] sm:$0xff] %v6950
      %6955 = vst [vmem:[#allocation4 + $0x8] sm:$0xff] %v6951
      %6956 = vst [vmem:[#allocation4 + $0x10] sm:$0xff] %v6952
      %6957 = vst [vmem:[#allocation4 + $0x18] sm:$0xff] %v6953
      %v6958 = vld [vmem:[#allocation4] sm:$0x1]
      %v6959 = vld [vmem:[#allocation4 + $0x1] sm:$0x1]
      %v6960 = vmax.f32 %v6958, %v6959
      %v6961 = vld [vmem:[#allocation4 + $0x8] sm:$0x1]
      %v6962 = vld [vmem:[#allocation4 + $0x9] sm:$0x1]
      %v6963 = vmax.f32 %v6961, %v6962
      %v6964 = vmax.f32 %v6960, %v6963
      %v6965 = vld [vmem:[#allocation4 + $0x2] sm:$0x1]
      %v6966 = vld [vmem:[#allocation4 + $0x3] sm:$0x1]
      %v6967 = vmax.f32 %v6965, %v6966
      %v6968 = vld [vmem:[#allocation4 + $0xa] sm:$0x1]
      %v6969 = vld [vmem:[#allocation4 + $0xb] sm:$0x1]
      %v6970 = vmax.f32 %v6968, %v6969
      %v6971 = vmax.f32 %v6967, %v6970
      %v6972 = vld [vmem:[#allocation4 + $0x10] sm:$0x1]
      %v6973 = vld [vmem:[#allocation4 + $0x11] sm:$0x1]
      %v6974 = vmax.f32 %v6972, %v6973
      %v6975 = vld [vmem:[#allocation4 + $0x18] sm:$0x1]
      %v6976 = vld [vmem:[#allocation4 + $0x19] sm:$0x1]
      %v6977 = vmax.f32 %v6975, %v6976
      %v6978 = vmax.f32 %v6974, %v6977
      %v6979 = vld [vmem:[#allocation4 + $0x12] sm:$0x1]
      %v6980 = vld [vmem:[#allocation4 + $0x13] sm:$0x1]
      %v6981 = vmax.f32 %v6979, %v6980
      %v6982 = vld [vmem:[#allocation4 + $0x1a] sm:$0x1]
      %v6983 = vld [vmem:[#allocation4 + $0x1b] sm:$0x1]
      %v6984 = vmax.f32 %v6982, %v6983
      %v6985 = vmax.f32 %v6981, %v6984
      %v6986 = vlaneseq
      %v6987 = vshrl.u32 %v6986, 7
      %v6988 = vsub.s32 0, %v6987
      %v6989 = vrot.slane %v6964, %v6988
      %v6990 = vlaneseq
      %v6991 = vshrl.u32 %v6990, 7
      %v6992 = vsub.s32 0, %v6991
      %v6993 = vrot.slane %v6971, %v6992
      %v6994 = vlaneseq
      %v6995 = vshrl.u32 %v6994, 7
      %v6996 = vsub.s32 0, %v6995
      %v6997 = vrot.slane %v6978, %v6996
      %v6998 = vlaneseq
      %v6999 = vshrl.u32 %v6998, 7
      %v7000 = vsub.s32 0, %v6999
      %v7001 = vrot.slane %v6985, %v7000
      %v7002 = vpack.c.bf16 %v6989, %v6989
      %v7003 = vpack.c.bf16 %v6993, %v6993
      %v7004 = vpack.c.bf16 %v6997, %v6997
      %v7005 = vpack.c.bf16 %v7001, %v7001
      %v7006 = vld [vmem:[%s3] sm:$0xf]
      %v7007 = vld [vmem:[%s3 + $0x4] sm:$0xf]
      %v7008 = vld [vmem:[%s3 + $0x8] sm:$0xf]
      %v7009 = vld [vmem:[%s3 + $0xc] sm:$0xf]
      %v7010 = vld [vmem:[%s3 + $0x10] sm:$0xf]
      %v7011 = vld [vmem:[%s3 + $0x14] sm:$0xf]
      %v7012 = vld [vmem:[%s3 + $0x18] sm:$0xf]
      %v7013 = vld [vmem:[%s3 + $0x1c] sm:$0xf]
      %v7014 = vld [vmem:[%s3 + $0x20] sm:$0xf]
      %v7015 = vld [vmem:[%s3 + $0x24] sm:$0xf]
      %v7016 = vld [vmem:[%s3 + $0x28] sm:$0xf]
      %v7017 = vld [vmem:[%s3 + $0x2c] sm:$0xf]
      %v7018 = vld [vmem:[%s3 + $0x30] sm:$0xf]
      %v7019 = vld [vmem:[%s3 + $0x34] sm:$0xf]
      %v7020 = vld [vmem:[%s3 + $0x38] sm:$0xf]
      %v7021 = vld [vmem:[%s3 + $0x3c] sm:$0xf]
      %v7022 = vld [vmem:[%s3 + $0x40] sm:$0xf]
      %v7023 = vld [vmem:[%s3 + $0x44] sm:$0xf]
      %v7024 = vld [vmem:[%s3 + $0x48] sm:$0xf]
      %v7025 = vld [vmem:[%s3 + $0x4c] sm:$0xf]
      %v7026 = vld [vmem:[%s3 + $0x50] sm:$0xf]
      %v7027 = vld [vmem:[%s3 + $0x54] sm:$0xf]
      %v7028 = vld [vmem:[%s3 + $0x58] sm:$0xf]
      %v7029 = vld [vmem:[%s3 + $0x5c] sm:$0xf]
      %v7030 = vld [vmem:[%s3 + $0x60] sm:$0xf]
      %v7031 = vld [vmem:[%s3 + $0x64] sm:$0xf]
      %v7032 = vld [vmem:[%s3 + $0x68] sm:$0xf]
      %v7033 = vld [vmem:[%s3 + $0x6c] sm:$0xf]
      %v7034 = vld [vmem:[%s3 + $0x70] sm:$0xf]
      %v7035 = vld [vmem:[%s3 + $0x74] sm:$0xf]
      %v7036 = vld [vmem:[%s3 + $0x78] sm:$0xf]
      %v7037 = vld [vmem:[%s3 + $0x7c] sm:$0xf]
      %v7038 = vld [vmem:[%s3 + $0x80] sm:$0xf]
      %v7039 = vld [vmem:[%s3 + $0x84] sm:$0xf]
      %v7040 = vld [vmem:[%s3 + $0x88] sm:$0xf]
      %v7041 = vld [vmem:[%s3 + $0x8c] sm:$0xf]
      %v7042 = vld [vmem:[%s3 + $0x90] sm:$0xf]
      %v7043 = vld [vmem:[%s3 + $0x94] sm:$0xf]
      %v7044 = vld [vmem:[%s3 + $0x98] sm:$0xf]
      %v7045 = vld [vmem:[%s3 + $0x9c] sm:$0xf]
      %v7046 = vld [vmem:[%s3 + $0xa0] sm:$0xf]
      %v7047 = vld [vmem:[%s3 + $0xa4] sm:$0xf]
      %v7048 = vld [vmem:[%s3 + $0xa8] sm:$0xf]
      %v7049 = vld [vmem:[%s3 + $0xac] sm:$0xf]
      %v7050 = vld [vmem:[%s3 + $0xb0] sm:$0xf]
      %v7051 = vld [vmem:[%s3 + $0xb4] sm:$0xf]
      %v7052 = vld [vmem:[%s3 + $0xb8] sm:$0xf]
      %v7053 = vld [vmem:[%s3 + $0xbc] sm:$0xf]
      %v7054 = vld [vmem:[%s3 + $0xc0] sm:$0xf]
      %v7055 = vld [vmem:[%s3 + $0xc4] sm:$0xf]
      %v7056 = vld [vmem:[%s3 + $0xc8] sm:$0xf]
      %v7057 = vld [vmem:[%s3 + $0xcc] sm:$0xf]
      %v7058 = vld [vmem:[%s3 + $0xd0] sm:$0xf]
      %v7059 = vld [vmem:[%s3 + $0xd4] sm:$0xf]
      %v7060 = vld [vmem:[%s3 + $0xd8] sm:$0xf]
      %v7061 = vld [vmem:[%s3 + $0xdc] sm:$0xf]
      %v7062 = vld [vmem:[%s3 + $0xe0] sm:$0xf]
      %v7063 = vld [vmem:[%s3 + $0xe4] sm:$0xf]
      %v7064 = vld [vmem:[%s3 + $0xe8] sm:$0xf]
      %v7065 = vld [vmem:[%s3 + $0xec] sm:$0xf]
      %v7066 = vld [vmem:[%s3 + $0xf0] sm:$0xf]
      %v7067 = vld [vmem:[%s3 + $0xf4] sm:$0xf]
      %v7068 = vld [vmem:[%s3 + $0xf8] sm:$0xf]
      %v7069 = vld [vmem:[%s3 + $0xfc] sm:$0xf]
      %v7070 = vld [vmem:[%s4] sm:$0x1]
      %v7072 = vlaneseq
      %v7073 = vshrl.u32 %v7072, 7
      %v7074 = vsub.s32 0, %v7073
      %v7075 = vrot.slane %v7070, %v7074
      %v7141 = vunpack.c.l.b16 %v7006
      %v7142 = vunpack.c.l.b16 %v7007
      %v7143 = vunpack.c.l.b16 %v7008
      %v7144 = vunpack.c.l.b16 %v7009
      %v7145 = vunpack.c.l.b16 %v7010
      %v7146 = vunpack.c.l.b16 %v7011
      %v7147 = vunpack.c.l.b16 %v7012
      %v7148 = vunpack.c.l.b16 %v7013
      %v7149 = vunpack.c.l.b16 %v7014
      %v7150 = vunpack.c.l.b16 %v7015
      %v7151 = vunpack.c.l.b16 %v7016
      %v7152 = vunpack.c.l.b16 %v7017
      %v7153 = vunpack.c.l.b16 %v7018
      %v7154 = vunpack.c.l.b16 %v7019
      %v7155 = vunpack.c.l.b16 %v7020
      %v7156 = vunpack.c.l.b16 %v7021
      %v7157 = vunpack.c.l.b16 %v7022
      %v7158 = vunpack.c.l.b16 %v7023
      %v7159 = vunpack.c.l.b16 %v7024
      %v7160 = vunpack.c.l.b16 %v7025
      %v7161 = vunpack.c.l.b16 %v7026
      %v7162 = vunpack.c.l.b16 %v7027
      %v7163 = vunpack.c.l.b16 %v7028
      %v7164 = vunpack.c.l.b16 %v7029
      %v7165 = vunpack.c.l.b16 %v7030
      %v7166 = vunpack.c.l.b16 %v7031
      %v7167 = vunpack.c.l.b16 %v7032
      %v7168 = vunpack.c.l.b16 %v7033
      %v7169 = vunpack.c.l.b16 %v7034
      %v7170 = vunpack.c.l.b16 %v7035
      %v7171 = vunpack.c.l.b16 %v7036
      %v7172 = vunpack.c.l.b16 %v7037
      %v7173 = vunpack.c.l.b16 %v7038
      %v7174 = vunpack.c.l.b16 %v7039
      %v7175 = vunpack.c.l.b16 %v7040
      %v7176 = vunpack.c.l.b16 %v7041
      %v7177 = vunpack.c.l.b16 %v7042
      %v7178 = vunpack.c.l.b16 %v7043
      %v7179 = vunpack.c.l.b16 %v7044
      %v7180 = vunpack.c.l.b16 %v7045
      %v7181 = vunpack.c.l.b16 %v7046
      %v7182 = vunpack.c.l.b16 %v7047
      %v7183 = vunpack.c.l.b16 %v7048
      %v7184 = vunpack.c.l.b16 %v7049
      %v7185 = vunpack.c.l.b16 %v7050
      %v7186 = vunpack.c.l.b16 %v7051
      %v7187 = vunpack.c.l.b16 %v7052
      %v7188 = vunpack.c.l.b16 %v7053
      %v7189 = vunpack.c.l.b16 %v7054
      %v7190 = vunpack.c.l.b16 %v7055
      %v7191 = vunpack.c.l.b16 %v7056
      %v7192 = vunpack.c.l.b16 %v7057
      %v7193 = vunpack.c.l.b16 %v7058
      %v7194 = vunpack.c.l.b16 %v7059
      %v7195 = vunpack.c.l.b16 %v7060
      %v7196 = vunpack.c.l.b16 %v7061
      %v7197 = vunpack.c.l.b16 %v7062
      %v7198 = vunpack.c.l.b16 %v7063
      %v7199 = vunpack.c.l.b16 %v7064
      %v7200 = vunpack.c.l.b16 %v7065
      %v7201 = vunpack.c.l.b16 %v7066
      %v7202 = vunpack.c.l.b16 %v7067
      %v7203 = vunpack.c.l.b16 %v7068
      %v7204 = vunpack.c.l.b16 %v7069
      %v7205 = vpack.c.b16 %v7142, %v7141
      %v7206 = vpack.c.b16 %v7144, %v7143
      %v7207 = vpack.c.b16 %v7146, %v7145
      %v7208 = vpack.c.b16 %v7148, %v7147
      %v7209 = vpack.c.b16 %v7150, %v7149
      %v7210 = vpack.c.b16 %v7152, %v7151
      %v7211 = vpack.c.b16 %v7154, %v7153
      %v7212 = vpack.c.b16 %v7156, %v7155
      %v7213 = vpack.c.b16 %v7158, %v7157
      %v7214 = vpack.c.b16 %v7160, %v7159
      %v7215 = vpack.c.b16 %v7162, %v7161
      %v7216 = vpack.c.b16 %v7164, %v7163
      %v7217 = vpack.c.b16 %v7166, %v7165
      %v7218 = vpack.c.b16 %v7168, %v7167
      %v7219 = vpack.c.b16 %v7170, %v7169
      %v7220 = vpack.c.b16 %v7172, %v7171
      %v7221 = vpack.c.b16 %v7174, %v7173
      %v7222 = vpack.c.b16 %v7176, %v7175
      %v7223 = vpack.c.b16 %v7178, %v7177
      %v7224 = vpack.c.b16 %v7180, %v7179
      %v7225 = vpack.c.b16 %v7182, %v7181
      %v7226 = vpack.c.b16 %v7184, %v7183
      %v7227 = vpack.c.b16 %v7186, %v7185
      %v7228 = vpack.c.b16 %v7188, %v7187
      %v7229 = vpack.c.b16 %v7190, %v7189
      %v7230 = vpack.c.b16 %v7192, %v7191
      %v7231 = vpack.c.b16 %v7194, %v7193
      %v7232 = vpack.c.b16 %v7196, %v7195
      %v7233 = vpack.c.b16 %v7198, %v7197
      %v7234 = vpack.c.b16 %v7200, %v7199
      %v7235 = vpack.c.b16 %v7202, %v7201
      %v7236 = vpack.c.b16 %v7204, %v7203
      %7269 = vmatprep.subr.bf16.mxu0 0
      %7270 = vmatpush1.bf16.msra.mxu0 %v7205
      %7271 = vmatprep.subr.bf16.mxu0 0
      %7272 = vmatpush1.bf16.msra.mxu0 %v7206
      %7273 = vmatprep.subr.bf16.mxu0 0
      %7274 = vmatpush1.bf16.msra.mxu0 %v7207
      %7275 = vmatprep.subr.bf16.mxu0 0
      %7276 = vmatpush1.bf16.msra.mxu0 %v7208
      %7277 = vmatprep.subr.bf16.mxu0 0
      %7278 = vmatpush1.bf16.msra.mxu0 %v7209
      %7279 = vmatprep.subr.bf16.mxu0 0
      %7280 = vmatpush1.bf16.msra.mxu0 %v7210
      %7281 = vmatprep.subr.bf16.mxu0 0
      %7282 = vmatpush1.bf16.msra.mxu0 %v7211
      %7283 = vmatprep.subr.bf16.mxu0 0
      %7284 = vmatpush1.bf16.msra.mxu0 %v7212
      %7285 = vmatprep.subr.bf16.mxu0 0
      %7286 = vmatpush1.bf16.msra.mxu0 %v7213
      %7287 = vmatprep.subr.bf16.mxu0 0
      %7288 = vmatpush1.bf16.msra.mxu0 %v7214
      %7289 = vmatprep.subr.bf16.mxu0 0
      %7290 = vmatpush1.bf16.msra.mxu0 %v7215
      %7291 = vmatprep.subr.bf16.mxu0 0
      %7292 = vmatpush1.bf16.msra.mxu0 %v7216
      %7293 = vmatprep.subr.bf16.mxu0 0
      %7294 = vmatpush1.bf16.msra.mxu0 %v7217
      %7295 = vmatprep.subr.bf16.mxu0 0
      %7296 = vmatpush1.bf16.msra.mxu0 %v7218
      %7297 = vmatprep.subr.bf16.mxu0 0
      %7298 = vmatpush1.bf16.msra.mxu0 %v7219
      %7299 = vmatprep.subr.bf16.mxu0 0
      %7300 = vmatpush1.bf16.msra.mxu0 %v7220
      %7301 = vmatprep.mubr.bf16.mxu0 %v7003
      %7302 = vmatmul.mubr.bf16.gmra.mrb[0].mxu0 %v7002
      %v7303 = vpop.f32.mrb[0].mxu0
      %v7304 = vadd.f32 %v7075, %v7303
      %v7305 = vpop.f32.mrb[0].mxu0
      %v7306 = vpop.f32.mrb[0].mxu0
      %v7307 = vpop.f32.mrb[0].mxu0
      %7308 = vdwg.mxu0
      %7309 = vmatprep.subr.bf16.mxu0 0
      %7310 = vmatpush1.bf16.msra.mxu0 %v7221
      %7311 = vmatprep.subr.bf16.mxu0 0
      %7312 = vmatpush1.bf16.msra.mxu0 %v7222
      %7313 = vmatprep.subr.bf16.mxu0 0
      %7314 = vmatpush1.bf16.msra.mxu0 %v7223
      %7315 = vmatprep.subr.bf16.mxu0 0
      %7316 = vmatpush1.bf16.msra.mxu0 %v7224
      %7317 = vmatprep.subr.bf16.mxu0 0
      %7318 = vmatpush1.bf16.msra.mxu0 %v7225
      %7319 = vmatprep.subr.bf16.mxu0 0
      %7320 = vmatpush1.bf16.msra.mxu0 %v7226
      %7321 = vmatprep.subr.bf16.mxu0 0
      %7322 = vmatpush1.bf16.msra.mxu0 %v7227
      %7323 = vmatprep.subr.bf16.mxu0 0
      %7324 = vmatpush1.bf16.msra.mxu0 %v7228
      %7325 = vmatprep.subr.bf16.mxu0 0
      %7326 = vmatpush1.bf16.msra.mxu0 %v7229
      %7327 = vmatprep.subr.bf16.mxu0 0
      %7328 = vmatpush1.bf16.msra.mxu0 %v7230
      %7329 = vmatprep.subr.bf16.mxu0 0
      %7330 = vmatpush1.bf16.msra.mxu0 %v7231
      %7331 = vmatprep.subr.bf16.mxu0 0
      %7332 = vmatpush1.bf16.msra.mxu0 %v7232
      %7333 = vmatprep.subr.bf16.mxu0 0
      %7334 = vmatpush1.bf16.msra.mxu0 %v7233
      %7335 = vmatprep.subr.bf16.mxu0 0
      %7336 = vmatpush1.bf16.msra.mxu0 %v7234
      %7337 = vmatprep.subr.bf16.mxu0 0
      %7338 = vmatpush1.bf16.msra.mxu0 %v7235
      %7339 = vmatprep.subr.bf16.mxu0 0
      %7340 = vmatpush1.bf16.msra.mxu0 %v7236
      %7341 = vmatprep.mubr.bf16.mxu0 %v7005
      %7342 = vmatmul.mubr.bf16.gmra.mrb[0].mxu0 %v7004
      %v7343 = vpop.f32.mrb[0].mxu0
      %v7344 = vadd.f32 %v7304, %v7343
      %v7345 = vpop.f32.mrb[0].mxu0
      %v7346 = vpop.f32.mrb[0].mxu0
      %v7347 = vpop.f32.mrb[0].mxu0
      %7348 = vdwg.mxu0
      %v7349 = vmax.f32 %v7344, 0.0
      %v7350 = vpack.c.bf16 %v7349, %v7349
      %v7351 = vld [vmem:[%s5] sm:$0xf]
      %v7352 = vld [vmem:[%s5 + $0x4] sm:$0xf]
      %v7353 = vld [vmem:[%s5 + $0x8] sm:$0xf]
      %v7354 = vld [vmem:[%s5 + $0xc] sm:$0xf]
      %v7355 = vld [vmem:[%s5 + $0x10] sm:$0xf]
      %v7356 = vld [vmem:[%s5 + $0x14] sm:$0xf]
      %v7357 = vld [vmem:[%s5 + $0x18] sm:$0xf]
      %v7358 = vld [vmem:[%s5 + $0x1c] sm:$0xf]
      %v7359 = vld [vmem:[%s5 + $0x20] sm:$0xf]
      %v7360 = vld [vmem:[%s5 + $0x24] sm:$0xf]
      %v7361 = vld [vmem:[%s5 + $0x28] sm:$0xf]
      %v7362 = vld [vmem:[%s5 + $0x2c] sm:$0xf]
      %v7363 = vld [vmem:[%s5 + $0x30] sm:$0xf]
      %v7364 = vld [vmem:[%s5 + $0x34] sm:$0xf]
      %v7365 = vld [vmem:[%s5 + $0x38] sm:$0xf]
      %v7366 = vld [vmem:[%s5 + $0x3c] sm:$0xf]
      %v7367 = vld [vmem:[%s6] sm:$0x1]
      %v7369 = vlaneseq
      %v7370 = vshrl.u32 %v7369, 7
      %v7371 = vsub.s32 0, %v7370
      %v7372 = vrot.slane %v7367, %v7371
      %v7390 = vunpack.c.l.b16 %v7351
      %v7391 = vunpack.c.l.b16 %v7352
      %v7392 = vunpack.c.l.b16 %v7353
      %v7393 = vunpack.c.l.b16 %v7354
      %v7394 = vunpack.c.l.b16 %v7355
      %v7395 = vunpack.c.l.b16 %v7356
      %v7396 = vunpack.c.l.b16 %v7357
      %v7397 = vunpack.c.l.b16 %v7358
      %v7398 = vunpack.c.l.b16 %v7359
      %v7399 = vunpack.c.l.b16 %v7360
      %v7400 = vunpack.c.l.b16 %v7361
      %v7401 = vunpack.c.l.b16 %v7362
      %v7402 = vunpack.c.l.b16 %v7363
      %v7403 = vunpack.c.l.b16 %v7364
      %v7404 = vunpack.c.l.b16 %v7365
      %v7405 = vunpack.c.l.b16 %v7366
      %v7406 = vpack.c.b16 %v7391, %v7390
      %v7407 = vpack.c.b16 %v7393, %v7392
      %v7408 = vpack.c.b16 %v7395, %v7394
      %v7409 = vpack.c.b16 %v7397, %v7396
      %v7410 = vpack.c.b16 %v7399, %v7398
      %v7411 = vpack.c.b16 %v7401, %v7400
      %v7412 = vpack.c.b16 %v7403, %v7402
      %v7413 = vpack.c.b16 %v7405, %v7404
      %7422 = vmatprep.subr.bf16.mxu0 0
      %7423 = vmatpush1.bf16.msra.mxu0 %v7406
      %7424 = vmatprep.subr.bf16.mxu0 0
      %7425 = vmatpush1.bf16.msra.mxu0 %v7407
      %7426 = vmatprep.subr.bf16.mxu0 0
      %7427 = vmatpush1.bf16.msra.mxu0 %v7408
      %7428 = vmatprep.subr.bf16.mxu0 0
      %7429 = vmatpush1.bf16.msra.mxu0 %v7409
      %7430 = vmatprep.subr.bf16.mxu0 0
      %7431 = vmatpush1.bf16.msra.mxu0 %v7410
      %7432 = vmatprep.subr.bf16.mxu0 0
      %7433 = vmatpush1.bf16.msra.mxu0 %v7411
      %7434 = vmatprep.subr.bf16.mxu0 0
      %7435 = vmatpush1.bf16.msra.mxu0 %v7412
      %7436 = vmatprep.subr.bf16.mxu0 0
      %7437 = vmatpush1.bf16.msra.mxu0 %v7413
      %7438 = vmatprep.subr.bf16.mxu0 0
      %7439 = vmatpush1.bf16.msra.mxu0 0
      %7440 = vmatprep.subr.bf16.mxu0 0
      %7441 = vmatpush1.bf16.msra.mxu0 0
      %7442 = vmatprep.subr.bf16.mxu0 0
      %7443 = vmatpush1.bf16.msra.mxu0 0
      %7444 = vmatprep.subr.bf16.mxu0 0
      %7445 = vmatpush1.bf16.msra.mxu0 0
      %7446 = vmatprep.subr.bf16.mxu0 0
      %7447 = vmatpush1.bf16.msra.mxu0 0
      %7448 = vmatprep.subr.bf16.mxu0 0
      %7449 = vmatpush1.bf16.msra.mxu0 0
      %7450 = vmatprep.subr.bf16.mxu0 0
      %7451 = vmatpush1.bf16.msra.mxu0 0
      %7452 = vmatprep.subr.bf16.mxu0 0
      %7453 = vmatpush1.bf16.msra.mxu0 0
      %7454 = vmatprep.mubr.bf16.mxu0 0
      %7455 = vmatmul.mubr.bf16.gmra.mrb[0].mxu0 %v7350
      %v7456 = vpop.f32.mrb[0].mxu0
      %v7457 = vadd.f32 %v7372, %v7456
      %v7458 = vpop.f32.mrb[0].mxu0
      %v7459 = vpop.f32.mrb[0].mxu0
      %v7460 = vpop.f32.mrb[0].mxu0
      %7461 = vdwg.mxu0
      %7462 = vst [vmem:[%s276] sm:$0xff] %v7457
      %p7463 = scmp.lt.s32.totalorder %s18, 1
      %s7464 = scalar_select %p7463, %s18, 1
      %s7465 = smul.addr %s7464, 8
      %s7466 = scalar_lea.vmem %s7, %s7465
      // Predicated region
      $region49: #{_lambda_.1} parent=47 // pred_check
        %p7467 = pneg %p188
      $region50: #{_lambda_.1} parent=47 // pred_check_branch
        %7469 = sbr.rel (%p7467) target = $region52
      $region51: #{_lambda_.1} parent=47 // pred_region
        _
      $region52: #{_lambda_.1} parent=47 // pred_fallthru
        _
    $region48: #{_lambda_.1} parent=5 // pred_fallthru
      _
    %p7470 = scmp.le.s32.totalorder 2, %s13
    // Predicated region
    $region53: #{_lambda_.1} parent=5 // pred_check
      %p7471 = pneg %p7470
    $region54: #{_lambda_.1} parent=5 // pred_check_branch
      %7473 = sbr.rel (%p7471) target = $region56
    $region55: #{_lambda_.1} parent=5 // pred_region
      %s7474 = ssub.s32 %s13, 2
      // Predicated region
      $region57: #{_lambda_.1} parent=55 // pred_check
        %p7475 = pneg %p194
      $region58: #{_lambda_.1} parent=55 // pred_check_branch
        %7477 = sbr.rel (%p7475) target = $region60
      $region59: #{_lambda_.1} parent=55 // pred_region
        %p7478 = scmp.lt.s32.totalorder %s19, 1
        %s7479 = scalar_select %p7478, %s19, 1
        %s7480 = smul.addr %s7479, 8
        %s7481 = scalar_lea.vmem %s7, %s7480
      $region60: #{_lambda_.1} parent=55 // pred_fallthru
        _
    $region56: #{_lambda_.1} parent=5 // pred_fallthru
      _
  $region6: #{_lambda_.1} parent=0 // loop_footer
    %s17 = sadd.s32 1, %s13
  $region7: #{_lambda_.1} parent=0 // loop_footer_branch
    %12 = sbr.rel target = $region3
  $region8: #{_lambda_.1} parent=0 // loop_exit
    _

</llo_original>
